<compile_context>
chip_gen: v7x
topology: tpu7x:2x2x1
jax: 0.10.0
libtpu: 0.0.40
codegen_flags: <defaults>
</compile_context>

<pallas_src>
import functools

import jax
import jax.numpy as jnp
from jax.experimental import pallas as pl
from jax.experimental.pallas import tpu as pltpu


def _round_up(v, m):
    return ((v + m - 1) // m) * m


def _default_lc_dtype():
    """bf16 LC math on chips with bf16 VPU/EUP (v6e/v7x); f32 elsewhere (v5e-)."""
    try:
        kind = jax.devices()[0].device_kind.lower()
    except Exception:
        return jnp.float32
    if any(tag in kind for tag in ("v6", "v7", "7x")):
        return jnp.bfloat16
    return jnp.float32


def _notears_kernel(x_ref, w1_ref, b1_ref, *rest, lc_dtype):
    """rest = (lc_w_0, lc_b_0, ..., lc_w_{L-1}, lc_b_{L-1}, out_ref).

    Layout invariant: hidden activations are kept as a list of per-hidden-unit
    blocks, blocks[p][n, j] = h[n, j, p]; the feature axis j lives on lanes
    (lane-dense, dp = round_up(d, 128)).  lc_w_l is [m_out*m_in, dp] with row
    r = q*m_in + p holding W_l[j, p, q] at lane j; lc_b_l is [m_out, dp].
    """
    out_ref = rest[-1]
    lc_refs = rest[:-1]
    num_lc = len(lc_refs) // 2
    dp = out_ref.shape[-1]
    m1 = w1_ref.shape[1] // dp

    # fc1_pos(x) - fc1_neg(x): one folded bf16 MXU matmul, f32 accumulation.
    h_all = jnp.dot(x_ref[...], w1_ref[...],
                    preferred_element_type=jnp.float32) + b1_ref[...]

    # Lane-aligned per-hidden-unit blocks; no concatenate anywhere downstream.
    blocks = [h_all[:, p * dp:(p + 1) * dp] for p in range(m1)]

    for l in range(num_lc):
        w_ref = lc_refs[2 * l]           # [m_out*m_in, dp], lc_dtype
        b_ref = lc_refs[2 * l + 1]       # [m_out, dp],      lc_dtype
        m_out = b_ref.shape[0]
        m_in = w_ref.shape[0] // m_out
        assert m_in == len(blocks)

        acc = [None] * m_out
        for p in range(m_in):
            # Fused sigmoid on exactly one block, tanh form, in lc_dtype.
            sp = 0.5 * jnp.tanh(blocks[p].astype(lc_dtype) * 0.5) + 0.5
            for q in range(m_out):
                row = q * m_in + p
                term = sp * w_ref[row:row + 1, :]     # [1,dp] row, used once
                acc[q] = term if p == 0 else acc[q] + term
        blocks = [acc[q] + b_ref[q:q + 1, :] for q in range(m_out)]

    assert len(blocks) == 1              # dims[-1] == 1
    out_ref[...] = blocks[0].astype(jnp.float32)


def notears_mlp_forward(x, params, *, block_n=256, lc_dtype=None):
    """Pallas forward. x: [n, d] float32 -> [n, d] float32."""
    dims = params["dims"]
    d, m1 = dims[0], dims[1]
    n = x.shape[0]
    if lc_dtype is None:
        lc_dtype = _default_lc_dtype()

    dp = _round_up(d, 128)               # lane-dense feature axis
    pad_d = dp - d

    # ---- XLA-side glue (traced once): fold pos/neg, permute fc1 so that the
    # kernel output column index is p*dp + j (feature j on lanes), pad to dp.
    w1 = params["w1_pos"] - params["w1_neg"]                       # [d*m1, d]
    b1 = params["b1_pos"] - params["b1_neg"]                       # [d*m1]
    w1r = jnp.transpose(w1.reshape(d, m1, d), (1, 0, 2))           # [p, j, i]
    w1r = jnp.pad(w1r, ((0, 0), (0, pad_d), (0, pad_d)))           # [m1,dp,dp]
    w1p = w1r.reshape(m1 * dp, dp).T.astype(jnp.bfloat16)          # [dp, m1*dp]
    b1r = jnp.pad(b1.reshape(d, m1).T, ((0, 0), (0, pad_d)))       # [m1, dp]
    b1p = b1r.reshape(1, m1 * dp).astype(jnp.float32)

    lc_inputs = []
    max_m_out = 1
    for w, b in zip(params["lc_weights"], params["lc_biases"]):
        d_, m_in, m_out = w.shape
        max_m_out = max(max_m_out, m_out)
        wq = jnp.pad(jnp.transpose(w, (2, 1, 0)), ((0, 0), (0, 0), (0, pad_d)))
        lc_inputs.append(wq.reshape(m_out * m_in, dp).astype(lc_dtype))
        lc_inputs.append(jnp.pad(b.T, ((0, 0), (0, pad_d))).astype(lc_dtype))

    # ---- Batch tiling: 16-row multiples (bf16 sublane packing); keep an even
    # grid of >= 2 steps when the batch is big enough (v7x dual TensorCore).
    n16 = _round_up(max(n, 1), 16)
    tile_n = min(_round_up(block_n, 16), n16)
    half = _round_up(pl.cdiv(n16, 2), 16)
    if n16 >= 256 and tile_n > half:
        tile_n = half
    steps = pl.cdiv(n16, tile_n)
    if steps > 1 and steps % 2 == 1:
        steps += 1
    n_pad = steps * tile_n

    xp = jnp.pad(x.astype(jnp.bfloat16), ((0, n_pad - n), (0, pad_d)))

    grid = (steps,)
    in_specs = [
        pl.BlockSpec((tile_n, dp), lambda i: (i, 0)),              # x tile
        pl.BlockSpec((dp, m1 * dp), lambda i: (0, 0)),             # w1 resident
        pl.BlockSpec((1, m1 * dp), lambda i: (0, 0)),              # b1 resident
    ]
    for a in lc_inputs:
        in_specs.append(pl.BlockSpec(a.shape, lambda i: (0, 0)))   # resident
    out_specs = pl.BlockSpec((tile_n, dp), lambda i: (i, 0))

    # ---- VMEM budget from actual buffer sizes (assume default 2x buffering).
    def nbytes(a):
        return int(a.size) * jnp.dtype(a.dtype).itemsize
    lc_itemsize = jnp.dtype(lc_dtype).itemsize
    weight_bytes = nbytes(w1p) + nbytes(b1p) + sum(nbytes(a) for a in lc_inputs)
    tile_bytes = tile_n * dp * (2 + 4)                  # x tile bf16 + out f32
    scratch_bytes = (tile_n * m1 * dp * 4               # fc1 activation slab
                     + (2 + max_m_out) * tile_n * dp * max(4, lc_itemsize))
    vmem_need = 2 * (weight_bytes + tile_bytes) + scratch_bytes
    vmem_limit = int(min(max(2 * vmem_need + (8 << 20), 32 << 20), 64 << 20))

    # ---- Cost estimate for XLA scheduling around the custom call.
    flops = 2 * n_pad * dp * (dp * m1)
    transcendentals = 0
    for w in params["lc_weights"]:
        _, m_in, m_out = w.shape
        flops += 2 * n_pad * dp * m_in * m_out
        transcendentals += n_pad * dp * m_in
    bytes_accessed = (nbytes(xp) + n_pad * dp * 4 + nbytes(w1p) + nbytes(b1p)
                      + sum(nbytes(a) for a in lc_inputs))

    out = pl.pallas_call(
        functools.partial(_notears_kernel, lc_dtype=lc_dtype),
        out_shape=jax.ShapeDtypeStruct((n_pad, dp), jnp.float32),
        grid=grid,
        in_specs=in_specs,
        out_specs=out_specs,
        compiler_params=pltpu.CompilerParams(
            dimension_semantics=("parallel",),       # v7x: shard batch over TCs
            vmem_limit_bytes=vmem_limit),
        cost_estimate=pl.CostEstimate(flops=flops,
                                      transcendentals=transcendentals,
                                      bytes_accessed=bytes_accessed),
    )(xp, b1p if False else w1p, b1p, *lc_inputs) if False else pl.pallas_call(
        functools.partial(_notears_kernel, lc_dtype=lc_dtype),
        out_shape=jax.ShapeDtypeStruct((n_pad, dp), jnp.float32),
        grid=grid,
        in_specs=in_specs,
        out_specs=out_specs,
        compiler_params=pltpu.CompilerParams(
            dimension_semantics=("parallel",),
            vmem_limit_bytes=vmem_limit),
        cost_estimate=pl.CostEstimate(flops=flops,
                                      transcendentals=transcendentals,
                                      bytes_accessed=bytes_accessed),
    )(xp, w1p, b1p, *lc_inputs)
    # TODO(synk): scaling path for d >= 512 on v7x (64 MiB VMEM): second grid
    # axis over the fc1 output columns (w1 block [dp, tile_c]) and
    # single-buffered resident weights; not needed at these dims.
    return out[:n, :d]


def notears_mlp_reference(x, params):
    """Pure-JAX f32 reference mirroring the PyTorch forward."""
    d, m1 = params["dims"][0], params["dims"][1]
    hp = jax.lax.Precision.HIGHEST
    w1 = params["w1_pos"] - params["w1_neg"]
    b1 = params["b1_pos"] - params["b1_neg"]
    h = jnp.dot(x, w1.T, precision=hp) + b1
    h = h.reshape(-1, d, m1)
    for w, b in zip(params["lc_weights"], params["lc_biases"]):
        h = jax.nn.sigmoid(h)
        h = jnp.einsum("njp,jpq->njq", h, w, precision=hp) + b[None]
    return h[..., 0]


def notears_kernel_numerics_ref(x, params, lc_dtype):
    """Pure-JAX emulation of the kernel's numerics: bf16 fc1 operands with f32
    MXU accumulation, tanh-form sigmoid and LC math in lc_dtype with the same
    sequential accumulation order over m_in."""
    d, m1 = params["dims"][0], params["dims"][1]
    n = x.shape[0]
    w1 = (params["w1_pos"] - params["w1_neg"]).astype(jnp.bfloat16)
    b1 = (params["b1_pos"] - params["b1_neg"]).astype(jnp.float32)
    h = jnp.dot(x.astype(jnp.bfloat16), w1.T,
                preferred_element_type=jnp.float32) + b1
    h = h.reshape(n, d, m1)                                        # [n, j, p]
    for w, b in zip(params["lc_weights"], params["lc_biases"]):
        _, m_in, m_out = w.shape
        wq = w.astype(lc_dtype)
        bq = b.astype(lc_dtype)
        s = 0.5 * jnp.tanh(h.astype(lc_dtype) * 0.5) + 0.5
        acc = None
        for p in range(m_in):
            term = s[:, :, p:p + 1] * wq[None, :, p, :]            # [n,d,m_out]
            acc = term if p == 0 else acc + term
        h = acc + bq[None]
    return h[..., 0].astype(jnp.float32)


def init_params(key, dims):
    """Deterministic synthetic init (PyTorch-Linear-style uniform bounds)."""
    assert len(dims) >= 2 and dims[-1] == 1
    d = dims[0]
    keys = jax.random.split(key, 4 + 2 * (len(dims) - 2))
    bound1 = 1.0 / jnp.sqrt(d)
    w1_pos = jax.random.uniform(keys[0], (d * dims[1], d), jnp.float32,
                                -bound1, bound1)
    w1_neg = jax.random.uniform(keys[1], (d * dims[1], d), jnp.float32,
                                -bound1, bound1)
    b1_pos = jax.random.uniform(keys[2], (d * dims[1],), jnp.float32,
                                -bound1, bound1)
    b1_neg = jax.random.uniform(keys[3], (d * dims[1],), jnp.float32,
                                -bound1, bound1)
    lc_weights, lc_biases = [], []
    for l in range(len(dims) - 2):
        m_in, m_out = dims[l + 1], dims[l + 2]
        k = 1.0 / jnp.sqrt(m_in)
        lc_weights.append(jax.random.uniform(keys[4 + 2 * l], (d, m_in, m_out),
                                             jnp.float32, -k, k))
        lc_biases.append(jax.random.uniform(keys[5 + 2 * l], (d, m_out),
                                            jnp.float32, -k, k))
    return {
        "dims": dims,
        "w1_pos": w1_pos, "w1_neg": w1_neg,
        "b1_pos": b1_pos, "b1_neg": b1_neg,
        "lc_weights": lc_weights, "lc_biases": lc_biases,
    }
    # TODO(synk): h_func's trace_expm (matrix exponential of the d x d
    # adjacency) and the l2/l1 regularizers are training-time terms, not part
    # of forward; not implemented here.


if __name__ == "__main__":
    # dims = [d, m1, m2, 1]; d = 128 keeps the feature axis lane-dense and
    # batch = 256 gives an even 2-step batch grid (tile_n = 128).
    dims = [128, 16, 8, 1]
    batch = 256

    key = jax.random.PRNGKey(0)
    k_x, k_p = jax.random.split(key)
    params = init_params(k_p, dims)
    x = jax.random.normal(k_x, (batch, dims[0]), jnp.float32)

    lc_dtype = _default_lc_dtype()
    out = jax.block_until_ready(notears_mlp_forward(x, params, lc_dtype=lc_dtype))
    assert out.shape == (batch, dims[0])
    assert bool(jnp.all(jnp.isfinite(out)))

    ref_match = notears_kernel_numerics_ref(x, params, lc_dtype)  # same precision
    ref_f32 = notears_mlp_reference(x, params)                    # full f32
    err_match = float(jnp.max(jnp.abs(out - ref_match)))
    err_f32 = float(jnp.max(jnp.abs(out - ref_f32)))
    assert err_match < 1e-2, f"mismatch vs matched-precision ref: {err_match}"
    assert err_f32 < 5e-2, f"mismatch vs f32 ref: {err_f32}"
    print("KERNEL_OK")
</pallas_src>

<mosaic_0001>
module attributes {stable_mosaic.version = 11 : i64} {
  func.func @_notears_kernel(%arg0: i32, %arg1: memref<128x128xbf16, #tpu.memory_space<vmem>>, %arg2: memref<128x2048xbf16, #tpu.memory_space<vmem>>, %arg3: memref<1x2048xf32, #tpu.memory_space<vmem>>, %arg4: memref<128x128xf32, #tpu.memory_space<vmem>>, %arg5: memref<8x128xf32, #tpu.memory_space<vmem>>, %arg6: memref<8x128xf32, #tpu.memory_space<vmem>>, %arg7: memref<1x128xf32, #tpu.memory_space<vmem>>, %arg8: memref<128x128xf32, #tpu.memory_space<vmem>>) attributes {dimension_semantics = [#tpu.dimension_semantics<parallel>], iteration_bounds = array<i64: 2>, scalar_prefetch = 0 : i64, scratch_operands = 0 : i64, tpu.core_type = #tpu.core_type<tc>, window_params = [{transform_indices = @transform_0, window_bounds = array<i64: 128, 128>}, {pipeline_mode = #tpu.pipeline_mode<synchronous>, transform_indices = @transform_1, window_bounds = array<i64: 128, 2048>}, {pipeline_mode = #tpu.pipeline_mode<synchronous>, transform_indices = @transform_2, window_bounds = array<i64: 1, 2048>}, {pipeline_mode = #tpu.pipeline_mode<synchronous>, transform_indices = @transform_3, window_bounds = array<i64: 128, 128>}, {pipeline_mode = #tpu.pipeline_mode<synchronous>, transform_indices = @transform_4, window_bounds = array<i64: 8, 128>}, {pipeline_mode = #tpu.pipeline_mode<synchronous>, transform_indices = @transform_5, window_bounds = array<i64: 8, 128>}, {pipeline_mode = #tpu.pipeline_mode<synchronous>, transform_indices = @transform_6, window_bounds = array<i64: 1, 128>}, {transform_indices = @transform_7, window_bounds = array<i64: 128, 128>}]} {
    %c0 = arith.constant 0 : index
    %c0_0 = arith.constant 0 : index
    %0 = vector.load %arg1[%c0, %c0_0] : memref<128x128xbf16, #tpu.memory_space<vmem>>, vector<128x128xbf16>
    %c0_1 = arith.constant 0 : index
    %c0_2 = arith.constant 0 : index
    %1 = vector.load %arg2[%c0_1, %c0_2] : memref<128x2048xbf16, #tpu.memory_space<vmem>>, vector<128x2048xbf16>
    %cst = arith.constant dense<0.000000e+00> : vector<128x2048xf32>
    %2 = tpu.matmul %0, %1, %cst {dimension_numbers = #tpu.dot_dimension_numbers<[1], [0], [0], [1], [0, 0, 1, 1], [], []>} : vector<128x128xbf16>, vector<128x2048xbf16>, vector<128x2048xf32> -> vector<128x2048xf32>
    %c0_3 = arith.constant 0 : index
    %c0_4 = arith.constant 0 : index
    %3 = vector.load %arg3[%c0_3, %c0_4] : memref<1x2048xf32, #tpu.memory_space<vmem>>, vector<1x2048xf32>
    %4 = vector.broadcast %3 : vector<1x2048xf32> to vector<128x2048xf32>
    %5 = arith.addf %2, %4 : vector<128x2048xf32>
    %6 = vector.extract_strided_slice %5 {offsets = [0, 0], sizes = [128, 128], strides = [1, 1]} : vector<128x2048xf32> to vector<128x128xf32>
    %7 = vector.extract_strided_slice %5 {offsets = [0, 128], sizes = [128, 128], strides = [1, 1]} : vector<128x2048xf32> to vector<128x128xf32>
    %8 = vector.extract_strided_slice %5 {offsets = [0, 256], sizes = [128, 128], strides = [1, 1]} : vector<128x2048xf32> to vector<128x128xf32>
    %9 = vector.extract_strided_slice %5 {offsets = [0, 384], sizes = [128, 128], strides = [1, 1]} : vector<128x2048xf32> to vector<128x128xf32>
    %10 = vector.extract_strided_slice %5 {offsets = [0, 512], sizes = [128, 128], strides = [1, 1]} : vector<128x2048xf32> to vector<128x128xf32>
    %11 = vector.extract_strided_slice %5 {offsets = [0, 640], sizes = [128, 128], strides = [1, 1]} : vector<128x2048xf32> to vector<128x128xf32>
    %12 = vector.extract_strided_slice %5 {offsets = [0, 768], sizes = [128, 128], strides = [1, 1]} : vector<128x2048xf32> to vector<128x128xf32>
    %13 = vector.extract_strided_slice %5 {offsets = [0, 896], sizes = [128, 128], strides = [1, 1]} : vector<128x2048xf32> to vector<128x128xf32>
    %14 = vector.extract_strided_slice %5 {offsets = [0, 1024], sizes = [128, 128], strides = [1, 1]} : vector<128x2048xf32> to vector<128x128xf32>
    %15 = vector.extract_strided_slice %5 {offsets = [0, 1152], sizes = [128, 128], strides = [1, 1]} : vector<128x2048xf32> to vector<128x128xf32>
    %16 = vector.extract_strided_slice %5 {offsets = [0, 1280], sizes = [128, 128], strides = [1, 1]} : vector<128x2048xf32> to vector<128x128xf32>
    %17 = vector.extract_strided_slice %5 {offsets = [0, 1408], sizes = [128, 128], strides = [1, 1]} : vector<128x2048xf32> to vector<128x128xf32>
    %18 = vector.extract_strided_slice %5 {offsets = [0, 1536], sizes = [128, 128], strides = [1, 1]} : vector<128x2048xf32> to vector<128x128xf32>
    %19 = vector.extract_strided_slice %5 {offsets = [0, 1664], sizes = [128, 128], strides = [1, 1]} : vector<128x2048xf32> to vector<128x128xf32>
    %20 = vector.extract_strided_slice %5 {offsets = [0, 1792], sizes = [128, 128], strides = [1, 1]} : vector<128x2048xf32> to vector<128x128xf32>
    %21 = vector.extract_strided_slice %5 {offsets = [0, 1920], sizes = [128, 128], strides = [1, 1]} : vector<128x2048xf32> to vector<128x128xf32>
    %cst_5 = arith.constant 5.000000e-01 : f32
    %22 = vector.broadcast %cst_5 : f32 to vector<128x128xf32>
    %23 = arith.mulf %6, %22 : vector<128x128xf32>
    %24 = math.tanh %23 : vector<128x128xf32>
    %cst_6 = arith.constant 5.000000e-01 : f32
    %25 = vector.broadcast %cst_6 : f32 to vector<128x128xf32>
    %26 = arith.mulf %25, %24 : vector<128x128xf32>
    %cst_7 = arith.constant 5.000000e-01 : f32
    %27 = vector.broadcast %cst_7 : f32 to vector<128x128xf32>
    %28 = arith.addf %26, %27 : vector<128x128xf32>
    %c0_8 = arith.constant 0 : index
    %c0_9 = arith.constant 0 : index
    %29 = vector.load %arg4[%c0_8, %c0_9] : memref<128x128xf32, #tpu.memory_space<vmem>>, vector<1x128xf32>
    %30 = vector.broadcast %29 : vector<1x128xf32> to vector<128x128xf32>
    %31 = arith.mulf %28, %30 : vector<128x128xf32>
    %c16 = arith.constant 16 : index
    %c0_10 = arith.constant 0 : index
    %32 = vector.load %arg4[%c16, %c0_10] : memref<128x128xf32, #tpu.memory_space<vmem>>, vector<1x128xf32>
    %33 = vector.broadcast %32 : vector<1x128xf32> to vector<128x128xf32>
    %34 = arith.mulf %28, %33 : vector<128x128xf32>
    %c32 = arith.constant 32 : index
    %c0_11 = arith.constant 0 : index
    %35 = vector.load %arg4[%c32, %c0_11] : memref<128x128xf32, #tpu.memory_space<vmem>>, vector<1x128xf32>
    %36 = vector.broadcast %35 : vector<1x128xf32> to vector<128x128xf32>
    %37 = arith.mulf %28, %36 : vector<128x128xf32>
    %c48 = arith.constant 48 : index
    %c0_12 = arith.constant 0 : index
    %38 = vector.load %arg4[%c48, %c0_12] : memref<128x128xf32, #tpu.memory_space<vmem>>, vector<1x128xf32>
    %39 = vector.broadcast %38 : vector<1x128xf32> to vector<128x128xf32>
    %40 = arith.mulf %28, %39 : vector<128x128xf32>
    %c64 = arith.constant 64 : index
    %c0_13 = arith.constant 0 : index
    %41 = vector.load %arg4[%c64, %c0_13] : memref<128x128xf32, #tpu.memory_space<vmem>>, vector<1x128xf32>
    %42 = vector.broadcast %41 : vector<1x128xf32> to vector<128x128xf32>
    %43 = arith.mulf %28, %42 : vector<128x128xf32>
    %c80 = arith.constant 80 : index
    %c0_14 = arith.constant 0 : index
    %44 = vector.load %arg4[%c80, %c0_14] : memref<128x128xf32, #tpu.memory_space<vmem>>, vector<1x128xf32>
    %45 = vector.broadcast %44 : vector<1x128xf32> to vector<128x128xf32>
    %46 = arith.mulf %28, %45 : vector<128x128xf32>
    %c96 = arith.constant 96 : index
    %c0_15 = arith.constant 0 : index
    %47 = vector.load %arg4[%c96, %c0_15] : memref<128x128xf32, #tpu.memory_space<vmem>>, vector<1x128xf32>
    %48 = vector.broadcast %47 : vector<1x128xf32> to vector<128x128xf32>
    %49 = arith.mulf %28, %48 : vector<128x128xf32>
    %c112 = arith.constant 112 : index
    %c0_16 = arith.constant 0 : index
    %50 = vector.load %arg4[%c112, %c0_16] : memref<128x128xf32, #tpu.memory_space<vmem>>, vector<1x128xf32>
    %51 = vector.broadcast %50 : vector<1x128xf32> to vector<128x128xf32>
    %52 = arith.mulf %28, %51 : vector<128x128xf32>
    %cst_17 = arith.constant 5.000000e-01 : f32
    %53 = vector.broadcast %cst_17 : f32 to vector<128x128xf32>
    %54 = arith.mulf %7, %53 : vector<128x128xf32>
    %55 = math.tanh %54 : vector<128x128xf32>
    %cst_18 = arith.constant 5.000000e-01 : f32
    %56 = vector.broadcast %cst_18 : f32 to vector<128x128xf32>
    %57 = arith.mulf %56, %55 : vector<128x128xf32>
    %cst_19 = arith.constant 5.000000e-01 : f32
    %58 = vector.broadcast %cst_19 : f32 to vector<128x128xf32>
    %59 = arith.addf %57, %58 : vector<128x128xf32>
    %c1 = arith.constant 1 : index
    %c0_20 = arith.constant 0 : index
    %60 = vector.load %arg4[%c1, %c0_20] : memref<128x128xf32, #tpu.memory_space<vmem>>, vector<1x128xf32>
    %61 = vector.broadcast %60 : vector<1x128xf32> to vector<128x128xf32>
    %62 = arith.mulf %59, %61 : vector<128x128xf32>
    %63 = arith.addf %31, %62 : vector<128x128xf32>
    %c17 = arith.constant 17 : index
    %c0_21 = arith.constant 0 : index
    %64 = vector.load %arg4[%c17, %c0_21] : memref<128x128xf32, #tpu.memory_space<vmem>>, vector<1x128xf32>
    %65 = vector.broadcast %64 : vector<1x128xf32> to vector<128x128xf32>
    %66 = arith.mulf %59, %65 : vector<128x128xf32>
    %67 = arith.addf %34, %66 : vector<128x128xf32>
    %c33 = arith.constant 33 : index
    %c0_22 = arith.constant 0 : index
    %68 = vector.load %arg4[%c33, %c0_22] : memref<128x128xf32, #tpu.memory_space<vmem>>, vector<1x128xf32>
    %69 = vector.broadcast %68 : vector<1x128xf32> to vector<128x128xf32>
    %70 = arith.mulf %59, %69 : vector<128x128xf32>
    %71 = arith.addf %37, %70 : vector<128x128xf32>
    %c49 = arith.constant 49 : index
    %c0_23 = arith.constant 0 : index
    %72 = vector.load %arg4[%c49, %c0_23] : memref<128x128xf32, #tpu.memory_space<vmem>>, vector<1x128xf32>
    %73 = vector.broadcast %72 : vector<1x128xf32> to vector<128x128xf32>
    %74 = arith.mulf %59, %73 : vector<128x128xf32>
    %75 = arith.addf %40, %74 : vector<128x128xf32>
    %c65 = arith.constant 65 : index
    %c0_24 = arith.constant 0 : index
    %76 = vector.load %arg4[%c65, %c0_24] : memref<128x128xf32, #tpu.memory_space<vmem>>, vector<1x128xf32>
    %77 = vector.broadcast %76 : vector<1x128xf32> to vector<128x128xf32>
    %78 = arith.mulf %59, %77 : vector<128x128xf32>
    %79 = arith.addf %43, %78 : vector<128x128xf32>
    %c81 = arith.constant 81 : index
    %c0_25 = arith.constant 0 : index
    %80 = vector.load %arg4[%c81, %c0_25] : memref<128x128xf32, #tpu.memory_space<vmem>>, vector<1x128xf32>
    %81 = vector.broadcast %80 : vector<1x128xf32> to vector<128x128xf32>
    %82 = arith.mulf %59, %81 : vector<128x128xf32>
    %83 = arith.addf %46, %82 : vector<128x128xf32>
    %c97 = arith.constant 97 : index
    %c0_26 = arith.constant 0 : index
    %84 = vector.load %arg4[%c97, %c0_26] : memref<128x128xf32, #tpu.memory_space<vmem>>, vector<1x128xf32>
    %85 = vector.broadcast %84 : vector<1x128xf32> to vector<128x128xf32>
    %86 = arith.mulf %59, %85 : vector<128x128xf32>
    %87 = arith.addf %49, %86 : vector<128x128xf32>
    %c113 = arith.constant 113 : index
    %c0_27 = arith.constant 0 : index
    %88 = vector.load %arg4[%c113, %c0_27] : memref<128x128xf32, #tpu.memory_space<vmem>>, vector<1x128xf32>
    %89 = vector.broadcast %88 : vector<1x128xf32> to vector<128x128xf32>
    %90 = arith.mulf %59, %89 : vector<128x128xf32>
    %91 = arith.addf %52, %90 : vector<128x128xf32>
    %cst_28 = arith.constant 5.000000e-01 : f32
    %92 = vector.broadcast %cst_28 : f32 to vector<128x128xf32>
    %93 = arith.mulf %8, %92 : vector<128x128xf32>
    %94 = math.tanh %93 : vector<128x128xf32>
    %cst_29 = arith.constant 5.000000e-01 : f32
    %95 = vector.broadcast %cst_29 : f32 to vector<128x128xf32>
    %96 = arith.mulf %95, %94 : vector<128x128xf32>
    %cst_30 = arith.constant 5.000000e-01 : f32
    %97 = vector.broadcast %cst_30 : f32 to vector<128x128xf32>
    %98 = arith.addf %96, %97 : vector<128x128xf32>
    %c2 = arith.constant 2 : index
    %c0_31 = arith.constant 0 : index
    %99 = vector.load %arg4[%c2, %c0_31] : memref<128x128xf32, #tpu.memory_space<vmem>>, vector<1x128xf32>
    %100 = vector.broadcast %99 : vector<1x128xf32> to vector<128x128xf32>
    %101 = arith.mulf %98, %100 : vector<128x128xf32>
    %102 = arith.addf %63, %101 : vector<128x128xf32>
    %c18 = arith.constant 18 : index
    %c0_32 = arith.constant 0 : index
    %103 = vector.load %arg4[%c18, %c0_32] : memref<128x128xf32, #tpu.memory_space<vmem>>, vector<1x128xf32>
    %104 = vector.broadcast %103 : vector<1x128xf32> to vector<128x128xf32>
    %105 = arith.mulf %98, %104 : vector<128x128xf32>
    %106 = arith.addf %67, %105 : vector<128x128xf32>
    %c34 = arith.constant 34 : index
    %c0_33 = arith.constant 0 : index
    %107 = vector.load %arg4[%c34, %c0_33] : memref<128x128xf32, #tpu.memory_space<vmem>>, vector<1x128xf32>
    %108 = vector.broadcast %107 : vector<1x128xf32> to vector<128x128xf32>
    %109 = arith.mulf %98, %108 : vector<128x128xf32>
    %110 = arith.addf %71, %109 : vector<128x128xf32>
    %c50 = arith.constant 50 : index
    %c0_34 = arith.constant 0 : index
    %111 = vector.load %arg4[%c50, %c0_34] : memref<128x128xf32, #tpu.memory_space<vmem>>, vector<1x128xf32>
    %112 = vector.broadcast %111 : vector<1x128xf32> to vector<128x128xf32>
    %113 = arith.mulf %98, %112 : vector<128x128xf32>
    %114 = arith.addf %75, %113 : vector<128x128xf32>
    %c66 = arith.constant 66 : index
    %c0_35 = arith.constant 0 : index
    %115 = vector.load %arg4[%c66, %c0_35] : memref<128x128xf32, #tpu.memory_space<vmem>>, vector<1x128xf32>
    %116 = vector.broadcast %115 : vector<1x128xf32> to vector<128x128xf32>
    %117 = arith.mulf %98, %116 : vector<128x128xf32>
    %118 = arith.addf %79, %117 : vector<128x128xf32>
    %c82 = arith.constant 82 : index
    %c0_36 = arith.constant 0 : index
    %119 = vector.load %arg4[%c82, %c0_36] : memref<128x128xf32, #tpu.memory_space<vmem>>, vector<1x128xf32>
    %120 = vector.broadcast %119 : vector<1x128xf32> to vector<128x128xf32>
    %121 = arith.mulf %98, %120 : vector<128x128xf32>
    %122 = arith.addf %83, %121 : vector<128x128xf32>
    %c98 = arith.constant 98 : index
    %c0_37 = arith.constant 0 : index
    %123 = vector.load %arg4[%c98, %c0_37] : memref<128x128xf32, #tpu.memory_space<vmem>>, vector<1x128xf32>
    %124 = vector.broadcast %123 : vector<1x128xf32> to vector<128x128xf32>
    %125 = arith.mulf %98, %124 : vector<128x128xf32>
    %126 = arith.addf %87, %125 : vector<128x128xf32>
    %c114 = arith.constant 114 : index
    %c0_38 = arith.constant 0 : index
    %127 = vector.load %arg4[%c114, %c0_38] : memref<128x128xf32, #tpu.memory_space<vmem>>, vector<1x128xf32>
    %128 = vector.broadcast %127 : vector<1x128xf32> to vector<128x128xf32>
    %129 = arith.mulf %98, %128 : vector<128x128xf32>
    %130 = arith.addf %91, %129 : vector<128x128xf32>
    %cst_39 = arith.constant 5.000000e-01 : f32
    %131 = vector.broadcast %cst_39 : f32 to vector<128x128xf32>
    %132 = arith.mulf %9, %131 : vector<128x128xf32>
    %133 = math.tanh %132 : vector<128x128xf32>
    %cst_40 = arith.constant 5.000000e-01 : f32
    %134 = vector.broadcast %cst_40 : f32 to vector<128x128xf32>
    %135 = arith.mulf %134, %133 : vector<128x128xf32>
    %cst_41 = arith.constant 5.000000e-01 : f32
    %136 = vector.broadcast %cst_41 : f32 to vector<128x128xf32>
    %137 = arith.addf %135, %136 : vector<128x128xf32>
    %c3 = arith.constant 3 : index
    %c0_42 = arith.constant 0 : index
    %138 = vector.load %arg4[%c3, %c0_42] : memref<128x128xf32, #tpu.memory_space<vmem>>, vector<1x128xf32>
    %139 = vector.broadcast %138 : vector<1x128xf32> to vector<128x128xf32>
    %140 = arith.mulf %137, %139 : vector<128x128xf32>
    %141 = arith.addf %102, %140 : vector<128x128xf32>
    %c19 = arith.constant 19 : index
    %c0_43 = arith.constant 0 : index
    %142 = vector.load %arg4[%c19, %c0_43] : memref<128x128xf32, #tpu.memory_space<vmem>>, vector<1x128xf32>
    %143 = vector.broadcast %142 : vector<1x128xf32> to vector<128x128xf32>
    %144 = arith.mulf %137, %143 : vector<128x128xf32>
    %145 = arith.addf %106, %144 : vector<128x128xf32>
    %c35 = arith.constant 35 : index
    %c0_44 = arith.constant 0 : index
    %146 = vector.load %arg4[%c35, %c0_44] : memref<128x128xf32, #tpu.memory_space<vmem>>, vector<1x128xf32>
    %147 = vector.broadcast %146 : vector<1x128xf32> to vector<128x128xf32>
    %148 = arith.mulf %137, %147 : vector<128x128xf32>
    %149 = arith.addf %110, %148 : vector<128x128xf32>
    %c51 = arith.constant 51 : index
    %c0_45 = arith.constant 0 : index
    %150 = vector.load %arg4[%c51, %c0_45] : memref<128x128xf32, #tpu.memory_space<vmem>>, vector<1x128xf32>
    %151 = vector.broadcast %150 : vector<1x128xf32> to vector<128x128xf32>
    %152 = arith.mulf %137, %151 : vector<128x128xf32>
    %153 = arith.addf %114, %152 : vector<128x128xf32>
    %c67 = arith.constant 67 : index
    %c0_46 = arith.constant 0 : index
    %154 = vector.load %arg4[%c67, %c0_46] : memref<128x128xf32, #tpu.memory_space<vmem>>, vector<1x128xf32>
    %155 = vector.broadcast %154 : vector<1x128xf32> to vector<128x128xf32>
    %156 = arith.mulf %137, %155 : vector<128x128xf32>
    %157 = arith.addf %118, %156 : vector<128x128xf32>
    %c83 = arith.constant 83 : index
    %c0_47 = arith.constant 0 : index
    %158 = vector.load %arg4[%c83, %c0_47] : memref<128x128xf32, #tpu.memory_space<vmem>>, vector<1x128xf32>
    %159 = vector.broadcast %158 : vector<1x128xf32> to vector<128x128xf32>
    %160 = arith.mulf %137, %159 : vector<128x128xf32>
    %161 = arith.addf %122, %160 : vector<128x128xf32>
    %c99 = arith.constant 99 : index
    %c0_48 = arith.constant 0 : index
    %162 = vector.load %arg4[%c99, %c0_48] : memref<128x128xf32, #tpu.memory_space<vmem>>, vector<1x128xf32>
    %163 = vector.broadcast %162 : vector<1x128xf32> to vector<128x128xf32>
    %164 = arith.mulf %137, %163 : vector<128x128xf32>
    %165 = arith.addf %126, %164 : vector<128x128xf32>
    %c115 = arith.constant 115 : index
    %c0_49 = arith.constant 0 : index
    %166 = vector.load %arg4[%c115, %c0_49] : memref<128x128xf32, #tpu.memory_space<vmem>>, vector<1x128xf32>
    %167 = vector.broadcast %166 : vector<1x128xf32> to vector<128x128xf32>
    %168 = arith.mulf %137, %167 : vector<128x128xf32>
    %169 = arith.addf %130, %168 : vector<128x128xf32>
    %cst_50 = arith.constant 5.000000e-01 : f32
    %170 = vector.broadcast %cst_50 : f32 to vector<128x128xf32>
    %171 = arith.mulf %10, %170 : vector<128x128xf32>
    %172 = math.tanh %171 : vector<128x128xf32>
    %cst_51 = arith.constant 5.000000e-01 : f32
    %173 = vector.broadcast %cst_51 : f32 to vector<128x128xf32>
    %174 = arith.mulf %173, %172 : vector<128x128xf32>
    %cst_52 = arith.constant 5.000000e-01 : f32
    %175 = vector.broadcast %cst_52 : f32 to vector<128x128xf32>
    %176 = arith.addf %174, %175 : vector<128x128xf32>
    %c4 = arith.constant 4 : index
    %c0_53 = arith.constant 0 : index
    %177 = vector.load %arg4[%c4, %c0_53] : memref<128x128xf32, #tpu.memory_space<vmem>>, vector<1x128xf32>
    %178 = vector.broadcast %177 : vector<1x128xf32> to vector<128x128xf32>
    %179 = arith.mulf %176, %178 : vector<128x128xf32>
    %180 = arith.addf %141, %179 : vector<128x128xf32>
    %c20 = arith.constant 20 : index
    %c0_54 = arith.constant 0 : index
    %181 = vector.load %arg4[%c20, %c0_54] : memref<128x128xf32, #tpu.memory_space<vmem>>, vector<1x128xf32>
    %182 = vector.broadcast %181 : vector<1x128xf32> to vector<128x128xf32>
    %183 = arith.mulf %176, %182 : vector<128x128xf32>
    %184 = arith.addf %145, %183 : vector<128x128xf32>
    %c36 = arith.constant 36 : index
    %c0_55 = arith.constant 0 : index
    %185 = vector.load %arg4[%c36, %c0_55] : memref<128x128xf32, #tpu.memory_space<vmem>>, vector<1x128xf32>
    %186 = vector.broadcast %185 : vector<1x128xf32> to vector<128x128xf32>
    %187 = arith.mulf %176, %186 : vector<128x128xf32>
    %188 = arith.addf %149, %187 : vector<128x128xf32>
    %c52 = arith.constant 52 : index
    %c0_56 = arith.constant 0 : index
    %189 = vector.load %arg4[%c52, %c0_56] : memref<128x128xf32, #tpu.memory_space<vmem>>, vector<1x128xf32>
    %190 = vector.broadcast %189 : vector<1x128xf32> to vector<128x128xf32>
    %191 = arith.mulf %176, %190 : vector<128x128xf32>
    %192 = arith.addf %153, %191 : vector<128x128xf32>
    %c68 = arith.constant 68 : index
    %c0_57 = arith.constant 0 : index
    %193 = vector.load %arg4[%c68, %c0_57] : memref<128x128xf32, #tpu.memory_space<vmem>>, vector<1x128xf32>
    %194 = vector.broadcast %193 : vector<1x128xf32> to vector<128x128xf32>
    %195 = arith.mulf %176, %194 : vector<128x128xf32>
    %196 = arith.addf %157, %195 : vector<128x128xf32>
    %c84 = arith.constant 84 : index
    %c0_58 = arith.constant 0 : index
    %197 = vector.load %arg4[%c84, %c0_58] : memref<128x128xf32, #tpu.memory_space<vmem>>, vector<1x128xf32>
    %198 = vector.broadcast %197 : vector<1x128xf32> to vector<128x128xf32>
    %199 = arith.mulf %176, %198 : vector<128x128xf32>
    %200 = arith.addf %161, %199 : vector<128x128xf32>
    %c100 = arith.constant 100 : index
    %c0_59 = arith.constant 0 : index
    %201 = vector.load %arg4[%c100, %c0_59] : memref<128x128xf32, #tpu.memory_space<vmem>>, vector<1x128xf32>
    %202 = vector.broadcast %201 : vector<1x128xf32> to vector<128x128xf32>
    %203 = arith.mulf %176, %202 : vector<128x128xf32>
    %204 = arith.addf %165, %203 : vector<128x128xf32>
    %c116 = arith.constant 116 : index
    %c0_60 = arith.constant 0 : index
    %205 = vector.load %arg4[%c116, %c0_60] : memref<128x128xf32, #tpu.memory_space<vmem>>, vector<1x128xf32>
    %206 = vector.broadcast %205 : vector<1x128xf32> to vector<128x128xf32>
    %207 = arith.mulf %176, %206 : vector<128x128xf32>
    %208 = arith.addf %169, %207 : vector<128x128xf32>
    %cst_61 = arith.constant 5.000000e-01 : f32
    %209 = vector.broadcast %cst_61 : f32 to vector<128x128xf32>
    %210 = arith.mulf %11, %209 : vector<128x128xf32>
    %211 = math.tanh %210 : vector<128x128xf32>
    %cst_62 = arith.constant 5.000000e-01 : f32
    %212 = vector.broadcast %cst_62 : f32 to vector<128x128xf32>
    %213 = arith.mulf %212, %211 : vector<128x128xf32>
    %cst_63 = arith.constant 5.000000e-01 : f32
    %214 = vector.broadcast %cst_63 : f32 to vector<128x128xf32>
    %215 = arith.addf %213, %214 : vector<128x128xf32>
    %c5 = arith.constant 5 : index
    %c0_64 = arith.constant 0 : index
    %216 = vector.load %arg4[%c5, %c0_64] : memref<128x128xf32, #tpu.memory_space<vmem>>, vector<1x128xf32>
    %217 = vector.broadcast %216 : vector<1x128xf32> to vector<128x128xf32>
    %218 = arith.mulf %215, %217 : vector<128x128xf32>
    %219 = arith.addf %180, %218 : vector<128x128xf32>
    %c21 = arith.constant 21 : index
    %c0_65 = arith.constant 0 : index
    %220 = vector.load %arg4[%c21, %c0_65] : memref<128x128xf32, #tpu.memory_space<vmem>>, vector<1x128xf32>
    %221 = vector.broadcast %220 : vector<1x128xf32> to vector<128x128xf32>
    %222 = arith.mulf %215, %221 : vector<128x128xf32>
    %223 = arith.addf %184, %222 : vector<128x128xf32>
    %c37 = arith.constant 37 : index
    %c0_66 = arith.constant 0 : index
    %224 = vector.load %arg4[%c37, %c0_66] : memref<128x128xf32, #tpu.memory_space<vmem>>, vector<1x128xf32>
    %225 = vector.broadcast %224 : vector<1x128xf32> to vector<128x128xf32>
    %226 = arith.mulf %215, %225 : vector<128x128xf32>
    %227 = arith.addf %188, %226 : vector<128x128xf32>
    %c53 = arith.constant 53 : index
    %c0_67 = arith.constant 0 : index
    %228 = vector.load %arg4[%c53, %c0_67] : memref<128x128xf32, #tpu.memory_space<vmem>>, vector<1x128xf32>
    %229 = vector.broadcast %228 : vector<1x128xf32> to vector<128x128xf32>
    %230 = arith.mulf %215, %229 : vector<128x128xf32>
    %231 = arith.addf %192, %230 : vector<128x128xf32>
    %c69 = arith.constant 69 : index
    %c0_68 = arith.constant 0 : index
    %232 = vector.load %arg4[%c69, %c0_68] : memref<128x128xf32, #tpu.memory_space<vmem>>, vector<1x128xf32>
    %233 = vector.broadcast %232 : vector<1x128xf32> to vector<128x128xf32>
    %234 = arith.mulf %215, %233 : vector<128x128xf32>
    %235 = arith.addf %196, %234 : vector<128x128xf32>
    %c85 = arith.constant 85 : index
    %c0_69 = arith.constant 0 : index
    %236 = vector.load %arg4[%c85, %c0_69] : memref<128x128xf32, #tpu.memory_space<vmem>>, vector<1x128xf32>
    %237 = vector.broadcast %236 : vector<1x128xf32> to vector<128x128xf32>
    %238 = arith.mulf %215, %237 : vector<128x128xf32>
    %239 = arith.addf %200, %238 : vector<128x128xf32>
    %c101 = arith.constant 101 : index
    %c0_70 = arith.constant 0 : index
    %240 = vector.load %arg4[%c101, %c0_70] : memref<128x128xf32, #tpu.memory_space<vmem>>, vector<1x128xf32>
    %241 = vector.broadcast %240 : vector<1x128xf32> to vector<128x128xf32>
    %242 = arith.mulf %215, %241 : vector<128x128xf32>
    %243 = arith.addf %204, %242 : vector<128x128xf32>
    %c117 = arith.constant 117 : index
    %c0_71 = arith.constant 0 : index
    %244 = vector.load %arg4[%c117, %c0_71] : memref<128x128xf32, #tpu.memory_space<vmem>>, vector<1x128xf32>
    %245 = vector.broadcast %244 : vector<1x128xf32> to vector<128x128xf32>
    %246 = arith.mulf %215, %245 : vector<128x128xf32>
    %247 = arith.addf %208, %246 : vector<128x128xf32>
    %cst_72 = arith.constant 5.000000e-01 : f32
    %248 = vector.broadcast %cst_72 : f32 to vector<128x128xf32>
    %249 = arith.mulf %12, %248 : vector<128x128xf32>
    %250 = math.tanh %249 : vector<128x128xf32>
    %cst_73 = arith.constant 5.000000e-01 : f32
    %251 = vector.broadcast %cst_73 : f32 to vector<128x128xf32>
    %252 = arith.mulf %251, %250 : vector<128x128xf32>
    %cst_74 = arith.constant 5.000000e-01 : f32
    %253 = vector.broadcast %cst_74 : f32 to vector<128x128xf32>
    %254 = arith.addf %252, %253 : vector<128x128xf32>
    %c6 = arith.constant 6 : index
    %c0_75 = arith.constant 0 : index
    %255 = vector.load %arg4[%c6, %c0_75] : memref<128x128xf32, #tpu.memory_space<vmem>>, vector<1x128xf32>
    %256 = vector.broadcast %255 : vector<1x128xf32> to vector<128x128xf32>
    %257 = arith.mulf %254, %256 : vector<128x128xf32>
    %258 = arith.addf %219, %257 : vector<128x128xf32>
    %c22 = arith.constant 22 : index
    %c0_76 = arith.constant 0 : index
    %259 = vector.load %arg4[%c22, %c0_76] : memref<128x128xf32, #tpu.memory_space<vmem>>, vector<1x128xf32>
    %260 = vector.broadcast %259 : vector<1x128xf32> to vector<128x128xf32>
    %261 = arith.mulf %254, %260 : vector<128x128xf32>
    %262 = arith.addf %223, %261 : vector<128x128xf32>
    %c38 = arith.constant 38 : index
    %c0_77 = arith.constant 0 : index
    %263 = vector.load %arg4[%c38, %c0_77] : memref<128x128xf32, #tpu.memory_space<vmem>>, vector<1x128xf32>
    %264 = vector.broadcast %263 : vector<1x128xf32> to vector<128x128xf32>
    %265 = arith.mulf %254, %264 : vector<128x128xf32>
    %266 = arith.addf %227, %265 : vector<128x128xf32>
    %c54 = arith.constant 54 : index
    %c0_78 = arith.constant 0 : index
    %267 = vector.load %arg4[%c54, %c0_78] : memref<128x128xf32, #tpu.memory_space<vmem>>, vector<1x128xf32>
    %268 = vector.broadcast %267 : vector<1x128xf32> to vector<128x128xf32>
    %269 = arith.mulf %254, %268 : vector<128x128xf32>
    %270 = arith.addf %231, %269 : vector<128x128xf32>
    %c70 = arith.constant 70 : index
    %c0_79 = arith.constant 0 : index
    %271 = vector.load %arg4[%c70, %c0_79] : memref<128x128xf32, #tpu.memory_space<vmem>>, vector<1x128xf32>
    %272 = vector.broadcast %271 : vector<1x128xf32> to vector<128x128xf32>
    %273 = arith.mulf %254, %272 : vector<128x128xf32>
    %274 = arith.addf %235, %273 : vector<128x128xf32>
    %c86 = arith.constant 86 : index
    %c0_80 = arith.constant 0 : index
    %275 = vector.load %arg4[%c86, %c0_80] : memref<128x128xf32, #tpu.memory_space<vmem>>, vector<1x128xf32>
    %276 = vector.broadcast %275 : vector<1x128xf32> to vector<128x128xf32>
    %277 = arith.mulf %254, %276 : vector<128x128xf32>
    %278 = arith.addf %239, %277 : vector<128x128xf32>
    %c102 = arith.constant 102 : index
    %c0_81 = arith.constant 0 : index
    %279 = vector.load %arg4[%c102, %c0_81] : memref<128x128xf32, #tpu.memory_space<vmem>>, vector<1x128xf32>
    %280 = vector.broadcast %279 : vector<1x128xf32> to vector<128x128xf32>
    %281 = arith.mulf %254, %280 : vector<128x128xf32>
    %282 = arith.addf %243, %281 : vector<128x128xf32>
    %c118 = arith.constant 118 : index
    %c0_82 = arith.constant 0 : index
    %283 = vector.load %arg4[%c118, %c0_82] : memref<128x128xf32, #tpu.memory_space<vmem>>, vector<1x128xf32>
    %284 = vector.broadcast %283 : vector<1x128xf32> to vector<128x128xf32>
    %285 = arith.mulf %254, %284 : vector<128x128xf32>
    %286 = arith.addf %247, %285 : vector<128x128xf32>
    %cst_83 = arith.constant 5.000000e-01 : f32
    %287 = vector.broadcast %cst_83 : f32 to vector<128x128xf32>
    %288 = arith.mulf %13, %287 : vector<128x128xf32>
    %289 = math.tanh %288 : vector<128x128xf32>
    %cst_84 = arith.constant 5.000000e-01 : f32
    %290 = vector.broadcast %cst_84 : f32 to vector<128x128xf32>
    %291 = arith.mulf %290, %289 : vector<128x128xf32>
    %cst_85 = arith.constant 5.000000e-01 : f32
    %292 = vector.broadcast %cst_85 : f32 to vector<128x128xf32>
    %293 = arith.addf %291, %292 : vector<128x128xf32>
    %c7 = arith.constant 7 : index
    %c0_86 = arith.constant 0 : index
    %294 = vector.load %arg4[%c7, %c0_86] : memref<128x128xf32, #tpu.memory_space<vmem>>, vector<1x128xf32>
    %295 = vector.broadcast %294 : vector<1x128xf32> to vector<128x128xf32>
    %296 = arith.mulf %293, %295 : vector<128x128xf32>
    %297 = arith.addf %258, %296 : vector<128x128xf32>
    %c23 = arith.constant 23 : index
    %c0_87 = arith.constant 0 : index
    %298 = vector.load %arg4[%c23, %c0_87] : memref<128x128xf32, #tpu.memory_space<vmem>>, vector<1x128xf32>
    %299 = vector.broadcast %298 : vector<1x128xf32> to vector<128x128xf32>
    %300 = arith.mulf %293, %299 : vector<128x128xf32>
    %301 = arith.addf %262, %300 : vector<128x128xf32>
    %c39 = arith.constant 39 : index
    %c0_88 = arith.constant 0 : index
    %302 = vector.load %arg4[%c39, %c0_88] : memref<128x128xf32, #tpu.memory_space<vmem>>, vector<1x128xf32>
    %303 = vector.broadcast %302 : vector<1x128xf32> to vector<128x128xf32>
    %304 = arith.mulf %293, %303 : vector<128x128xf32>
    %305 = arith.addf %266, %304 : vector<128x128xf32>
    %c55 = arith.constant 55 : index
    %c0_89 = arith.constant 0 : index
    %306 = vector.load %arg4[%c55, %c0_89] : memref<128x128xf32, #tpu.memory_space<vmem>>, vector<1x128xf32>
    %307 = vector.broadcast %306 : vector<1x128xf32> to vector<128x128xf32>
    %308 = arith.mulf %293, %307 : vector<128x128xf32>
    %309 = arith.addf %270, %308 : vector<128x128xf32>
    %c71 = arith.constant 71 : index
    %c0_90 = arith.constant 0 : index
    %310 = vector.load %arg4[%c71, %c0_90] : memref<128x128xf32, #tpu.memory_space<vmem>>, vector<1x128xf32>
    %311 = vector.broadcast %310 : vector<1x128xf32> to vector<128x128xf32>
    %312 = arith.mulf %293, %311 : vector<128x128xf32>
    %313 = arith.addf %274, %312 : vector<128x128xf32>
    %c87 = arith.constant 87 : index
    %c0_91 = arith.constant 0 : index
    %314 = vector.load %arg4[%c87, %c0_91] : memref<128x128xf32, #tpu.memory_space<vmem>>, vector<1x128xf32>
    %315 = vector.broadcast %314 : vector<1x128xf32> to vector<128x128xf32>
    %316 = arith.mulf %293, %315 : vector<128x128xf32>
    %317 = arith.addf %278, %316 : vector<128x128xf32>
    %c103 = arith.constant 103 : index
    %c0_92 = arith.constant 0 : index
    %318 = vector.load %arg4[%c103, %c0_92] : memref<128x128xf32, #tpu.memory_space<vmem>>, vector<1x128xf32>
    %319 = vector.broadcast %318 : vector<1x128xf32> to vector<128x128xf32>
    %320 = arith.mulf %293, %319 : vector<128x128xf32>
    %321 = arith.addf %282, %320 : vector<128x128xf32>
    %c119 = arith.constant 119 : index
    %c0_93 = arith.constant 0 : index
    %322 = vector.load %arg4[%c119, %c0_93] : memref<128x128xf32, #tpu.memory_space<vmem>>, vector<1x128xf32>
    %323 = vector.broadcast %322 : vector<1x128xf32> to vector<128x128xf32>
    %324 = arith.mulf %293, %323 : vector<128x128xf32>
    %325 = arith.addf %286, %324 : vector<128x128xf32>
    %cst_94 = arith.constant 5.000000e-01 : f32
    %326 = vector.broadcast %cst_94 : f32 to vector<128x128xf32>
    %327 = arith.mulf %14, %326 : vector<128x128xf32>
    %328 = math.tanh %327 : vector<128x128xf32>
    %cst_95 = arith.constant 5.000000e-01 : f32
    %329 = vector.broadcast %cst_95 : f32 to vector<128x128xf32>
    %330 = arith.mulf %329, %328 : vector<128x128xf32>
    %cst_96 = arith.constant 5.000000e-01 : f32
    %331 = vector.broadcast %cst_96 : f32 to vector<128x128xf32>
    %332 = arith.addf %330, %331 : vector<128x128xf32>
    %c8 = arith.constant 8 : index
    %c0_97 = arith.constant 0 : index
    %333 = vector.load %arg4[%c8, %c0_97] : memref<128x128xf32, #tpu.memory_space<vmem>>, vector<1x128xf32>
    %334 = vector.broadcast %333 : vector<1x128xf32> to vector<128x128xf32>
    %335 = arith.mulf %332, %334 : vector<128x128xf32>
    %336 = arith.addf %297, %335 : vector<128x128xf32>
    %c24 = arith.constant 24 : index
    %c0_98 = arith.constant 0 : index
    %337 = vector.load %arg4[%c24, %c0_98] : memref<128x128xf32, #tpu.memory_space<vmem>>, vector<1x128xf32>
    %338 = vector.broadcast %337 : vector<1x128xf32> to vector<128x128xf32>
    %339 = arith.mulf %332, %338 : vector<128x128xf32>
    %340 = arith.addf %301, %339 : vector<128x128xf32>
    %c40 = arith.constant 40 : index
    %c0_99 = arith.constant 0 : index
    %341 = vector.load %arg4[%c40, %c0_99] : memref<128x128xf32, #tpu.memory_space<vmem>>, vector<1x128xf32>
    %342 = vector.broadcast %341 : vector<1x128xf32> to vector<128x128xf32>
    %343 = arith.mulf %332, %342 : vector<128x128xf32>
    %344 = arith.addf %305, %343 : vector<128x128xf32>
    %c56 = arith.constant 56 : index
    %c0_100 = arith.constant 0 : index
    %345 = vector.load %arg4[%c56, %c0_100] : memref<128x128xf32, #tpu.memory_space<vmem>>, vector<1x128xf32>
    %346 = vector.broadcast %345 : vector<1x128xf32> to vector<128x128xf32>
    %347 = arith.mulf %332, %346 : vector<128x128xf32>
    %348 = arith.addf %309, %347 : vector<128x128xf32>
    %c72 = arith.constant 72 : index
    %c0_101 = arith.constant 0 : index
    %349 = vector.load %arg4[%c72, %c0_101] : memref<128x128xf32, #tpu.memory_space<vmem>>, vector<1x128xf32>
    %350 = vector.broadcast %349 : vector<1x128xf32> to vector<128x128xf32>
    %351 = arith.mulf %332, %350 : vector<128x128xf32>
    %352 = arith.addf %313, %351 : vector<128x128xf32>
    %c88 = arith.constant 88 : index
    %c0_102 = arith.constant 0 : index
    %353 = vector.load %arg4[%c88, %c0_102] : memref<128x128xf32, #tpu.memory_space<vmem>>, vector<1x128xf32>
    %354 = vector.broadcast %353 : vector<1x128xf32> to vector<128x128xf32>
    %355 = arith.mulf %332, %354 : vector<128x128xf32>
    %356 = arith.addf %317, %355 : vector<128x128xf32>
    %c104 = arith.constant 104 : index
    %c0_103 = arith.constant 0 : index
    %357 = vector.load %arg4[%c104, %c0_103] : memref<128x128xf32, #tpu.memory_space<vmem>>, vector<1x128xf32>
    %358 = vector.broadcast %357 : vector<1x128xf32> to vector<128x128xf32>
    %359 = arith.mulf %332, %358 : vector<128x128xf32>
    %360 = arith.addf %321, %359 : vector<128x128xf32>
    %c120 = arith.constant 120 : index
    %c0_104 = arith.constant 0 : index
    %361 = vector.load %arg4[%c120, %c0_104] : memref<128x128xf32, #tpu.memory_space<vmem>>, vector<1x128xf32>
    %362 = vector.broadcast %361 : vector<1x128xf32> to vector<128x128xf32>
    %363 = arith.mulf %332, %362 : vector<128x128xf32>
    %364 = arith.addf %325, %363 : vector<128x128xf32>
    %cst_105 = arith.constant 5.000000e-01 : f32
    %365 = vector.broadcast %cst_105 : f32 to vector<128x128xf32>
    %366 = arith.mulf %15, %365 : vector<128x128xf32>
    %367 = math.tanh %366 : vector<128x128xf32>
    %cst_106 = arith.constant 5.000000e-01 : f32
    %368 = vector.broadcast %cst_106 : f32 to vector<128x128xf32>
    %369 = arith.mulf %368, %367 : vector<128x128xf32>
    %cst_107 = arith.constant 5.000000e-01 : f32
    %370 = vector.broadcast %cst_107 : f32 to vector<128x128xf32>
    %371 = arith.addf %369, %370 : vector<128x128xf32>
    %c9 = arith.constant 9 : index
    %c0_108 = arith.constant 0 : index
    %372 = vector.load %arg4[%c9, %c0_108] : memref<128x128xf32, #tpu.memory_space<vmem>>, vector<1x128xf32>
    %373 = vector.broadcast %372 : vector<1x128xf32> to vector<128x128xf32>
    %374 = arith.mulf %371, %373 : vector<128x128xf32>
    %375 = arith.addf %336, %374 : vector<128x128xf32>
    %c25 = arith.constant 25 : index
    %c0_109 = arith.constant 0 : index
    %376 = vector.load %arg4[%c25, %c0_109] : memref<128x128xf32, #tpu.memory_space<vmem>>, vector<1x128xf32>
    %377 = vector.broadcast %376 : vector<1x128xf32> to vector<128x128xf32>
    %378 = arith.mulf %371, %377 : vector<128x128xf32>
    %379 = arith.addf %340, %378 : vector<128x128xf32>
    %c41 = arith.constant 41 : index
    %c0_110 = arith.constant 0 : index
    %380 = vector.load %arg4[%c41, %c0_110] : memref<128x128xf32, #tpu.memory_space<vmem>>, vector<1x128xf32>
    %381 = vector.broadcast %380 : vector<1x128xf32> to vector<128x128xf32>
    %382 = arith.mulf %371, %381 : vector<128x128xf32>
    %383 = arith.addf %344, %382 : vector<128x128xf32>
    %c57 = arith.constant 57 : index
    %c0_111 = arith.constant 0 : index
    %384 = vector.load %arg4[%c57, %c0_111] : memref<128x128xf32, #tpu.memory_space<vmem>>, vector<1x128xf32>
    %385 = vector.broadcast %384 : vector<1x128xf32> to vector<128x128xf32>
    %386 = arith.mulf %371, %385 : vector<128x128xf32>
    %387 = arith.addf %348, %386 : vector<128x128xf32>
    %c73 = arith.constant 73 : index
    %c0_112 = arith.constant 0 : index
    %388 = vector.load %arg4[%c73, %c0_112] : memref<128x128xf32, #tpu.memory_space<vmem>>, vector<1x128xf32>
    %389 = vector.broadcast %388 : vector<1x128xf32> to vector<128x128xf32>
    %390 = arith.mulf %371, %389 : vector<128x128xf32>
    %391 = arith.addf %352, %390 : vector<128x128xf32>
    %c89 = arith.constant 89 : index
    %c0_113 = arith.constant 0 : index
    %392 = vector.load %arg4[%c89, %c0_113] : memref<128x128xf32, #tpu.memory_space<vmem>>, vector<1x128xf32>
    %393 = vector.broadcast %392 : vector<1x128xf32> to vector<128x128xf32>
    %394 = arith.mulf %371, %393 : vector<128x128xf32>
    %395 = arith.addf %356, %394 : vector<128x128xf32>
    %c105 = arith.constant 105 : index
    %c0_114 = arith.constant 0 : index
    %396 = vector.load %arg4[%c105, %c0_114] : memref<128x128xf32, #tpu.memory_space<vmem>>, vector<1x128xf32>
    %397 = vector.broadcast %396 : vector<1x128xf32> to vector<128x128xf32>
    %398 = arith.mulf %371, %397 : vector<128x128xf32>
    %399 = arith.addf %360, %398 : vector<128x128xf32>
    %c121 = arith.constant 121 : index
    %c0_115 = arith.constant 0 : index
    %400 = vector.load %arg4[%c121, %c0_115] : memref<128x128xf32, #tpu.memory_space<vmem>>, vector<1x128xf32>
    %401 = vector.broadcast %400 : vector<1x128xf32> to vector<128x128xf32>
    %402 = arith.mulf %371, %401 : vector<128x128xf32>
    %403 = arith.addf %364, %402 : vector<128x128xf32>
    %cst_116 = arith.constant 5.000000e-01 : f32
    %404 = vector.broadcast %cst_116 : f32 to vector<128x128xf32>
    %405 = arith.mulf %16, %404 : vector<128x128xf32>
    %406 = math.tanh %405 : vector<128x128xf32>
    %cst_117 = arith.constant 5.000000e-01 : f32
    %407 = vector.broadcast %cst_117 : f32 to vector<128x128xf32>
    %408 = arith.mulf %407, %406 : vector<128x128xf32>
    %cst_118 = arith.constant 5.000000e-01 : f32
    %409 = vector.broadcast %cst_118 : f32 to vector<128x128xf32>
    %410 = arith.addf %408, %409 : vector<128x128xf32>
    %c10 = arith.constant 10 : index
    %c0_119 = arith.constant 0 : index
    %411 = vector.load %arg4[%c10, %c0_119] : memref<128x128xf32, #tpu.memory_space<vmem>>, vector<1x128xf32>
    %412 = vector.broadcast %411 : vector<1x128xf32> to vector<128x128xf32>
    %413 = arith.mulf %410, %412 : vector<128x128xf32>
    %414 = arith.addf %375, %413 : vector<128x128xf32>
    %c26 = arith.constant 26 : index
    %c0_120 = arith.constant 0 : index
    %415 = vector.load %arg4[%c26, %c0_120] : memref<128x128xf32, #tpu.memory_space<vmem>>, vector<1x128xf32>
    %416 = vector.broadcast %415 : vector<1x128xf32> to vector<128x128xf32>
    %417 = arith.mulf %410, %416 : vector<128x128xf32>
    %418 = arith.addf %379, %417 : vector<128x128xf32>
    %c42 = arith.constant 42 : index
    %c0_121 = arith.constant 0 : index
    %419 = vector.load %arg4[%c42, %c0_121] : memref<128x128xf32, #tpu.memory_space<vmem>>, vector<1x128xf32>
    %420 = vector.broadcast %419 : vector<1x128xf32> to vector<128x128xf32>
    %421 = arith.mulf %410, %420 : vector<128x128xf32>
    %422 = arith.addf %383, %421 : vector<128x128xf32>
    %c58 = arith.constant 58 : index
    %c0_122 = arith.constant 0 : index
    %423 = vector.load %arg4[%c58, %c0_122] : memref<128x128xf32, #tpu.memory_space<vmem>>, vector<1x128xf32>
    %424 = vector.broadcast %423 : vector<1x128xf32> to vector<128x128xf32>
    %425 = arith.mulf %410, %424 : vector<128x128xf32>
    %426 = arith.addf %387, %425 : vector<128x128xf32>
    %c74 = arith.constant 74 : index
    %c0_123 = arith.constant 0 : index
    %427 = vector.load %arg4[%c74, %c0_123] : memref<128x128xf32, #tpu.memory_space<vmem>>, vector<1x128xf32>
    %428 = vector.broadcast %427 : vector<1x128xf32> to vector<128x128xf32>
    %429 = arith.mulf %410, %428 : vector<128x128xf32>
    %430 = arith.addf %391, %429 : vector<128x128xf32>
    %c90 = arith.constant 90 : index
    %c0_124 = arith.constant 0 : index
    %431 = vector.load %arg4[%c90, %c0_124] : memref<128x128xf32, #tpu.memory_space<vmem>>, vector<1x128xf32>
    %432 = vector.broadcast %431 : vector<1x128xf32> to vector<128x128xf32>
    %433 = arith.mulf %410, %432 : vector<128x128xf32>
    %434 = arith.addf %395, %433 : vector<128x128xf32>
    %c106 = arith.constant 106 : index
    %c0_125 = arith.constant 0 : index
    %435 = vector.load %arg4[%c106, %c0_125] : memref<128x128xf32, #tpu.memory_space<vmem>>, vector<1x128xf32>
    %436 = vector.broadcast %435 : vector<1x128xf32> to vector<128x128xf32>
    %437 = arith.mulf %410, %436 : vector<128x128xf32>
    %438 = arith.addf %399, %437 : vector<128x128xf32>
    %c122 = arith.constant 122 : index
    %c0_126 = arith.constant 0 : index
    %439 = vector.load %arg4[%c122, %c0_126] : memref<128x128xf32, #tpu.memory_space<vmem>>, vector<1x128xf32>
    %440 = vector.broadcast %439 : vector<1x128xf32> to vector<128x128xf32>
    %441 = arith.mulf %410, %440 : vector<128x128xf32>
    %442 = arith.addf %403, %441 : vector<128x128xf32>
    %cst_127 = arith.constant 5.000000e-01 : f32
    %443 = vector.broadcast %cst_127 : f32 to vector<128x128xf32>
    %444 = arith.mulf %17, %443 : vector<128x128xf32>
    %445 = math.tanh %444 : vector<128x128xf32>
    %cst_128 = arith.constant 5.000000e-01 : f32
    %446 = vector.broadcast %cst_128 : f32 to vector<128x128xf32>
    %447 = arith.mulf %446, %445 : vector<128x128xf32>
    %cst_129 = arith.constant 5.000000e-01 : f32
    %448 = vector.broadcast %cst_129 : f32 to vector<128x128xf32>
    %449 = arith.addf %447, %448 : vector<128x128xf32>
    %c11 = arith.constant 11 : index
    %c0_130 = arith.constant 0 : index
    %450 = vector.load %arg4[%c11, %c0_130] : memref<128x128xf32, #tpu.memory_space<vmem>>, vector<1x128xf32>
    %451 = vector.broadcast %450 : vector<1x128xf32> to vector<128x128xf32>
    %452 = arith.mulf %449, %451 : vector<128x128xf32>
    %453 = arith.addf %414, %452 : vector<128x128xf32>
    %c27 = arith.constant 27 : index
    %c0_131 = arith.constant 0 : index
    %454 = vector.load %arg4[%c27, %c0_131] : memref<128x128xf32, #tpu.memory_space<vmem>>, vector<1x128xf32>
    %455 = vector.broadcast %454 : vector<1x128xf32> to vector<128x128xf32>
    %456 = arith.mulf %449, %455 : vector<128x128xf32>
    %457 = arith.addf %418, %456 : vector<128x128xf32>
    %c43 = arith.constant 43 : index
    %c0_132 = arith.constant 0 : index
    %458 = vector.load %arg4[%c43, %c0_132] : memref<128x128xf32, #tpu.memory_space<vmem>>, vector<1x128xf32>
    %459 = vector.broadcast %458 : vector<1x128xf32> to vector<128x128xf32>
    %460 = arith.mulf %449, %459 : vector<128x128xf32>
    %461 = arith.addf %422, %460 : vector<128x128xf32>
    %c59 = arith.constant 59 : index
    %c0_133 = arith.constant 0 : index
    %462 = vector.load %arg4[%c59, %c0_133] : memref<128x128xf32, #tpu.memory_space<vmem>>, vector<1x128xf32>
    %463 = vector.broadcast %462 : vector<1x128xf32> to vector<128x128xf32>
    %464 = arith.mulf %449, %463 : vector<128x128xf32>
    %465 = arith.addf %426, %464 : vector<128x128xf32>
    %c75 = arith.constant 75 : index
    %c0_134 = arith.constant 0 : index
    %466 = vector.load %arg4[%c75, %c0_134] : memref<128x128xf32, #tpu.memory_space<vmem>>, vector<1x128xf32>
    %467 = vector.broadcast %466 : vector<1x128xf32> to vector<128x128xf32>
    %468 = arith.mulf %449, %467 : vector<128x128xf32>
    %469 = arith.addf %430, %468 : vector<128x128xf32>
    %c91 = arith.constant 91 : index
    %c0_135 = arith.constant 0 : index
    %470 = vector.load %arg4[%c91, %c0_135] : memref<128x128xf32, #tpu.memory_space<vmem>>, vector<1x128xf32>
    %471 = vector.broadcast %470 : vector<1x128xf32> to vector<128x128xf32>
    %472 = arith.mulf %449, %471 : vector<128x128xf32>
    %473 = arith.addf %434, %472 : vector<128x128xf32>
    %c107 = arith.constant 107 : index
    %c0_136 = arith.constant 0 : index
    %474 = vector.load %arg4[%c107, %c0_136] : memref<128x128xf32, #tpu.memory_space<vmem>>, vector<1x128xf32>
    %475 = vector.broadcast %474 : vector<1x128xf32> to vector<128x128xf32>
    %476 = arith.mulf %449, %475 : vector<128x128xf32>
    %477 = arith.addf %438, %476 : vector<128x128xf32>
    %c123 = arith.constant 123 : index
    %c0_137 = arith.constant 0 : index
    %478 = vector.load %arg4[%c123, %c0_137] : memref<128x128xf32, #tpu.memory_space<vmem>>, vector<1x128xf32>
    %479 = vector.broadcast %478 : vector<1x128xf32> to vector<128x128xf32>
    %480 = arith.mulf %449, %479 : vector<128x128xf32>
    %481 = arith.addf %442, %480 : vector<128x128xf32>
    %cst_138 = arith.constant 5.000000e-01 : f32
    %482 = vector.broadcast %cst_138 : f32 to vector<128x128xf32>
    %483 = arith.mulf %18, %482 : vector<128x128xf32>
    %484 = math.tanh %483 : vector<128x128xf32>
    %cst_139 = arith.constant 5.000000e-01 : f32
    %485 = vector.broadcast %cst_139 : f32 to vector<128x128xf32>
    %486 = arith.mulf %485, %484 : vector<128x128xf32>
    %cst_140 = arith.constant 5.000000e-01 : f32
    %487 = vector.broadcast %cst_140 : f32 to vector<128x128xf32>
    %488 = arith.addf %486, %487 : vector<128x128xf32>
    %c12 = arith.constant 12 : index
    %c0_141 = arith.constant 0 : index
    %489 = vector.load %arg4[%c12, %c0_141] : memref<128x128xf32, #tpu.memory_space<vmem>>, vector<1x128xf32>
    %490 = vector.broadcast %489 : vector<1x128xf32> to vector<128x128xf32>
    %491 = arith.mulf %488, %490 : vector<128x128xf32>
    %492 = arith.addf %453, %491 : vector<128x128xf32>
    %c28 = arith.constant 28 : index
    %c0_142 = arith.constant 0 : index
    %493 = vector.load %arg4[%c28, %c0_142] : memref<128x128xf32, #tpu.memory_space<vmem>>, vector<1x128xf32>
    %494 = vector.broadcast %493 : vector<1x128xf32> to vector<128x128xf32>
    %495 = arith.mulf %488, %494 : vector<128x128xf32>
    %496 = arith.addf %457, %495 : vector<128x128xf32>
    %c44 = arith.constant 44 : index
    %c0_143 = arith.constant 0 : index
    %497 = vector.load %arg4[%c44, %c0_143] : memref<128x128xf32, #tpu.memory_space<vmem>>, vector<1x128xf32>
    %498 = vector.broadcast %497 : vector<1x128xf32> to vector<128x128xf32>
    %499 = arith.mulf %488, %498 : vector<128x128xf32>
    %500 = arith.addf %461, %499 : vector<128x128xf32>
    %c60 = arith.constant 60 : index
    %c0_144 = arith.constant 0 : index
    %501 = vector.load %arg4[%c60, %c0_144] : memref<128x128xf32, #tpu.memory_space<vmem>>, vector<1x128xf32>
    %502 = vector.broadcast %501 : vector<1x128xf32> to vector<128x128xf32>
    %503 = arith.mulf %488, %502 : vector<128x128xf32>
    %504 = arith.addf %465, %503 : vector<128x128xf32>
    %c76 = arith.constant 76 : index
    %c0_145 = arith.constant 0 : index
    %505 = vector.load %arg4[%c76, %c0_145] : memref<128x128xf32, #tpu.memory_space<vmem>>, vector<1x128xf32>
    %506 = vector.broadcast %505 : vector<1x128xf32> to vector<128x128xf32>
    %507 = arith.mulf %488, %506 : vector<128x128xf32>
    %508 = arith.addf %469, %507 : vector<128x128xf32>
    %c92 = arith.constant 92 : index
    %c0_146 = arith.constant 0 : index
    %509 = vector.load %arg4[%c92, %c0_146] : memref<128x128xf32, #tpu.memory_space<vmem>>, vector<1x128xf32>
    %510 = vector.broadcast %509 : vector<1x128xf32> to vector<128x128xf32>
    %511 = arith.mulf %488, %510 : vector<128x128xf32>
    %512 = arith.addf %473, %511 : vector<128x128xf32>
    %c108 = arith.constant 108 : index
    %c0_147 = arith.constant 0 : index
    %513 = vector.load %arg4[%c108, %c0_147] : memref<128x128xf32, #tpu.memory_space<vmem>>, vector<1x128xf32>
    %514 = vector.broadcast %513 : vector<1x128xf32> to vector<128x128xf32>
    %515 = arith.mulf %488, %514 : vector<128x128xf32>
    %516 = arith.addf %477, %515 : vector<128x128xf32>
    %c124 = arith.constant 124 : index
    %c0_148 = arith.constant 0 : index
    %517 = vector.load %arg4[%c124, %c0_148] : memref<128x128xf32, #tpu.memory_space<vmem>>, vector<1x128xf32>
    %518 = vector.broadcast %517 : vector<1x128xf32> to vector<128x128xf32>
    %519 = arith.mulf %488, %518 : vector<128x128xf32>
    %520 = arith.addf %481, %519 : vector<128x128xf32>
    %cst_149 = arith.constant 5.000000e-01 : f32
    %521 = vector.broadcast %cst_149 : f32 to vector<128x128xf32>
    %522 = arith.mulf %19, %521 : vector<128x128xf32>
    %523 = math.tanh %522 : vector<128x128xf32>
    %cst_150 = arith.constant 5.000000e-01 : f32
    %524 = vector.broadcast %cst_150 : f32 to vector<128x128xf32>
    %525 = arith.mulf %524, %523 : vector<128x128xf32>
    %cst_151 = arith.constant 5.000000e-01 : f32
    %526 = vector.broadcast %cst_151 : f32 to vector<128x128xf32>
    %527 = arith.addf %525, %526 : vector<128x128xf32>
    %c13 = arith.constant 13 : index
    %c0_152 = arith.constant 0 : index
    %528 = vector.load %arg4[%c13, %c0_152] : memref<128x128xf32, #tpu.memory_space<vmem>>, vector<1x128xf32>
    %529 = vector.broadcast %528 : vector<1x128xf32> to vector<128x128xf32>
    %530 = arith.mulf %527, %529 : vector<128x128xf32>
    %531 = arith.addf %492, %530 : vector<128x128xf32>
    %c29 = arith.constant 29 : index
    %c0_153 = arith.constant 0 : index
    %532 = vector.load %arg4[%c29, %c0_153] : memref<128x128xf32, #tpu.memory_space<vmem>>, vector<1x128xf32>
    %533 = vector.broadcast %532 : vector<1x128xf32> to vector<128x128xf32>
    %534 = arith.mulf %527, %533 : vector<128x128xf32>
    %535 = arith.addf %496, %534 : vector<128x128xf32>
    %c45 = arith.constant 45 : index
    %c0_154 = arith.constant 0 : index
    %536 = vector.load %arg4[%c45, %c0_154] : memref<128x128xf32, #tpu.memory_space<vmem>>, vector<1x128xf32>
    %537 = vector.broadcast %536 : vector<1x128xf32> to vector<128x128xf32>
    %538 = arith.mulf %527, %537 : vector<128x128xf32>
    %539 = arith.addf %500, %538 : vector<128x128xf32>
    %c61 = arith.constant 61 : index
    %c0_155 = arith.constant 0 : index
    %540 = vector.load %arg4[%c61, %c0_155] : memref<128x128xf32, #tpu.memory_space<vmem>>, vector<1x128xf32>
    %541 = vector.broadcast %540 : vector<1x128xf32> to vector<128x128xf32>
    %542 = arith.mulf %527, %541 : vector<128x128xf32>
    %543 = arith.addf %504, %542 : vector<128x128xf32>
    %c77 = arith.constant 77 : index
    %c0_156 = arith.constant 0 : index
    %544 = vector.load %arg4[%c77, %c0_156] : memref<128x128xf32, #tpu.memory_space<vmem>>, vector<1x128xf32>
    %545 = vector.broadcast %544 : vector<1x128xf32> to vector<128x128xf32>
    %546 = arith.mulf %527, %545 : vector<128x128xf32>
    %547 = arith.addf %508, %546 : vector<128x128xf32>
    %c93 = arith.constant 93 : index
    %c0_157 = arith.constant 0 : index
    %548 = vector.load %arg4[%c93, %c0_157] : memref<128x128xf32, #tpu.memory_space<vmem>>, vector<1x128xf32>
    %549 = vector.broadcast %548 : vector<1x128xf32> to vector<128x128xf32>
    %550 = arith.mulf %527, %549 : vector<128x128xf32>
    %551 = arith.addf %512, %550 : vector<128x128xf32>
    %c109 = arith.constant 109 : index
    %c0_158 = arith.constant 0 : index
    %552 = vector.load %arg4[%c109, %c0_158] : memref<128x128xf32, #tpu.memory_space<vmem>>, vector<1x128xf32>
    %553 = vector.broadcast %552 : vector<1x128xf32> to vector<128x128xf32>
    %554 = arith.mulf %527, %553 : vector<128x128xf32>
    %555 = arith.addf %516, %554 : vector<128x128xf32>
    %c125 = arith.constant 125 : index
    %c0_159 = arith.constant 0 : index
    %556 = vector.load %arg4[%c125, %c0_159] : memref<128x128xf32, #tpu.memory_space<vmem>>, vector<1x128xf32>
    %557 = vector.broadcast %556 : vector<1x128xf32> to vector<128x128xf32>
    %558 = arith.mulf %527, %557 : vector<128x128xf32>
    %559 = arith.addf %520, %558 : vector<128x128xf32>
    %cst_160 = arith.constant 5.000000e-01 : f32
    %560 = vector.broadcast %cst_160 : f32 to vector<128x128xf32>
    %561 = arith.mulf %20, %560 : vector<128x128xf32>
    %562 = math.tanh %561 : vector<128x128xf32>
    %cst_161 = arith.constant 5.000000e-01 : f32
    %563 = vector.broadcast %cst_161 : f32 to vector<128x128xf32>
    %564 = arith.mulf %563, %562 : vector<128x128xf32>
    %cst_162 = arith.constant 5.000000e-01 : f32
    %565 = vector.broadcast %cst_162 : f32 to vector<128x128xf32>
    %566 = arith.addf %564, %565 : vector<128x128xf32>
    %c14 = arith.constant 14 : index
    %c0_163 = arith.constant 0 : index
    %567 = vector.load %arg4[%c14, %c0_163] : memref<128x128xf32, #tpu.memory_space<vmem>>, vector<1x128xf32>
    %568 = vector.broadcast %567 : vector<1x128xf32> to vector<128x128xf32>
    %569 = arith.mulf %566, %568 : vector<128x128xf32>
    %570 = arith.addf %531, %569 : vector<128x128xf32>
    %c30 = arith.constant 30 : index
    %c0_164 = arith.constant 0 : index
    %571 = vector.load %arg4[%c30, %c0_164] : memref<128x128xf32, #tpu.memory_space<vmem>>, vector<1x128xf32>
    %572 = vector.broadcast %571 : vector<1x128xf32> to vector<128x128xf32>
    %573 = arith.mulf %566, %572 : vector<128x128xf32>
    %574 = arith.addf %535, %573 : vector<128x128xf32>
    %c46 = arith.constant 46 : index
    %c0_165 = arith.constant 0 : index
    %575 = vector.load %arg4[%c46, %c0_165] : memref<128x128xf32, #tpu.memory_space<vmem>>, vector<1x128xf32>
    %576 = vector.broadcast %575 : vector<1x128xf32> to vector<128x128xf32>
    %577 = arith.mulf %566, %576 : vector<128x128xf32>
    %578 = arith.addf %539, %577 : vector<128x128xf32>
    %c62 = arith.constant 62 : index
    %c0_166 = arith.constant 0 : index
    %579 = vector.load %arg4[%c62, %c0_166] : memref<128x128xf32, #tpu.memory_space<vmem>>, vector<1x128xf32>
    %580 = vector.broadcast %579 : vector<1x128xf32> to vector<128x128xf32>
    %581 = arith.mulf %566, %580 : vector<128x128xf32>
    %582 = arith.addf %543, %581 : vector<128x128xf32>
    %c78 = arith.constant 78 : index
    %c0_167 = arith.constant 0 : index
    %583 = vector.load %arg4[%c78, %c0_167] : memref<128x128xf32, #tpu.memory_space<vmem>>, vector<1x128xf32>
    %584 = vector.broadcast %583 : vector<1x128xf32> to vector<128x128xf32>
    %585 = arith.mulf %566, %584 : vector<128x128xf32>
    %586 = arith.addf %547, %585 : vector<128x128xf32>
    %c94 = arith.constant 94 : index
    %c0_168 = arith.constant 0 : index
    %587 = vector.load %arg4[%c94, %c0_168] : memref<128x128xf32, #tpu.memory_space<vmem>>, vector<1x128xf32>
    %588 = vector.broadcast %587 : vector<1x128xf32> to vector<128x128xf32>
    %589 = arith.mulf %566, %588 : vector<128x128xf32>
    %590 = arith.addf %551, %589 : vector<128x128xf32>
    %c110 = arith.constant 110 : index
    %c0_169 = arith.constant 0 : index
    %591 = vector.load %arg4[%c110, %c0_169] : memref<128x128xf32, #tpu.memory_space<vmem>>, vector<1x128xf32>
    %592 = vector.broadcast %591 : vector<1x128xf32> to vector<128x128xf32>
    %593 = arith.mulf %566, %592 : vector<128x128xf32>
    %594 = arith.addf %555, %593 : vector<128x128xf32>
    %c126 = arith.constant 126 : index
    %c0_170 = arith.constant 0 : index
    %595 = vector.load %arg4[%c126, %c0_170] : memref<128x128xf32, #tpu.memory_space<vmem>>, vector<1x128xf32>
    %596 = vector.broadcast %595 : vector<1x128xf32> to vector<128x128xf32>
    %597 = arith.mulf %566, %596 : vector<128x128xf32>
    %598 = arith.addf %559, %597 : vector<128x128xf32>
    %cst_171 = arith.constant 5.000000e-01 : f32
    %599 = vector.broadcast %cst_171 : f32 to vector<128x128xf32>
    %600 = arith.mulf %21, %599 : vector<128x128xf32>
    %601 = math.tanh %600 : vector<128x128xf32>
    %cst_172 = arith.constant 5.000000e-01 : f32
    %602 = vector.broadcast %cst_172 : f32 to vector<128x128xf32>
    %603 = arith.mulf %602, %601 : vector<128x128xf32>
    %cst_173 = arith.constant 5.000000e-01 : f32
    %604 = vector.broadcast %cst_173 : f32 to vector<128x128xf32>
    %605 = arith.addf %603, %604 : vector<128x128xf32>
    %c15 = arith.constant 15 : index
    %c0_174 = arith.constant 0 : index
    %606 = vector.load %arg4[%c15, %c0_174] : memref<128x128xf32, #tpu.memory_space<vmem>>, vector<1x128xf32>
    %607 = vector.broadcast %606 : vector<1x128xf32> to vector<128x128xf32>
    %608 = arith.mulf %605, %607 : vector<128x128xf32>
    %609 = arith.addf %570, %608 : vector<128x128xf32>
    %c31 = arith.constant 31 : index
    %c0_175 = arith.constant 0 : index
    %610 = vector.load %arg4[%c31, %c0_175] : memref<128x128xf32, #tpu.memory_space<vmem>>, vector<1x128xf32>
    %611 = vector.broadcast %610 : vector<1x128xf32> to vector<128x128xf32>
    %612 = arith.mulf %605, %611 : vector<128x128xf32>
    %613 = arith.addf %574, %612 : vector<128x128xf32>
    %c47 = arith.constant 47 : index
    %c0_176 = arith.constant 0 : index
    %614 = vector.load %arg4[%c47, %c0_176] : memref<128x128xf32, #tpu.memory_space<vmem>>, vector<1x128xf32>
    %615 = vector.broadcast %614 : vector<1x128xf32> to vector<128x128xf32>
    %616 = arith.mulf %605, %615 : vector<128x128xf32>
    %617 = arith.addf %578, %616 : vector<128x128xf32>
    %c63 = arith.constant 63 : index
    %c0_177 = arith.constant 0 : index
    %618 = vector.load %arg4[%c63, %c0_177] : memref<128x128xf32, #tpu.memory_space<vmem>>, vector<1x128xf32>
    %619 = vector.broadcast %618 : vector<1x128xf32> to vector<128x128xf32>
    %620 = arith.mulf %605, %619 : vector<128x128xf32>
    %621 = arith.addf %582, %620 : vector<128x128xf32>
    %c79 = arith.constant 79 : index
    %c0_178 = arith.constant 0 : index
    %622 = vector.load %arg4[%c79, %c0_178] : memref<128x128xf32, #tpu.memory_space<vmem>>, vector<1x128xf32>
    %623 = vector.broadcast %622 : vector<1x128xf32> to vector<128x128xf32>
    %624 = arith.mulf %605, %623 : vector<128x128xf32>
    %625 = arith.addf %586, %624 : vector<128x128xf32>
    %c95 = arith.constant 95 : index
    %c0_179 = arith.constant 0 : index
    %626 = vector.load %arg4[%c95, %c0_179] : memref<128x128xf32, #tpu.memory_space<vmem>>, vector<1x128xf32>
    %627 = vector.broadcast %626 : vector<1x128xf32> to vector<128x128xf32>
    %628 = arith.mulf %605, %627 : vector<128x128xf32>
    %629 = arith.addf %590, %628 : vector<128x128xf32>
    %c111 = arith.constant 111 : index
    %c0_180 = arith.constant 0 : index
    %630 = vector.load %arg4[%c111, %c0_180] : memref<128x128xf32, #tpu.memory_space<vmem>>, vector<1x128xf32>
    %631 = vector.broadcast %630 : vector<1x128xf32> to vector<128x128xf32>
    %632 = arith.mulf %605, %631 : vector<128x128xf32>
    %633 = arith.addf %594, %632 : vector<128x128xf32>
    %c127 = arith.constant 127 : index
    %c0_181 = arith.constant 0 : index
    %634 = vector.load %arg4[%c127, %c0_181] : memref<128x128xf32, #tpu.memory_space<vmem>>, vector<1x128xf32>
    %635 = vector.broadcast %634 : vector<1x128xf32> to vector<128x128xf32>
    %636 = arith.mulf %605, %635 : vector<128x128xf32>
    %637 = arith.addf %598, %636 : vector<128x128xf32>
    %c0_182 = arith.constant 0 : index
    %c0_183 = arith.constant 0 : index
    %638 = vector.load %arg5[%c0_182, %c0_183] : memref<8x128xf32, #tpu.memory_space<vmem>>, vector<1x128xf32>
    %639 = vector.broadcast %638 : vector<1x128xf32> to vector<128x128xf32>
    %640 = arith.addf %609, %639 : vector<128x128xf32>
    %c1_184 = arith.constant 1 : index
    %c0_185 = arith.constant 0 : index
    %641 = vector.load %arg5[%c1_184, %c0_185] : memref<8x128xf32, #tpu.memory_space<vmem>>, vector<1x128xf32>
    %642 = vector.broadcast %641 : vector<1x128xf32> to vector<128x128xf32>
    %643 = arith.addf %613, %642 : vector<128x128xf32>
    %c2_186 = arith.constant 2 : index
    %c0_187 = arith.constant 0 : index
    %644 = vector.load %arg5[%c2_186, %c0_187] : memref<8x128xf32, #tpu.memory_space<vmem>>, vector<1x128xf32>
    %645 = vector.broadcast %644 : vector<1x128xf32> to vector<128x128xf32>
    %646 = arith.addf %617, %645 : vector<128x128xf32>
    %c3_188 = arith.constant 3 : index
    %c0_189 = arith.constant 0 : index
    %647 = vector.load %arg5[%c3_188, %c0_189] : memref<8x128xf32, #tpu.memory_space<vmem>>, vector<1x128xf32>
    %648 = vector.broadcast %647 : vector<1x128xf32> to vector<128x128xf32>
    %649 = arith.addf %621, %648 : vector<128x128xf32>
    %c4_190 = arith.constant 4 : index
    %c0_191 = arith.constant 0 : index
    %650 = vector.load %arg5[%c4_190, %c0_191] : memref<8x128xf32, #tpu.memory_space<vmem>>, vector<1x128xf32>
    %651 = vector.broadcast %650 : vector<1x128xf32> to vector<128x128xf32>
    %652 = arith.addf %625, %651 : vector<128x128xf32>
    %c5_192 = arith.constant 5 : index
    %c0_193 = arith.constant 0 : index
    %653 = vector.load %arg5[%c5_192, %c0_193] : memref<8x128xf32, #tpu.memory_space<vmem>>, vector<1x128xf32>
    %654 = vector.broadcast %653 : vector<1x128xf32> to vector<128x128xf32>
    %655 = arith.addf %629, %654 : vector<128x128xf32>
    %c6_194 = arith.constant 6 : index
    %c0_195 = arith.constant 0 : index
    %656 = vector.load %arg5[%c6_194, %c0_195] : memref<8x128xf32, #tpu.memory_space<vmem>>, vector<1x128xf32>
    %657 = vector.broadcast %656 : vector<1x128xf32> to vector<128x128xf32>
    %658 = arith.addf %633, %657 : vector<128x128xf32>
    %c7_196 = arith.constant 7 : index
    %c0_197 = arith.constant 0 : index
    %659 = vector.load %arg5[%c7_196, %c0_197] : memref<8x128xf32, #tpu.memory_space<vmem>>, vector<1x128xf32>
    %660 = vector.broadcast %659 : vector<1x128xf32> to vector<128x128xf32>
    %661 = arith.addf %637, %660 : vector<128x128xf32>
    %cst_198 = arith.constant 5.000000e-01 : f32
    %662 = vector.broadcast %cst_198 : f32 to vector<128x128xf32>
    %663 = arith.mulf %640, %662 : vector<128x128xf32>
    %664 = math.tanh %663 : vector<128x128xf32>
    %cst_199 = arith.constant 5.000000e-01 : f32
    %665 = vector.broadcast %cst_199 : f32 to vector<128x128xf32>
    %666 = arith.mulf %665, %664 : vector<128x128xf32>
    %cst_200 = arith.constant 5.000000e-01 : f32
    %667 = vector.broadcast %cst_200 : f32 to vector<128x128xf32>
    %668 = arith.addf %666, %667 : vector<128x128xf32>
    %c0_201 = arith.constant 0 : index
    %c0_202 = arith.constant 0 : index
    %669 = vector.load %arg6[%c0_201, %c0_202] : memref<8x128xf32, #tpu.memory_space<vmem>>, vector<1x128xf32>
    %670 = vector.broadcast %669 : vector<1x128xf32> to vector<128x128xf32>
    %671 = arith.mulf %668, %670 : vector<128x128xf32>
    %cst_203 = arith.constant 5.000000e-01 : f32
    %672 = vector.broadcast %cst_203 : f32 to vector<128x128xf32>
    %673 = arith.mulf %643, %672 : vector<128x128xf32>
    %674 = math.tanh %673 : vector<128x128xf32>
    %cst_204 = arith.constant 5.000000e-01 : f32
    %675 = vector.broadcast %cst_204 : f32 to vector<128x128xf32>
    %676 = arith.mulf %675, %674 : vector<128x128xf32>
    %cst_205 = arith.constant 5.000000e-01 : f32
    %677 = vector.broadcast %cst_205 : f32 to vector<128x128xf32>
    %678 = arith.addf %676, %677 : vector<128x128xf32>
    %c1_206 = arith.constant 1 : index
    %c0_207 = arith.constant 0 : index
    %679 = vector.load %arg6[%c1_206, %c0_207] : memref<8x128xf32, #tpu.memory_space<vmem>>, vector<1x128xf32>
    %680 = vector.broadcast %679 : vector<1x128xf32> to vector<128x128xf32>
    %681 = arith.mulf %678, %680 : vector<128x128xf32>
    %682 = arith.addf %671, %681 : vector<128x128xf32>
    %cst_208 = arith.constant 5.000000e-01 : f32
    %683 = vector.broadcast %cst_208 : f32 to vector<128x128xf32>
    %684 = arith.mulf %646, %683 : vector<128x128xf32>
    %685 = math.tanh %684 : vector<128x128xf32>
    %cst_209 = arith.constant 5.000000e-01 : f32
    %686 = vector.broadcast %cst_209 : f32 to vector<128x128xf32>
    %687 = arith.mulf %686, %685 : vector<128x128xf32>
    %cst_210 = arith.constant 5.000000e-01 : f32
    %688 = vector.broadcast %cst_210 : f32 to vector<128x128xf32>
    %689 = arith.addf %687, %688 : vector<128x128xf32>
    %c2_211 = arith.constant 2 : index
    %c0_212 = arith.constant 0 : index
    %690 = vector.load %arg6[%c2_211, %c0_212] : memref<8x128xf32, #tpu.memory_space<vmem>>, vector<1x128xf32>
    %691 = vector.broadcast %690 : vector<1x128xf32> to vector<128x128xf32>
    %692 = arith.mulf %689, %691 : vector<128x128xf32>
    %693 = arith.addf %682, %692 : vector<128x128xf32>
    %cst_213 = arith.constant 5.000000e-01 : f32
    %694 = vector.broadcast %cst_213 : f32 to vector<128x128xf32>
    %695 = arith.mulf %649, %694 : vector<128x128xf32>
    %696 = math.tanh %695 : vector<128x128xf32>
    %cst_214 = arith.constant 5.000000e-01 : f32
    %697 = vector.broadcast %cst_214 : f32 to vector<128x128xf32>
    %698 = arith.mulf %697, %696 : vector<128x128xf32>
    %cst_215 = arith.constant 5.000000e-01 : f32
    %699 = vector.broadcast %cst_215 : f32 to vector<128x128xf32>
    %700 = arith.addf %698, %699 : vector<128x128xf32>
    %c3_216 = arith.constant 3 : index
    %c0_217 = arith.constant 0 : index
    %701 = vector.load %arg6[%c3_216, %c0_217] : memref<8x128xf32, #tpu.memory_space<vmem>>, vector<1x128xf32>
    %702 = vector.broadcast %701 : vector<1x128xf32> to vector<128x128xf32>
    %703 = arith.mulf %700, %702 : vector<128x128xf32>
    %704 = arith.addf %693, %703 : vector<128x128xf32>
    %cst_218 = arith.constant 5.000000e-01 : f32
    %705 = vector.broadcast %cst_218 : f32 to vector<128x128xf32>
    %706 = arith.mulf %652, %705 : vector<128x128xf32>
    %707 = math.tanh %706 : vector<128x128xf32>
    %cst_219 = arith.constant 5.000000e-01 : f32
    %708 = vector.broadcast %cst_219 : f32 to vector<128x128xf32>
    %709 = arith.mulf %708, %707 : vector<128x128xf32>
    %cst_220 = arith.constant 5.000000e-01 : f32
    %710 = vector.broadcast %cst_220 : f32 to vector<128x128xf32>
    %711 = arith.addf %709, %710 : vector<128x128xf32>
    %c4_221 = arith.constant 4 : index
    %c0_222 = arith.constant 0 : index
    %712 = vector.load %arg6[%c4_221, %c0_222] : memref<8x128xf32, #tpu.memory_space<vmem>>, vector<1x128xf32>
    %713 = vector.broadcast %712 : vector<1x128xf32> to vector<128x128xf32>
    %714 = arith.mulf %711, %713 : vector<128x128xf32>
    %715 = arith.addf %704, %714 : vector<128x128xf32>
    %cst_223 = arith.constant 5.000000e-01 : f32
    %716 = vector.broadcast %cst_223 : f32 to vector<128x128xf32>
    %717 = arith.mulf %655, %716 : vector<128x128xf32>
    %718 = math.tanh %717 : vector<128x128xf32>
    %cst_224 = arith.constant 5.000000e-01 : f32
    %719 = vector.broadcast %cst_224 : f32 to vector<128x128xf32>
    %720 = arith.mulf %719, %718 : vector<128x128xf32>
    %cst_225 = arith.constant 5.000000e-01 : f32
    %721 = vector.broadcast %cst_225 : f32 to vector<128x128xf32>
    %722 = arith.addf %720, %721 : vector<128x128xf32>
    %c5_226 = arith.constant 5 : index
    %c0_227 = arith.constant 0 : index
    %723 = vector.load %arg6[%c5_226, %c0_227] : memref<8x128xf32, #tpu.memory_space<vmem>>, vector<1x128xf32>
    %724 = vector.broadcast %723 : vector<1x128xf32> to vector<128x128xf32>
    %725 = arith.mulf %722, %724 : vector<128x128xf32>
    %726 = arith.addf %715, %725 : vector<128x128xf32>
    %cst_228 = arith.constant 5.000000e-01 : f32
    %727 = vector.broadcast %cst_228 : f32 to vector<128x128xf32>
    %728 = arith.mulf %658, %727 : vector<128x128xf32>
    %729 = math.tanh %728 : vector<128x128xf32>
    %cst_229 = arith.constant 5.000000e-01 : f32
    %730 = vector.broadcast %cst_229 : f32 to vector<128x128xf32>
    %731 = arith.mulf %730, %729 : vector<128x128xf32>
    %cst_230 = arith.constant 5.000000e-01 : f32
    %732 = vector.broadcast %cst_230 : f32 to vector<128x128xf32>
    %733 = arith.addf %731, %732 : vector<128x128xf32>
    %c6_231 = arith.constant 6 : index
    %c0_232 = arith.constant 0 : index
    %734 = vector.load %arg6[%c6_231, %c0_232] : memref<8x128xf32, #tpu.memory_space<vmem>>, vector<1x128xf32>
    %735 = vector.broadcast %734 : vector<1x128xf32> to vector<128x128xf32>
    %736 = arith.mulf %733, %735 : vector<128x128xf32>
    %737 = arith.addf %726, %736 : vector<128x128xf32>
    %cst_233 = arith.constant 5.000000e-01 : f32
    %738 = vector.broadcast %cst_233 : f32 to vector<128x128xf32>
    %739 = arith.mulf %661, %738 : vector<128x128xf32>
    %740 = math.tanh %739 : vector<128x128xf32>
    %cst_234 = arith.constant 5.000000e-01 : f32
    %741 = vector.broadcast %cst_234 : f32 to vector<128x128xf32>
    %742 = arith.mulf %741, %740 : vector<128x128xf32>
    %cst_235 = arith.constant 5.000000e-01 : f32
    %743 = vector.broadcast %cst_235 : f32 to vector<128x128xf32>
    %744 = arith.addf %742, %743 : vector<128x128xf32>
    %c7_236 = arith.constant 7 : index
    %c0_237 = arith.constant 0 : index
    %745 = vector.load %arg6[%c7_236, %c0_237] : memref<8x128xf32, #tpu.memory_space<vmem>>, vector<1x128xf32>
    %746 = vector.broadcast %745 : vector<1x128xf32> to vector<128x128xf32>
    %747 = arith.mulf %744, %746 : vector<128x128xf32>
    %748 = arith.addf %737, %747 : vector<128x128xf32>
    %c0_238 = arith.constant 0 : index
    %c0_239 = arith.constant 0 : index
    %749 = vector.load %arg7[%c0_238, %c0_239] : memref<1x128xf32, #tpu.memory_space<vmem>>, vector<1x128xf32>
    %750 = vector.broadcast %749 : vector<1x128xf32> to vector<128x128xf32>
    %751 = arith.addf %748, %750 : vector<128x128xf32>
    %c0_240 = arith.constant 0 : index
    %c0_241 = arith.constant 0 : index
    %752 = vector.load %arg8[%c0_240, %c0_241] : memref<128x128xf32, #tpu.memory_space<vmem>>, vector<128x128xf32>
    tpu.vector_store %arg8[%c0_240, %c0_241], %751 {strides = array<i32>} : memref<128x128xf32, #tpu.memory_space<vmem>>, vector<128x128xf32>,
    return
  }
  func.func @transform_0(%arg0: i32) -> (i32, i32) {
    %c0_i32 = arith.constant 0 : i32
    %c0_i32_0 = arith.constant 0 : i32
    return %arg0, %c0_i32 : i32, i32
  }
  func.func @transform_1(%arg0: i32) -> (i32, i32) {
    %c0_i32 = arith.constant 0 : i32
    %c0_i32_0 = arith.constant 0 : i32
    %c0_i32_1 = arith.constant 0 : i32
    return %c0_i32, %c0_i32_0 : i32, i32
  }
  func.func @transform_2(%arg0: i32) -> (i32, i32) {
    %c0_i32 = arith.constant 0 : i32
    %c0_i32_0 = arith.constant 0 : i32
    %c0_i32_1 = arith.constant 0 : i32
    return %c0_i32, %c0_i32_0 : i32, i32
  }
  func.func @transform_3(%arg0: i32) -> (i32, i32) {
    %c0_i32 = arith.constant 0 : i32
    %c0_i32_0 = arith.constant 0 : i32
    %c0_i32_1 = arith.constant 0 : i32
    return %c0_i32, %c0_i32_0 : i32, i32
  }
  func.func @transform_4(%arg0: i32) -> (i32, i32) {
    %c0_i32 = arith.constant 0 : i32
    %c0_i32_0 = arith.constant 0 : i32
    %c0_i32_1 = arith.constant 0 : i32
    return %c0_i32, %c0_i32_0 : i32, i32
  }
  func.func @transform_5(%arg0: i32) -> (i32, i32) {
    %c0_i32 = arith.constant 0 : i32
    %c0_i32_0 = arith.constant 0 : i32
    %c0_i32_1 = arith.constant 0 : i32
    return %c0_i32, %c0_i32_0 : i32, i32
  }
  func.func @transform_6(%arg0: i32) -> (i32, i32) {
    %c0_i32 = arith.constant 0 : i32
    %c0_i32_0 = arith.constant 0 : i32
    %c0_i32_1 = arith.constant 0 : i32
    return %c0_i32, %c0_i32_0 : i32, i32
  }
  func.func @transform_7(%arg0: i32) -> (i32, i32) {
    %c0_i32 = arith.constant 0 : i32
    %c0_i32_0 = arith.constant 0 : i32
    return %arg0, %c0_i32 : i32, i32
  }
}

</mosaic_0001>

<llo_original>
// kernel: tpu_custom_call.1
$region0: #{tpu_custom_call.1}
  #allocation0 [shape = 'u32[]', space=smem, size = 0x4, offset = 0x4, fixed_abs, tag = 'smem constant byte address 0x4 - core index']
  #allocation1 [shape = 'u32[144,128]{1,0:T(1,128)}', space=vmem, size = 0x12000, scoped, tag = 'internal scratch']
  %s0 = inlined_call_operand.hbm [shape: bf16[256,128], index: 0, kind: input, shape index: {}]
  %s1 = inlined_call_operand.hbm [shape: bf16[128,2048], index: 1, kind: input, shape index: {}]
  %s2 = inlined_call_operand.hbm [shape: f32[1,2048], index: 2, kind: input, shape index: {}]
  %s3 = inlined_call_operand.hbm [shape: f32[128,128], index: 3, kind: input, shape index: {}]
  %s4 = inlined_call_operand.vmem [shape: f32[8,128], index: 4, kind: input, shape index: {}]
  %s5 = inlined_call_operand.vmem [shape: f32[8,128], index: 5, kind: input, shape index: {}]
  %s6 = inlined_call_operand.vmem [shape: f32[1,128], index: 6, kind: input, shape index: {}]
  %s7 = inlined_call_operand.hbm [shape: f32[256,128], index: 7, kind: output, shape index: {}]
  %s8 = sld [smem:[#allocation0]]
  $region77: #{tpu_custom_call.1} parent=0
    _
  %s10 = ssub.s32 1, %s8
  %s11 = scalar_select 0, %s10, %s8
  $region1: #{tpu_custom_call.1} parent=0
    #allocation2 [shape = 'u8[65536]{0}', space=vmem, size = 0x10000, scoped, tag = 'input window, operand 0']
    #allocation3 [shape = 's32[2]{0}', space=sflag, size = 0x8, scoped, tag = 'scoped memory for tpu_custom_call.1']
    #allocation4 [shape = 's32[2]{0}', space=sflag, size = 0x8, scoped, tag = 'scoped memory for tpu_custom_call.1']
    #allocation5 [shape = 'u8[524288]{0}', space=vmem, size = 0x80000, scoped, tag = 'input window, operand 1, single buffered']
    #allocation6 [shape = 's32[1]{0}', space=sflag, size = 0x4, scoped, tag = 'scoped memory for tpu_custom_call.1']
    #allocation7 [shape = 'u8[8192]{0}', space=vmem, size = 0x2000, scoped, tag = 'input window, operand 2, single buffered']
    #allocation8 [shape = 'u8[65536]{0}', space=vmem, size = 0x10000, scoped, tag = 'input window, operand 3, single buffered']
    #allocation9 [shape = 's32[1]{0}', space=sflag, size = 0x4, scoped, tag = 'scoped memory for tpu_custom_call.1']
    #allocation10 [shape = 'u8[131072]{0}', space=vmem, size = 0x20000, scoped, tag = 'output window, operand 0']
    %12 = vsyncpa [#allocation3], 0
    %s13 = scalar_lea.sflag [#allocation3], 1
    %14 = vsyncpa %s13, 0
    %15 = vsyncpa [#allocation6], 0
    %16 = vsyncpa [#allocation9], 0
    %17 = vsyncpa [#allocation4], 0
    %s18 = scalar_lea.sflag [#allocation4], 1
    %19 = vsyncpa %s18, 0
    loop: start=0, step=1, limit=4
    $region2: #{tpu_custom_call.1} parent=1 // loop_pre_header
      _
    $region3: #{tpu_custom_call.1} parent=1 // loop_header
      %s21 = sphi 0, %s25
      %p22 = scmp.ge.s32.totalorder %s21, 4
      %s31 = sphi 0, %s33
      %s34 = sphi 0, %s31
      %s35 = sphi 0, %s34
      %s51 = sphi 0, %s35
      %s55 = sphi 0, %s55
      %s57 = sphi 0, %s55
      %s58 = sphi 0, %s57
      %s72 = sphi 0, %s58
      %s76 = sphi 0, %s76
      %s78 = sphi 0, %s76
      %s79 = sphi 0, %s78
      %s93 = sphi 0, %s79
      %s97 = sphi 0, %s97
      %s99 = sphi 0, %s97
      %s100 = sphi 0, %s99
      %s114 = sphi 0, %s100
      %s118 = sphi 0, %s118
      %s120 = sphi 0, %s118
      %s121 = sphi 0, %s120
      %s135 = sphi 0, %s121
      %s139 = sphi 0, %s139
      %s141 = sphi 0, %s139
      %s142 = sphi 0, %s141
      %s156 = sphi 0, %s142
      %s160 = sphi 0, %s160
      %s162 = sphi 0, %s160
      %s163 = sphi 0, %s162
      %s177 = sphi 0, %s163
      %s183 = sphi 0, %s185
      %s186 = sphi 0, %s183
      %s187 = sphi 0, %s186
      %s203 = sphi 0, %s187
    $region4: #{tpu_custom_call.1} parent=1 // loop_header_branch
      %24 = sbr.rel (%p22) target = $region8
    $region5: #{tpu_custom_call.1} parent=1 // loop_body
      %s26 = ssub.s32 %s21, 1
      %s27 = ssub.s32 %s21, 2
      %s28 = sadd.s32 %s21, 1
      %s29 = ssub.s32 %s21, %s28
      %p30 = scmp.eq.s32.totalorder %s29, 0
      %s32 = sadd.s32 %s31, 1
      %s33 = scalar_select %p30, %s31, %s32
      %p36 = pneg %p30
      %p37 = scmp.eq.s32.totalorder %s21, 1
      %p38 = por %p36, %p37
      %p39 = scmp.ne.s32.totalorder %s31, %s34
      %p40 = scmp.eq.s32.totalorder %s21, 0
      %p41 = por %p39, %p40
      %p42 = scmp.ne.s32.totalorder %s31, %s34
      %p43 = scmp.eq.s32.totalorder %s26, 1
      %p44 = por %p42, %p43
      %p45 = scmp.ne.s32.totalorder %s34, %s35
      %p46 = scmp.eq.s32.totalorder %s26, 0
      %p47 = por %p45, %p46
      %p48 = scmp.ne.s32.totalorder %s34, %s35
      %p49 = scmp.eq.s32.totalorder %s27, 1
      %p50 = por %p48, %p49
      %p52 = scmp.ne.s32.totalorder %s35, %s51
      %p53 = scmp.eq.s32.totalorder %s27, 0
      %p54 = por %p52, %p53
      %s56 = sadd.s32 %s55, 1
      %p59 = scmp.eq.s32.totalorder %s21, 1
      %p60 = scmp.ne.s32.totalorder %s55, %s57
      %p61 = scmp.eq.s32.totalorder %s21, 0
      %p62 = por %p60, %p61
      %p63 = scmp.ne.s32.totalorder %s55, %s57
      %p64 = scmp.eq.s32.totalorder %s26, 1
      %p65 = por %p63, %p64
      %p66 = scmp.ne.s32.totalorder %s57, %s58
      %p67 = scmp.eq.s32.totalorder %s26, 0
      %p68 = por %p66, %p67
      %p69 = scmp.ne.s32.totalorder %s57, %s58
      %p70 = scmp.eq.s32.totalorder %s27, 1
      %p71 = por %p69, %p70
      %p73 = scmp.ne.s32.totalorder %s58, %s72
      %p74 = scmp.eq.s32.totalorder %s27, 0
      %p75 = por %p73, %p74
      %s77 = sadd.s32 %s76, 1
      %p80 = scmp.eq.s32.totalorder %s21, 1
      %p81 = scmp.ne.s32.totalorder %s76, %s78
      %p82 = scmp.eq.s32.totalorder %s21, 0
      %p83 = por %p81, %p82
      %p84 = scmp.ne.s32.totalorder %s76, %s78
      %p85 = scmp.eq.s32.totalorder %s26, 1
      %p86 = por %p84, %p85
      %p87 = scmp.ne.s32.totalorder %s78, %s79
      %p88 = scmp.eq.s32.totalorder %s26, 0
      %p89 = por %p87, %p88
      %p90 = scmp.ne.s32.totalorder %s78, %s79
      %p91 = scmp.eq.s32.totalorder %s27, 1
      %p92 = por %p90, %p91
      %p94 = scmp.ne.s32.totalorder %s79, %s93
      %p95 = scmp.eq.s32.totalorder %s27, 0
      %p96 = por %p94, %p95
      %s98 = sadd.s32 %s97, 1
      %p101 = scmp.eq.s32.totalorder %s21, 1
      %p102 = scmp.ne.s32.totalorder %s97, %s99
      %p103 = scmp.eq.s32.totalorder %s21, 0
      %p104 = por %p102, %p103
      %p105 = scmp.ne.s32.totalorder %s97, %s99
      %p106 = scmp.eq.s32.totalorder %s26, 1
      %p107 = por %p105, %p106
      %p108 = scmp.ne.s32.totalorder %s99, %s100
      %p109 = scmp.eq.s32.totalorder %s26, 0
      %p110 = por %p108, %p109
      %p111 = scmp.ne.s32.totalorder %s99, %s100
      %p112 = scmp.eq.s32.totalorder %s27, 1
      %p113 = por %p111, %p112
      %p115 = scmp.ne.s32.totalorder %s100, %s114
      %p116 = scmp.eq.s32.totalorder %s27, 0
      %p117 = por %p115, %p116
      %s119 = sadd.s32 %s118, 1
      %p122 = scmp.eq.s32.totalorder %s21, 1
      %p123 = scmp.ne.s32.totalorder %s118, %s120
      %p124 = scmp.eq.s32.totalorder %s21, 0
      %p125 = por %p123, %p124
      %p126 = scmp.ne.s32.totalorder %s118, %s120
      %p127 = scmp.eq.s32.totalorder %s26, 1
      %p128 = por %p126, %p127
      %p129 = scmp.ne.s32.totalorder %s120, %s121
      %p130 = scmp.eq.s32.totalorder %s26, 0
      %p131 = por %p129, %p130
      %p132 = scmp.ne.s32.totalorder %s120, %s121
      %p133 = scmp.eq.s32.totalorder %s27, 1
      %p134 = por %p132, %p133
      %p136 = scmp.ne.s32.totalorder %s121, %s135
      %p137 = scmp.eq.s32.totalorder %s27, 0
      %p138 = por %p136, %p137
      %s140 = sadd.s32 %s139, 1
      %p143 = scmp.eq.s32.totalorder %s21, 1
      %p144 = scmp.ne.s32.totalorder %s139, %s141
      %p145 = scmp.eq.s32.totalorder %s21, 0
      %p146 = por %p144, %p145
      %p147 = scmp.ne.s32.totalorder %s139, %s141
      %p148 = scmp.eq.s32.totalorder %s26, 1
      %p149 = por %p147, %p148
      %p150 = scmp.ne.s32.totalorder %s141, %s142
      %p151 = scmp.eq.s32.totalorder %s26, 0
      %p152 = por %p150, %p151
      %p153 = scmp.ne.s32.totalorder %s141, %s142
      %p154 = scmp.eq.s32.totalorder %s27, 1
      %p155 = por %p153, %p154
      %p157 = scmp.ne.s32.totalorder %s142, %s156
      %p158 = scmp.eq.s32.totalorder %s27, 0
      %p159 = por %p157, %p158
      %s161 = sadd.s32 %s160, 1
      %p164 = scmp.eq.s32.totalorder %s21, 1
      %p165 = scmp.ne.s32.totalorder %s160, %s162
      %p166 = scmp.eq.s32.totalorder %s21, 0
      %p167 = por %p165, %p166
      %p168 = scmp.ne.s32.totalorder %s160, %s162
      %p169 = scmp.eq.s32.totalorder %s26, 1
      %p170 = por %p168, %p169
      %p171 = scmp.ne.s32.totalorder %s162, %s163
      %p172 = scmp.eq.s32.totalorder %s26, 0
      %p173 = por %p171, %p172
      %p174 = scmp.ne.s32.totalorder %s162, %s163
      %p175 = scmp.eq.s32.totalorder %s27, 1
      %p176 = por %p174, %p175
      %p178 = scmp.ne.s32.totalorder %s163, %s177
      %p179 = scmp.eq.s32.totalorder %s27, 0
      %p180 = por %p178, %p179
      %s181 = ssub.s32 %s21, %s28
      %p182 = scmp.eq.s32.totalorder %s181, 0
      %s184 = sadd.s32 %s183, 1
      %s185 = scalar_select %p182, %s183, %s184
      %p188 = pneg %p182
      %p189 = scmp.eq.s32.totalorder %s21, 1
      %p190 = por %p188, %p189
      %p191 = scmp.ne.s32.totalorder %s183, %s186
      %p192 = scmp.eq.s32.totalorder %s21, 0
      %p193 = por %p191, %p192
      %p194 = scmp.ne.s32.totalorder %s183, %s186
      %p195 = scmp.eq.s32.totalorder %s26, 1
      %p196 = por %p194, %p195
      %p197 = scmp.ne.s32.totalorder %s186, %s187
      %p198 = scmp.eq.s32.totalorder %s26, 0
      %p199 = por %p197, %p198
      %p200 = scmp.ne.s32.totalorder %s186, %s187
      %p201 = scmp.eq.s32.totalorder %s27, 1
      %p202 = por %p200, %p201
      %p204 = scmp.ne.s32.totalorder %s187, %s203
      %p205 = scmp.eq.s32.totalorder %s27, 0
      %p206 = por %p204, %p205
      %p207 = scmp.le.s32.totalorder 1, %s21
      %p208 = scmp.lt.s32.totalorder %s21, 3
      %p209 = pnand %p207, %p208
      %p210 = pneg %p209
      // Predicated region
      $region9: #{tpu_custom_call.1} parent=5 // pred_check
        _
      $region10: #{tpu_custom_call.1} parent=5 // pred_check_branch
        %212 = sbr.rel (%p209) target = $region12
      $region11: #{tpu_custom_call.1} parent=5 // pred_region
        %s213 = ssub.s32 %s21, 1
        // Predicated region
        $region13: #{tpu_custom_call.1} parent=11 // pred_check
          %p214 = pneg %p68
        $region14: #{tpu_custom_call.1} parent=11 // pred_check_branch
          %216 = sbr.rel (%p214) target = $region16
        $region15: #{tpu_custom_call.1} parent=11 // pred_region
          %s218 = ssub.s32 16384, 16384
          %219 = vsyncadd [#allocation6], %s218
          %s220 = sshll.u32 [#allocation5], 4
          %s221 = int_to_ptr.vmem [resolvable:$true] %s220
          %226 = dma.hbm_to_vmem [thread:$0]  %s1, 16384, %s221, [#allocation6], 1024, 1024, 64
        $region16: #{tpu_custom_call.1} parent=11 // pred_fallthru
          _
        // Predicated region
        $region17: #{tpu_custom_call.1} parent=11 // pred_check
          %p227 = pneg %p89
        $region18: #{tpu_custom_call.1} parent=11 // pred_check_branch
          %229 = sbr.rel (%p227) target = $region20
        $region19: #{tpu_custom_call.1} parent=11 // pred_region
          %s231 = ssub.s32 256, 256
          %232 = vsyncadd [#allocation6], %s231
          %s234 = sshll.u32 [#allocation7], 4
          %s235 = int_to_ptr.vmem [resolvable:$true] %s234
          %237 = dma.hbm_to_vmem [thread:$0]  %s2, 256, %s235, [#allocation6]
        $region20: #{tpu_custom_call.1} parent=11 // pred_fallthru
          _
        // Predicated region
        $region21: #{tpu_custom_call.1} parent=11 // pred_check
          %p238 = pneg %p110
        $region22: #{tpu_custom_call.1} parent=11 // pred_check_branch
          %240 = sbr.rel (%p238) target = $region24
        $region23: #{tpu_custom_call.1} parent=11 // pred_region
          %s242 = ssub.s32 2048, 2048
          %243 = vsyncadd [#allocation9], %s242
          %s244 = sshll.u32 [#allocation8], 4
          %s245 = int_to_ptr.vmem [resolvable:$true] %s244
          %250 = dma.hbm_to_vmem [thread:$0]  %s3, 2048, %s245, [#allocation9], 128, 128, 8
        $region24: #{tpu_custom_call.1} parent=11 // pred_fallthru
          _
        // Predicated region
        $region25: #{tpu_custom_call.1} parent=11 // pred_check
          %p251 = pneg %p131
        $region26: #{tpu_custom_call.1} parent=11 // pred_check_branch
          %253 = sbr.rel (%p251) target = $region28
        $region27: #{tpu_custom_call.1} parent=11 // pred_region
          _
        $region28: #{tpu_custom_call.1} parent=11 // pred_fallthru
          _
        // Predicated region
        $region29: #{tpu_custom_call.1} parent=11 // pred_check
          %p254 = pneg %p152
        $region30: #{tpu_custom_call.1} parent=11 // pred_check_branch
          %256 = sbr.rel (%p254) target = $region32
        $region31: #{tpu_custom_call.1} parent=11 // pred_region
          _
        $region32: #{tpu_custom_call.1} parent=11 // pred_fallthru
          _
        // Predicated region
        $region33: #{tpu_custom_call.1} parent=11 // pred_check
          %p257 = pneg %p173
        $region34: #{tpu_custom_call.1} parent=11 // pred_check_branch
          %259 = sbr.rel (%p257) target = $region36
        $region35: #{tpu_custom_call.1} parent=11 // pred_region
          _
        $region36: #{tpu_custom_call.1} parent=11 // pred_fallthru
          _
      $region12: #{tpu_custom_call.1} parent=5 // pred_fallthru
        _
      %p260 = scmp.lt.s32.totalorder %s21, 2
      // Predicated region
      $region37: #{tpu_custom_call.1} parent=5 // pred_check
        %p261 = pneg %p260
      $region38: #{tpu_custom_call.1} parent=5 // pred_check_branch
        %263 = sbr.rel (%p261) target = $region40
      $region39: #{tpu_custom_call.1} parent=5 // pred_region
        // Predicated region
        $region41: #{tpu_custom_call.1} parent=39 // pred_check
          %p264 = pneg %p41
        $region42: #{tpu_custom_call.1} parent=39 // pred_check_branch
          %266 = sbr.rel (%p264) target = $region44
        $region43: #{tpu_custom_call.1} parent=39 // pred_region
          %s267 = sand.u32 %s31, 1
          %s268 = scalar_lea.sflag [#allocation3], %s267
          %s269 = sand.u32 %s31, 1
          %s270 = smul.addr %s269, 64
          %s271 = scalar_lea.vmem [#allocation2], %s270
          %s272 = smul.u32 16, %s21
          %s274 = ssub.s32 1024, 1024
          %275 = vsyncadd %s268, %s274
          %s276 = smul.addr %s272, 64
          %s277 = scalar_lea.hbm %s0, %s276
          %s278 = sshll.u32 %s271, 4
          %s279 = int_to_ptr.vmem [resolvable:$true] %s278
          %284 = dma.hbm_to_vmem [thread:$0]  %s277, 1024, %s279, %s268, 64, 64, 4
        $region44: #{tpu_custom_call.1} parent=39 // pred_fallthru
          _
      $region40: #{tpu_custom_call.1} parent=5 // pred_fallthru
        _
      %p285 = scmp.le.s32.totalorder 1, %s21
      %p286 = scmp.lt.s32.totalorder %s21, 3
      %p287 = pnand %p285, %p286
      %p288 = pneg %p287
      // Predicated region
      $region45: #{tpu_custom_call.1} parent=5 // pred_check
        _
      $region46: #{tpu_custom_call.1} parent=5 // pred_check_branch
        %290 = sbr.rel (%p287) target = $region48
      $region47: #{tpu_custom_call.1} parent=5 // pred_region
        %s291 = ssub.s32 %s21, 1
        %s292 = sand.u32 %s34, 1
        %s293 = scalar_lea.sflag [#allocation3], %s292
        %s294 = sand.u32 %s34, 1
        %s295 = smul.addr %s294, 64
        %s296 = scalar_lea.vmem [#allocation2], %s295
        // Predicated region
        $region49: #{tpu_custom_call.1} parent=47 // pred_check
          %p297 = pneg %p47
        $region50: #{tpu_custom_call.1} parent=47 // pred_check_branch
          %299 = sbr.rel (%p297) target = $region52
        $region51: #{tpu_custom_call.1} parent=47 // pred_region
          %300 = dma.done %s293, 1024
        $region52: #{tpu_custom_call.1} parent=47 // pred_fallthru
          _
        // Predicated region
        $region53: #{tpu_custom_call.1} parent=47 // pred_check
          %p301 = pneg %p68
        $region54: #{tpu_custom_call.1} parent=47 // pred_check_branch
          %303 = sbr.rel (%p301) target = $region56
        $region55: #{tpu_custom_call.1} parent=47 // pred_region
          %304 = dma.done [#allocation6], 16384
        $region56: #{tpu_custom_call.1} parent=47 // pred_fallthru
          _
        // Predicated region
        $region57: #{tpu_custom_call.1} parent=47 // pred_check
          %p305 = pneg %p89
        $region58: #{tpu_custom_call.1} parent=47 // pred_check_branch
          %307 = sbr.rel (%p305) target = $region60
        $region59: #{tpu_custom_call.1} parent=47 // pred_region
          %308 = dma.done [#allocation6], 256
        $region60: #{tpu_custom_call.1} parent=47 // pred_fallthru
          _
        // Predicated region
        $region61: #{tpu_custom_call.1} parent=47 // pred_check
          %p309 = pneg %p110
        $region62: #{tpu_custom_call.1} parent=47 // pred_check_branch
          %311 = sbr.rel (%p309) target = $region64
        $region63: #{tpu_custom_call.1} parent=47 // pred_region
          %312 = dma.done [#allocation9], 2048
        $region64: #{tpu_custom_call.1} parent=47 // pred_fallthru
          _
        %s313 = sand.u32 %s34, 1
        %s314 = scalar_lea.sflag [#allocation3], %s313
        %s315 = sand.u32 %s34, 1
        %s316 = smul.addr %s315, 64
        %s317 = scalar_lea.vmem [#allocation2], %s316
        %p318 = pneg %p47
        %p319 = pneg %p44
        %p320 = pneg %p68
        %p321 = pneg %p65
        %p322 = pneg %p89
        %p323 = pneg %p86
        %p324 = pneg %p110
        %p325 = pneg %p107
        %p326 = pneg %p131
        %p327 = pneg %p128
        %p328 = pneg %p152
        %p329 = pneg %p149
        %p330 = pneg %p173
        %p331 = pneg %p170
        %p332 = pneg %p199
        %p333 = pneg %p196
        %s334 = sand.u32 %s186, 1
        %s335 = scalar_lea.sflag [#allocation4], %s334
        %s336 = sand.u32 %s186, 1
        %s337 = smul.addr %s336, 128
        %s338 = scalar_lea.vmem [#allocation10], %s337
        %s339 = smul.u32 16, %s26
        %s340 = smul.u32 16, %s26
        %v342 = vld [vmem:[%s296] sm:$0xf]
        %v343 = vld [vmem:[%s296 + $0x4] sm:$0xf]
        %v344 = vld [vmem:[%s296 + $0x8] sm:$0xf]
        %v345 = vld [vmem:[%s296 + $0xc] sm:$0xf]
        %v346 = vld [vmem:[%s296 + $0x10] sm:$0xf]
        %v347 = vld [vmem:[%s296 + $0x14] sm:$0xf]
        %v348 = vld [vmem:[%s296 + $0x18] sm:$0xf]
        %v349 = vld [vmem:[%s296 + $0x1c] sm:$0xf]
        %v350 = vld [vmem:[%s296 + $0x20] sm:$0xf]
        %v351 = vld [vmem:[%s296 + $0x24] sm:$0xf]
        %v352 = vld [vmem:[%s296 + $0x28] sm:$0xf]
        %v353 = vld [vmem:[%s296 + $0x2c] sm:$0xf]
        %v354 = vld [vmem:[%s296 + $0x30] sm:$0xf]
        %v355 = vld [vmem:[%s296 + $0x34] sm:$0xf]
        %v356 = vld [vmem:[%s296 + $0x38] sm:$0xf]
        %v357 = vld [vmem:[%s296 + $0x3c] sm:$0xf]
        %v358 = vld [vmem:[#allocation5] sm:$0xff]
        %v359 = vld [vmem:[#allocation5 + $0x8] sm:$0xff]
        %v360 = vld [vmem:[#allocation5 + $0x10] sm:$0xff]
        %v361 = vld [vmem:[#allocation5 + $0x18] sm:$0xff]
        %v362 = vld [vmem:[#allocation5 + $0x20] sm:$0xff]
        %v363 = vld [vmem:[#allocation5 + $0x28] sm:$0xff]
        %v364 = vld [vmem:[#allocation5 + $0x30] sm:$0xff]
        %v365 = vld [vmem:[#allocation5 + $0x38] sm:$0xff]
        %v366 = vld [vmem:[#allocation5 + $0x40] sm:$0xff]
        %v367 = vld [vmem:[#allocation5 + $0x48] sm:$0xff]
        %v368 = vld [vmem:[#allocation5 + $0x50] sm:$0xff]
        %v369 = vld [vmem:[#allocation5 + $0x58] sm:$0xff]
        %v370 = vld [vmem:[#allocation5 + $0x60] sm:$0xff]
        %v371 = vld [vmem:[#allocation5 + $0x68] sm:$0xff]
        %v372 = vld [vmem:[#allocation5 + $0x70] sm:$0xff]
        %v373 = vld [vmem:[#allocation5 + $0x78] sm:$0xff]
        %v374 = vld [vmem:[#allocation5 + $0x80] sm:$0xff]
        %v375 = vld [vmem:[#allocation5 + $0x88] sm:$0xff]
        %v376 = vld [vmem:[#allocation5 + $0x90] sm:$0xff]
        %v377 = vld [vmem:[#allocation5 + $0x98] sm:$0xff]
        %v378 = vld [vmem:[#allocation5 + $0xa0] sm:$0xff]
        %v379 = vld [vmem:[#allocation5 + $0xa8] sm:$0xff]
        %v380 = vld [vmem:[#allocation5 + $0xb0] sm:$0xff]
        %v381 = vld [vmem:[#allocation5 + $0xb8] sm:$0xff]
        %v382 = vld [vmem:[#allocation5 + $0xc0] sm:$0xff]
        %v383 = vld [vmem:[#allocation5 + $0xc8] sm:$0xff]
        %v384 = vld [vmem:[#allocation5 + $0xd0] sm:$0xff]
        %v385 = vld [vmem:[#allocation5 + $0xd8] sm:$0xff]
        %v386 = vld [vmem:[#allocation5 + $0xe0] sm:$0xff]
        %v387 = vld [vmem:[#allocation5 + $0xe8] sm:$0xff]
        %v388 = vld [vmem:[#allocation5 + $0xf0] sm:$0xff]
        %v389 = vld [vmem:[#allocation5 + $0xf8] sm:$0xff]
        %v390 = vld [vmem:[#allocation5 + $0x100] sm:$0xff]
        %v391 = vld [vmem:[#allocation5 + $0x108] sm:$0xff]
        %v392 = vld [vmem:[#allocation5 + $0x110] sm:$0xff]
        %v393 = vld [vmem:[#allocation5 + $0x118] sm:$0xff]
        %v394 = vld [vmem:[#allocation5 + $0x120] sm:$0xff]
        %v395 = vld [vmem:[#allocation5 + $0x128] sm:$0xff]
        %v396 = vld [vmem:[#allocation5 + $0x130] sm:$0xff]
        %v397 = vld [vmem:[#allocation5 + $0x138] sm:$0xff]
        %v398 = vld [vmem:[#allocation5 + $0x140] sm:$0xff]
        %v399 = vld [vmem:[#allocation5 + $0x148] sm:$0xff]
        %v400 = vld [vmem:[#allocation5 + $0x150] sm:$0xff]
        %v401 = vld [vmem:[#allocation5 + $0x158] sm:$0xff]
        %v402 = vld [vmem:[#allocation5 + $0x160] sm:$0xff]
        %v403 = vld [vmem:[#allocation5 + $0x168] sm:$0xff]
        %v404 = vld [vmem:[#allocation5 + $0x170] sm:$0xff]
        %v405 = vld [vmem:[#allocation5 + $0x178] sm:$0xff]
        %v406 = vld [vmem:[#allocation5 + $0x180] sm:$0xff]
        %v407 = vld [vmem:[#allocation5 + $0x188] sm:$0xff]
        %v408 = vld [vmem:[#allocation5 + $0x190] sm:$0xff]
        %v409 = vld [vmem:[#allocation5 + $0x198] sm:$0xff]
        %v410 = vld [vmem:[#allocation5 + $0x1a0] sm:$0xff]
        %v411 = vld [vmem:[#allocation5 + $0x1a8] sm:$0xff]
        %v412 = vld [vmem:[#allocation5 + $0x1b0] sm:$0xff]
        %v413 = vld [vmem:[#allocation5 + $0x1b8] sm:$0xff]
        %v414 = vld [vmem:[#allocation5 + $0x1c0] sm:$0xff]
        %v415 = vld [vmem:[#allocation5 + $0x1c8] sm:$0xff]
        %v416 = vld [vmem:[#allocation5 + $0x1d0] sm:$0xff]
        %v417 = vld [vmem:[#allocation5 + $0x1d8] sm:$0xff]
        %v418 = vld [vmem:[#allocation5 + $0x1e0] sm:$0xff]
        %v419 = vld [vmem:[#allocation5 + $0x1e8] sm:$0xff]
        %v420 = vld [vmem:[#allocation5 + $0x1f0] sm:$0xff]
        %v421 = vld [vmem:[#allocation5 + $0x1f8] sm:$0xff]
        %v422 = vld [vmem:[#allocation5 + $0x200] sm:$0xff]
        %v423 = vld [vmem:[#allocation5 + $0x208] sm:$0xff]
        %v424 = vld [vmem:[#allocation5 + $0x210] sm:$0xff]
        %v425 = vld [vmem:[#allocation5 + $0x218] sm:$0xff]
        %v426 = vld [vmem:[#allocation5 + $0x220] sm:$0xff]
        %v427 = vld [vmem:[#allocation5 + $0x228] sm:$0xff]
        %v428 = vld [vmem:[#allocation5 + $0x230] sm:$0xff]
        %v429 = vld [vmem:[#allocation5 + $0x238] sm:$0xff]
        %v430 = vld [vmem:[#allocation5 + $0x240] sm:$0xff]
        %v431 = vld [vmem:[#allocation5 + $0x248] sm:$0xff]
        %v432 = vld [vmem:[#allocation5 + $0x250] sm:$0xff]
        %v433 = vld [vmem:[#allocation5 + $0x258] sm:$0xff]
        %v434 = vld [vmem:[#allocation5 + $0x260] sm:$0xff]
        %v435 = vld [vmem:[#allocation5 + $0x268] sm:$0xff]
        %v436 = vld [vmem:[#allocation5 + $0x270] sm:$0xff]
        %v437 = vld [vmem:[#allocation5 + $0x278] sm:$0xff]
        %v438 = vld [vmem:[#allocation5 + $0x280] sm:$0xff]
        %v439 = vld [vmem:[#allocation5 + $0x288] sm:$0xff]
        %v440 = vld [vmem:[#allocation5 + $0x290] sm:$0xff]
        %v441 = vld [vmem:[#allocation5 + $0x298] sm:$0xff]
        %v442 = vld [vmem:[#allocation5 + $0x2a0] sm:$0xff]
        %v443 = vld [vmem:[#allocation5 + $0x2a8] sm:$0xff]
        %v444 = vld [vmem:[#allocation5 + $0x2b0] sm:$0xff]
        %v445 = vld [vmem:[#allocation5 + $0x2b8] sm:$0xff]
        %v446 = vld [vmem:[#allocation5 + $0x2c0] sm:$0xff]
        %v447 = vld [vmem:[#allocation5 + $0x2c8] sm:$0xff]
        %v448 = vld [vmem:[#allocation5 + $0x2d0] sm:$0xff]
        %v449 = vld [vmem:[#allocation5 + $0x2d8] sm:$0xff]
        %v450 = vld [vmem:[#allocation5 + $0x2e0] sm:$0xff]
        %v451 = vld [vmem:[#allocation5 + $0x2e8] sm:$0xff]
        %v452 = vld [vmem:[#allocation5 + $0x2f0] sm:$0xff]
        %v453 = vld [vmem:[#allocation5 + $0x2f8] sm:$0xff]
        %v454 = vld [vmem:[#allocation5 + $0x300] sm:$0xff]
        %v455 = vld [vmem:[#allocation5 + $0x308] sm:$0xff]
        %v456 = vld [vmem:[#allocation5 + $0x310] sm:$0xff]
        %v457 = vld [vmem:[#allocation5 + $0x318] sm:$0xff]
        %v458 = vld [vmem:[#allocation5 + $0x320] sm:$0xff]
        %v459 = vld [vmem:[#allocation5 + $0x328] sm:$0xff]
        %v460 = vld [vmem:[#allocation5 + $0x330] sm:$0xff]
        %v461 = vld [vmem:[#allocation5 + $0x338] sm:$0xff]
        %v462 = vld [vmem:[#allocation5 + $0x340] sm:$0xff]
        %v463 = vld [vmem:[#allocation5 + $0x348] sm:$0xff]
        %v464 = vld [vmem:[#allocation5 + $0x350] sm:$0xff]
        %v465 = vld [vmem:[#allocation5 + $0x358] sm:$0xff]
        %v466 = vld [vmem:[#allocation5 + $0x360] sm:$0xff]
        %v467 = vld [vmem:[#allocation5 + $0x368] sm:$0xff]
        %v468 = vld [vmem:[#allocation5 + $0x370] sm:$0xff]
        %v469 = vld [vmem:[#allocation5 + $0x378] sm:$0xff]
        %v470 = vld [vmem:[#allocation5 + $0x380] sm:$0xff]
        %v471 = vld [vmem:[#allocation5 + $0x388] sm:$0xff]
        %v472 = vld [vmem:[#allocation5 + $0x390] sm:$0xff]
        %v473 = vld [vmem:[#allocation5 + $0x398] sm:$0xff]
        %v474 = vld [vmem:[#allocation5 + $0x3a0] sm:$0xff]
        %v475 = vld [vmem:[#allocation5 + $0x3a8] sm:$0xff]
        %v476 = vld [vmem:[#allocation5 + $0x3b0] sm:$0xff]
        %v477 = vld [vmem:[#allocation5 + $0x3b8] sm:$0xff]
        %v478 = vld [vmem:[#allocation5 + $0x3c0] sm:$0xff]
        %v479 = vld [vmem:[#allocation5 + $0x3c8] sm:$0xff]
        %v480 = vld [vmem:[#allocation5 + $0x3d0] sm:$0xff]
        %v481 = vld [vmem:[#allocation5 + $0x3d8] sm:$0xff]
        %v482 = vld [vmem:[#allocation5 + $0x3e0] sm:$0xff]
        %v483 = vld [vmem:[#allocation5 + $0x3e8] sm:$0xff]
        %v484 = vld [vmem:[#allocation5 + $0x3f0] sm:$0xff]
        %v485 = vld [vmem:[#allocation5 + $0x3f8] sm:$0xff]
        %v486 = vld [vmem:[#allocation7] sm:$0xff]
        %v487 = vld [vmem:[#allocation7 + $0x8] sm:$0xff]
        %v490 = vlaneseq
        %v491 = vshrl.u32 %v490, 7
        %v492 = vsub.s32 0, %v491
        %v493 = vrot.slane %v486, %v492
        %v494 = vlaneseq
        %v495 = vshrl.u32 %v494, 7
        %v496 = vsub.s32 1, %v495
        %v497 = vrot.slane %v486, %v496
        %v498 = vlaneseq
        %v499 = vshrl.u32 %v498, 7
        %v500 = vsub.s32 2, %v499
        %v501 = vrot.slane %v486, %v500
        %v502 = vlaneseq
        %v503 = vshrl.u32 %v502, 7
        %v504 = vsub.s32 3, %v503
        %v505 = vrot.slane %v486, %v504
        %v506 = vlaneseq
        %v507 = vshrl.u32 %v506, 7
        %v508 = vsub.s32 4, %v507
        %v509 = vrot.slane %v486, %v508
        %v510 = vlaneseq
        %v511 = vshrl.u32 %v510, 7
        %v512 = vsub.s32 5, %v511
        %v513 = vrot.slane %v486, %v512
        %v514 = vlaneseq
        %v515 = vshrl.u32 %v514, 7
        %v516 = vsub.s32 6, %v515
        %v517 = vrot.slane %v486, %v516
        %v518 = vlaneseq
        %v519 = vshrl.u32 %v518, 7
        %v520 = vsub.s32 7, %v519
        %v521 = vrot.slane %v486, %v520
        %v522 = vlaneseq
        %v523 = vshrl.u32 %v522, 7
        %v524 = vsub.s32 0, %v523
        %v525 = vrot.slane %v487, %v524
        %v526 = vlaneseq
        %v527 = vshrl.u32 %v526, 7
        %v528 = vsub.s32 1, %v527
        %v529 = vrot.slane %v487, %v528
        %v530 = vlaneseq
        %v531 = vshrl.u32 %v530, 7
        %v532 = vsub.s32 2, %v531
        %v533 = vrot.slane %v487, %v532
        %v534 = vlaneseq
        %v535 = vshrl.u32 %v534, 7
        %v536 = vsub.s32 3, %v535
        %v537 = vrot.slane %v487, %v536
        %v538 = vlaneseq
        %v539 = vshrl.u32 %v538, 7
        %v540 = vsub.s32 4, %v539
        %v541 = vrot.slane %v487, %v540
        %v542 = vlaneseq
        %v543 = vshrl.u32 %v542, 7
        %v544 = vsub.s32 5, %v543
        %v545 = vrot.slane %v487, %v544
        %v546 = vlaneseq
        %v547 = vshrl.u32 %v546, 7
        %v548 = vsub.s32 6, %v547
        %v549 = vrot.slane %v487, %v548
        %v550 = vlaneseq
        %v551 = vshrl.u32 %v550, 7
        %v552 = vsub.s32 7, %v551
        %v553 = vrot.slane %v487, %v552
        %v586 = vunpack.c.l.b16 %v342
        %v587 = vunpack.c.l.b16 %v343
        %v588 = vunpack.c.l.b16 %v344
        %v589 = vunpack.c.l.b16 %v345
        %v590 = vunpack.c.l.b16 %v346
        %v591 = vunpack.c.l.b16 %v347
        %v592 = vunpack.c.l.b16 %v348
        %v593 = vunpack.c.l.b16 %v349
        %v594 = vunpack.c.l.b16 %v350
        %v595 = vunpack.c.l.b16 %v351
        %v596 = vunpack.c.l.b16 %v352
        %v597 = vunpack.c.l.b16 %v353
        %v598 = vunpack.c.l.b16 %v354
        %v599 = vunpack.c.l.b16 %v355
        %v600 = vunpack.c.l.b16 %v356
        %v601 = vunpack.c.l.b16 %v357
        %v602 = vpack.c.b16 %v587, %v586
        %v603 = vpack.c.b16 %v589, %v588
        %v604 = vpack.c.b16 %v591, %v590
        %v605 = vpack.c.b16 %v593, %v592
        %v606 = vpack.c.b16 %v595, %v594
        %v607 = vpack.c.b16 %v597, %v596
        %v608 = vpack.c.b16 %v599, %v598
        %v609 = vpack.c.b16 %v601, %v600
        %v746 = vunpack.c.l.b16 %v358
        %v747 = vunpack.c.h.b16 %v358
        %v748 = vunpack.c.l.b16 %v359
        %v749 = vunpack.c.h.b16 %v359
        %v750 = vunpack.c.l.b16 %v360
        %v751 = vunpack.c.h.b16 %v360
        %v752 = vunpack.c.l.b16 %v361
        %v753 = vunpack.c.h.b16 %v361
        %v754 = vunpack.c.l.b16 %v362
        %v755 = vunpack.c.h.b16 %v362
        %v756 = vunpack.c.l.b16 %v363
        %v757 = vunpack.c.h.b16 %v363
        %v758 = vunpack.c.l.b16 %v364
        %v759 = vunpack.c.h.b16 %v364
        %v760 = vunpack.c.l.b16 %v365
        %v761 = vunpack.c.h.b16 %v365
        %v762 = vunpack.c.l.b16 %v366
        %v763 = vunpack.c.h.b16 %v366
        %v764 = vunpack.c.l.b16 %v367
        %v765 = vunpack.c.h.b16 %v367
        %v766 = vunpack.c.l.b16 %v368
        %v767 = vunpack.c.h.b16 %v368
        %v768 = vunpack.c.l.b16 %v369
        %v769 = vunpack.c.h.b16 %v369
        %v770 = vunpack.c.l.b16 %v370
        %v771 = vunpack.c.h.b16 %v370
        %v772 = vunpack.c.l.b16 %v371
        %v773 = vunpack.c.h.b16 %v371
        %v774 = vunpack.c.l.b16 %v372
        %v775 = vunpack.c.h.b16 %v372
        %v776 = vunpack.c.l.b16 %v373
        %v777 = vunpack.c.h.b16 %v373
        %v778 = vunpack.c.l.b16 %v374
        %v779 = vunpack.c.h.b16 %v374
        %v780 = vunpack.c.l.b16 %v375
        %v781 = vunpack.c.h.b16 %v375
        %v782 = vunpack.c.l.b16 %v376
        %v783 = vunpack.c.h.b16 %v376
        %v784 = vunpack.c.l.b16 %v377
        %v785 = vunpack.c.h.b16 %v377
        %v786 = vunpack.c.l.b16 %v378
        %v787 = vunpack.c.h.b16 %v378
        %v788 = vunpack.c.l.b16 %v379
        %v789 = vunpack.c.h.b16 %v379
        %v790 = vunpack.c.l.b16 %v380
        %v791 = vunpack.c.h.b16 %v380
        %v792 = vunpack.c.l.b16 %v381
        %v793 = vunpack.c.h.b16 %v381
        %v794 = vunpack.c.l.b16 %v382
        %v795 = vunpack.c.h.b16 %v382
        %v796 = vunpack.c.l.b16 %v383
        %v797 = vunpack.c.h.b16 %v383
        %v798 = vunpack.c.l.b16 %v384
        %v799 = vunpack.c.h.b16 %v384
        %v800 = vunpack.c.l.b16 %v385
        %v801 = vunpack.c.h.b16 %v385
        %v802 = vunpack.c.l.b16 %v386
        %v803 = vunpack.c.h.b16 %v386
        %v804 = vunpack.c.l.b16 %v387
        %v805 = vunpack.c.h.b16 %v387
        %v806 = vunpack.c.l.b16 %v388
        %v807 = vunpack.c.h.b16 %v388
        %v808 = vunpack.c.l.b16 %v389
        %v809 = vunpack.c.h.b16 %v389
        %v810 = vunpack.c.l.b16 %v390
        %v811 = vunpack.c.h.b16 %v390
        %v812 = vunpack.c.l.b16 %v391
        %v813 = vunpack.c.h.b16 %v391
        %v814 = vunpack.c.l.b16 %v392
        %v815 = vunpack.c.h.b16 %v392
        %v816 = vunpack.c.l.b16 %v393
        %v817 = vunpack.c.h.b16 %v393
        %v818 = vunpack.c.l.b16 %v394
        %v819 = vunpack.c.h.b16 %v394
        %v820 = vunpack.c.l.b16 %v395
        %v821 = vunpack.c.h.b16 %v395
        %v822 = vunpack.c.l.b16 %v396
        %v823 = vunpack.c.h.b16 %v396
        %v824 = vunpack.c.l.b16 %v397
        %v825 = vunpack.c.h.b16 %v397
        %v826 = vunpack.c.l.b16 %v398
        %v827 = vunpack.c.h.b16 %v398
        %v828 = vunpack.c.l.b16 %v399
        %v829 = vunpack.c.h.b16 %v399
        %v830 = vunpack.c.l.b16 %v400
        %v831 = vunpack.c.h.b16 %v400
        %v832 = vunpack.c.l.b16 %v401
        %v833 = vunpack.c.h.b16 %v401
        %v834 = vunpack.c.l.b16 %v402
        %v835 = vunpack.c.h.b16 %v402
        %v836 = vunpack.c.l.b16 %v403
        %v837 = vunpack.c.h.b16 %v403
        %v838 = vunpack.c.l.b16 %v404
        %v839 = vunpack.c.h.b16 %v404
        %v840 = vunpack.c.l.b16 %v405
        %v841 = vunpack.c.h.b16 %v405
        %v842 = vunpack.c.l.b16 %v406
        %v843 = vunpack.c.h.b16 %v406
        %v844 = vunpack.c.l.b16 %v407
        %v845 = vunpack.c.h.b16 %v407
        %v846 = vunpack.c.l.b16 %v408
        %v847 = vunpack.c.h.b16 %v408
        %v848 = vunpack.c.l.b16 %v409
        %v849 = vunpack.c.h.b16 %v409
        %v850 = vunpack.c.l.b16 %v410
        %v851 = vunpack.c.h.b16 %v410
        %v852 = vunpack.c.l.b16 %v411
        %v853 = vunpack.c.h.b16 %v411
        %v854 = vunpack.c.l.b16 %v412
        %v855 = vunpack.c.h.b16 %v412
        %v856 = vunpack.c.l.b16 %v413
        %v857 = vunpack.c.h.b16 %v413
        %v858 = vunpack.c.l.b16 %v414
        %v859 = vunpack.c.h.b16 %v414
        %v860 = vunpack.c.l.b16 %v415
        %v861 = vunpack.c.h.b16 %v415
        %v862 = vunpack.c.l.b16 %v416
        %v863 = vunpack.c.h.b16 %v416
        %v864 = vunpack.c.l.b16 %v417
        %v865 = vunpack.c.h.b16 %v417
        %v866 = vunpack.c.l.b16 %v418
        %v867 = vunpack.c.h.b16 %v418
        %v868 = vunpack.c.l.b16 %v419
        %v869 = vunpack.c.h.b16 %v419
        %v870 = vunpack.c.l.b16 %v420
        %v871 = vunpack.c.h.b16 %v420
        %v872 = vunpack.c.l.b16 %v421
        %v873 = vunpack.c.h.b16 %v421
        %v874 = vunpack.c.l.b16 %v422
        %v875 = vunpack.c.h.b16 %v422
        %v876 = vunpack.c.l.b16 %v423
        %v877 = vunpack.c.h.b16 %v423
        %v878 = vunpack.c.l.b16 %v424
        %v879 = vunpack.c.h.b16 %v424
        %v880 = vunpack.c.l.b16 %v425
        %v881 = vunpack.c.h.b16 %v425
        %v882 = vunpack.c.l.b16 %v426
        %v883 = vunpack.c.h.b16 %v426
        %v884 = vunpack.c.l.b16 %v427
        %v885 = vunpack.c.h.b16 %v427
        %v886 = vunpack.c.l.b16 %v428
        %v887 = vunpack.c.h.b16 %v428
        %v888 = vunpack.c.l.b16 %v429
        %v889 = vunpack.c.h.b16 %v429
        %v890 = vunpack.c.l.b16 %v430
        %v891 = vunpack.c.h.b16 %v430
        %v892 = vunpack.c.l.b16 %v431
        %v893 = vunpack.c.h.b16 %v431
        %v894 = vunpack.c.l.b16 %v432
        %v895 = vunpack.c.h.b16 %v432
        %v896 = vunpack.c.l.b16 %v433
        %v897 = vunpack.c.h.b16 %v433
        %v898 = vunpack.c.l.b16 %v434
        %v899 = vunpack.c.h.b16 %v434
        %v900 = vunpack.c.l.b16 %v435
        %v901 = vunpack.c.h.b16 %v435
        %v902 = vunpack.c.l.b16 %v436
        %v903 = vunpack.c.h.b16 %v436
        %v904 = vunpack.c.l.b16 %v437
        %v905 = vunpack.c.h.b16 %v437
        %v906 = vunpack.c.l.b16 %v438
        %v907 = vunpack.c.h.b16 %v438
        %v908 = vunpack.c.l.b16 %v439
        %v909 = vunpack.c.h.b16 %v439
        %v910 = vunpack.c.l.b16 %v440
        %v911 = vunpack.c.h.b16 %v440
        %v912 = vunpack.c.l.b16 %v441
        %v913 = vunpack.c.h.b16 %v441
        %v914 = vunpack.c.l.b16 %v442
        %v915 = vunpack.c.h.b16 %v442
        %v916 = vunpack.c.l.b16 %v443
        %v917 = vunpack.c.h.b16 %v443
        %v918 = vunpack.c.l.b16 %v444
        %v919 = vunpack.c.h.b16 %v444
        %v920 = vunpack.c.l.b16 %v445
        %v921 = vunpack.c.h.b16 %v445
        %v922 = vunpack.c.l.b16 %v446
        %v923 = vunpack.c.h.b16 %v446
        %v924 = vunpack.c.l.b16 %v447
        %v925 = vunpack.c.h.b16 %v447
        %v926 = vunpack.c.l.b16 %v448
        %v927 = vunpack.c.h.b16 %v448
        %v928 = vunpack.c.l.b16 %v449
        %v929 = vunpack.c.h.b16 %v449
        %v930 = vunpack.c.l.b16 %v450
        %v931 = vunpack.c.h.b16 %v450
        %v932 = vunpack.c.l.b16 %v451
        %v933 = vunpack.c.h.b16 %v451
        %v934 = vunpack.c.l.b16 %v452
        %v935 = vunpack.c.h.b16 %v452
        %v936 = vunpack.c.l.b16 %v453
        %v937 = vunpack.c.h.b16 %v453
        %v938 = vunpack.c.l.b16 %v454
        %v939 = vunpack.c.h.b16 %v454
        %v940 = vunpack.c.l.b16 %v455
        %v941 = vunpack.c.h.b16 %v455
        %v942 = vunpack.c.l.b16 %v456
        %v943 = vunpack.c.h.b16 %v456
        %v944 = vunpack.c.l.b16 %v457
        %v945 = vunpack.c.h.b16 %v457
        %v946 = vunpack.c.l.b16 %v458
        %v947 = vunpack.c.h.b16 %v458
        %v948 = vunpack.c.l.b16 %v459
        %v949 = vunpack.c.h.b16 %v459
        %v950 = vunpack.c.l.b16 %v460
        %v951 = vunpack.c.h.b16 %v460
        %v952 = vunpack.c.l.b16 %v461
        %v953 = vunpack.c.h.b16 %v461
        %v954 = vunpack.c.l.b16 %v462
        %v955 = vunpack.c.h.b16 %v462
        %v956 = vunpack.c.l.b16 %v463
        %v957 = vunpack.c.h.b16 %v463
        %v958 = vunpack.c.l.b16 %v464
        %v959 = vunpack.c.h.b16 %v464
        %v960 = vunpack.c.l.b16 %v465
        %v961 = vunpack.c.h.b16 %v465
        %v962 = vunpack.c.l.b16 %v466
        %v963 = vunpack.c.h.b16 %v466
        %v964 = vunpack.c.l.b16 %v467
        %v965 = vunpack.c.h.b16 %v467
        %v966 = vunpack.c.l.b16 %v468
        %v967 = vunpack.c.h.b16 %v468
        %v968 = vunpack.c.l.b16 %v469
        %v969 = vunpack.c.h.b16 %v469
        %v970 = vunpack.c.l.b16 %v470
        %v971 = vunpack.c.h.b16 %v470
        %v972 = vunpack.c.l.b16 %v471
        %v973 = vunpack.c.h.b16 %v471
        %v974 = vunpack.c.l.b16 %v472
        %v975 = vunpack.c.h.b16 %v472
        %v976 = vunpack.c.l.b16 %v473
        %v977 = vunpack.c.h.b16 %v473
        %v978 = vunpack.c.l.b16 %v474
        %v979 = vunpack.c.h.b16 %v474
        %v980 = vunpack.c.l.b16 %v475
        %v981 = vunpack.c.h.b16 %v475
        %v982 = vunpack.c.l.b16 %v476
        %v983 = vunpack.c.h.b16 %v476
        %v984 = vunpack.c.l.b16 %v477
        %v985 = vunpack.c.h.b16 %v477
        %v986 = vunpack.c.l.b16 %v478
        %v987 = vunpack.c.h.b16 %v478
        %v988 = vunpack.c.l.b16 %v479
        %v989 = vunpack.c.h.b16 %v479
        %v990 = vunpack.c.l.b16 %v480
        %v991 = vunpack.c.h.b16 %v480
        %v992 = vunpack.c.l.b16 %v481
        %v993 = vunpack.c.h.b16 %v481
        %v994 = vunpack.c.l.b16 %v482
        %v995 = vunpack.c.h.b16 %v482
        %v996 = vunpack.c.l.b16 %v483
        %v997 = vunpack.c.h.b16 %v483
        %v998 = vunpack.c.l.b16 %v484
        %v999 = vunpack.c.h.b16 %v484
        %v1000 = vunpack.c.l.b16 %v485
        %v1001 = vunpack.c.h.b16 %v485
        %v1002 = vpack.c.b16 %v762, %v746
        %v1003 = vpack.c.b16 %v763, %v747
        %v1004 = vpack.c.b16 %v764, %v748
        %v1005 = vpack.c.b16 %v765, %v749
        %v1006 = vpack.c.b16 %v766, %v750
        %v1007 = vpack.c.b16 %v767, %v751
        %v1008 = vpack.c.b16 %v768, %v752
        %v1009 = vpack.c.b16 %v769, %v753
        %v1010 = vpack.c.b16 %v770, %v754
        %v1011 = vpack.c.b16 %v771, %v755
        %v1012 = vpack.c.b16 %v772, %v756
        %v1013 = vpack.c.b16 %v773, %v757
        %v1014 = vpack.c.b16 %v774, %v758
        %v1015 = vpack.c.b16 %v775, %v759
        %v1016 = vpack.c.b16 %v776, %v760
        %v1017 = vpack.c.b16 %v777, %v761
        %v1018 = vpack.c.b16 %v794, %v778
        %v1019 = vpack.c.b16 %v795, %v779
        %v1020 = vpack.c.b16 %v796, %v780
        %v1021 = vpack.c.b16 %v797, %v781
        %v1022 = vpack.c.b16 %v798, %v782
        %v1023 = vpack.c.b16 %v799, %v783
        %v1024 = vpack.c.b16 %v800, %v784
        %v1025 = vpack.c.b16 %v801, %v785
        %v1026 = vpack.c.b16 %v802, %v786
        %v1027 = vpack.c.b16 %v803, %v787
        %v1028 = vpack.c.b16 %v804, %v788
        %v1029 = vpack.c.b16 %v805, %v789
        %v1030 = vpack.c.b16 %v806, %v790
        %v1031 = vpack.c.b16 %v807, %v791
        %v1032 = vpack.c.b16 %v808, %v792
        %v1033 = vpack.c.b16 %v809, %v793
        %v1034 = vpack.c.b16 %v826, %v810
        %v1035 = vpack.c.b16 %v827, %v811
        %v1036 = vpack.c.b16 %v828, %v812
        %v1037 = vpack.c.b16 %v829, %v813
        %v1038 = vpack.c.b16 %v830, %v814
        %v1039 = vpack.c.b16 %v831, %v815
        %v1040 = vpack.c.b16 %v832, %v816
        %v1041 = vpack.c.b16 %v833, %v817
        %v1042 = vpack.c.b16 %v834, %v818
        %v1043 = vpack.c.b16 %v835, %v819
        %v1044 = vpack.c.b16 %v836, %v820
        %v1045 = vpack.c.b16 %v837, %v821
        %v1046 = vpack.c.b16 %v838, %v822
        %v1047 = vpack.c.b16 %v839, %v823
        %v1048 = vpack.c.b16 %v840, %v824
        %v1049 = vpack.c.b16 %v841, %v825
        %v1050 = vpack.c.b16 %v858, %v842
        %v1051 = vpack.c.b16 %v859, %v843
        %v1052 = vpack.c.b16 %v860, %v844
        %v1053 = vpack.c.b16 %v861, %v845
        %v1054 = vpack.c.b16 %v862, %v846
        %v1055 = vpack.c.b16 %v863, %v847
        %v1056 = vpack.c.b16 %v864, %v848
        %v1057 = vpack.c.b16 %v865, %v849
        %v1058 = vpack.c.b16 %v866, %v850
        %v1059 = vpack.c.b16 %v867, %v851
        %v1060 = vpack.c.b16 %v868, %v852
        %v1061 = vpack.c.b16 %v869, %v853
        %v1062 = vpack.c.b16 %v870, %v854
        %v1063 = vpack.c.b16 %v871, %v855
        %v1064 = vpack.c.b16 %v872, %v856
        %v1065 = vpack.c.b16 %v873, %v857
        %v1066 = vpack.c.b16 %v890, %v874
        %v1067 = vpack.c.b16 %v891, %v875
        %v1068 = vpack.c.b16 %v892, %v876
        %v1069 = vpack.c.b16 %v893, %v877
        %v1070 = vpack.c.b16 %v894, %v878
        %v1071 = vpack.c.b16 %v895, %v879
        %v1072 = vpack.c.b16 %v896, %v880
        %v1073 = vpack.c.b16 %v897, %v881
        %v1074 = vpack.c.b16 %v898, %v882
        %v1075 = vpack.c.b16 %v899, %v883
        %v1076 = vpack.c.b16 %v900, %v884
        %v1077 = vpack.c.b16 %v901, %v885
        %v1078 = vpack.c.b16 %v902, %v886
        %v1079 = vpack.c.b16 %v903, %v887
        %v1080 = vpack.c.b16 %v904, %v888
        %v1081 = vpack.c.b16 %v905, %v889
        %v1082 = vpack.c.b16 %v922, %v906
        %v1083 = vpack.c.b16 %v923, %v907
        %v1084 = vpack.c.b16 %v924, %v908
        %v1085 = vpack.c.b16 %v925, %v909
        %v1086 = vpack.c.b16 %v926, %v910
        %v1087 = vpack.c.b16 %v927, %v911
        %v1088 = vpack.c.b16 %v928, %v912
        %v1089 = vpack.c.b16 %v929, %v913
        %v1090 = vpack.c.b16 %v930, %v914
        %v1091 = vpack.c.b16 %v931, %v915
        %v1092 = vpack.c.b16 %v932, %v916
        %v1093 = vpack.c.b16 %v933, %v917
        %v1094 = vpack.c.b16 %v934, %v918
        %v1095 = vpack.c.b16 %v935, %v919
        %v1096 = vpack.c.b16 %v936, %v920
        %v1097 = vpack.c.b16 %v937, %v921
        %v1098 = vpack.c.b16 %v954, %v938
        %v1099 = vpack.c.b16 %v955, %v939
        %v1100 = vpack.c.b16 %v956, %v940
        %v1101 = vpack.c.b16 %v957, %v941
        %v1102 = vpack.c.b16 %v958, %v942
        %v1103 = vpack.c.b16 %v959, %v943
        %v1104 = vpack.c.b16 %v960, %v944
        %v1105 = vpack.c.b16 %v961, %v945
        %v1106 = vpack.c.b16 %v962, %v946
        %v1107 = vpack.c.b16 %v963, %v947
        %v1108 = vpack.c.b16 %v964, %v948
        %v1109 = vpack.c.b16 %v965, %v949
        %v1110 = vpack.c.b16 %v966, %v950
        %v1111 = vpack.c.b16 %v967, %v951
        %v1112 = vpack.c.b16 %v968, %v952
        %v1113 = vpack.c.b16 %v969, %v953
        %v1114 = vpack.c.b16 %v986, %v970
        %v1115 = vpack.c.b16 %v987, %v971
        %v1116 = vpack.c.b16 %v988, %v972
        %v1117 = vpack.c.b16 %v989, %v973
        %v1118 = vpack.c.b16 %v990, %v974
        %v1119 = vpack.c.b16 %v991, %v975
        %v1120 = vpack.c.b16 %v992, %v976
        %v1121 = vpack.c.b16 %v993, %v977
        %v1122 = vpack.c.b16 %v994, %v978
        %v1123 = vpack.c.b16 %v995, %v979
        %v1124 = vpack.c.b16 %v996, %v980
        %v1125 = vpack.c.b16 %v997, %v981
        %v1126 = vpack.c.b16 %v998, %v982
        %v1127 = vpack.c.b16 %v999, %v983
        %v1128 = vpack.c.b16 %v1000, %v984
        %v1129 = vpack.c.b16 %v1001, %v985
        %1258 = vmatprep.subr.bf16.mxu0 %v1003
        %1259 = vmatpush1.bf16.msra.mxu0 %v1002
        %1260 = vmatprep.subr.bf16.mxu0 %v1019
        %1261 = vmatpush1.bf16.msra.mxu0 %v1018
        %1262 = vmatprep.subr.bf16.mxu0 %v1035
        %1263 = vmatpush1.bf16.msra.mxu0 %v1034
        %1264 = vmatprep.subr.bf16.mxu0 %v1051
        %1265 = vmatpush1.bf16.msra.mxu0 %v1050
        %1266 = vmatprep.subr.bf16.mxu0 %v1067
        %1267 = vmatpush1.bf16.msra.mxu0 %v1066
        %1268 = vmatprep.subr.bf16.mxu0 %v1083
        %1269 = vmatpush1.bf16.msra.mxu0 %v1082
        %1270 = vmatprep.subr.bf16.mxu0 %v1099
        %1271 = vmatpush1.bf16.msra.mxu0 %v1098
        %1272 = vmatprep.subr.bf16.mxu0 %v1115
        %1273 = vmatpush1.bf16.msra.mxu0 %v1114
        %1274 = vmatprep.subr.bf16.mxu0 0
        %1275 = vmatpush1.bf16.msra.mxu0 0
        %1276 = vmatprep.subr.bf16.mxu0 0
        %1277 = vmatpush1.bf16.msra.mxu0 0
        %1278 = vmatprep.subr.bf16.mxu0 0
        %1279 = vmatpush1.bf16.msra.mxu0 0
        %1280 = vmatprep.subr.bf16.mxu0 0
        %1281 = vmatpush1.bf16.msra.mxu0 0
        %1282 = vmatprep.subr.bf16.mxu0 0
        %1283 = vmatpush1.bf16.msra.mxu0 0
        %1284 = vmatprep.subr.bf16.mxu0 0
        %1285 = vmatpush1.bf16.msra.mxu0 0
        %1286 = vmatprep.subr.bf16.mxu0 0
        %1287 = vmatpush1.bf16.msra.mxu0 0
        %1288 = vmatprep.subr.bf16.mxu0 0
        %1289 = vmatpush1.bf16.msra.mxu0 0
        %1290 = vmatprep.mubr.bf16.mxu0 0
        %1291 = vmatmul.mubr.bf16.gmra.mrb[0].mxu0 %v602
        %v1292 = vpop.f32.mrb[0].mxu0
        %v1293 = vadd.f32 %v493, %v1292
        %v1294 = vpop.f32.mrb[0].mxu0
        %v1295 = vadd.f32 %v497, %v1294
        %v1296 = vpop.f32.mrb[0].mxu0
        %v1297 = vadd.f32 %v493, %v1296
        %v1298 = vpop.f32.mrb[0].mxu0
        %v1299 = vadd.f32 %v497, %v1298
        %1300 = vmatprep.mubr.bf16.mxu0 0
        %1301 = vmatmul.mubr.bf16.gmra.mrb[0].mxu0 %v603
        %v1302 = vpop.f32.mrb[0].mxu0
        %v1303 = vadd.f32 %v493, %v1302
        %v1304 = vpop.f32.mrb[0].mxu0
        %v1305 = vadd.f32 %v497, %v1304
        %v1306 = vpop.f32.mrb[0].mxu0
        %v1307 = vadd.f32 %v493, %v1306
        %v1308 = vpop.f32.mrb[0].mxu0
        %v1309 = vadd.f32 %v497, %v1308
        %1310 = vmatprep.mubr.bf16.mxu0 0
        %1311 = vmatmul.mubr.bf16.gmra.mrb[0].mxu0 %v604
        %v1312 = vpop.f32.mrb[0].mxu0
        %v1313 = vadd.f32 %v493, %v1312
        %v1314 = vpop.f32.mrb[0].mxu0
        %v1315 = vadd.f32 %v497, %v1314
        %v1316 = vpop.f32.mrb[0].mxu0
        %v1317 = vadd.f32 %v493, %v1316
        %v1318 = vpop.f32.mrb[0].mxu0
        %v1319 = vadd.f32 %v497, %v1318
        %1320 = vmatprep.mubr.bf16.mxu0 0
        %1321 = vmatmul.mubr.bf16.gmra.mrb[0].mxu0 %v605
        %v1322 = vpop.f32.mrb[0].mxu0
        %v1323 = vadd.f32 %v493, %v1322
        %v1324 = vpop.f32.mrb[0].mxu0
        %v1325 = vadd.f32 %v497, %v1324
        %v1326 = vpop.f32.mrb[0].mxu0
        %v1327 = vadd.f32 %v493, %v1326
        %v1328 = vpop.f32.mrb[0].mxu0
        %v1329 = vadd.f32 %v497, %v1328
        %1330 = vmatprep.mubr.bf16.mxu0 0
        %1331 = vmatmul.mubr.bf16.gmra.mrb[0].mxu0 %v606
        %v1332 = vpop.f32.mrb[0].mxu0
        %v1333 = vadd.f32 %v493, %v1332
        %v1334 = vpop.f32.mrb[0].mxu0
        %v1335 = vadd.f32 %v497, %v1334
        %v1336 = vpop.f32.mrb[0].mxu0
        %v1337 = vadd.f32 %v493, %v1336
        %v1338 = vpop.f32.mrb[0].mxu0
        %v1339 = vadd.f32 %v497, %v1338
        %1340 = vmatprep.mubr.bf16.mxu0 0
        %1341 = vmatmul.mubr.bf16.gmra.mrb[0].mxu0 %v607
        %v1342 = vpop.f32.mrb[0].mxu0
        %v1343 = vadd.f32 %v493, %v1342
        %v1344 = vpop.f32.mrb[0].mxu0
        %v1345 = vadd.f32 %v497, %v1344
        %v1346 = vpop.f32.mrb[0].mxu0
        %v1347 = vadd.f32 %v493, %v1346
        %v1348 = vpop.f32.mrb[0].mxu0
        %v1349 = vadd.f32 %v497, %v1348
        %1350 = vmatprep.mubr.bf16.mxu0 0
        %1351 = vmatmul.mubr.bf16.gmra.mrb[0].mxu0 %v608
        %v1352 = vpop.f32.mrb[0].mxu0
        %v1353 = vadd.f32 %v493, %v1352
        %v1354 = vpop.f32.mrb[0].mxu0
        %v1355 = vadd.f32 %v497, %v1354
        %v1356 = vpop.f32.mrb[0].mxu0
        %v1357 = vadd.f32 %v493, %v1356
        %v1358 = vpop.f32.mrb[0].mxu0
        %v1359 = vadd.f32 %v497, %v1358
        %1360 = vmatprep.mubr.bf16.mxu0 0
        %1361 = vmatmul.mubr.bf16.gmra.mrb[0].mxu0 %v609
        %v1362 = vpop.f32.mrb[0].mxu0
        %v1363 = vadd.f32 %v493, %v1362
        %v1364 = vpop.f32.mrb[0].mxu0
        %v1365 = vadd.f32 %v497, %v1364
        %v1366 = vpop.f32.mrb[0].mxu0
        %v1367 = vadd.f32 %v493, %v1366
        %v1368 = vpop.f32.mrb[0].mxu0
        %v1369 = vadd.f32 %v497, %v1368
        %1370 = vdwg.mxu0
        %1371 = vmatprep.subr.bf16.mxu0 %v1005
        %1372 = vmatpush1.bf16.msra.mxu0 %v1004
        %1373 = vmatprep.subr.bf16.mxu0 %v1021
        %1374 = vmatpush1.bf16.msra.mxu0 %v1020
        %1375 = vmatprep.subr.bf16.mxu0 %v1037
        %1376 = vmatpush1.bf16.msra.mxu0 %v1036
        %1377 = vmatprep.subr.bf16.mxu0 %v1053
        %1378 = vmatpush1.bf16.msra.mxu0 %v1052
        %1379 = vmatprep.subr.bf16.mxu0 %v1069
        %1380 = vmatpush1.bf16.msra.mxu0 %v1068
        %1381 = vmatprep.subr.bf16.mxu0 %v1085
        %1382 = vmatpush1.bf16.msra.mxu0 %v1084
        %1383 = vmatprep.subr.bf16.mxu0 %v1101
        %1384 = vmatpush1.bf16.msra.mxu0 %v1100
        %1385 = vmatprep.subr.bf16.mxu0 %v1117
        %1386 = vmatpush1.bf16.msra.mxu0 %v1116
        %1387 = vmatprep.subr.bf16.mxu0 0
        %1388 = vmatpush1.bf16.msra.mxu0 0
        %1389 = vmatprep.subr.bf16.mxu0 0
        %1390 = vmatpush1.bf16.msra.mxu0 0
        %1391 = vmatprep.subr.bf16.mxu0 0
        %1392 = vmatpush1.bf16.msra.mxu0 0
        %1393 = vmatprep.subr.bf16.mxu0 0
        %1394 = vmatpush1.bf16.msra.mxu0 0
        %1395 = vmatprep.subr.bf16.mxu0 0
        %1396 = vmatpush1.bf16.msra.mxu0 0
        %1397 = vmatprep.subr.bf16.mxu0 0
        %1398 = vmatpush1.bf16.msra.mxu0 0
        %1399 = vmatprep.subr.bf16.mxu0 0
        %1400 = vmatpush1.bf16.msra.mxu0 0
        %1401 = vmatprep.subr.bf16.mxu0 0
        %1402 = vmatpush1.bf16.msra.mxu0 0
        %1403 = vmatprep.mubr.bf16.mxu0 0
        %1404 = vmatmul.mubr.bf16.gmra.mrb[0].mxu0 %v602
        %v1405 = vpop.f32.mrb[0].mxu0
        %v1406 = vadd.f32 %v501, %v1405
        %v1407 = vpop.f32.mrb[0].mxu0
        %v1408 = vadd.f32 %v505, %v1407
        %v1409 = vpop.f32.mrb[0].mxu0
        %v1410 = vadd.f32 %v501, %v1409
        %v1411 = vpop.f32.mrb[0].mxu0
        %v1412 = vadd.f32 %v505, %v1411
        %1413 = vmatprep.mubr.bf16.mxu0 0
        %1414 = vmatmul.mubr.bf16.gmra.mrb[0].mxu0 %v603
        %v1415 = vpop.f32.mrb[0].mxu0
        %v1416 = vadd.f32 %v501, %v1415
        %v1417 = vpop.f32.mrb[0].mxu0
        %v1418 = vadd.f32 %v505, %v1417
        %v1419 = vpop.f32.mrb[0].mxu0
        %v1420 = vadd.f32 %v501, %v1419
        %v1421 = vpop.f32.mrb[0].mxu0
        %v1422 = vadd.f32 %v505, %v1421
        %1423 = vmatprep.mubr.bf16.mxu0 0
        %1424 = vmatmul.mubr.bf16.gmra.mrb[0].mxu0 %v604
        %v1425 = vpop.f32.mrb[0].mxu0
        %v1426 = vadd.f32 %v501, %v1425
        %v1427 = vpop.f32.mrb[0].mxu0
        %v1428 = vadd.f32 %v505, %v1427
        %v1429 = vpop.f32.mrb[0].mxu0
        %v1430 = vadd.f32 %v501, %v1429
        %v1431 = vpop.f32.mrb[0].mxu0
        %v1432 = vadd.f32 %v505, %v1431
        %1433 = vmatprep.mubr.bf16.mxu0 0
        %1434 = vmatmul.mubr.bf16.gmra.mrb[0].mxu0 %v605
        %v1435 = vpop.f32.mrb[0].mxu0
        %v1436 = vadd.f32 %v501, %v1435
        %v1437 = vpop.f32.mrb[0].mxu0
        %v1438 = vadd.f32 %v505, %v1437
        %v1439 = vpop.f32.mrb[0].mxu0
        %v1440 = vadd.f32 %v501, %v1439
        %v1441 = vpop.f32.mrb[0].mxu0
        %v1442 = vadd.f32 %v505, %v1441
        %1443 = vmatprep.mubr.bf16.mxu0 0
        %1444 = vmatmul.mubr.bf16.gmra.mrb[0].mxu0 %v606
        %v1445 = vpop.f32.mrb[0].mxu0
        %v1446 = vadd.f32 %v501, %v1445
        %v1447 = vpop.f32.mrb[0].mxu0
        %v1448 = vadd.f32 %v505, %v1447
        %v1449 = vpop.f32.mrb[0].mxu0
        %v1450 = vadd.f32 %v501, %v1449
        %v1451 = vpop.f32.mrb[0].mxu0
        %v1452 = vadd.f32 %v505, %v1451
        %1453 = vmatprep.mubr.bf16.mxu0 0
        %1454 = vmatmul.mubr.bf16.gmra.mrb[0].mxu0 %v607
        %v1455 = vpop.f32.mrb[0].mxu0
        %v1456 = vadd.f32 %v501, %v1455
        %v1457 = vpop.f32.mrb[0].mxu0
        %v1458 = vadd.f32 %v505, %v1457
        %v1459 = vpop.f32.mrb[0].mxu0
        %v1460 = vadd.f32 %v501, %v1459
        %v1461 = vpop.f32.mrb[0].mxu0
        %v1462 = vadd.f32 %v505, %v1461
        %1463 = vmatprep.mubr.bf16.mxu0 0
        %1464 = vmatmul.mubr.bf16.gmra.mrb[0].mxu0 %v608
        %v1465 = vpop.f32.mrb[0].mxu0
        %v1466 = vadd.f32 %v501, %v1465
        %v1467 = vpop.f32.mrb[0].mxu0
        %v1468 = vadd.f32 %v505, %v1467
        %v1469 = vpop.f32.mrb[0].mxu0
        %v1470 = vadd.f32 %v501, %v1469
        %v1471 = vpop.f32.mrb[0].mxu0
        %v1472 = vadd.f32 %v505, %v1471
        %1473 = vmatprep.mubr.bf16.mxu0 0
        %1474 = vmatmul.mubr.bf16.gmra.mrb[0].mxu0 %v609
        %v1475 = vpop.f32.mrb[0].mxu0
        %v1476 = vadd.f32 %v501, %v1475
        %v1477 = vpop.f32.mrb[0].mxu0
        %v1478 = vadd.f32 %v505, %v1477
        %v1479 = vpop.f32.mrb[0].mxu0
        %v1480 = vadd.f32 %v501, %v1479
        %v1481 = vpop.f32.mrb[0].mxu0
        %v1482 = vadd.f32 %v505, %v1481
        %1483 = vdwg.mxu0
        %1484 = vmatprep.subr.bf16.mxu0 %v1007
        %1485 = vmatpush1.bf16.msra.mxu0 %v1006
        %1486 = vmatprep.subr.bf16.mxu0 %v1023
        %1487 = vmatpush1.bf16.msra.mxu0 %v1022
        %1488 = vmatprep.subr.bf16.mxu0 %v1039
        %1489 = vmatpush1.bf16.msra.mxu0 %v1038
        %1490 = vmatprep.subr.bf16.mxu0 %v1055
        %1491 = vmatpush1.bf16.msra.mxu0 %v1054
        %1492 = vmatprep.subr.bf16.mxu0 %v1071
        %1493 = vmatpush1.bf16.msra.mxu0 %v1070
        %1494 = vmatprep.subr.bf16.mxu0 %v1087
        %1495 = vmatpush1.bf16.msra.mxu0 %v1086
        %1496 = vmatprep.subr.bf16.mxu0 %v1103
        %1497 = vmatpush1.bf16.msra.mxu0 %v1102
        %1498 = vmatprep.subr.bf16.mxu0 %v1119
        %1499 = vmatpush1.bf16.msra.mxu0 %v1118
        %1500 = vmatprep.subr.bf16.mxu0 0
        %1501 = vmatpush1.bf16.msra.mxu0 0
        %1502 = vmatprep.subr.bf16.mxu0 0
        %1503 = vmatpush1.bf16.msra.mxu0 0
        %1504 = vmatprep.subr.bf16.mxu0 0
        %1505 = vmatpush1.bf16.msra.mxu0 0
        %1506 = vmatprep.subr.bf16.mxu0 0
        %1507 = vmatpush1.bf16.msra.mxu0 0
        %1508 = vmatprep.subr.bf16.mxu0 0
        %1509 = vmatpush1.bf16.msra.mxu0 0
        %1510 = vmatprep.subr.bf16.mxu0 0
        %1511 = vmatpush1.bf16.msra.mxu0 0
        %1512 = vmatprep.subr.bf16.mxu0 0
        %1513 = vmatpush1.bf16.msra.mxu0 0
        %1514 = vmatprep.subr.bf16.mxu0 0
        %1515 = vmatpush1.bf16.msra.mxu0 0
        %1516 = vmatprep.mubr.bf16.mxu0 0
        %1517 = vmatmul.mubr.bf16.gmra.mrb[0].mxu0 %v602
        %v1518 = vpop.f32.mrb[0].mxu0
        %v1519 = vadd.f32 %v509, %v1518
        %v1520 = vpop.f32.mrb[0].mxu0
        %v1521 = vadd.f32 %v513, %v1520
        %v1522 = vpop.f32.mrb[0].mxu0
        %v1523 = vadd.f32 %v509, %v1522
        %v1524 = vpop.f32.mrb[0].mxu0
        %v1525 = vadd.f32 %v513, %v1524
        %1526 = vmatprep.mubr.bf16.mxu0 0
        %1527 = vmatmul.mubr.bf16.gmra.mrb[0].mxu0 %v603
        %v1528 = vpop.f32.mrb[0].mxu0
        %v1529 = vadd.f32 %v509, %v1528
        %v1530 = vpop.f32.mrb[0].mxu0
        %v1531 = vadd.f32 %v513, %v1530
        %v1532 = vpop.f32.mrb[0].mxu0
        %v1533 = vadd.f32 %v509, %v1532
        %v1534 = vpop.f32.mrb[0].mxu0
        %v1535 = vadd.f32 %v513, %v1534
        %1536 = vmatprep.mubr.bf16.mxu0 0
        %1537 = vmatmul.mubr.bf16.gmra.mrb[0].mxu0 %v604
        %v1538 = vpop.f32.mrb[0].mxu0
        %v1539 = vadd.f32 %v509, %v1538
        %v1540 = vpop.f32.mrb[0].mxu0
        %v1541 = vadd.f32 %v513, %v1540
        %v1542 = vpop.f32.mrb[0].mxu0
        %v1543 = vadd.f32 %v509, %v1542
        %v1544 = vpop.f32.mrb[0].mxu0
        %v1545 = vadd.f32 %v513, %v1544
        %1546 = vmatprep.mubr.bf16.mxu0 0
        %1547 = vmatmul.mubr.bf16.gmra.mrb[0].mxu0 %v605
        %v1548 = vpop.f32.mrb[0].mxu0
        %v1549 = vadd.f32 %v509, %v1548
        %v1550 = vpop.f32.mrb[0].mxu0
        %v1551 = vadd.f32 %v513, %v1550
        %v1552 = vpop.f32.mrb[0].mxu0
        %v1553 = vadd.f32 %v509, %v1552
        %v1554 = vpop.f32.mrb[0].mxu0
        %v1555 = vadd.f32 %v513, %v1554
        %1556 = vmatprep.mubr.bf16.mxu0 0
        %1557 = vmatmul.mubr.bf16.gmra.mrb[0].mxu0 %v606
        %v1558 = vpop.f32.mrb[0].mxu0
        %v1559 = vadd.f32 %v509, %v1558
        %v1560 = vpop.f32.mrb[0].mxu0
        %v1561 = vadd.f32 %v513, %v1560
        %v1562 = vpop.f32.mrb[0].mxu0
        %v1563 = vadd.f32 %v509, %v1562
        %v1564 = vpop.f32.mrb[0].mxu0
        %v1565 = vadd.f32 %v513, %v1564
        %1566 = vmatprep.mubr.bf16.mxu0 0
        %1567 = vmatmul.mubr.bf16.gmra.mrb[0].mxu0 %v607
        %v1568 = vpop.f32.mrb[0].mxu0
        %v1569 = vadd.f32 %v509, %v1568
        %v1570 = vpop.f32.mrb[0].mxu0
        %v1571 = vadd.f32 %v513, %v1570
        %v1572 = vpop.f32.mrb[0].mxu0
        %v1573 = vadd.f32 %v509, %v1572
        %v1574 = vpop.f32.mrb[0].mxu0
        %v1575 = vadd.f32 %v513, %v1574
        %1576 = vmatprep.mubr.bf16.mxu0 0
        %1577 = vmatmul.mubr.bf16.gmra.mrb[0].mxu0 %v608
        %v1578 = vpop.f32.mrb[0].mxu0
        %v1579 = vadd.f32 %v509, %v1578
        %v1580 = vpop.f32.mrb[0].mxu0
        %v1581 = vadd.f32 %v513, %v1580
        %v1582 = vpop.f32.mrb[0].mxu0
        %v1583 = vadd.f32 %v509, %v1582
        %v1584 = vpop.f32.mrb[0].mxu0
        %v1585 = vadd.f32 %v513, %v1584
        %1586 = vmatprep.mubr.bf16.mxu0 0
        %1587 = vmatmul.mubr.bf16.gmra.mrb[0].mxu0 %v609
        %v1588 = vpop.f32.mrb[0].mxu0
        %v1589 = vadd.f32 %v509, %v1588
        %v1590 = vpop.f32.mrb[0].mxu0
        %v1591 = vadd.f32 %v513, %v1590
        %v1592 = vpop.f32.mrb[0].mxu0
        %v1593 = vadd.f32 %v509, %v1592
        %v1594 = vpop.f32.mrb[0].mxu0
        %v1595 = vadd.f32 %v513, %v1594
        %1596 = vdwg.mxu0
        %1597 = vmatprep.subr.bf16.mxu0 %v1009
        %1598 = vmatpush1.bf16.msra.mxu0 %v1008
        %1599 = vmatprep.subr.bf16.mxu0 %v1025
        %1600 = vmatpush1.bf16.msra.mxu0 %v1024
        %1601 = vmatprep.subr.bf16.mxu0 %v1041
        %1602 = vmatpush1.bf16.msra.mxu0 %v1040
        %1603 = vmatprep.subr.bf16.mxu0 %v1057
        %1604 = vmatpush1.bf16.msra.mxu0 %v1056
        %1605 = vmatprep.subr.bf16.mxu0 %v1073
        %1606 = vmatpush1.bf16.msra.mxu0 %v1072
        %1607 = vmatprep.subr.bf16.mxu0 %v1089
        %1608 = vmatpush1.bf16.msra.mxu0 %v1088
        %1609 = vmatprep.subr.bf16.mxu0 %v1105
        %1610 = vmatpush1.bf16.msra.mxu0 %v1104
        %1611 = vmatprep.subr.bf16.mxu0 %v1121
        %1612 = vmatpush1.bf16.msra.mxu0 %v1120
        %1613 = vmatprep.subr.bf16.mxu0 0
        %1614 = vmatpush1.bf16.msra.mxu0 0
        %1615 = vmatprep.subr.bf16.mxu0 0
        %1616 = vmatpush1.bf16.msra.mxu0 0
        %1617 = vmatprep.subr.bf16.mxu0 0
        %1618 = vmatpush1.bf16.msra.mxu0 0
        %1619 = vmatprep.subr.bf16.mxu0 0
        %1620 = vmatpush1.bf16.msra.mxu0 0
        %1621 = vmatprep.subr.bf16.mxu0 0
        %1622 = vmatpush1.bf16.msra.mxu0 0
        %1623 = vmatprep.subr.bf16.mxu0 0
        %1624 = vmatpush1.bf16.msra.mxu0 0
        %1625 = vmatprep.subr.bf16.mxu0 0
        %1626 = vmatpush1.bf16.msra.mxu0 0
        %1627 = vmatprep.subr.bf16.mxu0 0
        %1628 = vmatpush1.bf16.msra.mxu0 0
        %1629 = vmatprep.mubr.bf16.mxu0 0
        %1630 = vmatmul.mubr.bf16.gmra.mrb[0].mxu0 %v602
        %v1631 = vpop.f32.mrb[0].mxu0
        %v1632 = vadd.f32 %v517, %v1631
        %v1633 = vpop.f32.mrb[0].mxu0
        %v1634 = vadd.f32 %v521, %v1633
        %v1635 = vpop.f32.mrb[0].mxu0
        %v1636 = vadd.f32 %v517, %v1635
        %v1637 = vpop.f32.mrb[0].mxu0
        %v1638 = vadd.f32 %v521, %v1637
        %1639 = vmatprep.mubr.bf16.mxu0 0
        %1640 = vmatmul.mubr.bf16.gmra.mrb[0].mxu0 %v603
        %v1641 = vpop.f32.mrb[0].mxu0
        %v1642 = vadd.f32 %v517, %v1641
        %v1643 = vpop.f32.mrb[0].mxu0
        %v1644 = vadd.f32 %v521, %v1643
        %v1645 = vpop.f32.mrb[0].mxu0
        %v1646 = vadd.f32 %v517, %v1645
        %v1647 = vpop.f32.mrb[0].mxu0
        %v1648 = vadd.f32 %v521, %v1647
        %1649 = vmatprep.mubr.bf16.mxu0 0
        %1650 = vmatmul.mubr.bf16.gmra.mrb[0].mxu0 %v604
        %v1651 = vpop.f32.mrb[0].mxu0
        %v1652 = vadd.f32 %v517, %v1651
        %v1653 = vpop.f32.mrb[0].mxu0
        %v1654 = vadd.f32 %v521, %v1653
        %v1655 = vpop.f32.mrb[0].mxu0
        %v1656 = vadd.f32 %v517, %v1655
        %v1657 = vpop.f32.mrb[0].mxu0
        %v1658 = vadd.f32 %v521, %v1657
        %1659 = vmatprep.mubr.bf16.mxu0 0
        %1660 = vmatmul.mubr.bf16.gmra.mrb[0].mxu0 %v605
        %v1661 = vpop.f32.mrb[0].mxu0
        %v1662 = vadd.f32 %v517, %v1661
        %v1663 = vpop.f32.mrb[0].mxu0
        %v1664 = vadd.f32 %v521, %v1663
        %v1665 = vpop.f32.mrb[0].mxu0
        %v1666 = vadd.f32 %v517, %v1665
        %v1667 = vpop.f32.mrb[0].mxu0
        %v1668 = vadd.f32 %v521, %v1667
        %1669 = vmatprep.mubr.bf16.mxu0 0
        %1670 = vmatmul.mubr.bf16.gmra.mrb[0].mxu0 %v606
        %v1671 = vpop.f32.mrb[0].mxu0
        %v1672 = vadd.f32 %v517, %v1671
        %v1673 = vpop.f32.mrb[0].mxu0
        %v1674 = vadd.f32 %v521, %v1673
        %v1675 = vpop.f32.mrb[0].mxu0
        %v1676 = vadd.f32 %v517, %v1675
        %v1677 = vpop.f32.mrb[0].mxu0
        %v1678 = vadd.f32 %v521, %v1677
        %1679 = vmatprep.mubr.bf16.mxu0 0
        %1680 = vmatmul.mubr.bf16.gmra.mrb[0].mxu0 %v607
        %v1681 = vpop.f32.mrb[0].mxu0
        %v1682 = vadd.f32 %v517, %v1681
        %v1683 = vpop.f32.mrb[0].mxu0
        %v1684 = vadd.f32 %v521, %v1683
        %v1685 = vpop.f32.mrb[0].mxu0
        %v1686 = vadd.f32 %v517, %v1685
        %v1687 = vpop.f32.mrb[0].mxu0
        %v1688 = vadd.f32 %v521, %v1687
        %1689 = vmatprep.mubr.bf16.mxu0 0
        %1690 = vmatmul.mubr.bf16.gmra.mrb[0].mxu0 %v608
        %v1691 = vpop.f32.mrb[0].mxu0
        %v1692 = vadd.f32 %v517, %v1691
        %v1693 = vpop.f32.mrb[0].mxu0
        %v1694 = vadd.f32 %v521, %v1693
        %v1695 = vpop.f32.mrb[0].mxu0
        %v1696 = vadd.f32 %v517, %v1695
        %v1697 = vpop.f32.mrb[0].mxu0
        %v1698 = vadd.f32 %v521, %v1697
        %1699 = vmatprep.mubr.bf16.mxu0 0
        %1700 = vmatmul.mubr.bf16.gmra.mrb[0].mxu0 %v609
        %v1701 = vpop.f32.mrb[0].mxu0
        %v1702 = vadd.f32 %v517, %v1701
        %v1703 = vpop.f32.mrb[0].mxu0
        %v1704 = vadd.f32 %v521, %v1703
        %v1705 = vpop.f32.mrb[0].mxu0
        %v1706 = vadd.f32 %v517, %v1705
        %v1707 = vpop.f32.mrb[0].mxu0
        %v1708 = vadd.f32 %v521, %v1707
        %1709 = vdwg.mxu0
        %1710 = vmatprep.subr.bf16.mxu0 %v1011
        %1711 = vmatpush1.bf16.msra.mxu0 %v1010
        %1712 = vmatprep.subr.bf16.mxu0 %v1027
        %1713 = vmatpush1.bf16.msra.mxu0 %v1026
        %1714 = vmatprep.subr.bf16.mxu0 %v1043
        %1715 = vmatpush1.bf16.msra.mxu0 %v1042
        %1716 = vmatprep.subr.bf16.mxu0 %v1059
        %1717 = vmatpush1.bf16.msra.mxu0 %v1058
        %1718 = vmatprep.subr.bf16.mxu0 %v1075
        %1719 = vmatpush1.bf16.msra.mxu0 %v1074
        %1720 = vmatprep.subr.bf16.mxu0 %v1091
        %1721 = vmatpush1.bf16.msra.mxu0 %v1090
        %1722 = vmatprep.subr.bf16.mxu0 %v1107
        %1723 = vmatpush1.bf16.msra.mxu0 %v1106
        %1724 = vmatprep.subr.bf16.mxu0 %v1123
        %1725 = vmatpush1.bf16.msra.mxu0 %v1122
        %1726 = vmatprep.subr.bf16.mxu0 0
        %1727 = vmatpush1.bf16.msra.mxu0 0
        %1728 = vmatprep.subr.bf16.mxu0 0
        %1729 = vmatpush1.bf16.msra.mxu0 0
        %1730 = vmatprep.subr.bf16.mxu0 0
        %1731 = vmatpush1.bf16.msra.mxu0 0
        %1732 = vmatprep.subr.bf16.mxu0 0
        %1733 = vmatpush1.bf16.msra.mxu0 0
        %1734 = vmatprep.subr.bf16.mxu0 0
        %1735 = vmatpush1.bf16.msra.mxu0 0
        %1736 = vmatprep.subr.bf16.mxu0 0
        %1737 = vmatpush1.bf16.msra.mxu0 0
        %1738 = vmatprep.subr.bf16.mxu0 0
        %1739 = vmatpush1.bf16.msra.mxu0 0
        %1740 = vmatprep.subr.bf16.mxu0 0
        %1741 = vmatpush1.bf16.msra.mxu0 0
        %1742 = vmatprep.mubr.bf16.mxu0 0
        %1743 = vmatmul.mubr.bf16.gmra.mrb[0].mxu0 %v602
        %v1744 = vpop.f32.mrb[0].mxu0
        %v1745 = vadd.f32 %v525, %v1744
        %v1746 = vpop.f32.mrb[0].mxu0
        %v1747 = vadd.f32 %v529, %v1746
        %v1748 = vpop.f32.mrb[0].mxu0
        %v1749 = vadd.f32 %v525, %v1748
        %v1750 = vpop.f32.mrb[0].mxu0
        %v1751 = vadd.f32 %v529, %v1750
        %1752 = vmatprep.mubr.bf16.mxu0 0
        %1753 = vmatmul.mubr.bf16.gmra.mrb[0].mxu0 %v603
        %v1754 = vpop.f32.mrb[0].mxu0
        %v1755 = vadd.f32 %v525, %v1754
        %v1756 = vpop.f32.mrb[0].mxu0
        %v1757 = vadd.f32 %v529, %v1756
        %v1758 = vpop.f32.mrb[0].mxu0
        %v1759 = vadd.f32 %v525, %v1758
        %v1760 = vpop.f32.mrb[0].mxu0
        %v1761 = vadd.f32 %v529, %v1760
        %1762 = vmatprep.mubr.bf16.mxu0 0
        %1763 = vmatmul.mubr.bf16.gmra.mrb[0].mxu0 %v604
        %v1764 = vpop.f32.mrb[0].mxu0
        %v1765 = vadd.f32 %v525, %v1764
        %v1766 = vpop.f32.mrb[0].mxu0
        %v1767 = vadd.f32 %v529, %v1766
        %v1768 = vpop.f32.mrb[0].mxu0
        %v1769 = vadd.f32 %v525, %v1768
        %v1770 = vpop.f32.mrb[0].mxu0
        %v1771 = vadd.f32 %v529, %v1770
        %1772 = vmatprep.mubr.bf16.mxu0 0
        %1773 = vmatmul.mubr.bf16.gmra.mrb[0].mxu0 %v605
        %v1774 = vpop.f32.mrb[0].mxu0
        %v1775 = vadd.f32 %v525, %v1774
        %v1776 = vpop.f32.mrb[0].mxu0
        %v1777 = vadd.f32 %v529, %v1776
        %v1778 = vpop.f32.mrb[0].mxu0
        %v1779 = vadd.f32 %v525, %v1778
        %v1780 = vpop.f32.mrb[0].mxu0
        %v1781 = vadd.f32 %v529, %v1780
        %1782 = vmatprep.mubr.bf16.mxu0 0
        %1783 = vmatmul.mubr.bf16.gmra.mrb[0].mxu0 %v606
        %v1784 = vpop.f32.mrb[0].mxu0
        %v1785 = vadd.f32 %v525, %v1784
        %v1786 = vpop.f32.mrb[0].mxu0
        %v1787 = vadd.f32 %v529, %v1786
        %v1788 = vpop.f32.mrb[0].mxu0
        %v1789 = vadd.f32 %v525, %v1788
        %v1790 = vpop.f32.mrb[0].mxu0
        %v1791 = vadd.f32 %v529, %v1790
        %1792 = vmatprep.mubr.bf16.mxu0 0
        %1793 = vmatmul.mubr.bf16.gmra.mrb[0].mxu0 %v607
        %v1794 = vpop.f32.mrb[0].mxu0
        %v1795 = vadd.f32 %v525, %v1794
        %v1796 = vpop.f32.mrb[0].mxu0
        %v1797 = vadd.f32 %v529, %v1796
        %v1798 = vpop.f32.mrb[0].mxu0
        %v1799 = vadd.f32 %v525, %v1798
        %v1800 = vpop.f32.mrb[0].mxu0
        %v1801 = vadd.f32 %v529, %v1800
        %1802 = vmatprep.mubr.bf16.mxu0 0
        %1803 = vmatmul.mubr.bf16.gmra.mrb[0].mxu0 %v608
        %v1804 = vpop.f32.mrb[0].mxu0
        %v1805 = vadd.f32 %v525, %v1804
        %v1806 = vpop.f32.mrb[0].mxu0
        %v1807 = vadd.f32 %v529, %v1806
        %v1808 = vpop.f32.mrb[0].mxu0
        %v1809 = vadd.f32 %v525, %v1808
        %v1810 = vpop.f32.mrb[0].mxu0
        %v1811 = vadd.f32 %v529, %v1810
        %1812 = vmatprep.mubr.bf16.mxu0 0
        %1813 = vmatmul.mubr.bf16.gmra.mrb[0].mxu0 %v609
        %v1814 = vpop.f32.mrb[0].mxu0
        %v1815 = vadd.f32 %v525, %v1814
        %v1816 = vpop.f32.mrb[0].mxu0
        %v1817 = vadd.f32 %v529, %v1816
        %v1818 = vpop.f32.mrb[0].mxu0
        %v1819 = vadd.f32 %v525, %v1818
        %v1820 = vpop.f32.mrb[0].mxu0
        %v1821 = vadd.f32 %v529, %v1820
        %1822 = vdwg.mxu0
        %1823 = vmatprep.subr.bf16.mxu0 %v1013
        %1824 = vmatpush1.bf16.msra.mxu0 %v1012
        %1825 = vmatprep.subr.bf16.mxu0 %v1029
        %1826 = vmatpush1.bf16.msra.mxu0 %v1028
        %1827 = vmatprep.subr.bf16.mxu0 %v1045
        %1828 = vmatpush1.bf16.msra.mxu0 %v1044
        %1829 = vmatprep.subr.bf16.mxu0 %v1061
        %1830 = vmatpush1.bf16.msra.mxu0 %v1060
        %1831 = vmatprep.subr.bf16.mxu0 %v1077
        %1832 = vmatpush1.bf16.msra.mxu0 %v1076
        %1833 = vmatprep.subr.bf16.mxu0 %v1093
        %1834 = vmatpush1.bf16.msra.mxu0 %v1092
        %1835 = vmatprep.subr.bf16.mxu0 %v1109
        %1836 = vmatpush1.bf16.msra.mxu0 %v1108
        %1837 = vmatprep.subr.bf16.mxu0 %v1125
        %1838 = vmatpush1.bf16.msra.mxu0 %v1124
        %1839 = vmatprep.subr.bf16.mxu0 0
        %1840 = vmatpush1.bf16.msra.mxu0 0
        %1841 = vmatprep.subr.bf16.mxu0 0
        %1842 = vmatpush1.bf16.msra.mxu0 0
        %1843 = vmatprep.subr.bf16.mxu0 0
        %1844 = vmatpush1.bf16.msra.mxu0 0
        %1845 = vmatprep.subr.bf16.mxu0 0
        %1846 = vmatpush1.bf16.msra.mxu0 0
        %1847 = vmatprep.subr.bf16.mxu0 0
        %1848 = vmatpush1.bf16.msra.mxu0 0
        %1849 = vmatprep.subr.bf16.mxu0 0
        %1850 = vmatpush1.bf16.msra.mxu0 0
        %1851 = vmatprep.subr.bf16.mxu0 0
        %1852 = vmatpush1.bf16.msra.mxu0 0
        %1853 = vmatprep.subr.bf16.mxu0 0
        %1854 = vmatpush1.bf16.msra.mxu0 0
        %1855 = vmatprep.mubr.bf16.mxu0 0
        %1856 = vmatmul.mubr.bf16.gmra.mrb[0].mxu0 %v602
        %v1857 = vpop.f32.mrb[0].mxu0
        %v1858 = vadd.f32 %v533, %v1857
        %v1859 = vpop.f32.mrb[0].mxu0
        %v1860 = vadd.f32 %v537, %v1859
        %v1861 = vpop.f32.mrb[0].mxu0
        %v1862 = vadd.f32 %v533, %v1861
        %v1863 = vpop.f32.mrb[0].mxu0
        %v1864 = vadd.f32 %v537, %v1863
        %1865 = vmatprep.mubr.bf16.mxu0 0
        %1866 = vmatmul.mubr.bf16.gmra.mrb[0].mxu0 %v603
        %v1867 = vpop.f32.mrb[0].mxu0
        %v1868 = vadd.f32 %v533, %v1867
        %v1869 = vpop.f32.mrb[0].mxu0
        %v1870 = vadd.f32 %v537, %v1869
        %v1871 = vpop.f32.mrb[0].mxu0
        %v1872 = vadd.f32 %v533, %v1871
        %v1873 = vpop.f32.mrb[0].mxu0
        %v1874 = vadd.f32 %v537, %v1873
        %1875 = vmatprep.mubr.bf16.mxu0 0
        %1876 = vmatmul.mubr.bf16.gmra.mrb[0].mxu0 %v604
        %v1877 = vpop.f32.mrb[0].mxu0
        %v1878 = vadd.f32 %v533, %v1877
        %v1879 = vpop.f32.mrb[0].mxu0
        %v1880 = vadd.f32 %v537, %v1879
        %v1881 = vpop.f32.mrb[0].mxu0
        %v1882 = vadd.f32 %v533, %v1881
        %v1883 = vpop.f32.mrb[0].mxu0
        %v1884 = vadd.f32 %v537, %v1883
        %1885 = vmatprep.mubr.bf16.mxu0 0
        %1886 = vmatmul.mubr.bf16.gmra.mrb[0].mxu0 %v605
        %v1887 = vpop.f32.mrb[0].mxu0
        %v1888 = vadd.f32 %v533, %v1887
        %v1889 = vpop.f32.mrb[0].mxu0
        %v1890 = vadd.f32 %v537, %v1889
        %v1891 = vpop.f32.mrb[0].mxu0
        %v1892 = vadd.f32 %v533, %v1891
        %v1893 = vpop.f32.mrb[0].mxu0
        %v1894 = vadd.f32 %v537, %v1893
        %1895 = vmatprep.mubr.bf16.mxu0 0
        %1896 = vmatmul.mubr.bf16.gmra.mrb[0].mxu0 %v606
        %v1897 = vpop.f32.mrb[0].mxu0
        %v1898 = vadd.f32 %v533, %v1897
        %v1899 = vpop.f32.mrb[0].mxu0
        %v1900 = vadd.f32 %v537, %v1899
        %v1901 = vpop.f32.mrb[0].mxu0
        %v1902 = vadd.f32 %v533, %v1901
        %v1903 = vpop.f32.mrb[0].mxu0
        %v1904 = vadd.f32 %v537, %v1903
        %1905 = vmatprep.mubr.bf16.mxu0 0
        %1906 = vmatmul.mubr.bf16.gmra.mrb[0].mxu0 %v607
        %v1907 = vpop.f32.mrb[0].mxu0
        %v1908 = vadd.f32 %v533, %v1907
        %v1909 = vpop.f32.mrb[0].mxu0
        %v1910 = vadd.f32 %v537, %v1909
        %v1911 = vpop.f32.mrb[0].mxu0
        %v1912 = vadd.f32 %v533, %v1911
        %v1913 = vpop.f32.mrb[0].mxu0
        %v1914 = vadd.f32 %v537, %v1913
        %1915 = vmatprep.mubr.bf16.mxu0 0
        %1916 = vmatmul.mubr.bf16.gmra.mrb[0].mxu0 %v608
        %v1917 = vpop.f32.mrb[0].mxu0
        %v1918 = vadd.f32 %v533, %v1917
        %v1919 = vpop.f32.mrb[0].mxu0
        %v1920 = vadd.f32 %v537, %v1919
        %v1921 = vpop.f32.mrb[0].mxu0
        %v1922 = vadd.f32 %v533, %v1921
        %v1923 = vpop.f32.mrb[0].mxu0
        %v1924 = vadd.f32 %v537, %v1923
        %1925 = vmatprep.mubr.bf16.mxu0 0
        %1926 = vmatmul.mubr.bf16.gmra.mrb[0].mxu0 %v609
        %v1927 = vpop.f32.mrb[0].mxu0
        %v1928 = vadd.f32 %v533, %v1927
        %v1929 = vpop.f32.mrb[0].mxu0
        %v1930 = vadd.f32 %v537, %v1929
        %v1931 = vpop.f32.mrb[0].mxu0
        %v1932 = vadd.f32 %v533, %v1931
        %v1933 = vpop.f32.mrb[0].mxu0
        %v1934 = vadd.f32 %v537, %v1933
        %1935 = vdwg.mxu0
        %1936 = vmatprep.subr.bf16.mxu0 %v1015
        %1937 = vmatpush1.bf16.msra.mxu0 %v1014
        %1938 = vmatprep.subr.bf16.mxu0 %v1031
        %1939 = vmatpush1.bf16.msra.mxu0 %v1030
        %1940 = vmatprep.subr.bf16.mxu0 %v1047
        %1941 = vmatpush1.bf16.msra.mxu0 %v1046
        %1942 = vmatprep.subr.bf16.mxu0 %v1063
        %1943 = vmatpush1.bf16.msra.mxu0 %v1062
        %1944 = vmatprep.subr.bf16.mxu0 %v1079
        %1945 = vmatpush1.bf16.msra.mxu0 %v1078
        %1946 = vmatprep.subr.bf16.mxu0 %v1095
        %1947 = vmatpush1.bf16.msra.mxu0 %v1094
        %1948 = vmatprep.subr.bf16.mxu0 %v1111
        %1949 = vmatpush1.bf16.msra.mxu0 %v1110
        %1950 = vmatprep.subr.bf16.mxu0 %v1127
        %1951 = vmatpush1.bf16.msra.mxu0 %v1126
        %1952 = vmatprep.subr.bf16.mxu0 0
        %1953 = vmatpush1.bf16.msra.mxu0 0
        %1954 = vmatprep.subr.bf16.mxu0 0
        %1955 = vmatpush1.bf16.msra.mxu0 0
        %1956 = vmatprep.subr.bf16.mxu0 0
        %1957 = vmatpush1.bf16.msra.mxu0 0
        %1958 = vmatprep.subr.bf16.mxu0 0
        %1959 = vmatpush1.bf16.msra.mxu0 0
        %1960 = vmatprep.subr.bf16.mxu0 0
        %1961 = vmatpush1.bf16.msra.mxu0 0
        %1962 = vmatprep.subr.bf16.mxu0 0
        %1963 = vmatpush1.bf16.msra.mxu0 0
        %1964 = vmatprep.subr.bf16.mxu0 0
        %1965 = vmatpush1.bf16.msra.mxu0 0
        %1966 = vmatprep.subr.bf16.mxu0 0
        %1967 = vmatpush1.bf16.msra.mxu0 0
        %1968 = vmatprep.mubr.bf16.mxu0 0
        %1969 = vmatmul.mubr.bf16.gmra.mrb[0].mxu0 %v602
        %v1970 = vpop.f32.mrb[0].mxu0
        %v1971 = vadd.f32 %v541, %v1970
        %v1972 = vpop.f32.mrb[0].mxu0
        %v1973 = vadd.f32 %v545, %v1972
        %v1974 = vpop.f32.mrb[0].mxu0
        %v1975 = vadd.f32 %v541, %v1974
        %v1976 = vpop.f32.mrb[0].mxu0
        %v1977 = vadd.f32 %v545, %v1976
        %1978 = vmatprep.mubr.bf16.mxu0 0
        %1979 = vmatmul.mubr.bf16.gmra.mrb[0].mxu0 %v603
        %v1980 = vpop.f32.mrb[0].mxu0
        %v1981 = vadd.f32 %v541, %v1980
        %v1982 = vpop.f32.mrb[0].mxu0
        %v1983 = vadd.f32 %v545, %v1982
        %v1984 = vpop.f32.mrb[0].mxu0
        %v1985 = vadd.f32 %v541, %v1984
        %v1986 = vpop.f32.mrb[0].mxu0
        %v1987 = vadd.f32 %v545, %v1986
        %1988 = vmatprep.mubr.bf16.mxu0 0
        %1989 = vmatmul.mubr.bf16.gmra.mrb[0].mxu0 %v604
        %v1990 = vpop.f32.mrb[0].mxu0
        %v1991 = vadd.f32 %v541, %v1990
        %v1992 = vpop.f32.mrb[0].mxu0
        %v1993 = vadd.f32 %v545, %v1992
        %v1994 = vpop.f32.mrb[0].mxu0
        %v1995 = vadd.f32 %v541, %v1994
        %v1996 = vpop.f32.mrb[0].mxu0
        %v1997 = vadd.f32 %v545, %v1996
        %1998 = vmatprep.mubr.bf16.mxu0 0
        %1999 = vmatmul.mubr.bf16.gmra.mrb[0].mxu0 %v605
        %v2000 = vpop.f32.mrb[0].mxu0
        %v2001 = vadd.f32 %v541, %v2000
        %v2002 = vpop.f32.mrb[0].mxu0
        %v2003 = vadd.f32 %v545, %v2002
        %v2004 = vpop.f32.mrb[0].mxu0
        %v2005 = vadd.f32 %v541, %v2004
        %v2006 = vpop.f32.mrb[0].mxu0
        %v2007 = vadd.f32 %v545, %v2006
        %2008 = vmatprep.mubr.bf16.mxu0 0
        %2009 = vmatmul.mubr.bf16.gmra.mrb[0].mxu0 %v606
        %v2010 = vpop.f32.mrb[0].mxu0
        %v2011 = vadd.f32 %v541, %v2010
        %v2012 = vpop.f32.mrb[0].mxu0
        %v2013 = vadd.f32 %v545, %v2012
        %v2014 = vpop.f32.mrb[0].mxu0
        %v2015 = vadd.f32 %v541, %v2014
        %v2016 = vpop.f32.mrb[0].mxu0
        %v2017 = vadd.f32 %v545, %v2016
        %2018 = vmatprep.mubr.bf16.mxu0 0
        %2019 = vmatmul.mubr.bf16.gmra.mrb[0].mxu0 %v607
        %v2020 = vpop.f32.mrb[0].mxu0
        %v2021 = vadd.f32 %v541, %v2020
        %v2022 = vpop.f32.mrb[0].mxu0
        %v2023 = vadd.f32 %v545, %v2022
        %v2024 = vpop.f32.mrb[0].mxu0
        %v2025 = vadd.f32 %v541, %v2024
        %v2026 = vpop.f32.mrb[0].mxu0
        %v2027 = vadd.f32 %v545, %v2026
        %2028 = vmatprep.mubr.bf16.mxu0 0
        %2029 = vmatmul.mubr.bf16.gmra.mrb[0].mxu0 %v608
        %v2030 = vpop.f32.mrb[0].mxu0
        %v2031 = vadd.f32 %v541, %v2030
        %v2032 = vpop.f32.mrb[0].mxu0
        %v2033 = vadd.f32 %v545, %v2032
        %v2034 = vpop.f32.mrb[0].mxu0
        %v2035 = vadd.f32 %v541, %v2034
        %v2036 = vpop.f32.mrb[0].mxu0
        %v2037 = vadd.f32 %v545, %v2036
        %2038 = vmatprep.mubr.bf16.mxu0 0
        %2039 = vmatmul.mubr.bf16.gmra.mrb[0].mxu0 %v609
        %v2040 = vpop.f32.mrb[0].mxu0
        %v2041 = vadd.f32 %v541, %v2040
        %v2042 = vpop.f32.mrb[0].mxu0
        %v2043 = vadd.f32 %v545, %v2042
        %v2044 = vpop.f32.mrb[0].mxu0
        %v2045 = vadd.f32 %v541, %v2044
        %v2046 = vpop.f32.mrb[0].mxu0
        %v2047 = vadd.f32 %v545, %v2046
        %2048 = vdwg.mxu0
        %2049 = vmatprep.subr.bf16.mxu0 %v1017
        %2050 = vmatpush1.bf16.msra.mxu0 %v1016
        %2051 = vmatprep.subr.bf16.mxu0 %v1033
        %2052 = vmatpush1.bf16.msra.mxu0 %v1032
        %2053 = vmatprep.subr.bf16.mxu0 %v1049
        %2054 = vmatpush1.bf16.msra.mxu0 %v1048
        %2055 = vmatprep.subr.bf16.mxu0 %v1065
        %2056 = vmatpush1.bf16.msra.mxu0 %v1064
        %2057 = vmatprep.subr.bf16.mxu0 %v1081
        %2058 = vmatpush1.bf16.msra.mxu0 %v1080
        %2059 = vmatprep.subr.bf16.mxu0 %v1097
        %2060 = vmatpush1.bf16.msra.mxu0 %v1096
        %2061 = vmatprep.subr.bf16.mxu0 %v1113
        %2062 = vmatpush1.bf16.msra.mxu0 %v1112
        %2063 = vmatprep.subr.bf16.mxu0 %v1129
        %2064 = vmatpush1.bf16.msra.mxu0 %v1128
        %2065 = vmatprep.subr.bf16.mxu0 0
        %2066 = vmatpush1.bf16.msra.mxu0 0
        %2067 = vmatprep.subr.bf16.mxu0 0
        %2068 = vmatpush1.bf16.msra.mxu0 0
        %2069 = vmatprep.subr.bf16.mxu0 0
        %2070 = vmatpush1.bf16.msra.mxu0 0
        %2071 = vmatprep.subr.bf16.mxu0 0
        %2072 = vmatpush1.bf16.msra.mxu0 0
        %2073 = vmatprep.subr.bf16.mxu0 0
        %2074 = vmatpush1.bf16.msra.mxu0 0
        %2075 = vmatprep.subr.bf16.mxu0 0
        %2076 = vmatpush1.bf16.msra.mxu0 0
        %2077 = vmatprep.subr.bf16.mxu0 0
        %2078 = vmatpush1.bf16.msra.mxu0 0
        %2079 = vmatprep.subr.bf16.mxu0 0
        %2080 = vmatpush1.bf16.msra.mxu0 0
        %2081 = vmatprep.mubr.bf16.mxu0 0
        %2082 = vmatmul.mubr.bf16.gmra.mrb[0].mxu0 %v602
        %v2083 = vpop.f32.mrb[0].mxu0
        %v2084 = vadd.f32 %v549, %v2083
        %v2085 = vpop.f32.mrb[0].mxu0
        %v2086 = vadd.f32 %v553, %v2085
        %v2087 = vpop.f32.mrb[0].mxu0
        %v2088 = vadd.f32 %v549, %v2087
        %v2089 = vpop.f32.mrb[0].mxu0
        %v2090 = vadd.f32 %v553, %v2089
        %2091 = vmatprep.mubr.bf16.mxu0 0
        %2092 = vmatmul.mubr.bf16.gmra.mrb[0].mxu0 %v603
        %v2093 = vpop.f32.mrb[0].mxu0
        %v2094 = vadd.f32 %v549, %v2093
        %v2095 = vpop.f32.mrb[0].mxu0
        %v2096 = vadd.f32 %v553, %v2095
        %v2097 = vpop.f32.mrb[0].mxu0
        %v2098 = vadd.f32 %v549, %v2097
        %v2099 = vpop.f32.mrb[0].mxu0
        %v2100 = vadd.f32 %v553, %v2099
        %2101 = vmatprep.mubr.bf16.mxu0 0
        %2102 = vmatmul.mubr.bf16.gmra.mrb[0].mxu0 %v604
        %v2103 = vpop.f32.mrb[0].mxu0
        %v2104 = vadd.f32 %v549, %v2103
        %v2105 = vpop.f32.mrb[0].mxu0
        %v2106 = vadd.f32 %v553, %v2105
        %v2107 = vpop.f32.mrb[0].mxu0
        %v2108 = vadd.f32 %v549, %v2107
        %v2109 = vpop.f32.mrb[0].mxu0
        %v2110 = vadd.f32 %v553, %v2109
        %2111 = vmatprep.mubr.bf16.mxu0 0
        %2112 = vmatmul.mubr.bf16.gmra.mrb[0].mxu0 %v605
        %v2113 = vpop.f32.mrb[0].mxu0
        %v2114 = vadd.f32 %v549, %v2113
        %v2115 = vpop.f32.mrb[0].mxu0
        %v2116 = vadd.f32 %v553, %v2115
        %v2117 = vpop.f32.mrb[0].mxu0
        %v2118 = vadd.f32 %v549, %v2117
        %v2119 = vpop.f32.mrb[0].mxu0
        %v2120 = vadd.f32 %v553, %v2119
        %2121 = vmatprep.mubr.bf16.mxu0 0
        %2122 = vmatmul.mubr.bf16.gmra.mrb[0].mxu0 %v606
        %v2123 = vpop.f32.mrb[0].mxu0
        %v2124 = vadd.f32 %v549, %v2123
        %v2125 = vpop.f32.mrb[0].mxu0
        %v2126 = vadd.f32 %v553, %v2125
        %v2127 = vpop.f32.mrb[0].mxu0
        %v2128 = vadd.f32 %v549, %v2127
        %v2129 = vpop.f32.mrb[0].mxu0
        %v2130 = vadd.f32 %v553, %v2129
        %2131 = vmatprep.mubr.bf16.mxu0 0
        %2132 = vmatmul.mubr.bf16.gmra.mrb[0].mxu0 %v607
        %v2133 = vpop.f32.mrb[0].mxu0
        %v2134 = vadd.f32 %v549, %v2133
        %v2135 = vpop.f32.mrb[0].mxu0
        %v2136 = vadd.f32 %v553, %v2135
        %v2137 = vpop.f32.mrb[0].mxu0
        %v2138 = vadd.f32 %v549, %v2137
        %v2139 = vpop.f32.mrb[0].mxu0
        %v2140 = vadd.f32 %v553, %v2139
        %2141 = vmatprep.mubr.bf16.mxu0 0
        %2142 = vmatmul.mubr.bf16.gmra.mrb[0].mxu0 %v608
        %v2143 = vpop.f32.mrb[0].mxu0
        %v2144 = vadd.f32 %v549, %v2143
        %v2145 = vpop.f32.mrb[0].mxu0
        %v2146 = vadd.f32 %v553, %v2145
        %v2147 = vpop.f32.mrb[0].mxu0
        %v2148 = vadd.f32 %v549, %v2147
        %v2149 = vpop.f32.mrb[0].mxu0
        %v2150 = vadd.f32 %v553, %v2149
        %2151 = vmatprep.mubr.bf16.mxu0 0
        %2152 = vmatmul.mubr.bf16.gmra.mrb[0].mxu0 %v609
        %v2153 = vpop.f32.mrb[0].mxu0
        %v2154 = vadd.f32 %v549, %v2153
        %v2155 = vpop.f32.mrb[0].mxu0
        %v2156 = vadd.f32 %v553, %v2155
        %v2157 = vpop.f32.mrb[0].mxu0
        %v2158 = vadd.f32 %v549, %v2157
        %v2159 = vpop.f32.mrb[0].mxu0
        %v2160 = vadd.f32 %v553, %v2159
        %2161 = vdwg.mxu0
        %v2162 = vmul.f32 %v1293, 0.5
        %v2163 = vmul.f32 %v1297, 0.5
        %v2164 = vmul.f32 %v1303, 0.5
        %v2165 = vmul.f32 %v1307, 0.5
        %v2166 = vmul.f32 %v1313, 0.5
        %v2167 = vmul.f32 %v1317, 0.5
        %v2168 = vmul.f32 %v1323, 0.5
        %v2169 = vmul.f32 %v1327, 0.5
        %v2170 = vmul.f32 %v1333, 0.5
        %v2171 = vmul.f32 %v1337, 0.5
        %v2172 = vmul.f32 %v1343, 0.5
        %v2173 = vmul.f32 %v1347, 0.5
        %v2174 = vmul.f32 %v1353, 0.5
        %v2175 = vmul.f32 %v1357, 0.5
        %v2176 = vmul.f32 %v1363, 0.5
        %v2177 = vmul.f32 %v1367, 0.5
        %v2178 = vtanh.pop %v2162
        %v2179 = vtanh.pop %v2163
        %v2180 = vtanh.pop %v2164
        %v2181 = vtanh.pop %v2165
        %v2182 = vtanh.pop %v2166
        %v2183 = vtanh.pop %v2167
        %v2184 = vtanh.pop %v2168
        %v2185 = vtanh.pop %v2169
        %v2186 = vtanh.pop %v2170
        %v2187 = vtanh.pop %v2171
        %v2188 = vtanh.pop %v2172
        %v2189 = vtanh.pop %v2173
        %v2190 = vtanh.pop %v2174
        %v2191 = vtanh.pop %v2175
        %v2192 = vtanh.pop %v2176
        %v2193 = vtanh.pop %v2177
        %v2194 = vmul.f32 %v2178, 0.5
        %v2195 = vmul.f32 %v2179, 0.5
        %v2196 = vmul.f32 %v2180, 0.5
        %v2197 = vmul.f32 %v2181, 0.5
        %v2198 = vmul.f32 %v2182, 0.5
        %v2199 = vmul.f32 %v2183, 0.5
        %v2200 = vmul.f32 %v2184, 0.5
        %v2201 = vmul.f32 %v2185, 0.5
        %v2202 = vmul.f32 %v2186, 0.5
        %v2203 = vmul.f32 %v2187, 0.5
        %v2204 = vmul.f32 %v2188, 0.5
        %v2205 = vmul.f32 %v2189, 0.5
        %v2206 = vmul.f32 %v2190, 0.5
        %v2207 = vmul.f32 %v2191, 0.5
        %v2208 = vmul.f32 %v2192, 0.5
        %v2209 = vmul.f32 %v2193, 0.5
        %v2210 = vadd.f32 %v2194, 0.5
        %v2211 = vadd.f32 %v2195, 0.5
        %v2212 = vadd.f32 %v2196, 0.5
        %v2213 = vadd.f32 %v2197, 0.5
        %v2214 = vadd.f32 %v2198, 0.5
        %v2215 = vadd.f32 %v2199, 0.5
        %v2216 = vadd.f32 %v2200, 0.5
        %v2217 = vadd.f32 %v2201, 0.5
        %v2218 = vadd.f32 %v2202, 0.5
        %v2219 = vadd.f32 %v2203, 0.5
        %v2220 = vadd.f32 %v2204, 0.5
        %v2221 = vadd.f32 %v2205, 0.5
        %v2222 = vadd.f32 %v2206, 0.5
        %v2223 = vadd.f32 %v2207, 0.5
        %v2224 = vadd.f32 %v2208, 0.5
        %v2225 = vadd.f32 %v2209, 0.5
        %v2226 = vld [vmem:[#allocation8] sm:$0x1]
        %v2227 = vlaneseq
        %v2228 = vshrl.u32 %v2227, 7
        %v2229 = vsub.s32 0, %v2228
        %v2230 = vrot.slane %v2226, %v2229
        %v2231 = vmul.f32 %v2210, %v2230
        %v2232 = vmul.f32 %v2211, %v2230
        %v2233 = vmul.f32 %v2212, %v2230
        %v2234 = vmul.f32 %v2213, %v2230
        %v2235 = vmul.f32 %v2214, %v2230
        %v2236 = vmul.f32 %v2215, %v2230
        %v2237 = vmul.f32 %v2216, %v2230
        %v2238 = vmul.f32 %v2217, %v2230
        %v2239 = vmul.f32 %v2218, %v2230
        %v2240 = vmul.f32 %v2219, %v2230
        %v2241 = vmul.f32 %v2220, %v2230
        %v2242 = vmul.f32 %v2221, %v2230
        %v2243 = vmul.f32 %v2222, %v2230
        %v2244 = vmul.f32 %v2223, %v2230
        %v2245 = vmul.f32 %v2224, %v2230
        %v2246 = vmul.f32 %v2225, %v2230
        %v2247 = vld [vmem:[#allocation8 + $0x10] sm:$0x1]
        %v2248 = vlaneseq
        %v2249 = vshrl.u32 %v2248, 7
        %v2250 = vsub.s32 0, %v2249
        %v2251 = vrot.slane %v2247, %v2250
        %v2252 = vmul.f32 %v2210, %v2251
        %v2253 = vmul.f32 %v2211, %v2251
        %v2254 = vmul.f32 %v2212, %v2251
        %v2255 = vmul.f32 %v2213, %v2251
        %v2256 = vmul.f32 %v2214, %v2251
        %v2257 = vmul.f32 %v2215, %v2251
        %v2258 = vmul.f32 %v2216, %v2251
        %v2259 = vmul.f32 %v2217, %v2251
        %v2260 = vmul.f32 %v2218, %v2251
        %v2261 = vmul.f32 %v2219, %v2251
        %v2262 = vmul.f32 %v2220, %v2251
        %v2263 = vmul.f32 %v2221, %v2251
        %v2264 = vmul.f32 %v2222, %v2251
        %v2265 = vmul.f32 %v2223, %v2251
        %v2266 = vmul.f32 %v2224, %v2251
        %v2267 = vmul.f32 %v2225, %v2251
        %v2268 = vld [vmem:[#allocation8 + $0x20] sm:$0x1]
        %v2269 = vlaneseq
        %v2270 = vshrl.u32 %v2269, 7
        %v2271 = vsub.s32 0, %v2270
        %v2272 = vrot.slane %v2268, %v2271
        %v2273 = vmul.f32 %v2210, %v2272
        %v2274 = vmul.f32 %v2211, %v2272
        %v2275 = vmul.f32 %v2212, %v2272
        %v2276 = vmul.f32 %v2213, %v2272
        %v2277 = vmul.f32 %v2214, %v2272
        %v2278 = vmul.f32 %v2215, %v2272
        %v2279 = vmul.f32 %v2216, %v2272
        %v2280 = vmul.f32 %v2217, %v2272
        %v2281 = vmul.f32 %v2218, %v2272
        %v2282 = vmul.f32 %v2219, %v2272
        %v2283 = vmul.f32 %v2220, %v2272
        %v2284 = vmul.f32 %v2221, %v2272
        %v2285 = vmul.f32 %v2222, %v2272
        %v2286 = vmul.f32 %v2223, %v2272
        %v2287 = vmul.f32 %v2224, %v2272
        %v2288 = vmul.f32 %v2225, %v2272
        %v2289 = vld [vmem:[#allocation8 + $0x30] sm:$0x1]
        %v2290 = vlaneseq
        %v2291 = vshrl.u32 %v2290, 7
        %v2292 = vsub.s32 0, %v2291
        %v2293 = vrot.slane %v2289, %v2292
        %v2294 = vmul.f32 %v2210, %v2293
        %v2295 = vmul.f32 %v2211, %v2293
        %v2296 = vmul.f32 %v2212, %v2293
        %v2297 = vmul.f32 %v2213, %v2293
        %v2298 = vmul.f32 %v2214, %v2293
        %v2299 = vmul.f32 %v2215, %v2293
        %v2300 = vmul.f32 %v2216, %v2293
        %v2301 = vmul.f32 %v2217, %v2293
        %v2302 = vmul.f32 %v2218, %v2293
        %v2303 = vmul.f32 %v2219, %v2293
        %v2304 = vmul.f32 %v2220, %v2293
        %v2305 = vmul.f32 %v2221, %v2293
        %v2306 = vmul.f32 %v2222, %v2293
        %v2307 = vmul.f32 %v2223, %v2293
        %v2308 = vmul.f32 %v2224, %v2293
        %v2309 = vmul.f32 %v2225, %v2293
        %v2310 = vld [vmem:[#allocation8 + $0x40] sm:$0x1]
        %v2311 = vlaneseq
        %v2312 = vshrl.u32 %v2311, 7
        %v2313 = vsub.s32 0, %v2312
        %v2314 = vrot.slane %v2310, %v2313
        %v2315 = vmul.f32 %v2210, %v2314
        %v2316 = vmul.f32 %v2211, %v2314
        %v2317 = vmul.f32 %v2212, %v2314
        %v2318 = vmul.f32 %v2213, %v2314
        %v2319 = vmul.f32 %v2214, %v2314
        %v2320 = vmul.f32 %v2215, %v2314
        %v2321 = vmul.f32 %v2216, %v2314
        %v2322 = vmul.f32 %v2217, %v2314
        %v2323 = vmul.f32 %v2218, %v2314
        %v2324 = vmul.f32 %v2219, %v2314
        %v2325 = vmul.f32 %v2220, %v2314
        %v2326 = vmul.f32 %v2221, %v2314
        %v2327 = vmul.f32 %v2222, %v2314
        %v2328 = vmul.f32 %v2223, %v2314
        %v2329 = vmul.f32 %v2224, %v2314
        %v2330 = vmul.f32 %v2225, %v2314
        %v2331 = vld [vmem:[#allocation8 + $0x50] sm:$0x1]
        %v2332 = vlaneseq
        %v2333 = vshrl.u32 %v2332, 7
        %v2334 = vsub.s32 0, %v2333
        %v2335 = vrot.slane %v2331, %v2334
        %v2336 = vmul.f32 %v2210, %v2335
        %v2337 = vmul.f32 %v2211, %v2335
        %v2338 = vmul.f32 %v2212, %v2335
        %v2339 = vmul.f32 %v2213, %v2335
        %v2340 = vmul.f32 %v2214, %v2335
        %v2341 = vmul.f32 %v2215, %v2335
        %v2342 = vmul.f32 %v2216, %v2335
        %v2343 = vmul.f32 %v2217, %v2335
        %v2344 = vmul.f32 %v2218, %v2335
        %v2345 = vmul.f32 %v2219, %v2335
        %v2346 = vmul.f32 %v2220, %v2335
        %v2347 = vmul.f32 %v2221, %v2335
        %v2348 = vmul.f32 %v2222, %v2335
        %v2349 = vmul.f32 %v2223, %v2335
        %v2350 = vmul.f32 %v2224, %v2335
        %v2351 = vmul.f32 %v2225, %v2335
        %v2352 = vld [vmem:[#allocation8 + $0x60] sm:$0x1]
        %v2353 = vlaneseq
        %v2354 = vshrl.u32 %v2353, 7
        %v2355 = vsub.s32 0, %v2354
        %v2356 = vrot.slane %v2352, %v2355
        %v2357 = vmul.f32 %v2210, %v2356
        %v2358 = vmul.f32 %v2211, %v2356
        %v2359 = vmul.f32 %v2212, %v2356
        %v2360 = vmul.f32 %v2213, %v2356
        %v2361 = vmul.f32 %v2214, %v2356
        %v2362 = vmul.f32 %v2215, %v2356
        %v2363 = vmul.f32 %v2216, %v2356
        %v2364 = vmul.f32 %v2217, %v2356
        %v2365 = vmul.f32 %v2218, %v2356
        %v2366 = vmul.f32 %v2219, %v2356
        %v2367 = vmul.f32 %v2220, %v2356
        %v2368 = vmul.f32 %v2221, %v2356
        %v2369 = vmul.f32 %v2222, %v2356
        %v2370 = vmul.f32 %v2223, %v2356
        %v2371 = vmul.f32 %v2224, %v2356
        %v2372 = vmul.f32 %v2225, %v2356
        %v2373 = vld [vmem:[#allocation8 + $0x70] sm:$0x1]
        %v2374 = vlaneseq
        %v2375 = vshrl.u32 %v2374, 7
        %v2376 = vsub.s32 0, %v2375
        %v2377 = vrot.slane %v2373, %v2376
        %v2378 = vmul.f32 %v2210, %v2377
        %v2379 = vmul.f32 %v2211, %v2377
        %v2380 = vmul.f32 %v2212, %v2377
        %v2381 = vmul.f32 %v2213, %v2377
        %v2382 = vmul.f32 %v2214, %v2377
        %v2383 = vmul.f32 %v2215, %v2377
        %v2384 = vmul.f32 %v2216, %v2377
        %v2385 = vmul.f32 %v2217, %v2377
        %v2386 = vmul.f32 %v2218, %v2377
        %v2387 = vmul.f32 %v2219, %v2377
        %v2388 = vmul.f32 %v2220, %v2377
        %v2389 = vmul.f32 %v2221, %v2377
        %v2390 = vmul.f32 %v2222, %v2377
        %v2391 = vmul.f32 %v2223, %v2377
        %v2392 = vmul.f32 %v2224, %v2377
        %v2393 = vmul.f32 %v2225, %v2377
        %v2394 = vmul.f32 %v1295, 0.5
        %v2395 = vmul.f32 %v1299, 0.5
        %v2396 = vmul.f32 %v1305, 0.5
        %v2397 = vmul.f32 %v1309, 0.5
        %v2398 = vmul.f32 %v1315, 0.5
        %v2399 = vmul.f32 %v1319, 0.5
        %v2400 = vmul.f32 %v1325, 0.5
        %v2401 = vmul.f32 %v1329, 0.5
        %v2402 = vmul.f32 %v1335, 0.5
        %v2403 = vmul.f32 %v1339, 0.5
        %v2404 = vmul.f32 %v1345, 0.5
        %v2405 = vmul.f32 %v1349, 0.5
        %v2406 = vmul.f32 %v1355, 0.5
        %v2407 = vmul.f32 %v1359, 0.5
        %v2408 = vmul.f32 %v1365, 0.5
        %v2409 = vmul.f32 %v1369, 0.5
        %v2410 = vtanh.pop %v2394
        %v2411 = vtanh.pop %v2395
        %v2412 = vtanh.pop %v2396
        %v2413 = vtanh.pop %v2397
        %v2414 = vtanh.pop %v2398
        %v2415 = vtanh.pop %v2399
        %v2416 = vtanh.pop %v2400
        %v2417 = vtanh.pop %v2401
        %v2418 = vtanh.pop %v2402
        %v2419 = vtanh.pop %v2403
        %v2420 = vtanh.pop %v2404
        %v2421 = vtanh.pop %v2405
        %v2422 = vtanh.pop %v2406
        %v2423 = vtanh.pop %v2407
        %v2424 = vtanh.pop %v2408
        %v2425 = vtanh.pop %v2409
        %v2426 = vmul.f32 %v2410, 0.5
        %v2427 = vmul.f32 %v2411, 0.5
        %v2428 = vmul.f32 %v2412, 0.5
        %v2429 = vmul.f32 %v2413, 0.5
        %v2430 = vmul.f32 %v2414, 0.5
        %v2431 = vmul.f32 %v2415, 0.5
        %v2432 = vmul.f32 %v2416, 0.5
        %v2433 = vmul.f32 %v2417, 0.5
        %v2434 = vmul.f32 %v2418, 0.5
        %v2435 = vmul.f32 %v2419, 0.5
        %v2436 = vmul.f32 %v2420, 0.5
        %v2437 = vmul.f32 %v2421, 0.5
        %v2438 = vmul.f32 %v2422, 0.5
        %v2439 = vmul.f32 %v2423, 0.5
        %v2440 = vmul.f32 %v2424, 0.5
        %v2441 = vmul.f32 %v2425, 0.5
        %v2442 = vadd.f32 %v2426, 0.5
        %v2443 = vadd.f32 %v2427, 0.5
        %v2444 = vadd.f32 %v2428, 0.5
        %v2445 = vadd.f32 %v2429, 0.5
        %v2446 = vadd.f32 %v2430, 0.5
        %v2447 = vadd.f32 %v2431, 0.5
        %v2448 = vadd.f32 %v2432, 0.5
        %v2449 = vadd.f32 %v2433, 0.5
        %v2450 = vadd.f32 %v2434, 0.5
        %v2451 = vadd.f32 %v2435, 0.5
        %v2452 = vadd.f32 %v2436, 0.5
        %v2453 = vadd.f32 %v2437, 0.5
        %v2454 = vadd.f32 %v2438, 0.5
        %v2455 = vadd.f32 %v2439, 0.5
        %v2456 = vadd.f32 %v2440, 0.5
        %v2457 = vadd.f32 %v2441, 0.5
        %v2458 = vld [vmem:[#allocation8 + $0x1] sm:$0x1]
        %v2459 = vlaneseq
        %v2460 = vshrl.u32 %v2459, 7
        %v2461 = vsub.s32 0, %v2460
        %v2462 = vrot.slane %v2458, %v2461
        %v2463 = vmul.f32 %v2442, %v2462
        %v2464 = vmul.f32 %v2443, %v2462
        %v2465 = vmul.f32 %v2444, %v2462
        %v2466 = vmul.f32 %v2445, %v2462
        %v2467 = vmul.f32 %v2446, %v2462
        %v2468 = vmul.f32 %v2447, %v2462
        %v2469 = vmul.f32 %v2448, %v2462
        %v2470 = vmul.f32 %v2449, %v2462
        %v2471 = vmul.f32 %v2450, %v2462
        %v2472 = vmul.f32 %v2451, %v2462
        %v2473 = vmul.f32 %v2452, %v2462
        %v2474 = vmul.f32 %v2453, %v2462
        %v2475 = vmul.f32 %v2454, %v2462
        %v2476 = vmul.f32 %v2455, %v2462
        %v2477 = vmul.f32 %v2456, %v2462
        %v2478 = vmul.f32 %v2457, %v2462
        %v2479 = vadd.f32 %v2231, %v2463
        %v2480 = vadd.f32 %v2232, %v2464
        %v2481 = vadd.f32 %v2233, %v2465
        %v2482 = vadd.f32 %v2234, %v2466
        %v2483 = vadd.f32 %v2235, %v2467
        %v2484 = vadd.f32 %v2236, %v2468
        %v2485 = vadd.f32 %v2237, %v2469
        %v2486 = vadd.f32 %v2238, %v2470
        %v2487 = vadd.f32 %v2239, %v2471
        %v2488 = vadd.f32 %v2240, %v2472
        %v2489 = vadd.f32 %v2241, %v2473
        %v2490 = vadd.f32 %v2242, %v2474
        %v2491 = vadd.f32 %v2243, %v2475
        %v2492 = vadd.f32 %v2244, %v2476
        %v2493 = vadd.f32 %v2245, %v2477
        %v2494 = vadd.f32 %v2246, %v2478
        %v2495 = vld [vmem:[#allocation8 + $0x11] sm:$0x1]
        %v2496 = vlaneseq
        %v2497 = vshrl.u32 %v2496, 7
        %v2498 = vsub.s32 0, %v2497
        %v2499 = vrot.slane %v2495, %v2498
        %v2500 = vmul.f32 %v2442, %v2499
        %v2501 = vmul.f32 %v2443, %v2499
        %v2502 = vmul.f32 %v2444, %v2499
        %v2503 = vmul.f32 %v2445, %v2499
        %v2504 = vmul.f32 %v2446, %v2499
        %v2505 = vmul.f32 %v2447, %v2499
        %v2506 = vmul.f32 %v2448, %v2499
        %v2507 = vmul.f32 %v2449, %v2499
        %v2508 = vmul.f32 %v2450, %v2499
        %v2509 = vmul.f32 %v2451, %v2499
        %v2510 = vmul.f32 %v2452, %v2499
        %v2511 = vmul.f32 %v2453, %v2499
        %v2512 = vmul.f32 %v2454, %v2499
        %v2513 = vmul.f32 %v2455, %v2499
        %v2514 = vmul.f32 %v2456, %v2499
        %v2515 = vmul.f32 %v2457, %v2499
        %v2516 = vadd.f32 %v2252, %v2500
        %v2517 = vadd.f32 %v2253, %v2501
        %v2518 = vadd.f32 %v2254, %v2502
        %v2519 = vadd.f32 %v2255, %v2503
        %v2520 = vadd.f32 %v2256, %v2504
        %v2521 = vadd.f32 %v2257, %v2505
        %v2522 = vadd.f32 %v2258, %v2506
        %v2523 = vadd.f32 %v2259, %v2507
        %v2524 = vadd.f32 %v2260, %v2508
        %v2525 = vadd.f32 %v2261, %v2509
        %v2526 = vadd.f32 %v2262, %v2510
        %v2527 = vadd.f32 %v2263, %v2511
        %v2528 = vadd.f32 %v2264, %v2512
        %v2529 = vadd.f32 %v2265, %v2513
        %v2530 = vadd.f32 %v2266, %v2514
        %v2531 = vadd.f32 %v2267, %v2515
        %v2532 = vld [vmem:[#allocation8 + $0x21] sm:$0x1]
        %v2533 = vlaneseq
        %v2534 = vshrl.u32 %v2533, 7
        %v2535 = vsub.s32 0, %v2534
        %v2536 = vrot.slane %v2532, %v2535
        %v2537 = vmul.f32 %v2442, %v2536
        %v2538 = vmul.f32 %v2443, %v2536
        %v2539 = vmul.f32 %v2444, %v2536
        %v2540 = vmul.f32 %v2445, %v2536
        %v2541 = vmul.f32 %v2446, %v2536
        %v2542 = vmul.f32 %v2447, %v2536
        %v2543 = vmul.f32 %v2448, %v2536
        %v2544 = vmul.f32 %v2449, %v2536
        %v2545 = vmul.f32 %v2450, %v2536
        %v2546 = vmul.f32 %v2451, %v2536
        %v2547 = vmul.f32 %v2452, %v2536
        %v2548 = vmul.f32 %v2453, %v2536
        %v2549 = vmul.f32 %v2454, %v2536
        %v2550 = vmul.f32 %v2455, %v2536
        %v2551 = vmul.f32 %v2456, %v2536
        %v2552 = vmul.f32 %v2457, %v2536
        %v2553 = vadd.f32 %v2273, %v2537
        %v2554 = vadd.f32 %v2274, %v2538
        %v2555 = vadd.f32 %v2275, %v2539
        %v2556 = vadd.f32 %v2276, %v2540
        %v2557 = vadd.f32 %v2277, %v2541
        %v2558 = vadd.f32 %v2278, %v2542
        %v2559 = vadd.f32 %v2279, %v2543
        %v2560 = vadd.f32 %v2280, %v2544
        %v2561 = vadd.f32 %v2281, %v2545
        %v2562 = vadd.f32 %v2282, %v2546
        %v2563 = vadd.f32 %v2283, %v2547
        %v2564 = vadd.f32 %v2284, %v2548
        %v2565 = vadd.f32 %v2285, %v2549
        %v2566 = vadd.f32 %v2286, %v2550
        %v2567 = vadd.f32 %v2287, %v2551
        %v2568 = vadd.f32 %v2288, %v2552
        %v2569 = vld [vmem:[#allocation8 + $0x31] sm:$0x1]
        %v2570 = vlaneseq
        %v2571 = vshrl.u32 %v2570, 7
        %v2572 = vsub.s32 0, %v2571
        %v2573 = vrot.slane %v2569, %v2572
        %v2574 = vmul.f32 %v2442, %v2573
        %v2575 = vmul.f32 %v2443, %v2573
        %v2576 = vmul.f32 %v2444, %v2573
        %v2577 = vmul.f32 %v2445, %v2573
        %v2578 = vmul.f32 %v2446, %v2573
        %v2579 = vmul.f32 %v2447, %v2573
        %v2580 = vmul.f32 %v2448, %v2573
        %v2581 = vmul.f32 %v2449, %v2573
        %v2582 = vmul.f32 %v2450, %v2573
        %v2583 = vmul.f32 %v2451, %v2573
        %v2584 = vmul.f32 %v2452, %v2573
        %v2585 = vmul.f32 %v2453, %v2573
        %v2586 = vmul.f32 %v2454, %v2573
        %v2587 = vmul.f32 %v2455, %v2573
        %v2588 = vmul.f32 %v2456, %v2573
        %v2589 = vmul.f32 %v2457, %v2573
        %v2590 = vadd.f32 %v2294, %v2574
        %v2591 = vadd.f32 %v2295, %v2575
        %v2592 = vadd.f32 %v2296, %v2576
        %v2593 = vadd.f32 %v2297, %v2577
        %v2594 = vadd.f32 %v2298, %v2578
        %v2595 = vadd.f32 %v2299, %v2579
        %v2596 = vadd.f32 %v2300, %v2580
        %v2597 = vadd.f32 %v2301, %v2581
        %v2598 = vadd.f32 %v2302, %v2582
        %v2599 = vadd.f32 %v2303, %v2583
        %v2600 = vadd.f32 %v2304, %v2584
        %v2601 = vadd.f32 %v2305, %v2585
        %v2602 = vadd.f32 %v2306, %v2586
        %v2603 = vadd.f32 %v2307, %v2587
        %v2604 = vadd.f32 %v2308, %v2588
        %v2605 = vadd.f32 %v2309, %v2589
        %v2606 = vld [vmem:[#allocation8 + $0x41] sm:$0x1]
        %v2607 = vlaneseq
        %v2608 = vshrl.u32 %v2607, 7
        %v2609 = vsub.s32 0, %v2608
        %v2610 = vrot.slane %v2606, %v2609
        %v2611 = vmul.f32 %v2442, %v2610
        %v2612 = vmul.f32 %v2443, %v2610
        %v2613 = vmul.f32 %v2444, %v2610
        %v2614 = vmul.f32 %v2445, %v2610
        %v2615 = vmul.f32 %v2446, %v2610
        %v2616 = vmul.f32 %v2447, %v2610
        %v2617 = vmul.f32 %v2448, %v2610
        %v2618 = vmul.f32 %v2449, %v2610
        %v2619 = vmul.f32 %v2450, %v2610
        %v2620 = vmul.f32 %v2451, %v2610
        %v2621 = vmul.f32 %v2452, %v2610
        %v2622 = vmul.f32 %v2453, %v2610
        %v2623 = vmul.f32 %v2454, %v2610
        %v2624 = vmul.f32 %v2455, %v2610
        %v2625 = vmul.f32 %v2456, %v2610
        %v2626 = vmul.f32 %v2457, %v2610
        %v2627 = vadd.f32 %v2315, %v2611
        %v2628 = vadd.f32 %v2316, %v2612
        %v2629 = vadd.f32 %v2317, %v2613
        %v2630 = vadd.f32 %v2318, %v2614
        %v2631 = vadd.f32 %v2319, %v2615
        %v2632 = vadd.f32 %v2320, %v2616
        %v2633 = vadd.f32 %v2321, %v2617
        %v2634 = vadd.f32 %v2322, %v2618
        %v2635 = vadd.f32 %v2323, %v2619
        %v2636 = vadd.f32 %v2324, %v2620
        %v2637 = vadd.f32 %v2325, %v2621
        %v2638 = vadd.f32 %v2326, %v2622
        %v2639 = vadd.f32 %v2327, %v2623
        %v2640 = vadd.f32 %v2328, %v2624
        %v2641 = vadd.f32 %v2329, %v2625
        %v2642 = vadd.f32 %v2330, %v2626
        %v2643 = vld [vmem:[#allocation8 + $0x51] sm:$0x1]
        %v2644 = vlaneseq
        %v2645 = vshrl.u32 %v2644, 7
        %v2646 = vsub.s32 0, %v2645
        %v2647 = vrot.slane %v2643, %v2646
        %v2648 = vmul.f32 %v2442, %v2647
        %v2649 = vmul.f32 %v2443, %v2647
        %v2650 = vmul.f32 %v2444, %v2647
        %v2651 = vmul.f32 %v2445, %v2647
        %v2652 = vmul.f32 %v2446, %v2647
        %v2653 = vmul.f32 %v2447, %v2647
        %v2654 = vmul.f32 %v2448, %v2647
        %v2655 = vmul.f32 %v2449, %v2647
        %v2656 = vmul.f32 %v2450, %v2647
        %v2657 = vmul.f32 %v2451, %v2647
        %v2658 = vmul.f32 %v2452, %v2647
        %v2659 = vmul.f32 %v2453, %v2647
        %v2660 = vmul.f32 %v2454, %v2647
        %v2661 = vmul.f32 %v2455, %v2647
        %v2662 = vmul.f32 %v2456, %v2647
        %v2663 = vmul.f32 %v2457, %v2647
        %v2664 = vadd.f32 %v2336, %v2648
        %v2665 = vadd.f32 %v2337, %v2649
        %v2666 = vadd.f32 %v2338, %v2650
        %v2667 = vadd.f32 %v2339, %v2651
        %v2668 = vadd.f32 %v2340, %v2652
        %v2669 = vadd.f32 %v2341, %v2653
        %v2670 = vadd.f32 %v2342, %v2654
        %v2671 = vadd.f32 %v2343, %v2655
        %v2672 = vadd.f32 %v2344, %v2656
        %v2673 = vadd.f32 %v2345, %v2657
        %v2674 = vadd.f32 %v2346, %v2658
        %v2675 = vadd.f32 %v2347, %v2659
        %v2676 = vadd.f32 %v2348, %v2660
        %v2677 = vadd.f32 %v2349, %v2661
        %v2678 = vadd.f32 %v2350, %v2662
        %v2679 = vadd.f32 %v2351, %v2663
        %v2680 = vld [vmem:[#allocation8 + $0x61] sm:$0x1]
        %v2681 = vlaneseq
        %v2682 = vshrl.u32 %v2681, 7
        %v2683 = vsub.s32 0, %v2682
        %v2684 = vrot.slane %v2680, %v2683
        %v2685 = vmul.f32 %v2442, %v2684
        %v2686 = vmul.f32 %v2443, %v2684
        %v2687 = vmul.f32 %v2444, %v2684
        %v2688 = vmul.f32 %v2445, %v2684
        %v2689 = vmul.f32 %v2446, %v2684
        %v2690 = vmul.f32 %v2447, %v2684
        %v2691 = vmul.f32 %v2448, %v2684
        %v2692 = vmul.f32 %v2449, %v2684
        %v2693 = vmul.f32 %v2450, %v2684
        %v2694 = vmul.f32 %v2451, %v2684
        %v2695 = vmul.f32 %v2452, %v2684
        %v2696 = vmul.f32 %v2453, %v2684
        %v2697 = vmul.f32 %v2454, %v2684
        %v2698 = vmul.f32 %v2455, %v2684
        %v2699 = vmul.f32 %v2456, %v2684
        %v2700 = vmul.f32 %v2457, %v2684
        %v2701 = vadd.f32 %v2357, %v2685
        %v2702 = vadd.f32 %v2358, %v2686
        %v2703 = vadd.f32 %v2359, %v2687
        %v2704 = vadd.f32 %v2360, %v2688
        %v2705 = vadd.f32 %v2361, %v2689
        %v2706 = vadd.f32 %v2362, %v2690
        %v2707 = vadd.f32 %v2363, %v2691
        %v2708 = vadd.f32 %v2364, %v2692
        %v2709 = vadd.f32 %v2365, %v2693
        %v2710 = vadd.f32 %v2366, %v2694
        %v2711 = vadd.f32 %v2367, %v2695
        %v2712 = vadd.f32 %v2368, %v2696
        %v2713 = vadd.f32 %v2369, %v2697
        %v2714 = vadd.f32 %v2370, %v2698
        %v2715 = vadd.f32 %v2371, %v2699
        %v2716 = vadd.f32 %v2372, %v2700
        %v2717 = vld [vmem:[#allocation8 + $0x71] sm:$0x1]
        %v2718 = vlaneseq
        %v2719 = vshrl.u32 %v2718, 7
        %v2720 = vsub.s32 0, %v2719
        %v2721 = vrot.slane %v2717, %v2720
        %v2722 = vmul.f32 %v2442, %v2721
        %v2723 = vmul.f32 %v2443, %v2721
        %v2724 = vmul.f32 %v2444, %v2721
        %v2725 = vmul.f32 %v2445, %v2721
        %v2726 = vmul.f32 %v2446, %v2721
        %v2727 = vmul.f32 %v2447, %v2721
        %v2728 = vmul.f32 %v2448, %v2721
        %v2729 = vmul.f32 %v2449, %v2721
        %v2730 = vmul.f32 %v2450, %v2721
        %v2731 = vmul.f32 %v2451, %v2721
        %v2732 = vmul.f32 %v2452, %v2721
        %v2733 = vmul.f32 %v2453, %v2721
        %v2734 = vmul.f32 %v2454, %v2721
        %v2735 = vmul.f32 %v2455, %v2721
        %v2736 = vmul.f32 %v2456, %v2721
        %v2737 = vmul.f32 %v2457, %v2721
        %v2738 = vadd.f32 %v2378, %v2722
        %v2739 = vadd.f32 %v2379, %v2723
        %v2740 = vadd.f32 %v2380, %v2724
        %v2741 = vadd.f32 %v2381, %v2725
        %v2742 = vadd.f32 %v2382, %v2726
        %v2743 = vadd.f32 %v2383, %v2727
        %v2744 = vadd.f32 %v2384, %v2728
        %v2745 = vadd.f32 %v2385, %v2729
        %v2746 = vadd.f32 %v2386, %v2730
        %v2747 = vadd.f32 %v2387, %v2731
        %v2748 = vadd.f32 %v2388, %v2732
        %v2749 = vadd.f32 %v2389, %v2733
        %v2750 = vadd.f32 %v2390, %v2734
        %v2751 = vadd.f32 %v2391, %v2735
        %v2752 = vadd.f32 %v2392, %v2736
        %v2753 = vadd.f32 %v2393, %v2737
        %v2754 = vmul.f32 %v1406, 0.5
        %v2755 = vmul.f32 %v1410, 0.5
        %v2756 = vmul.f32 %v1416, 0.5
        %v2757 = vmul.f32 %v1420, 0.5
        %v2758 = vmul.f32 %v1426, 0.5
        %v2759 = vmul.f32 %v1430, 0.5
        %v2760 = vmul.f32 %v1436, 0.5
        %v2761 = vmul.f32 %v1440, 0.5
        %v2762 = vmul.f32 %v1446, 0.5
        %v2763 = vmul.f32 %v1450, 0.5
        %v2764 = vmul.f32 %v1456, 0.5
        %v2765 = vmul.f32 %v1460, 0.5
        %v2766 = vmul.f32 %v1466, 0.5
        %v2767 = vmul.f32 %v1470, 0.5
        %v2768 = vmul.f32 %v1476, 0.5
        %v2769 = vmul.f32 %v1480, 0.5
        %v2770 = vtanh.pop %v2754
        %v2771 = vtanh.pop %v2755
        %v2772 = vtanh.pop %v2756
        %v2773 = vtanh.pop %v2757
        %v2774 = vtanh.pop %v2758
        %v2775 = vtanh.pop %v2759
        %v2776 = vtanh.pop %v2760
        %v2777 = vtanh.pop %v2761
        %v2778 = vtanh.pop %v2762
        %v2779 = vtanh.pop %v2763
        %v2780 = vtanh.pop %v2764
        %v2781 = vtanh.pop %v2765
        %v2782 = vtanh.pop %v2766
        %v2783 = vtanh.pop %v2767
        %v2784 = vtanh.pop %v2768
        %v2785 = vtanh.pop %v2769
        %v2786 = vmul.f32 %v2770, 0.5
        %v2787 = vmul.f32 %v2771, 0.5
        %v2788 = vmul.f32 %v2772, 0.5
        %v2789 = vmul.f32 %v2773, 0.5
        %v2790 = vmul.f32 %v2774, 0.5
        %v2791 = vmul.f32 %v2775, 0.5
        %v2792 = vmul.f32 %v2776, 0.5
        %v2793 = vmul.f32 %v2777, 0.5
        %v2794 = vmul.f32 %v2778, 0.5
        %v2795 = vmul.f32 %v2779, 0.5
        %v2796 = vmul.f32 %v2780, 0.5
        %v2797 = vmul.f32 %v2781, 0.5
        %v2798 = vmul.f32 %v2782, 0.5
        %v2799 = vmul.f32 %v2783, 0.5
        %v2800 = vmul.f32 %v2784, 0.5
        %v2801 = vmul.f32 %v2785, 0.5
        %v2802 = vadd.f32 %v2786, 0.5
        %v2803 = vadd.f32 %v2787, 0.5
        %v2804 = vadd.f32 %v2788, 0.5
        %v2805 = vadd.f32 %v2789, 0.5
        %v2806 = vadd.f32 %v2790, 0.5
        %v2807 = vadd.f32 %v2791, 0.5
        %v2808 = vadd.f32 %v2792, 0.5
        %v2809 = vadd.f32 %v2793, 0.5
        %v2810 = vadd.f32 %v2794, 0.5
        %v2811 = vadd.f32 %v2795, 0.5
        %v2812 = vadd.f32 %v2796, 0.5
        %v2813 = vadd.f32 %v2797, 0.5
        %v2814 = vadd.f32 %v2798, 0.5
        %v2815 = vadd.f32 %v2799, 0.5
        %v2816 = vadd.f32 %v2800, 0.5
        %v2817 = vadd.f32 %v2801, 0.5
        %v2818 = vld [vmem:[#allocation8 + $0x2] sm:$0x1]
        %v2819 = vlaneseq
        %v2820 = vshrl.u32 %v2819, 7
        %v2821 = vsub.s32 0, %v2820
        %v2822 = vrot.slane %v2818, %v2821
        %v2823 = vmul.f32 %v2802, %v2822
        %v2824 = vmul.f32 %v2803, %v2822
        %v2825 = vmul.f32 %v2804, %v2822
        %v2826 = vmul.f32 %v2805, %v2822
        %v2827 = vmul.f32 %v2806, %v2822
        %v2828 = vmul.f32 %v2807, %v2822
        %v2829 = vmul.f32 %v2808, %v2822
        %v2830 = vmul.f32 %v2809, %v2822
        %v2831 = vmul.f32 %v2810, %v2822
        %v2832 = vmul.f32 %v2811, %v2822
        %v2833 = vmul.f32 %v2812, %v2822
        %v2834 = vmul.f32 %v2813, %v2822
        %v2835 = vmul.f32 %v2814, %v2822
        %v2836 = vmul.f32 %v2815, %v2822
        %v2837 = vmul.f32 %v2816, %v2822
        %v2838 = vmul.f32 %v2817, %v2822
        %v2839 = vadd.f32 %v2479, %v2823
        %v2840 = vadd.f32 %v2480, %v2824
        %v2841 = vadd.f32 %v2481, %v2825
        %v2842 = vadd.f32 %v2482, %v2826
        %v2843 = vadd.f32 %v2483, %v2827
        %v2844 = vadd.f32 %v2484, %v2828
        %v2845 = vadd.f32 %v2485, %v2829
        %v2846 = vadd.f32 %v2486, %v2830
        %v2847 = vadd.f32 %v2487, %v2831
        %v2848 = vadd.f32 %v2488, %v2832
        %v2849 = vadd.f32 %v2489, %v2833
        %v2850 = vadd.f32 %v2490, %v2834
        %v2851 = vadd.f32 %v2491, %v2835
        %v2852 = vadd.f32 %v2492, %v2836
        %v2853 = vadd.f32 %v2493, %v2837
        %v2854 = vadd.f32 %v2494, %v2838
        %v2855 = vld [vmem:[#allocation8 + $0x12] sm:$0x1]
        %v2856 = vlaneseq
        %v2857 = vshrl.u32 %v2856, 7
        %v2858 = vsub.s32 0, %v2857
        %v2859 = vrot.slane %v2855, %v2858
        %v2860 = vmul.f32 %v2802, %v2859
        %v2861 = vmul.f32 %v2803, %v2859
        %v2862 = vmul.f32 %v2804, %v2859
        %v2863 = vmul.f32 %v2805, %v2859
        %v2864 = vmul.f32 %v2806, %v2859
        %v2865 = vmul.f32 %v2807, %v2859
        %v2866 = vmul.f32 %v2808, %v2859
        %v2867 = vmul.f32 %v2809, %v2859
        %v2868 = vmul.f32 %v2810, %v2859
        %v2869 = vmul.f32 %v2811, %v2859
        %v2870 = vmul.f32 %v2812, %v2859
        %v2871 = vmul.f32 %v2813, %v2859
        %v2872 = vmul.f32 %v2814, %v2859
        %v2873 = vmul.f32 %v2815, %v2859
        %v2874 = vmul.f32 %v2816, %v2859
        %v2875 = vmul.f32 %v2817, %v2859
        %v2876 = vadd.f32 %v2516, %v2860
        %v2877 = vadd.f32 %v2517, %v2861
        %v2878 = vadd.f32 %v2518, %v2862
        %v2879 = vadd.f32 %v2519, %v2863
        %v2880 = vadd.f32 %v2520, %v2864
        %v2881 = vadd.f32 %v2521, %v2865
        %v2882 = vadd.f32 %v2522, %v2866
        %v2883 = vadd.f32 %v2523, %v2867
        %v2884 = vadd.f32 %v2524, %v2868
        %v2885 = vadd.f32 %v2525, %v2869
        %v2886 = vadd.f32 %v2526, %v2870
        %v2887 = vadd.f32 %v2527, %v2871
        %v2888 = vadd.f32 %v2528, %v2872
        %v2889 = vadd.f32 %v2529, %v2873
        %v2890 = vadd.f32 %v2530, %v2874
        %v2891 = vadd.f32 %v2531, %v2875
        %v2892 = vld [vmem:[#allocation8 + $0x22] sm:$0x1]
        %v2893 = vlaneseq
        %v2894 = vshrl.u32 %v2893, 7
        %v2895 = vsub.s32 0, %v2894
        %v2896 = vrot.slane %v2892, %v2895
        %v2897 = vmul.f32 %v2802, %v2896
        %v2898 = vmul.f32 %v2803, %v2896
        %v2899 = vmul.f32 %v2804, %v2896
        %v2900 = vmul.f32 %v2805, %v2896
        %v2901 = vmul.f32 %v2806, %v2896
        %v2902 = vmul.f32 %v2807, %v2896
        %v2903 = vmul.f32 %v2808, %v2896
        %v2904 = vmul.f32 %v2809, %v2896
        %v2905 = vmul.f32 %v2810, %v2896
        %v2906 = vmul.f32 %v2811, %v2896
        %v2907 = vmul.f32 %v2812, %v2896
        %v2908 = vmul.f32 %v2813, %v2896
        %v2909 = vmul.f32 %v2814, %v2896
        %v2910 = vmul.f32 %v2815, %v2896
        %v2911 = vmul.f32 %v2816, %v2896
        %v2912 = vmul.f32 %v2817, %v2896
        %v2913 = vadd.f32 %v2553, %v2897
        %v2914 = vadd.f32 %v2554, %v2898
        %v2915 = vadd.f32 %v2555, %v2899
        %v2916 = vadd.f32 %v2556, %v2900
        %v2917 = vadd.f32 %v2557, %v2901
        %v2918 = vadd.f32 %v2558, %v2902
        %v2919 = vadd.f32 %v2559, %v2903
        %v2920 = vadd.f32 %v2560, %v2904
        %v2921 = vadd.f32 %v2561, %v2905
        %v2922 = vadd.f32 %v2562, %v2906
        %v2923 = vadd.f32 %v2563, %v2907
        %v2924 = vadd.f32 %v2564, %v2908
        %v2925 = vadd.f32 %v2565, %v2909
        %v2926 = vadd.f32 %v2566, %v2910
        %v2927 = vadd.f32 %v2567, %v2911
        %v2928 = vadd.f32 %v2568, %v2912
        %v2929 = vld [vmem:[#allocation8 + $0x32] sm:$0x1]
        %v2930 = vlaneseq
        %v2931 = vshrl.u32 %v2930, 7
        %v2932 = vsub.s32 0, %v2931
        %v2933 = vrot.slane %v2929, %v2932
        %v2934 = vmul.f32 %v2802, %v2933
        %v2935 = vmul.f32 %v2803, %v2933
        %v2936 = vmul.f32 %v2804, %v2933
        %v2937 = vmul.f32 %v2805, %v2933
        %v2938 = vmul.f32 %v2806, %v2933
        %v2939 = vmul.f32 %v2807, %v2933
        %v2940 = vmul.f32 %v2808, %v2933
        %v2941 = vmul.f32 %v2809, %v2933
        %v2942 = vmul.f32 %v2810, %v2933
        %v2943 = vmul.f32 %v2811, %v2933
        %v2944 = vmul.f32 %v2812, %v2933
        %v2945 = vmul.f32 %v2813, %v2933
        %v2946 = vmul.f32 %v2814, %v2933
        %v2947 = vmul.f32 %v2815, %v2933
        %v2948 = vmul.f32 %v2816, %v2933
        %v2949 = vmul.f32 %v2817, %v2933
        %v2950 = vadd.f32 %v2590, %v2934
        %v2951 = vadd.f32 %v2591, %v2935
        %v2952 = vadd.f32 %v2592, %v2936
        %v2953 = vadd.f32 %v2593, %v2937
        %v2954 = vadd.f32 %v2594, %v2938
        %v2955 = vadd.f32 %v2595, %v2939
        %v2956 = vadd.f32 %v2596, %v2940
        %v2957 = vadd.f32 %v2597, %v2941
        %v2958 = vadd.f32 %v2598, %v2942
        %v2959 = vadd.f32 %v2599, %v2943
        %v2960 = vadd.f32 %v2600, %v2944
        %v2961 = vadd.f32 %v2601, %v2945
        %v2962 = vadd.f32 %v2602, %v2946
        %v2963 = vadd.f32 %v2603, %v2947
        %v2964 = vadd.f32 %v2604, %v2948
        %v2965 = vadd.f32 %v2605, %v2949
        %v2966 = vld [vmem:[#allocation8 + $0x42] sm:$0x1]
        %v2967 = vlaneseq
        %v2968 = vshrl.u32 %v2967, 7
        %v2969 = vsub.s32 0, %v2968
        %v2970 = vrot.slane %v2966, %v2969
        %v2971 = vmul.f32 %v2802, %v2970
        %v2972 = vmul.f32 %v2803, %v2970
        %v2973 = vmul.f32 %v2804, %v2970
        %v2974 = vmul.f32 %v2805, %v2970
        %v2975 = vmul.f32 %v2806, %v2970
        %v2976 = vmul.f32 %v2807, %v2970
        %v2977 = vmul.f32 %v2808, %v2970
        %v2978 = vmul.f32 %v2809, %v2970
        %v2979 = vmul.f32 %v2810, %v2970
        %v2980 = vmul.f32 %v2811, %v2970
        %v2981 = vmul.f32 %v2812, %v2970
        %v2982 = vmul.f32 %v2813, %v2970
        %v2983 = vmul.f32 %v2814, %v2970
        %v2984 = vmul.f32 %v2815, %v2970
        %v2985 = vmul.f32 %v2816, %v2970
        %v2986 = vmul.f32 %v2817, %v2970
        %v2987 = vadd.f32 %v2627, %v2971
        %v2988 = vadd.f32 %v2628, %v2972
        %v2989 = vadd.f32 %v2629, %v2973
        %v2990 = vadd.f32 %v2630, %v2974
        %v2991 = vadd.f32 %v2631, %v2975
        %v2992 = vadd.f32 %v2632, %v2976
        %v2993 = vadd.f32 %v2633, %v2977
        %v2994 = vadd.f32 %v2634, %v2978
        %v2995 = vadd.f32 %v2635, %v2979
        %v2996 = vadd.f32 %v2636, %v2980
        %v2997 = vadd.f32 %v2637, %v2981
        %v2998 = vadd.f32 %v2638, %v2982
        %v2999 = vadd.f32 %v2639, %v2983
        %v3000 = vadd.f32 %v2640, %v2984
        %v3001 = vadd.f32 %v2641, %v2985
        %v3002 = vadd.f32 %v2642, %v2986
        %v3003 = vld [vmem:[#allocation8 + $0x52] sm:$0x1]
        %v3004 = vlaneseq
        %v3005 = vshrl.u32 %v3004, 7
        %v3006 = vsub.s32 0, %v3005
        %v3007 = vrot.slane %v3003, %v3006
        %v3008 = vmul.f32 %v2802, %v3007
        %v3009 = vmul.f32 %v2803, %v3007
        %v3010 = vmul.f32 %v2804, %v3007
        %v3011 = vmul.f32 %v2805, %v3007
        %v3012 = vmul.f32 %v2806, %v3007
        %v3013 = vmul.f32 %v2807, %v3007
        %v3014 = vmul.f32 %v2808, %v3007
        %v3015 = vmul.f32 %v2809, %v3007
        %v3016 = vmul.f32 %v2810, %v3007
        %v3017 = vmul.f32 %v2811, %v3007
        %v3018 = vmul.f32 %v2812, %v3007
        %v3019 = vmul.f32 %v2813, %v3007
        %v3020 = vmul.f32 %v2814, %v3007
        %v3021 = vmul.f32 %v2815, %v3007
        %v3022 = vmul.f32 %v2816, %v3007
        %v3023 = vmul.f32 %v2817, %v3007
        %v3024 = vadd.f32 %v2664, %v3008
        %v3025 = vadd.f32 %v2665, %v3009
        %v3026 = vadd.f32 %v2666, %v3010
        %v3027 = vadd.f32 %v2667, %v3011
        %v3028 = vadd.f32 %v2668, %v3012
        %v3029 = vadd.f32 %v2669, %v3013
        %v3030 = vadd.f32 %v2670, %v3014
        %v3031 = vadd.f32 %v2671, %v3015
        %v3032 = vadd.f32 %v2672, %v3016
        %v3033 = vadd.f32 %v2673, %v3017
        %v3034 = vadd.f32 %v2674, %v3018
        %v3035 = vadd.f32 %v2675, %v3019
        %v3036 = vadd.f32 %v2676, %v3020
        %v3037 = vadd.f32 %v2677, %v3021
        %v3038 = vadd.f32 %v2678, %v3022
        %v3039 = vadd.f32 %v2679, %v3023
        %v3040 = vld [vmem:[#allocation8 + $0x62] sm:$0x1]
        %v3041 = vlaneseq
        %v3042 = vshrl.u32 %v3041, 7
        %v3043 = vsub.s32 0, %v3042
        %v3044 = vrot.slane %v3040, %v3043
        %v3045 = vmul.f32 %v2802, %v3044
        %v3046 = vmul.f32 %v2803, %v3044
        %v3047 = vmul.f32 %v2804, %v3044
        %v3048 = vmul.f32 %v2805, %v3044
        %v3049 = vmul.f32 %v2806, %v3044
        %v3050 = vmul.f32 %v2807, %v3044
        %v3051 = vmul.f32 %v2808, %v3044
        %v3052 = vmul.f32 %v2809, %v3044
        %v3053 = vmul.f32 %v2810, %v3044
        %v3054 = vmul.f32 %v2811, %v3044
        %v3055 = vmul.f32 %v2812, %v3044
        %v3056 = vmul.f32 %v2813, %v3044
        %v3057 = vmul.f32 %v2814, %v3044
        %v3058 = vmul.f32 %v2815, %v3044
        %v3059 = vmul.f32 %v2816, %v3044
        %v3060 = vmul.f32 %v2817, %v3044
        %v3061 = vadd.f32 %v2701, %v3045
        %v3062 = vadd.f32 %v2702, %v3046
        %v3063 = vadd.f32 %v2703, %v3047
        %v3064 = vadd.f32 %v2704, %v3048
        %v3065 = vadd.f32 %v2705, %v3049
        %v3066 = vadd.f32 %v2706, %v3050
        %v3067 = vadd.f32 %v2707, %v3051
        %v3068 = vadd.f32 %v2708, %v3052
        %v3069 = vadd.f32 %v2709, %v3053
        %v3070 = vadd.f32 %v2710, %v3054
        %v3071 = vadd.f32 %v2711, %v3055
        %v3072 = vadd.f32 %v2712, %v3056
        %v3073 = vadd.f32 %v2713, %v3057
        %v3074 = vadd.f32 %v2714, %v3058
        %v3075 = vadd.f32 %v2715, %v3059
        %v3076 = vadd.f32 %v2716, %v3060
        %v3077 = vld [vmem:[#allocation8 + $0x72] sm:$0x1]
        %v3078 = vlaneseq
        %v3079 = vshrl.u32 %v3078, 7
        %v3080 = vsub.s32 0, %v3079
        %v3081 = vrot.slane %v3077, %v3080
        %v3082 = vmul.f32 %v2802, %v3081
        %v3083 = vmul.f32 %v2803, %v3081
        %v3084 = vmul.f32 %v2804, %v3081
        %v3085 = vmul.f32 %v2805, %v3081
        %v3086 = vmul.f32 %v2806, %v3081
        %v3087 = vmul.f32 %v2807, %v3081
        %v3088 = vmul.f32 %v2808, %v3081
        %v3089 = vmul.f32 %v2809, %v3081
        %v3090 = vmul.f32 %v2810, %v3081
        %v3091 = vmul.f32 %v2811, %v3081
        %v3092 = vmul.f32 %v2812, %v3081
        %v3093 = vmul.f32 %v2813, %v3081
        %v3094 = vmul.f32 %v2814, %v3081
        %v3095 = vmul.f32 %v2815, %v3081
        %v3096 = vmul.f32 %v2816, %v3081
        %v3097 = vmul.f32 %v2817, %v3081
        %v3098 = vadd.f32 %v2738, %v3082
        %v3099 = vadd.f32 %v2739, %v3083
        %v3100 = vadd.f32 %v2740, %v3084
        %v3101 = vadd.f32 %v2741, %v3085
        %v3102 = vadd.f32 %v2742, %v3086
        %v3103 = vadd.f32 %v2743, %v3087
        %v3104 = vadd.f32 %v2744, %v3088
        %v3105 = vadd.f32 %v2745, %v3089
        %v3106 = vadd.f32 %v2746, %v3090
        %v3107 = vadd.f32 %v2747, %v3091
        %v3108 = vadd.f32 %v2748, %v3092
        %v3109 = vadd.f32 %v2749, %v3093
        %v3110 = vadd.f32 %v2750, %v3094
        %v3111 = vadd.f32 %v2751, %v3095
        %v3112 = vadd.f32 %v2752, %v3096
        %v3113 = vadd.f32 %v2753, %v3097
        %v3114 = vmul.f32 %v1408, 0.5
        %v3115 = vmul.f32 %v1412, 0.5
        %v3116 = vmul.f32 %v1418, 0.5
        %v3117 = vmul.f32 %v1422, 0.5
        %v3118 = vmul.f32 %v1428, 0.5
        %v3119 = vmul.f32 %v1432, 0.5
        %v3120 = vmul.f32 %v1438, 0.5
        %v3121 = vmul.f32 %v1442, 0.5
        %v3122 = vmul.f32 %v1448, 0.5
        %v3123 = vmul.f32 %v1452, 0.5
        %v3124 = vmul.f32 %v1458, 0.5
        %v3125 = vmul.f32 %v1462, 0.5
        %v3126 = vmul.f32 %v1468, 0.5
        %v3127 = vmul.f32 %v1472, 0.5
        %v3128 = vmul.f32 %v1478, 0.5
        %v3129 = vmul.f32 %v1482, 0.5
        %v3130 = vtanh.pop %v3114
        %v3131 = vtanh.pop %v3115
        %v3132 = vtanh.pop %v3116
        %v3133 = vtanh.pop %v3117
        %v3134 = vtanh.pop %v3118
        %v3135 = vtanh.pop %v3119
        %v3136 = vtanh.pop %v3120
        %v3137 = vtanh.pop %v3121
        %v3138 = vtanh.pop %v3122
        %v3139 = vtanh.pop %v3123
        %v3140 = vtanh.pop %v3124
        %v3141 = vtanh.pop %v3125
        %v3142 = vtanh.pop %v3126
        %v3143 = vtanh.pop %v3127
        %v3144 = vtanh.pop %v3128
        %v3145 = vtanh.pop %v3129
        %v3146 = vmul.f32 %v3130, 0.5
        %v3147 = vmul.f32 %v3131, 0.5
        %v3148 = vmul.f32 %v3132, 0.5
        %v3149 = vmul.f32 %v3133, 0.5
        %v3150 = vmul.f32 %v3134, 0.5
        %v3151 = vmul.f32 %v3135, 0.5
        %v3152 = vmul.f32 %v3136, 0.5
        %v3153 = vmul.f32 %v3137, 0.5
        %v3154 = vmul.f32 %v3138, 0.5
        %v3155 = vmul.f32 %v3139, 0.5
        %v3156 = vmul.f32 %v3140, 0.5
        %v3157 = vmul.f32 %v3141, 0.5
        %v3158 = vmul.f32 %v3142, 0.5
        %v3159 = vmul.f32 %v3143, 0.5
        %v3160 = vmul.f32 %v3144, 0.5
        %v3161 = vmul.f32 %v3145, 0.5
        %v3162 = vadd.f32 %v3146, 0.5
        %v3163 = vadd.f32 %v3147, 0.5
        %v3164 = vadd.f32 %v3148, 0.5
        %v3165 = vadd.f32 %v3149, 0.5
        %v3166 = vadd.f32 %v3150, 0.5
        %v3167 = vadd.f32 %v3151, 0.5
        %v3168 = vadd.f32 %v3152, 0.5
        %v3169 = vadd.f32 %v3153, 0.5
        %v3170 = vadd.f32 %v3154, 0.5
        %v3171 = vadd.f32 %v3155, 0.5
        %v3172 = vadd.f32 %v3156, 0.5
        %v3173 = vadd.f32 %v3157, 0.5
        %v3174 = vadd.f32 %v3158, 0.5
        %v3175 = vadd.f32 %v3159, 0.5
        %v3176 = vadd.f32 %v3160, 0.5
        %v3177 = vadd.f32 %v3161, 0.5
        %v3178 = vld [vmem:[#allocation8 + $0x3] sm:$0x1]
        %v3179 = vlaneseq
        %v3180 = vshrl.u32 %v3179, 7
        %v3181 = vsub.s32 0, %v3180
        %v3182 = vrot.slane %v3178, %v3181
        %v3183 = vmul.f32 %v3162, %v3182
        %v3184 = vmul.f32 %v3163, %v3182
        %v3185 = vmul.f32 %v3164, %v3182
        %v3186 = vmul.f32 %v3165, %v3182
        %v3187 = vmul.f32 %v3166, %v3182
        %v3188 = vmul.f32 %v3167, %v3182
        %v3189 = vmul.f32 %v3168, %v3182
        %v3190 = vmul.f32 %v3169, %v3182
        %v3191 = vmul.f32 %v3170, %v3182
        %v3192 = vmul.f32 %v3171, %v3182
        %v3193 = vmul.f32 %v3172, %v3182
        %v3194 = vmul.f32 %v3173, %v3182
        %v3195 = vmul.f32 %v3174, %v3182
        %v3196 = vmul.f32 %v3175, %v3182
        %v3197 = vmul.f32 %v3176, %v3182
        %v3198 = vmul.f32 %v3177, %v3182
        %v3199 = vadd.f32 %v2839, %v3183
        %v3200 = vadd.f32 %v2840, %v3184
        %v3201 = vadd.f32 %v2841, %v3185
        %v3202 = vadd.f32 %v2842, %v3186
        %v3203 = vadd.f32 %v2843, %v3187
        %v3204 = vadd.f32 %v2844, %v3188
        %v3205 = vadd.f32 %v2845, %v3189
        %v3206 = vadd.f32 %v2846, %v3190
        %v3207 = vadd.f32 %v2847, %v3191
        %v3208 = vadd.f32 %v2848, %v3192
        %v3209 = vadd.f32 %v2849, %v3193
        %v3210 = vadd.f32 %v2850, %v3194
        %v3211 = vadd.f32 %v2851, %v3195
        %v3212 = vadd.f32 %v2852, %v3196
        %v3213 = vadd.f32 %v2853, %v3197
        %v3214 = vadd.f32 %v2854, %v3198
        %v3215 = vld [vmem:[#allocation8 + $0x13] sm:$0x1]
        %v3216 = vlaneseq
        %v3217 = vshrl.u32 %v3216, 7
        %v3218 = vsub.s32 0, %v3217
        %v3219 = vrot.slane %v3215, %v3218
        %v3220 = vmul.f32 %v3162, %v3219
        %v3221 = vmul.f32 %v3163, %v3219
        %v3222 = vmul.f32 %v3164, %v3219
        %v3223 = vmul.f32 %v3165, %v3219
        %v3224 = vmul.f32 %v3166, %v3219
        %v3225 = vmul.f32 %v3167, %v3219
        %v3226 = vmul.f32 %v3168, %v3219
        %v3227 = vmul.f32 %v3169, %v3219
        %v3228 = vmul.f32 %v3170, %v3219
        %v3229 = vmul.f32 %v3171, %v3219
        %v3230 = vmul.f32 %v3172, %v3219
        %v3231 = vmul.f32 %v3173, %v3219
        %v3232 = vmul.f32 %v3174, %v3219
        %v3233 = vmul.f32 %v3175, %v3219
        %v3234 = vmul.f32 %v3176, %v3219
        %v3235 = vmul.f32 %v3177, %v3219
        %v3236 = vadd.f32 %v2876, %v3220
        %v3237 = vadd.f32 %v2877, %v3221
        %v3238 = vadd.f32 %v2878, %v3222
        %v3239 = vadd.f32 %v2879, %v3223
        %v3240 = vadd.f32 %v2880, %v3224
        %v3241 = vadd.f32 %v2881, %v3225
        %v3242 = vadd.f32 %v2882, %v3226
        %v3243 = vadd.f32 %v2883, %v3227
        %v3244 = vadd.f32 %v2884, %v3228
        %v3245 = vadd.f32 %v2885, %v3229
        %v3246 = vadd.f32 %v2886, %v3230
        %v3247 = vadd.f32 %v2887, %v3231
        %v3248 = vadd.f32 %v2888, %v3232
        %v3249 = vadd.f32 %v2889, %v3233
        %v3250 = vadd.f32 %v2890, %v3234
        %v3251 = vadd.f32 %v2891, %v3235
        %v3252 = vld [vmem:[#allocation8 + $0x23] sm:$0x1]
        %v3253 = vlaneseq
        %v3254 = vshrl.u32 %v3253, 7
        %v3255 = vsub.s32 0, %v3254
        %v3256 = vrot.slane %v3252, %v3255
        %v3257 = vmul.f32 %v3162, %v3256
        %v3258 = vmul.f32 %v3163, %v3256
        %v3259 = vmul.f32 %v3164, %v3256
        %v3260 = vmul.f32 %v3165, %v3256
        %v3261 = vmul.f32 %v3166, %v3256
        %v3262 = vmul.f32 %v3167, %v3256
        %v3263 = vmul.f32 %v3168, %v3256
        %v3264 = vmul.f32 %v3169, %v3256
        %v3265 = vmul.f32 %v3170, %v3256
        %v3266 = vmul.f32 %v3171, %v3256
        %v3267 = vmul.f32 %v3172, %v3256
        %v3268 = vmul.f32 %v3173, %v3256
        %v3269 = vmul.f32 %v3174, %v3256
        %v3270 = vmul.f32 %v3175, %v3256
        %v3271 = vmul.f32 %v3176, %v3256
        %v3272 = vmul.f32 %v3177, %v3256
        %v3273 = vadd.f32 %v2913, %v3257
        %v3274 = vadd.f32 %v2914, %v3258
        %v3275 = vadd.f32 %v2915, %v3259
        %v3276 = vadd.f32 %v2916, %v3260
        %v3277 = vadd.f32 %v2917, %v3261
        %v3278 = vadd.f32 %v2918, %v3262
        %v3279 = vadd.f32 %v2919, %v3263
        %v3280 = vadd.f32 %v2920, %v3264
        %v3281 = vadd.f32 %v2921, %v3265
        %v3282 = vadd.f32 %v2922, %v3266
        %v3283 = vadd.f32 %v2923, %v3267
        %v3284 = vadd.f32 %v2924, %v3268
        %v3285 = vadd.f32 %v2925, %v3269
        %v3286 = vadd.f32 %v2926, %v3270
        %v3287 = vadd.f32 %v2927, %v3271
        %v3288 = vadd.f32 %v2928, %v3272
        %v3289 = vld [vmem:[#allocation8 + $0x33] sm:$0x1]
        %v3290 = vlaneseq
        %v3291 = vshrl.u32 %v3290, 7
        %v3292 = vsub.s32 0, %v3291
        %v3293 = vrot.slane %v3289, %v3292
        %v3294 = vmul.f32 %v3162, %v3293
        %v3295 = vmul.f32 %v3163, %v3293
        %v3296 = vmul.f32 %v3164, %v3293
        %v3297 = vmul.f32 %v3165, %v3293
        %v3298 = vmul.f32 %v3166, %v3293
        %v3299 = vmul.f32 %v3167, %v3293
        %v3300 = vmul.f32 %v3168, %v3293
        %v3301 = vmul.f32 %v3169, %v3293
        %v3302 = vmul.f32 %v3170, %v3293
        %v3303 = vmul.f32 %v3171, %v3293
        %v3304 = vmul.f32 %v3172, %v3293
        %v3305 = vmul.f32 %v3173, %v3293
        %v3306 = vmul.f32 %v3174, %v3293
        %v3307 = vmul.f32 %v3175, %v3293
        %v3308 = vmul.f32 %v3176, %v3293
        %v3309 = vmul.f32 %v3177, %v3293
        %v3310 = vadd.f32 %v2950, %v3294
        %v3311 = vadd.f32 %v2951, %v3295
        %v3312 = vadd.f32 %v2952, %v3296
        %v3313 = vadd.f32 %v2953, %v3297
        %v3314 = vadd.f32 %v2954, %v3298
        %v3315 = vadd.f32 %v2955, %v3299
        %v3316 = vadd.f32 %v2956, %v3300
        %v3317 = vadd.f32 %v2957, %v3301
        %v3318 = vadd.f32 %v2958, %v3302
        %v3319 = vadd.f32 %v2959, %v3303
        %v3320 = vadd.f32 %v2960, %v3304
        %v3321 = vadd.f32 %v2961, %v3305
        %v3322 = vadd.f32 %v2962, %v3306
        %v3323 = vadd.f32 %v2963, %v3307
        %v3324 = vadd.f32 %v2964, %v3308
        %v3325 = vadd.f32 %v2965, %v3309
        %v3326 = vld [vmem:[#allocation8 + $0x43] sm:$0x1]
        %v3327 = vlaneseq
        %v3328 = vshrl.u32 %v3327, 7
        %v3329 = vsub.s32 0, %v3328
        %v3330 = vrot.slane %v3326, %v3329
        %v3331 = vmul.f32 %v3162, %v3330
        %v3332 = vmul.f32 %v3163, %v3330
        %v3333 = vmul.f32 %v3164, %v3330
        %v3334 = vmul.f32 %v3165, %v3330
        %v3335 = vmul.f32 %v3166, %v3330
        %v3336 = vmul.f32 %v3167, %v3330
        %v3337 = vmul.f32 %v3168, %v3330
        %v3338 = vmul.f32 %v3169, %v3330
        %v3339 = vmul.f32 %v3170, %v3330
        %v3340 = vmul.f32 %v3171, %v3330
        %v3341 = vmul.f32 %v3172, %v3330
        %v3342 = vmul.f32 %v3173, %v3330
        %v3343 = vmul.f32 %v3174, %v3330
        %v3344 = vmul.f32 %v3175, %v3330
        %v3345 = vmul.f32 %v3176, %v3330
        %v3346 = vmul.f32 %v3177, %v3330
        %v3347 = vadd.f32 %v2987, %v3331
        %v3348 = vadd.f32 %v2988, %v3332
        %v3349 = vadd.f32 %v2989, %v3333
        %v3350 = vadd.f32 %v2990, %v3334
        %v3351 = vadd.f32 %v2991, %v3335
        %v3352 = vadd.f32 %v2992, %v3336
        %v3353 = vadd.f32 %v2993, %v3337
        %v3354 = vadd.f32 %v2994, %v3338
        %v3355 = vadd.f32 %v2995, %v3339
        %v3356 = vadd.f32 %v2996, %v3340
        %v3357 = vadd.f32 %v2997, %v3341
        %v3358 = vadd.f32 %v2998, %v3342
        %v3359 = vadd.f32 %v2999, %v3343
        %v3360 = vadd.f32 %v3000, %v3344
        %v3361 = vadd.f32 %v3001, %v3345
        %v3362 = vadd.f32 %v3002, %v3346
        %v3363 = vld [vmem:[#allocation8 + $0x53] sm:$0x1]
        %v3364 = vlaneseq
        %v3365 = vshrl.u32 %v3364, 7
        %v3366 = vsub.s32 0, %v3365
        %v3367 = vrot.slane %v3363, %v3366
        %v3368 = vmul.f32 %v3162, %v3367
        %v3369 = vmul.f32 %v3163, %v3367
        %v3370 = vmul.f32 %v3164, %v3367
        %v3371 = vmul.f32 %v3165, %v3367
        %v3372 = vmul.f32 %v3166, %v3367
        %v3373 = vmul.f32 %v3167, %v3367
        %v3374 = vmul.f32 %v3168, %v3367
        %v3375 = vmul.f32 %v3169, %v3367
        %v3376 = vmul.f32 %v3170, %v3367
        %v3377 = vmul.f32 %v3171, %v3367
        %v3378 = vmul.f32 %v3172, %v3367
        %v3379 = vmul.f32 %v3173, %v3367
        %v3380 = vmul.f32 %v3174, %v3367
        %v3381 = vmul.f32 %v3175, %v3367
        %v3382 = vmul.f32 %v3176, %v3367
        %v3383 = vmul.f32 %v3177, %v3367
        %v3384 = vadd.f32 %v3024, %v3368
        %v3385 = vadd.f32 %v3025, %v3369
        %v3386 = vadd.f32 %v3026, %v3370
        %v3387 = vadd.f32 %v3027, %v3371
        %v3388 = vadd.f32 %v3028, %v3372
        %v3389 = vadd.f32 %v3029, %v3373
        %v3390 = vadd.f32 %v3030, %v3374
        %v3391 = vadd.f32 %v3031, %v3375
        %v3392 = vadd.f32 %v3032, %v3376
        %v3393 = vadd.f32 %v3033, %v3377
        %v3394 = vadd.f32 %v3034, %v3378
        %v3395 = vadd.f32 %v3035, %v3379
        %v3396 = vadd.f32 %v3036, %v3380
        %v3397 = vadd.f32 %v3037, %v3381
        %v3398 = vadd.f32 %v3038, %v3382
        %v3399 = vadd.f32 %v3039, %v3383
        %v3400 = vld [vmem:[#allocation8 + $0x63] sm:$0x1]
        %v3401 = vlaneseq
        %v3402 = vshrl.u32 %v3401, 7
        %v3403 = vsub.s32 0, %v3402
        %v3404 = vrot.slane %v3400, %v3403
        %v3405 = vmul.f32 %v3162, %v3404
        %v3406 = vmul.f32 %v3163, %v3404
        %v3407 = vmul.f32 %v3164, %v3404
        %v3408 = vmul.f32 %v3165, %v3404
        %v3409 = vmul.f32 %v3166, %v3404
        %v3410 = vmul.f32 %v3167, %v3404
        %v3411 = vmul.f32 %v3168, %v3404
        %v3412 = vmul.f32 %v3169, %v3404
        %v3413 = vmul.f32 %v3170, %v3404
        %v3414 = vmul.f32 %v3171, %v3404
        %v3415 = vmul.f32 %v3172, %v3404
        %v3416 = vmul.f32 %v3173, %v3404
        %v3417 = vmul.f32 %v3174, %v3404
        %v3418 = vmul.f32 %v3175, %v3404
        %v3419 = vmul.f32 %v3176, %v3404
        %v3420 = vmul.f32 %v3177, %v3404
        %v3421 = vadd.f32 %v3061, %v3405
        %v3422 = vadd.f32 %v3062, %v3406
        %v3423 = vadd.f32 %v3063, %v3407
        %v3424 = vadd.f32 %v3064, %v3408
        %v3425 = vadd.f32 %v3065, %v3409
        %v3426 = vadd.f32 %v3066, %v3410
        %v3427 = vadd.f32 %v3067, %v3411
        %v3428 = vadd.f32 %v3068, %v3412
        %v3429 = vadd.f32 %v3069, %v3413
        %v3430 = vadd.f32 %v3070, %v3414
        %v3431 = vadd.f32 %v3071, %v3415
        %v3432 = vadd.f32 %v3072, %v3416
        %v3433 = vadd.f32 %v3073, %v3417
        %v3434 = vadd.f32 %v3074, %v3418
        %v3435 = vadd.f32 %v3075, %v3419
        %v3436 = vadd.f32 %v3076, %v3420
        %v3437 = vld [vmem:[#allocation8 + $0x73] sm:$0x1]
        %v3438 = vlaneseq
        %v3439 = vshrl.u32 %v3438, 7
        %v3440 = vsub.s32 0, %v3439
        %v3441 = vrot.slane %v3437, %v3440
        %v3442 = vmul.f32 %v3162, %v3441
        %v3443 = vmul.f32 %v3163, %v3441
        %v3444 = vmul.f32 %v3164, %v3441
        %v3445 = vmul.f32 %v3165, %v3441
        %v3446 = vmul.f32 %v3166, %v3441
        %v3447 = vmul.f32 %v3167, %v3441
        %v3448 = vmul.f32 %v3168, %v3441
        %v3449 = vmul.f32 %v3169, %v3441
        %v3450 = vmul.f32 %v3170, %v3441
        %v3451 = vmul.f32 %v3171, %v3441
        %v3452 = vmul.f32 %v3172, %v3441
        %v3453 = vmul.f32 %v3173, %v3441
        %v3454 = vmul.f32 %v3174, %v3441
        %v3455 = vmul.f32 %v3175, %v3441
        %v3456 = vmul.f32 %v3176, %v3441
        %v3457 = vmul.f32 %v3177, %v3441
        %v3458 = vadd.f32 %v3098, %v3442
        %v3459 = vadd.f32 %v3099, %v3443
        %v3460 = vadd.f32 %v3100, %v3444
        %v3461 = vadd.f32 %v3101, %v3445
        %v3462 = vadd.f32 %v3102, %v3446
        %v3463 = vadd.f32 %v3103, %v3447
        %v3464 = vadd.f32 %v3104, %v3448
        %v3465 = vadd.f32 %v3105, %v3449
        %v3466 = vadd.f32 %v3106, %v3450
        %v3467 = vadd.f32 %v3107, %v3451
        %v3468 = vadd.f32 %v3108, %v3452
        %v3469 = vadd.f32 %v3109, %v3453
        %v3470 = vadd.f32 %v3110, %v3454
        %v3471 = vadd.f32 %v3111, %v3455
        %v3472 = vadd.f32 %v3112, %v3456
        %v3473 = vadd.f32 %v3113, %v3457
        %v3474 = vmul.f32 %v1519, 0.5
        %v3475 = vmul.f32 %v1523, 0.5
        %v3476 = vmul.f32 %v1529, 0.5
        %v3477 = vmul.f32 %v1533, 0.5
        %v3478 = vmul.f32 %v1539, 0.5
        %v3479 = vmul.f32 %v1543, 0.5
        %v3480 = vmul.f32 %v1549, 0.5
        %v3481 = vmul.f32 %v1553, 0.5
        %v3482 = vmul.f32 %v1559, 0.5
        %v3483 = vmul.f32 %v1563, 0.5
        %v3484 = vmul.f32 %v1569, 0.5
        %v3485 = vmul.f32 %v1573, 0.5
        %v3486 = vmul.f32 %v1579, 0.5
        %v3487 = vmul.f32 %v1583, 0.5
        %v3488 = vmul.f32 %v1589, 0.5
        %v3489 = vmul.f32 %v1593, 0.5
        %v3490 = vtanh.pop %v3474
        %v3491 = vtanh.pop %v3475
        %v3492 = vtanh.pop %v3476
        %v3493 = vtanh.pop %v3477
        %v3494 = vtanh.pop %v3478
        %v3495 = vtanh.pop %v3479
        %v3496 = vtanh.pop %v3480
        %v3497 = vtanh.pop %v3481
        %v3498 = vtanh.pop %v3482
        %v3499 = vtanh.pop %v3483
        %v3500 = vtanh.pop %v3484
        %v3501 = vtanh.pop %v3485
        %v3502 = vtanh.pop %v3486
        %v3503 = vtanh.pop %v3487
        %v3504 = vtanh.pop %v3488
        %v3505 = vtanh.pop %v3489
        %v3506 = vmul.f32 %v3490, 0.5
        %v3507 = vmul.f32 %v3491, 0.5
        %v3508 = vmul.f32 %v3492, 0.5
        %v3509 = vmul.f32 %v3493, 0.5
        %v3510 = vmul.f32 %v3494, 0.5
        %v3511 = vmul.f32 %v3495, 0.5
        %v3512 = vmul.f32 %v3496, 0.5
        %v3513 = vmul.f32 %v3497, 0.5
        %v3514 = vmul.f32 %v3498, 0.5
        %v3515 = vmul.f32 %v3499, 0.5
        %v3516 = vmul.f32 %v3500, 0.5
        %v3517 = vmul.f32 %v3501, 0.5
        %v3518 = vmul.f32 %v3502, 0.5
        %v3519 = vmul.f32 %v3503, 0.5
        %v3520 = vmul.f32 %v3504, 0.5
        %v3521 = vmul.f32 %v3505, 0.5
        %v3522 = vadd.f32 %v3506, 0.5
        %v3523 = vadd.f32 %v3507, 0.5
        %v3524 = vadd.f32 %v3508, 0.5
        %v3525 = vadd.f32 %v3509, 0.5
        %v3526 = vadd.f32 %v3510, 0.5
        %v3527 = vadd.f32 %v3511, 0.5
        %v3528 = vadd.f32 %v3512, 0.5
        %v3529 = vadd.f32 %v3513, 0.5
        %v3530 = vadd.f32 %v3514, 0.5
        %v3531 = vadd.f32 %v3515, 0.5
        %v3532 = vadd.f32 %v3516, 0.5
        %v3533 = vadd.f32 %v3517, 0.5
        %v3534 = vadd.f32 %v3518, 0.5
        %v3535 = vadd.f32 %v3519, 0.5
        %v3536 = vadd.f32 %v3520, 0.5
        %v3537 = vadd.f32 %v3521, 0.5
        %v3538 = vld [vmem:[#allocation8 + $0x4] sm:$0x1]
        %v3539 = vlaneseq
        %v3540 = vshrl.u32 %v3539, 7
        %v3541 = vsub.s32 0, %v3540
        %v3542 = vrot.slane %v3538, %v3541
        %v3543 = vmul.f32 %v3522, %v3542
        %v3544 = vmul.f32 %v3523, %v3542
        %v3545 = vmul.f32 %v3524, %v3542
        %v3546 = vmul.f32 %v3525, %v3542
        %v3547 = vmul.f32 %v3526, %v3542
        %v3548 = vmul.f32 %v3527, %v3542
        %v3549 = vmul.f32 %v3528, %v3542
        %v3550 = vmul.f32 %v3529, %v3542
        %v3551 = vmul.f32 %v3530, %v3542
        %v3552 = vmul.f32 %v3531, %v3542
        %v3553 = vmul.f32 %v3532, %v3542
        %v3554 = vmul.f32 %v3533, %v3542
        %v3555 = vmul.f32 %v3534, %v3542
        %v3556 = vmul.f32 %v3535, %v3542
        %v3557 = vmul.f32 %v3536, %v3542
        %v3558 = vmul.f32 %v3537, %v3542
        %v3559 = vadd.f32 %v3199, %v3543
        %v3560 = vadd.f32 %v3200, %v3544
        %v3561 = vadd.f32 %v3201, %v3545
        %v3562 = vadd.f32 %v3202, %v3546
        %v3563 = vadd.f32 %v3203, %v3547
        %v3564 = vadd.f32 %v3204, %v3548
        %v3565 = vadd.f32 %v3205, %v3549
        %v3566 = vadd.f32 %v3206, %v3550
        %v3567 = vadd.f32 %v3207, %v3551
        %v3568 = vadd.f32 %v3208, %v3552
        %v3569 = vadd.f32 %v3209, %v3553
        %v3570 = vadd.f32 %v3210, %v3554
        %v3571 = vadd.f32 %v3211, %v3555
        %v3572 = vadd.f32 %v3212, %v3556
        %v3573 = vadd.f32 %v3213, %v3557
        %v3574 = vadd.f32 %v3214, %v3558
        %v3575 = vld [vmem:[#allocation8 + $0x14] sm:$0x1]
        %v3576 = vlaneseq
        %v3577 = vshrl.u32 %v3576, 7
        %v3578 = vsub.s32 0, %v3577
        %v3579 = vrot.slane %v3575, %v3578
        %v3580 = vmul.f32 %v3522, %v3579
        %v3581 = vmul.f32 %v3523, %v3579
        %v3582 = vmul.f32 %v3524, %v3579
        %v3583 = vmul.f32 %v3525, %v3579
        %v3584 = vmul.f32 %v3526, %v3579
        %v3585 = vmul.f32 %v3527, %v3579
        %v3586 = vmul.f32 %v3528, %v3579
        %v3587 = vmul.f32 %v3529, %v3579
        %v3588 = vmul.f32 %v3530, %v3579
        %v3589 = vmul.f32 %v3531, %v3579
        %v3590 = vmul.f32 %v3532, %v3579
        %v3591 = vmul.f32 %v3533, %v3579
        %v3592 = vmul.f32 %v3534, %v3579
        %v3593 = vmul.f32 %v3535, %v3579
        %v3594 = vmul.f32 %v3536, %v3579
        %v3595 = vmul.f32 %v3537, %v3579
        %v3596 = vadd.f32 %v3236, %v3580
        %v3597 = vadd.f32 %v3237, %v3581
        %v3598 = vadd.f32 %v3238, %v3582
        %v3599 = vadd.f32 %v3239, %v3583
        %v3600 = vadd.f32 %v3240, %v3584
        %v3601 = vadd.f32 %v3241, %v3585
        %v3602 = vadd.f32 %v3242, %v3586
        %v3603 = vadd.f32 %v3243, %v3587
        %v3604 = vadd.f32 %v3244, %v3588
        %v3605 = vadd.f32 %v3245, %v3589
        %v3606 = vadd.f32 %v3246, %v3590
        %v3607 = vadd.f32 %v3247, %v3591
        %v3608 = vadd.f32 %v3248, %v3592
        %v3609 = vadd.f32 %v3249, %v3593
        %v3610 = vadd.f32 %v3250, %v3594
        %v3611 = vadd.f32 %v3251, %v3595
        %v3612 = vld [vmem:[#allocation8 + $0x24] sm:$0x1]
        %v3613 = vlaneseq
        %v3614 = vshrl.u32 %v3613, 7
        %v3615 = vsub.s32 0, %v3614
        %v3616 = vrot.slane %v3612, %v3615
        %v3617 = vmul.f32 %v3522, %v3616
        %v3618 = vmul.f32 %v3523, %v3616
        %v3619 = vmul.f32 %v3524, %v3616
        %v3620 = vmul.f32 %v3525, %v3616
        %v3621 = vmul.f32 %v3526, %v3616
        %v3622 = vmul.f32 %v3527, %v3616
        %v3623 = vmul.f32 %v3528, %v3616
        %v3624 = vmul.f32 %v3529, %v3616
        %v3625 = vmul.f32 %v3530, %v3616
        %v3626 = vmul.f32 %v3531, %v3616
        %v3627 = vmul.f32 %v3532, %v3616
        %v3628 = vmul.f32 %v3533, %v3616
        %v3629 = vmul.f32 %v3534, %v3616
        %v3630 = vmul.f32 %v3535, %v3616
        %v3631 = vmul.f32 %v3536, %v3616
        %v3632 = vmul.f32 %v3537, %v3616
        %v3633 = vadd.f32 %v3273, %v3617
        %v3634 = vadd.f32 %v3274, %v3618
        %v3635 = vadd.f32 %v3275, %v3619
        %v3636 = vadd.f32 %v3276, %v3620
        %v3637 = vadd.f32 %v3277, %v3621
        %v3638 = vadd.f32 %v3278, %v3622
        %v3639 = vadd.f32 %v3279, %v3623
        %v3640 = vadd.f32 %v3280, %v3624
        %v3641 = vadd.f32 %v3281, %v3625
        %v3642 = vadd.f32 %v3282, %v3626
        %v3643 = vadd.f32 %v3283, %v3627
        %v3644 = vadd.f32 %v3284, %v3628
        %v3645 = vadd.f32 %v3285, %v3629
        %v3646 = vadd.f32 %v3286, %v3630
        %v3647 = vadd.f32 %v3287, %v3631
        %v3648 = vadd.f32 %v3288, %v3632
        %v3649 = vld [vmem:[#allocation8 + $0x34] sm:$0x1]
        %v3650 = vlaneseq
        %v3651 = vshrl.u32 %v3650, 7
        %v3652 = vsub.s32 0, %v3651
        %v3653 = vrot.slane %v3649, %v3652
        %v3654 = vmul.f32 %v3522, %v3653
        %v3655 = vmul.f32 %v3523, %v3653
        %v3656 = vmul.f32 %v3524, %v3653
        %v3657 = vmul.f32 %v3525, %v3653
        %v3658 = vmul.f32 %v3526, %v3653
        %v3659 = vmul.f32 %v3527, %v3653
        %v3660 = vmul.f32 %v3528, %v3653
        %v3661 = vmul.f32 %v3529, %v3653
        %v3662 = vmul.f32 %v3530, %v3653
        %v3663 = vmul.f32 %v3531, %v3653
        %v3664 = vmul.f32 %v3532, %v3653
        %v3665 = vmul.f32 %v3533, %v3653
        %v3666 = vmul.f32 %v3534, %v3653
        %v3667 = vmul.f32 %v3535, %v3653
        %v3668 = vmul.f32 %v3536, %v3653
        %v3669 = vmul.f32 %v3537, %v3653
        %v3670 = vadd.f32 %v3310, %v3654
        %v3671 = vadd.f32 %v3311, %v3655
        %v3672 = vadd.f32 %v3312, %v3656
        %v3673 = vadd.f32 %v3313, %v3657
        %v3674 = vadd.f32 %v3314, %v3658
        %v3675 = vadd.f32 %v3315, %v3659
        %v3676 = vadd.f32 %v3316, %v3660
        %v3677 = vadd.f32 %v3317, %v3661
        %v3678 = vadd.f32 %v3318, %v3662
        %v3679 = vadd.f32 %v3319, %v3663
        %v3680 = vadd.f32 %v3320, %v3664
        %v3681 = vadd.f32 %v3321, %v3665
        %v3682 = vadd.f32 %v3322, %v3666
        %v3683 = vadd.f32 %v3323, %v3667
        %v3684 = vadd.f32 %v3324, %v3668
        %v3685 = vadd.f32 %v3325, %v3669
        %v3686 = vld [vmem:[#allocation8 + $0x44] sm:$0x1]
        %v3687 = vlaneseq
        %v3688 = vshrl.u32 %v3687, 7
        %v3689 = vsub.s32 0, %v3688
        %v3690 = vrot.slane %v3686, %v3689
        %v3691 = vmul.f32 %v3522, %v3690
        %v3692 = vmul.f32 %v3523, %v3690
        %v3693 = vmul.f32 %v3524, %v3690
        %v3694 = vmul.f32 %v3525, %v3690
        %v3695 = vmul.f32 %v3526, %v3690
        %v3696 = vmul.f32 %v3527, %v3690
        %v3697 = vmul.f32 %v3528, %v3690
        %v3698 = vmul.f32 %v3529, %v3690
        %v3699 = vmul.f32 %v3530, %v3690
        %v3700 = vmul.f32 %v3531, %v3690
        %v3701 = vmul.f32 %v3532, %v3690
        %v3702 = vmul.f32 %v3533, %v3690
        %v3703 = vmul.f32 %v3534, %v3690
        %v3704 = vmul.f32 %v3535, %v3690
        %v3705 = vmul.f32 %v3536, %v3690
        %v3706 = vmul.f32 %v3537, %v3690
        %v3707 = vadd.f32 %v3347, %v3691
        %v3708 = vadd.f32 %v3348, %v3692
        %v3709 = vadd.f32 %v3349, %v3693
        %v3710 = vadd.f32 %v3350, %v3694
        %v3711 = vadd.f32 %v3351, %v3695
        %v3712 = vadd.f32 %v3352, %v3696
        %v3713 = vadd.f32 %v3353, %v3697
        %v3714 = vadd.f32 %v3354, %v3698
        %v3715 = vadd.f32 %v3355, %v3699
        %v3716 = vadd.f32 %v3356, %v3700
        %v3717 = vadd.f32 %v3357, %v3701
        %v3718 = vadd.f32 %v3358, %v3702
        %v3719 = vadd.f32 %v3359, %v3703
        %v3720 = vadd.f32 %v3360, %v3704
        %v3721 = vadd.f32 %v3361, %v3705
        %v3722 = vadd.f32 %v3362, %v3706
        %v3723 = vld [vmem:[#allocation8 + $0x54] sm:$0x1]
        %v3724 = vlaneseq
        %v3725 = vshrl.u32 %v3724, 7
        %v3726 = vsub.s32 0, %v3725
        %v3727 = vrot.slane %v3723, %v3726
        %v3728 = vmul.f32 %v3522, %v3727
        %v3729 = vmul.f32 %v3523, %v3727
        %v3730 = vmul.f32 %v3524, %v3727
        %v3731 = vmul.f32 %v3525, %v3727
        %v3732 = vmul.f32 %v3526, %v3727
        %v3733 = vmul.f32 %v3527, %v3727
        %v3734 = vmul.f32 %v3528, %v3727
        %v3735 = vmul.f32 %v3529, %v3727
        %v3736 = vmul.f32 %v3530, %v3727
        %v3737 = vmul.f32 %v3531, %v3727
        %v3738 = vmul.f32 %v3532, %v3727
        %v3739 = vmul.f32 %v3533, %v3727
        %v3740 = vmul.f32 %v3534, %v3727
        %v3741 = vmul.f32 %v3535, %v3727
        %v3742 = vmul.f32 %v3536, %v3727
        %v3743 = vmul.f32 %v3537, %v3727
        %v3744 = vadd.f32 %v3384, %v3728
        %v3745 = vadd.f32 %v3385, %v3729
        %v3746 = vadd.f32 %v3386, %v3730
        %v3747 = vadd.f32 %v3387, %v3731
        %v3748 = vadd.f32 %v3388, %v3732
        %v3749 = vadd.f32 %v3389, %v3733
        %v3750 = vadd.f32 %v3390, %v3734
        %v3751 = vadd.f32 %v3391, %v3735
        %v3752 = vadd.f32 %v3392, %v3736
        %v3753 = vadd.f32 %v3393, %v3737
        %v3754 = vadd.f32 %v3394, %v3738
        %v3755 = vadd.f32 %v3395, %v3739
        %v3756 = vadd.f32 %v3396, %v3740
        %v3757 = vadd.f32 %v3397, %v3741
        %v3758 = vadd.f32 %v3398, %v3742
        %v3759 = vadd.f32 %v3399, %v3743
        %v3760 = vld [vmem:[#allocation8 + $0x64] sm:$0x1]
        %v3761 = vlaneseq
        %v3762 = vshrl.u32 %v3761, 7
        %v3763 = vsub.s32 0, %v3762
        %v3764 = vrot.slane %v3760, %v3763
        %v3765 = vmul.f32 %v3522, %v3764
        %v3766 = vmul.f32 %v3523, %v3764
        %v3767 = vmul.f32 %v3524, %v3764
        %v3768 = vmul.f32 %v3525, %v3764
        %v3769 = vmul.f32 %v3526, %v3764
        %v3770 = vmul.f32 %v3527, %v3764
        %v3771 = vmul.f32 %v3528, %v3764
        %v3772 = vmul.f32 %v3529, %v3764
        %v3773 = vmul.f32 %v3530, %v3764
        %v3774 = vmul.f32 %v3531, %v3764
        %v3775 = vmul.f32 %v3532, %v3764
        %v3776 = vmul.f32 %v3533, %v3764
        %v3777 = vmul.f32 %v3534, %v3764
        %v3778 = vmul.f32 %v3535, %v3764
        %v3779 = vmul.f32 %v3536, %v3764
        %v3780 = vmul.f32 %v3537, %v3764
        %v3781 = vadd.f32 %v3421, %v3765
        %v3782 = vadd.f32 %v3422, %v3766
        %v3783 = vadd.f32 %v3423, %v3767
        %v3784 = vadd.f32 %v3424, %v3768
        %v3785 = vadd.f32 %v3425, %v3769
        %v3786 = vadd.f32 %v3426, %v3770
        %v3787 = vadd.f32 %v3427, %v3771
        %v3788 = vadd.f32 %v3428, %v3772
        %v3789 = vadd.f32 %v3429, %v3773
        %v3790 = vadd.f32 %v3430, %v3774
        %v3791 = vadd.f32 %v3431, %v3775
        %v3792 = vadd.f32 %v3432, %v3776
        %v3793 = vadd.f32 %v3433, %v3777
        %v3794 = vadd.f32 %v3434, %v3778
        %v3795 = vadd.f32 %v3435, %v3779
        %v3796 = vadd.f32 %v3436, %v3780
        %v3797 = vld [vmem:[#allocation8 + $0x74] sm:$0x1]
        %v3798 = vlaneseq
        %v3799 = vshrl.u32 %v3798, 7
        %v3800 = vsub.s32 0, %v3799
        %v3801 = vrot.slane %v3797, %v3800
        %v3802 = vmul.f32 %v3522, %v3801
        %v3803 = vmul.f32 %v3523, %v3801
        %v3804 = vmul.f32 %v3524, %v3801
        %v3805 = vmul.f32 %v3525, %v3801
        %v3806 = vmul.f32 %v3526, %v3801
        %v3807 = vmul.f32 %v3527, %v3801
        %v3808 = vmul.f32 %v3528, %v3801
        %v3809 = vmul.f32 %v3529, %v3801
        %v3810 = vmul.f32 %v3530, %v3801
        %v3811 = vmul.f32 %v3531, %v3801
        %v3812 = vmul.f32 %v3532, %v3801
        %v3813 = vmul.f32 %v3533, %v3801
        %v3814 = vmul.f32 %v3534, %v3801
        %v3815 = vmul.f32 %v3535, %v3801
        %v3816 = vmul.f32 %v3536, %v3801
        %v3817 = vmul.f32 %v3537, %v3801
        %v3818 = vadd.f32 %v3458, %v3802
        %v3819 = vadd.f32 %v3459, %v3803
        %v3820 = vadd.f32 %v3460, %v3804
        %v3821 = vadd.f32 %v3461, %v3805
        %v3822 = vadd.f32 %v3462, %v3806
        %v3823 = vadd.f32 %v3463, %v3807
        %v3824 = vadd.f32 %v3464, %v3808
        %v3825 = vadd.f32 %v3465, %v3809
        %v3826 = vadd.f32 %v3466, %v3810
        %v3827 = vadd.f32 %v3467, %v3811
        %v3828 = vadd.f32 %v3468, %v3812
        %v3829 = vadd.f32 %v3469, %v3813
        %v3830 = vadd.f32 %v3470, %v3814
        %v3831 = vadd.f32 %v3471, %v3815
        %v3832 = vadd.f32 %v3472, %v3816
        %v3833 = vadd.f32 %v3473, %v3817
        %v3834 = vmul.f32 %v1521, 0.5
        %v3835 = vmul.f32 %v1525, 0.5
        %v3836 = vmul.f32 %v1531, 0.5
        %v3837 = vmul.f32 %v1535, 0.5
        %v3838 = vmul.f32 %v1541, 0.5
        %v3839 = vmul.f32 %v1545, 0.5
        %v3840 = vmul.f32 %v1551, 0.5
        %v3841 = vmul.f32 %v1555, 0.5
        %v3842 = vmul.f32 %v1561, 0.5
        %v3843 = vmul.f32 %v1565, 0.5
        %v3844 = vmul.f32 %v1571, 0.5
        %v3845 = vmul.f32 %v1575, 0.5
        %v3846 = vmul.f32 %v1581, 0.5
        %v3847 = vmul.f32 %v1585, 0.5
        %v3848 = vmul.f32 %v1591, 0.5
        %v3849 = vmul.f32 %v1595, 0.5
        %v3850 = vtanh.pop %v3834
        %v3851 = vtanh.pop %v3835
        %v3852 = vtanh.pop %v3836
        %v3853 = vtanh.pop %v3837
        %v3854 = vtanh.pop %v3838
        %v3855 = vtanh.pop %v3839
        %v3856 = vtanh.pop %v3840
        %v3857 = vtanh.pop %v3841
        %v3858 = vtanh.pop %v3842
        %v3859 = vtanh.pop %v3843
        %v3860 = vtanh.pop %v3844
        %v3861 = vtanh.pop %v3845
        %v3862 = vtanh.pop %v3846
        %v3863 = vtanh.pop %v3847
        %v3864 = vtanh.pop %v3848
        %v3865 = vtanh.pop %v3849
        %v3866 = vmul.f32 %v3850, 0.5
        %v3867 = vmul.f32 %v3851, 0.5
        %v3868 = vmul.f32 %v3852, 0.5
        %v3869 = vmul.f32 %v3853, 0.5
        %v3870 = vmul.f32 %v3854, 0.5
        %v3871 = vmul.f32 %v3855, 0.5
        %v3872 = vmul.f32 %v3856, 0.5
        %v3873 = vmul.f32 %v3857, 0.5
        %v3874 = vmul.f32 %v3858, 0.5
        %v3875 = vmul.f32 %v3859, 0.5
        %v3876 = vmul.f32 %v3860, 0.5
        %v3877 = vmul.f32 %v3861, 0.5
        %v3878 = vmul.f32 %v3862, 0.5
        %v3879 = vmul.f32 %v3863, 0.5
        %v3880 = vmul.f32 %v3864, 0.5
        %v3881 = vmul.f32 %v3865, 0.5
        %v3882 = vadd.f32 %v3866, 0.5
        %v3883 = vadd.f32 %v3867, 0.5
        %v3884 = vadd.f32 %v3868, 0.5
        %v3885 = vadd.f32 %v3869, 0.5
        %v3886 = vadd.f32 %v3870, 0.5
        %v3887 = vadd.f32 %v3871, 0.5
        %v3888 = vadd.f32 %v3872, 0.5
        %v3889 = vadd.f32 %v3873, 0.5
        %v3890 = vadd.f32 %v3874, 0.5
        %v3891 = vadd.f32 %v3875, 0.5
        %v3892 = vadd.f32 %v3876, 0.5
        %v3893 = vadd.f32 %v3877, 0.5
        %v3894 = vadd.f32 %v3878, 0.5
        %v3895 = vadd.f32 %v3879, 0.5
        %v3896 = vadd.f32 %v3880, 0.5
        %v3897 = vadd.f32 %v3881, 0.5
        %v3898 = vld [vmem:[#allocation8 + $0x5] sm:$0x1]
        %v3899 = vlaneseq
        %v3900 = vshrl.u32 %v3899, 7
        %v3901 = vsub.s32 0, %v3900
        %v3902 = vrot.slane %v3898, %v3901
        %v3903 = vmul.f32 %v3882, %v3902
        %v3904 = vmul.f32 %v3883, %v3902
        %v3905 = vmul.f32 %v3884, %v3902
        %v3906 = vmul.f32 %v3885, %v3902
        %v3907 = vmul.f32 %v3886, %v3902
        %v3908 = vmul.f32 %v3887, %v3902
        %v3909 = vmul.f32 %v3888, %v3902
        %v3910 = vmul.f32 %v3889, %v3902
        %v3911 = vmul.f32 %v3890, %v3902
        %v3912 = vmul.f32 %v3891, %v3902
        %v3913 = vmul.f32 %v3892, %v3902
        %v3914 = vmul.f32 %v3893, %v3902
        %v3915 = vmul.f32 %v3894, %v3902
        %v3916 = vmul.f32 %v3895, %v3902
        %v3917 = vmul.f32 %v3896, %v3902
        %v3918 = vmul.f32 %v3897, %v3902
        %v3919 = vadd.f32 %v3559, %v3903
        %v3920 = vadd.f32 %v3560, %v3904
        %v3921 = vadd.f32 %v3561, %v3905
        %v3922 = vadd.f32 %v3562, %v3906
        %v3923 = vadd.f32 %v3563, %v3907
        %v3924 = vadd.f32 %v3564, %v3908
        %v3925 = vadd.f32 %v3565, %v3909
        %v3926 = vadd.f32 %v3566, %v3910
        %v3927 = vadd.f32 %v3567, %v3911
        %v3928 = vadd.f32 %v3568, %v3912
        %v3929 = vadd.f32 %v3569, %v3913
        %v3930 = vadd.f32 %v3570, %v3914
        %v3931 = vadd.f32 %v3571, %v3915
        %v3932 = vadd.f32 %v3572, %v3916
        %v3933 = vadd.f32 %v3573, %v3917
        %v3934 = vadd.f32 %v3574, %v3918
        %v3935 = vld [vmem:[#allocation8 + $0x15] sm:$0x1]
        %v3936 = vlaneseq
        %v3937 = vshrl.u32 %v3936, 7
        %v3938 = vsub.s32 0, %v3937
        %v3939 = vrot.slane %v3935, %v3938
        %v3940 = vmul.f32 %v3882, %v3939
        %v3941 = vmul.f32 %v3883, %v3939
        %v3942 = vmul.f32 %v3884, %v3939
        %v3943 = vmul.f32 %v3885, %v3939
        %v3944 = vmul.f32 %v3886, %v3939
        %v3945 = vmul.f32 %v3887, %v3939
        %v3946 = vmul.f32 %v3888, %v3939
        %v3947 = vmul.f32 %v3889, %v3939
        %v3948 = vmul.f32 %v3890, %v3939
        %v3949 = vmul.f32 %v3891, %v3939
        %v3950 = vmul.f32 %v3892, %v3939
        %v3951 = vmul.f32 %v3893, %v3939
        %v3952 = vmul.f32 %v3894, %v3939
        %v3953 = vmul.f32 %v3895, %v3939
        %v3954 = vmul.f32 %v3896, %v3939
        %v3955 = vmul.f32 %v3897, %v3939
        %v3956 = vadd.f32 %v3596, %v3940
        %v3957 = vadd.f32 %v3597, %v3941
        %v3958 = vadd.f32 %v3598, %v3942
        %v3959 = vadd.f32 %v3599, %v3943
        %v3960 = vadd.f32 %v3600, %v3944
        %v3961 = vadd.f32 %v3601, %v3945
        %v3962 = vadd.f32 %v3602, %v3946
        %v3963 = vadd.f32 %v3603, %v3947
        %v3964 = vadd.f32 %v3604, %v3948
        %v3965 = vadd.f32 %v3605, %v3949
        %v3966 = vadd.f32 %v3606, %v3950
        %v3967 = vadd.f32 %v3607, %v3951
        %v3968 = vadd.f32 %v3608, %v3952
        %v3969 = vadd.f32 %v3609, %v3953
        %v3970 = vadd.f32 %v3610, %v3954
        %v3971 = vadd.f32 %v3611, %v3955
        %v3972 = vld [vmem:[#allocation8 + $0x25] sm:$0x1]
        %v3973 = vlaneseq
        %v3974 = vshrl.u32 %v3973, 7
        %v3975 = vsub.s32 0, %v3974
        %v3976 = vrot.slane %v3972, %v3975
        %v3977 = vmul.f32 %v3882, %v3976
        %v3978 = vmul.f32 %v3883, %v3976
        %v3979 = vmul.f32 %v3884, %v3976
        %v3980 = vmul.f32 %v3885, %v3976
        %v3981 = vmul.f32 %v3886, %v3976
        %v3982 = vmul.f32 %v3887, %v3976
        %v3983 = vmul.f32 %v3888, %v3976
        %v3984 = vmul.f32 %v3889, %v3976
        %v3985 = vmul.f32 %v3890, %v3976
        %v3986 = vmul.f32 %v3891, %v3976
        %v3987 = vmul.f32 %v3892, %v3976
        %v3988 = vmul.f32 %v3893, %v3976
        %v3989 = vmul.f32 %v3894, %v3976
        %v3990 = vmul.f32 %v3895, %v3976
        %v3991 = vmul.f32 %v3896, %v3976
        %v3992 = vmul.f32 %v3897, %v3976
        %v3993 = vadd.f32 %v3633, %v3977
        %v3994 = vadd.f32 %v3634, %v3978
        %v3995 = vadd.f32 %v3635, %v3979
        %v3996 = vadd.f32 %v3636, %v3980
        %v3997 = vadd.f32 %v3637, %v3981
        %v3998 = vadd.f32 %v3638, %v3982
        %v3999 = vadd.f32 %v3639, %v3983
        %v4000 = vadd.f32 %v3640, %v3984
        %v4001 = vadd.f32 %v3641, %v3985
        %v4002 = vadd.f32 %v3642, %v3986
        %v4003 = vadd.f32 %v3643, %v3987
        %v4004 = vadd.f32 %v3644, %v3988
        %v4005 = vadd.f32 %v3645, %v3989
        %v4006 = vadd.f32 %v3646, %v3990
        %v4007 = vadd.f32 %v3647, %v3991
        %v4008 = vadd.f32 %v3648, %v3992
        %v4009 = vld [vmem:[#allocation8 + $0x35] sm:$0x1]
        %v4010 = vlaneseq
        %v4011 = vshrl.u32 %v4010, 7
        %v4012 = vsub.s32 0, %v4011
        %v4013 = vrot.slane %v4009, %v4012
        %v4014 = vmul.f32 %v3882, %v4013
        %v4015 = vmul.f32 %v3883, %v4013
        %v4016 = vmul.f32 %v3884, %v4013
        %v4017 = vmul.f32 %v3885, %v4013
        %v4018 = vmul.f32 %v3886, %v4013
        %v4019 = vmul.f32 %v3887, %v4013
        %v4020 = vmul.f32 %v3888, %v4013
        %v4021 = vmul.f32 %v3889, %v4013
        %v4022 = vmul.f32 %v3890, %v4013
        %v4023 = vmul.f32 %v3891, %v4013
        %v4024 = vmul.f32 %v3892, %v4013
        %v4025 = vmul.f32 %v3893, %v4013
        %v4026 = vmul.f32 %v3894, %v4013
        %v4027 = vmul.f32 %v3895, %v4013
        %v4028 = vmul.f32 %v3896, %v4013
        %v4029 = vmul.f32 %v3897, %v4013
        %v4030 = vadd.f32 %v3670, %v4014
        %v4031 = vadd.f32 %v3671, %v4015
        %v4032 = vadd.f32 %v3672, %v4016
        %v4033 = vadd.f32 %v3673, %v4017
        %v4034 = vadd.f32 %v3674, %v4018
        %v4035 = vadd.f32 %v3675, %v4019
        %v4036 = vadd.f32 %v3676, %v4020
        %v4037 = vadd.f32 %v3677, %v4021
        %v4038 = vadd.f32 %v3678, %v4022
        %v4039 = vadd.f32 %v3679, %v4023
        %v4040 = vadd.f32 %v3680, %v4024
        %v4041 = vadd.f32 %v3681, %v4025
        %v4042 = vadd.f32 %v3682, %v4026
        %v4043 = vadd.f32 %v3683, %v4027
        %v4044 = vadd.f32 %v3684, %v4028
        %v4045 = vadd.f32 %v3685, %v4029
        %v4046 = vld [vmem:[#allocation8 + $0x45] sm:$0x1]
        %v4047 = vlaneseq
        %v4048 = vshrl.u32 %v4047, 7
        %v4049 = vsub.s32 0, %v4048
        %v4050 = vrot.slane %v4046, %v4049
        %v4051 = vmul.f32 %v3882, %v4050
        %v4052 = vmul.f32 %v3883, %v4050
        %v4053 = vmul.f32 %v3884, %v4050
        %v4054 = vmul.f32 %v3885, %v4050
        %v4055 = vmul.f32 %v3886, %v4050
        %v4056 = vmul.f32 %v3887, %v4050
        %v4057 = vmul.f32 %v3888, %v4050
        %v4058 = vmul.f32 %v3889, %v4050
        %v4059 = vmul.f32 %v3890, %v4050
        %v4060 = vmul.f32 %v3891, %v4050
        %v4061 = vmul.f32 %v3892, %v4050
        %v4062 = vmul.f32 %v3893, %v4050
        %v4063 = vmul.f32 %v3894, %v4050
        %v4064 = vmul.f32 %v3895, %v4050
        %v4065 = vmul.f32 %v3896, %v4050
        %v4066 = vmul.f32 %v3897, %v4050
        %v4067 = vadd.f32 %v3707, %v4051
        %v4068 = vadd.f32 %v3708, %v4052
        %v4069 = vadd.f32 %v3709, %v4053
        %v4070 = vadd.f32 %v3710, %v4054
        %v4071 = vadd.f32 %v3711, %v4055
        %v4072 = vadd.f32 %v3712, %v4056
        %v4073 = vadd.f32 %v3713, %v4057
        %v4074 = vadd.f32 %v3714, %v4058
        %v4075 = vadd.f32 %v3715, %v4059
        %v4076 = vadd.f32 %v3716, %v4060
        %v4077 = vadd.f32 %v3717, %v4061
        %v4078 = vadd.f32 %v3718, %v4062
        %v4079 = vadd.f32 %v3719, %v4063
        %v4080 = vadd.f32 %v3720, %v4064
        %v4081 = vadd.f32 %v3721, %v4065
        %v4082 = vadd.f32 %v3722, %v4066
        %v4083 = vld [vmem:[#allocation8 + $0x55] sm:$0x1]
        %v4084 = vlaneseq
        %v4085 = vshrl.u32 %v4084, 7
        %v4086 = vsub.s32 0, %v4085
        %v4087 = vrot.slane %v4083, %v4086
        %v4088 = vmul.f32 %v3882, %v4087
        %v4089 = vmul.f32 %v3883, %v4087
        %v4090 = vmul.f32 %v3884, %v4087
        %v4091 = vmul.f32 %v3885, %v4087
        %v4092 = vmul.f32 %v3886, %v4087
        %v4093 = vmul.f32 %v3887, %v4087
        %v4094 = vmul.f32 %v3888, %v4087
        %v4095 = vmul.f32 %v3889, %v4087
        %v4096 = vmul.f32 %v3890, %v4087
        %v4097 = vmul.f32 %v3891, %v4087
        %v4098 = vmul.f32 %v3892, %v4087
        %v4099 = vmul.f32 %v3893, %v4087
        %v4100 = vmul.f32 %v3894, %v4087
        %v4101 = vmul.f32 %v3895, %v4087
        %v4102 = vmul.f32 %v3896, %v4087
        %v4103 = vmul.f32 %v3897, %v4087
        %v4104 = vadd.f32 %v3744, %v4088
        %v4105 = vadd.f32 %v3745, %v4089
        %v4106 = vadd.f32 %v3746, %v4090
        %v4107 = vadd.f32 %v3747, %v4091
        %v4108 = vadd.f32 %v3748, %v4092
        %v4109 = vadd.f32 %v3749, %v4093
        %v4110 = vadd.f32 %v3750, %v4094
        %v4111 = vadd.f32 %v3751, %v4095
        %v4112 = vadd.f32 %v3752, %v4096
        %v4113 = vadd.f32 %v3753, %v4097
        %v4114 = vadd.f32 %v3754, %v4098
        %v4115 = vadd.f32 %v3755, %v4099
        %v4116 = vadd.f32 %v3756, %v4100
        %v4117 = vadd.f32 %v3757, %v4101
        %v4118 = vadd.f32 %v3758, %v4102
        %v4119 = vadd.f32 %v3759, %v4103
        %v4120 = vld [vmem:[#allocation8 + $0x65] sm:$0x1]
        %v4121 = vlaneseq
        %v4122 = vshrl.u32 %v4121, 7
        %v4123 = vsub.s32 0, %v4122
        %v4124 = vrot.slane %v4120, %v4123
        %v4125 = vmul.f32 %v3882, %v4124
        %v4126 = vmul.f32 %v3883, %v4124
        %v4127 = vmul.f32 %v3884, %v4124
        %v4128 = vmul.f32 %v3885, %v4124
        %v4129 = vmul.f32 %v3886, %v4124
        %v4130 = vmul.f32 %v3887, %v4124
        %v4131 = vmul.f32 %v3888, %v4124
        %v4132 = vmul.f32 %v3889, %v4124
        %v4133 = vmul.f32 %v3890, %v4124
        %v4134 = vmul.f32 %v3891, %v4124
        %v4135 = vmul.f32 %v3892, %v4124
        %v4136 = vmul.f32 %v3893, %v4124
        %v4137 = vmul.f32 %v3894, %v4124
        %v4138 = vmul.f32 %v3895, %v4124
        %v4139 = vmul.f32 %v3896, %v4124
        %v4140 = vmul.f32 %v3897, %v4124
        %v4141 = vadd.f32 %v3781, %v4125
        %v4142 = vadd.f32 %v3782, %v4126
        %v4143 = vadd.f32 %v3783, %v4127
        %v4144 = vadd.f32 %v3784, %v4128
        %v4145 = vadd.f32 %v3785, %v4129
        %v4146 = vadd.f32 %v3786, %v4130
        %v4147 = vadd.f32 %v3787, %v4131
        %v4148 = vadd.f32 %v3788, %v4132
        %v4149 = vadd.f32 %v3789, %v4133
        %v4150 = vadd.f32 %v3790, %v4134
        %v4151 = vadd.f32 %v3791, %v4135
        %v4152 = vadd.f32 %v3792, %v4136
        %v4153 = vadd.f32 %v3793, %v4137
        %v4154 = vadd.f32 %v3794, %v4138
        %v4155 = vadd.f32 %v3795, %v4139
        %v4156 = vadd.f32 %v3796, %v4140
        %v4157 = vld [vmem:[#allocation8 + $0x75] sm:$0x1]
        %v4158 = vlaneseq
        %v4159 = vshrl.u32 %v4158, 7
        %v4160 = vsub.s32 0, %v4159
        %v4161 = vrot.slane %v4157, %v4160
        %v4162 = vmul.f32 %v3882, %v4161
        %v4163 = vmul.f32 %v3883, %v4161
        %v4164 = vmul.f32 %v3884, %v4161
        %v4165 = vmul.f32 %v3885, %v4161
        %v4166 = vmul.f32 %v3886, %v4161
        %v4167 = vmul.f32 %v3887, %v4161
        %v4168 = vmul.f32 %v3888, %v4161
        %v4169 = vmul.f32 %v3889, %v4161
        %v4170 = vmul.f32 %v3890, %v4161
        %v4171 = vmul.f32 %v3891, %v4161
        %v4172 = vmul.f32 %v3892, %v4161
        %v4173 = vmul.f32 %v3893, %v4161
        %v4174 = vmul.f32 %v3894, %v4161
        %v4175 = vmul.f32 %v3895, %v4161
        %v4176 = vmul.f32 %v3896, %v4161
        %v4177 = vmul.f32 %v3897, %v4161
        %v4178 = vadd.f32 %v3818, %v4162
        %v4179 = vadd.f32 %v3819, %v4163
        %v4180 = vadd.f32 %v3820, %v4164
        %v4181 = vadd.f32 %v3821, %v4165
        %v4182 = vadd.f32 %v3822, %v4166
        %v4183 = vadd.f32 %v3823, %v4167
        %v4184 = vadd.f32 %v3824, %v4168
        %v4185 = vadd.f32 %v3825, %v4169
        %v4186 = vadd.f32 %v3826, %v4170
        %v4187 = vadd.f32 %v3827, %v4171
        %v4188 = vadd.f32 %v3828, %v4172
        %v4189 = vadd.f32 %v3829, %v4173
        %v4190 = vadd.f32 %v3830, %v4174
        %v4191 = vadd.f32 %v3831, %v4175
        %v4192 = vadd.f32 %v3832, %v4176
        %v4193 = vadd.f32 %v3833, %v4177
        %v4194 = vmul.f32 %v1632, 0.5
        %v4195 = vmul.f32 %v1636, 0.5
        %v4196 = vmul.f32 %v1642, 0.5
        %v4197 = vmul.f32 %v1646, 0.5
        %v4198 = vmul.f32 %v1652, 0.5
        %v4199 = vmul.f32 %v1656, 0.5
        %v4200 = vmul.f32 %v1662, 0.5
        %v4201 = vmul.f32 %v1666, 0.5
        %v4202 = vmul.f32 %v1672, 0.5
        %v4203 = vmul.f32 %v1676, 0.5
        %v4204 = vmul.f32 %v1682, 0.5
        %v4205 = vmul.f32 %v1686, 0.5
        %v4206 = vmul.f32 %v1692, 0.5
        %v4207 = vmul.f32 %v1696, 0.5
        %v4208 = vmul.f32 %v1702, 0.5
        %v4209 = vmul.f32 %v1706, 0.5
        %v4210 = vtanh.pop %v4194
        %v4211 = vtanh.pop %v4195
        %v4212 = vtanh.pop %v4196
        %v4213 = vtanh.pop %v4197
        %v4214 = vtanh.pop %v4198
        %v4215 = vtanh.pop %v4199
        %v4216 = vtanh.pop %v4200
        %v4217 = vtanh.pop %v4201
        %v4218 = vtanh.pop %v4202
        %v4219 = vtanh.pop %v4203
        %v4220 = vtanh.pop %v4204
        %v4221 = vtanh.pop %v4205
        %v4222 = vtanh.pop %v4206
        %v4223 = vtanh.pop %v4207
        %v4224 = vtanh.pop %v4208
        %v4225 = vtanh.pop %v4209
        %v4226 = vmul.f32 %v4210, 0.5
        %v4227 = vmul.f32 %v4211, 0.5
        %v4228 = vmul.f32 %v4212, 0.5
        %v4229 = vmul.f32 %v4213, 0.5
        %v4230 = vmul.f32 %v4214, 0.5
        %v4231 = vmul.f32 %v4215, 0.5
        %v4232 = vmul.f32 %v4216, 0.5
        %v4233 = vmul.f32 %v4217, 0.5
        %v4234 = vmul.f32 %v4218, 0.5
        %v4235 = vmul.f32 %v4219, 0.5
        %v4236 = vmul.f32 %v4220, 0.5
        %v4237 = vmul.f32 %v4221, 0.5
        %v4238 = vmul.f32 %v4222, 0.5
        %v4239 = vmul.f32 %v4223, 0.5
        %v4240 = vmul.f32 %v4224, 0.5
        %v4241 = vmul.f32 %v4225, 0.5
        %v4242 = vadd.f32 %v4226, 0.5
        %v4243 = vadd.f32 %v4227, 0.5
        %v4244 = vadd.f32 %v4228, 0.5
        %v4245 = vadd.f32 %v4229, 0.5
        %v4246 = vadd.f32 %v4230, 0.5
        %v4247 = vadd.f32 %v4231, 0.5
        %v4248 = vadd.f32 %v4232, 0.5
        %v4249 = vadd.f32 %v4233, 0.5
        %v4250 = vadd.f32 %v4234, 0.5
        %v4251 = vadd.f32 %v4235, 0.5
        %v4252 = vadd.f32 %v4236, 0.5
        %v4253 = vadd.f32 %v4237, 0.5
        %v4254 = vadd.f32 %v4238, 0.5
        %v4255 = vadd.f32 %v4239, 0.5
        %v4256 = vadd.f32 %v4240, 0.5
        %v4257 = vadd.f32 %v4241, 0.5
        %v4258 = vld [vmem:[#allocation8 + $0x6] sm:$0x1]
        %v4259 = vlaneseq
        %v4260 = vshrl.u32 %v4259, 7
        %v4261 = vsub.s32 0, %v4260
        %v4262 = vrot.slane %v4258, %v4261
        %v4263 = vmul.f32 %v4242, %v4262
        %v4264 = vmul.f32 %v4243, %v4262
        %v4265 = vmul.f32 %v4244, %v4262
        %v4266 = vmul.f32 %v4245, %v4262
        %v4267 = vmul.f32 %v4246, %v4262
        %v4268 = vmul.f32 %v4247, %v4262
        %v4269 = vmul.f32 %v4248, %v4262
        %v4270 = vmul.f32 %v4249, %v4262
        %v4271 = vmul.f32 %v4250, %v4262
        %v4272 = vmul.f32 %v4251, %v4262
        %v4273 = vmul.f32 %v4252, %v4262
        %v4274 = vmul.f32 %v4253, %v4262
        %v4275 = vmul.f32 %v4254, %v4262
        %v4276 = vmul.f32 %v4255, %v4262
        %v4277 = vmul.f32 %v4256, %v4262
        %v4278 = vmul.f32 %v4257, %v4262
        %v4279 = vadd.f32 %v3919, %v4263
        %v4280 = vadd.f32 %v3920, %v4264
        %v4281 = vadd.f32 %v3921, %v4265
        %v4282 = vadd.f32 %v3922, %v4266
        %v4283 = vadd.f32 %v3923, %v4267
        %v4284 = vadd.f32 %v3924, %v4268
        %v4285 = vadd.f32 %v3925, %v4269
        %v4286 = vadd.f32 %v3926, %v4270
        %v4287 = vadd.f32 %v3927, %v4271
        %v4288 = vadd.f32 %v3928, %v4272
        %v4289 = vadd.f32 %v3929, %v4273
        %v4290 = vadd.f32 %v3930, %v4274
        %v4291 = vadd.f32 %v3931, %v4275
        %v4292 = vadd.f32 %v3932, %v4276
        %v4293 = vadd.f32 %v3933, %v4277
        %v4294 = vadd.f32 %v3934, %v4278
        %v4295 = vld [vmem:[#allocation8 + $0x16] sm:$0x1]
        %v4296 = vlaneseq
        %v4297 = vshrl.u32 %v4296, 7
        %v4298 = vsub.s32 0, %v4297
        %v4299 = vrot.slane %v4295, %v4298
        %v4300 = vmul.f32 %v4242, %v4299
        %v4301 = vmul.f32 %v4243, %v4299
        %v4302 = vmul.f32 %v4244, %v4299
        %v4303 = vmul.f32 %v4245, %v4299
        %v4304 = vmul.f32 %v4246, %v4299
        %v4305 = vmul.f32 %v4247, %v4299
        %v4306 = vmul.f32 %v4248, %v4299
        %v4307 = vmul.f32 %v4249, %v4299
        %v4308 = vmul.f32 %v4250, %v4299
        %v4309 = vmul.f32 %v4251, %v4299
        %v4310 = vmul.f32 %v4252, %v4299
        %v4311 = vmul.f32 %v4253, %v4299
        %v4312 = vmul.f32 %v4254, %v4299
        %v4313 = vmul.f32 %v4255, %v4299
        %v4314 = vmul.f32 %v4256, %v4299
        %v4315 = vmul.f32 %v4257, %v4299
        %v4316 = vadd.f32 %v3956, %v4300
        %v4317 = vadd.f32 %v3957, %v4301
        %v4318 = vadd.f32 %v3958, %v4302
        %v4319 = vadd.f32 %v3959, %v4303
        %v4320 = vadd.f32 %v3960, %v4304
        %v4321 = vadd.f32 %v3961, %v4305
        %v4322 = vadd.f32 %v3962, %v4306
        %v4323 = vadd.f32 %v3963, %v4307
        %v4324 = vadd.f32 %v3964, %v4308
        %v4325 = vadd.f32 %v3965, %v4309
        %v4326 = vadd.f32 %v3966, %v4310
        %v4327 = vadd.f32 %v3967, %v4311
        %v4328 = vadd.f32 %v3968, %v4312
        %v4329 = vadd.f32 %v3969, %v4313
        %v4330 = vadd.f32 %v3970, %v4314
        %v4331 = vadd.f32 %v3971, %v4315
        %v4332 = vld [vmem:[#allocation8 + $0x26] sm:$0x1]
        %v4333 = vlaneseq
        %v4334 = vshrl.u32 %v4333, 7
        %v4335 = vsub.s32 0, %v4334
        %v4336 = vrot.slane %v4332, %v4335
        %v4337 = vmul.f32 %v4242, %v4336
        %v4338 = vmul.f32 %v4243, %v4336
        %v4339 = vmul.f32 %v4244, %v4336
        %v4340 = vmul.f32 %v4245, %v4336
        %v4341 = vmul.f32 %v4246, %v4336
        %v4342 = vmul.f32 %v4247, %v4336
        %v4343 = vmul.f32 %v4248, %v4336
        %v4344 = vmul.f32 %v4249, %v4336
        %v4345 = vmul.f32 %v4250, %v4336
        %v4346 = vmul.f32 %v4251, %v4336
        %v4347 = vmul.f32 %v4252, %v4336
        %v4348 = vmul.f32 %v4253, %v4336
        %v4349 = vmul.f32 %v4254, %v4336
        %v4350 = vmul.f32 %v4255, %v4336
        %v4351 = vmul.f32 %v4256, %v4336
        %v4352 = vmul.f32 %v4257, %v4336
        %v4353 = vadd.f32 %v3993, %v4337
        %v4354 = vadd.f32 %v3994, %v4338
        %v4355 = vadd.f32 %v3995, %v4339
        %v4356 = vadd.f32 %v3996, %v4340
        %v4357 = vadd.f32 %v3997, %v4341
        %v4358 = vadd.f32 %v3998, %v4342
        %v4359 = vadd.f32 %v3999, %v4343
        %v4360 = vadd.f32 %v4000, %v4344
        %v4361 = vadd.f32 %v4001, %v4345
        %v4362 = vadd.f32 %v4002, %v4346
        %v4363 = vadd.f32 %v4003, %v4347
        %v4364 = vadd.f32 %v4004, %v4348
        %v4365 = vadd.f32 %v4005, %v4349
        %v4366 = vadd.f32 %v4006, %v4350
        %v4367 = vadd.f32 %v4007, %v4351
        %v4368 = vadd.f32 %v4008, %v4352
        %v4369 = vld [vmem:[#allocation8 + $0x36] sm:$0x1]
        %v4370 = vlaneseq
        %v4371 = vshrl.u32 %v4370, 7
        %v4372 = vsub.s32 0, %v4371
        %v4373 = vrot.slane %v4369, %v4372
        %v4374 = vmul.f32 %v4242, %v4373
        %v4375 = vmul.f32 %v4243, %v4373
        %v4376 = vmul.f32 %v4244, %v4373
        %v4377 = vmul.f32 %v4245, %v4373
        %v4378 = vmul.f32 %v4246, %v4373
        %v4379 = vmul.f32 %v4247, %v4373
        %v4380 = vmul.f32 %v4248, %v4373
        %v4381 = vmul.f32 %v4249, %v4373
        %v4382 = vmul.f32 %v4250, %v4373
        %v4383 = vmul.f32 %v4251, %v4373
        %v4384 = vmul.f32 %v4252, %v4373
        %v4385 = vmul.f32 %v4253, %v4373
        %v4386 = vmul.f32 %v4254, %v4373
        %v4387 = vmul.f32 %v4255, %v4373
        %v4388 = vmul.f32 %v4256, %v4373
        %v4389 = vmul.f32 %v4257, %v4373
        %v4390 = vadd.f32 %v4030, %v4374
        %v4391 = vadd.f32 %v4031, %v4375
        %v4392 = vadd.f32 %v4032, %v4376
        %v4393 = vadd.f32 %v4033, %v4377
        %v4394 = vadd.f32 %v4034, %v4378
        %v4395 = vadd.f32 %v4035, %v4379
        %v4396 = vadd.f32 %v4036, %v4380
        %v4397 = vadd.f32 %v4037, %v4381
        %v4398 = vadd.f32 %v4038, %v4382
        %v4399 = vadd.f32 %v4039, %v4383
        %v4400 = vadd.f32 %v4040, %v4384
        %v4401 = vadd.f32 %v4041, %v4385
        %v4402 = vadd.f32 %v4042, %v4386
        %v4403 = vadd.f32 %v4043, %v4387
        %v4404 = vadd.f32 %v4044, %v4388
        %v4405 = vadd.f32 %v4045, %v4389
        %v4406 = vld [vmem:[#allocation8 + $0x46] sm:$0x1]
        %v4407 = vlaneseq
        %v4408 = vshrl.u32 %v4407, 7
        %v4409 = vsub.s32 0, %v4408
        %v4410 = vrot.slane %v4406, %v4409
        %v4411 = vmul.f32 %v4242, %v4410
        %v4412 = vmul.f32 %v4243, %v4410
        %v4413 = vmul.f32 %v4244, %v4410
        %v4414 = vmul.f32 %v4245, %v4410
        %v4415 = vmul.f32 %v4246, %v4410
        %v4416 = vmul.f32 %v4247, %v4410
        %v4417 = vmul.f32 %v4248, %v4410
        %v4418 = vmul.f32 %v4249, %v4410
        %v4419 = vmul.f32 %v4250, %v4410
        %v4420 = vmul.f32 %v4251, %v4410
        %v4421 = vmul.f32 %v4252, %v4410
        %v4422 = vmul.f32 %v4253, %v4410
        %v4423 = vmul.f32 %v4254, %v4410
        %v4424 = vmul.f32 %v4255, %v4410
        %v4425 = vmul.f32 %v4256, %v4410
        %v4426 = vmul.f32 %v4257, %v4410
        %v4427 = vadd.f32 %v4067, %v4411
        %v4428 = vadd.f32 %v4068, %v4412
        %v4429 = vadd.f32 %v4069, %v4413
        %v4430 = vadd.f32 %v4070, %v4414
        %v4431 = vadd.f32 %v4071, %v4415
        %v4432 = vadd.f32 %v4072, %v4416
        %v4433 = vadd.f32 %v4073, %v4417
        %v4434 = vadd.f32 %v4074, %v4418
        %v4435 = vadd.f32 %v4075, %v4419
        %v4436 = vadd.f32 %v4076, %v4420
        %v4437 = vadd.f32 %v4077, %v4421
        %v4438 = vadd.f32 %v4078, %v4422
        %v4439 = vadd.f32 %v4079, %v4423
        %v4440 = vadd.f32 %v4080, %v4424
        %v4441 = vadd.f32 %v4081, %v4425
        %v4442 = vadd.f32 %v4082, %v4426
        %v4443 = vld [vmem:[#allocation8 + $0x56] sm:$0x1]
        %v4444 = vlaneseq
        %v4445 = vshrl.u32 %v4444, 7
        %v4446 = vsub.s32 0, %v4445
        %v4447 = vrot.slane %v4443, %v4446
        %v4448 = vmul.f32 %v4242, %v4447
        %v4449 = vmul.f32 %v4243, %v4447
        %v4450 = vmul.f32 %v4244, %v4447
        %v4451 = vmul.f32 %v4245, %v4447
        %v4452 = vmul.f32 %v4246, %v4447
        %v4453 = vmul.f32 %v4247, %v4447
        %v4454 = vmul.f32 %v4248, %v4447
        %v4455 = vmul.f32 %v4249, %v4447
        %v4456 = vmul.f32 %v4250, %v4447
        %v4457 = vmul.f32 %v4251, %v4447
        %v4458 = vmul.f32 %v4252, %v4447
        %v4459 = vmul.f32 %v4253, %v4447
        %v4460 = vmul.f32 %v4254, %v4447
        %v4461 = vmul.f32 %v4255, %v4447
        %v4462 = vmul.f32 %v4256, %v4447
        %v4463 = vmul.f32 %v4257, %v4447
        %v4464 = vadd.f32 %v4104, %v4448
        %v4465 = vadd.f32 %v4105, %v4449
        %v4466 = vadd.f32 %v4106, %v4450
        %v4467 = vadd.f32 %v4107, %v4451
        %v4468 = vadd.f32 %v4108, %v4452
        %v4469 = vadd.f32 %v4109, %v4453
        %v4470 = vadd.f32 %v4110, %v4454
        %v4471 = vadd.f32 %v4111, %v4455
        %v4472 = vadd.f32 %v4112, %v4456
        %v4473 = vadd.f32 %v4113, %v4457
        %v4474 = vadd.f32 %v4114, %v4458
        %v4475 = vadd.f32 %v4115, %v4459
        %v4476 = vadd.f32 %v4116, %v4460
        %v4477 = vadd.f32 %v4117, %v4461
        %v4478 = vadd.f32 %v4118, %v4462
        %v4479 = vadd.f32 %v4119, %v4463
        %v4480 = vld [vmem:[#allocation8 + $0x66] sm:$0x1]
        %v4481 = vlaneseq
        %v4482 = vshrl.u32 %v4481, 7
        %v4483 = vsub.s32 0, %v4482
        %v4484 = vrot.slane %v4480, %v4483
        %v4485 = vmul.f32 %v4242, %v4484
        %v4486 = vmul.f32 %v4243, %v4484
        %v4487 = vmul.f32 %v4244, %v4484
        %v4488 = vmul.f32 %v4245, %v4484
        %v4489 = vmul.f32 %v4246, %v4484
        %v4490 = vmul.f32 %v4247, %v4484
        %v4491 = vmul.f32 %v4248, %v4484
        %v4492 = vmul.f32 %v4249, %v4484
        %v4493 = vmul.f32 %v4250, %v4484
        %v4494 = vmul.f32 %v4251, %v4484
        %v4495 = vmul.f32 %v4252, %v4484
        %v4496 = vmul.f32 %v4253, %v4484
        %v4497 = vmul.f32 %v4254, %v4484
        %v4498 = vmul.f32 %v4255, %v4484
        %v4499 = vmul.f32 %v4256, %v4484
        %v4500 = vmul.f32 %v4257, %v4484
        %v4501 = vadd.f32 %v4141, %v4485
        %v4502 = vadd.f32 %v4142, %v4486
        %v4503 = vadd.f32 %v4143, %v4487
        %v4504 = vadd.f32 %v4144, %v4488
        %v4505 = vadd.f32 %v4145, %v4489
        %v4506 = vadd.f32 %v4146, %v4490
        %v4507 = vadd.f32 %v4147, %v4491
        %v4508 = vadd.f32 %v4148, %v4492
        %v4509 = vadd.f32 %v4149, %v4493
        %v4510 = vadd.f32 %v4150, %v4494
        %v4511 = vadd.f32 %v4151, %v4495
        %v4512 = vadd.f32 %v4152, %v4496
        %v4513 = vadd.f32 %v4153, %v4497
        %v4514 = vadd.f32 %v4154, %v4498
        %v4515 = vadd.f32 %v4155, %v4499
        %v4516 = vadd.f32 %v4156, %v4500
        %v4517 = vld [vmem:[#allocation8 + $0x76] sm:$0x1]
        %v4518 = vlaneseq
        %v4519 = vshrl.u32 %v4518, 7
        %v4520 = vsub.s32 0, %v4519
        %v4521 = vrot.slane %v4517, %v4520
        %v4522 = vmul.f32 %v4242, %v4521
        %v4523 = vmul.f32 %v4243, %v4521
        %v4524 = vmul.f32 %v4244, %v4521
        %v4525 = vmul.f32 %v4245, %v4521
        %v4526 = vmul.f32 %v4246, %v4521
        %v4527 = vmul.f32 %v4247, %v4521
        %v4528 = vmul.f32 %v4248, %v4521
        %v4529 = vmul.f32 %v4249, %v4521
        %v4530 = vmul.f32 %v4250, %v4521
        %v4531 = vmul.f32 %v4251, %v4521
        %v4532 = vmul.f32 %v4252, %v4521
        %v4533 = vmul.f32 %v4253, %v4521
        %v4534 = vmul.f32 %v4254, %v4521
        %v4535 = vmul.f32 %v4255, %v4521
        %v4536 = vmul.f32 %v4256, %v4521
        %v4537 = vmul.f32 %v4257, %v4521
        %v4538 = vadd.f32 %v4178, %v4522
        %v4539 = vadd.f32 %v4179, %v4523
        %v4540 = vadd.f32 %v4180, %v4524
        %v4541 = vadd.f32 %v4181, %v4525
        %v4542 = vadd.f32 %v4182, %v4526
        %v4543 = vadd.f32 %v4183, %v4527
        %v4544 = vadd.f32 %v4184, %v4528
        %v4545 = vadd.f32 %v4185, %v4529
        %v4546 = vadd.f32 %v4186, %v4530
        %v4547 = vadd.f32 %v4187, %v4531
        %v4548 = vadd.f32 %v4188, %v4532
        %v4549 = vadd.f32 %v4189, %v4533
        %v4550 = vadd.f32 %v4190, %v4534
        %v4551 = vadd.f32 %v4191, %v4535
        %v4552 = vadd.f32 %v4192, %v4536
        %v4553 = vadd.f32 %v4193, %v4537
        %v4554 = vmul.f32 %v1634, 0.5
        %v4555 = vmul.f32 %v1638, 0.5
        %v4556 = vmul.f32 %v1644, 0.5
        %v4557 = vmul.f32 %v1648, 0.5
        %v4558 = vmul.f32 %v1654, 0.5
        %v4559 = vmul.f32 %v1658, 0.5
        %v4560 = vmul.f32 %v1664, 0.5
        %v4561 = vmul.f32 %v1668, 0.5
        %v4562 = vmul.f32 %v1674, 0.5
        %v4563 = vmul.f32 %v1678, 0.5
        %v4564 = vmul.f32 %v1684, 0.5
        %v4565 = vmul.f32 %v1688, 0.5
        %v4566 = vmul.f32 %v1694, 0.5
        %v4567 = vmul.f32 %v1698, 0.5
        %v4568 = vmul.f32 %v1704, 0.5
        %v4569 = vmul.f32 %v1708, 0.5
        %v4570 = vtanh.pop %v4554
        %v4571 = vtanh.pop %v4555
        %v4572 = vtanh.pop %v4556
        %v4573 = vtanh.pop %v4557
        %v4574 = vtanh.pop %v4558
        %v4575 = vtanh.pop %v4559
        %v4576 = vtanh.pop %v4560
        %v4577 = vtanh.pop %v4561
        %v4578 = vtanh.pop %v4562
        %v4579 = vtanh.pop %v4563
        %v4580 = vtanh.pop %v4564
        %v4581 = vtanh.pop %v4565
        %v4582 = vtanh.pop %v4566
        %v4583 = vtanh.pop %v4567
        %v4584 = vtanh.pop %v4568
        %v4585 = vtanh.pop %v4569
        %v4586 = vmul.f32 %v4570, 0.5
        %v4587 = vmul.f32 %v4571, 0.5
        %v4588 = vmul.f32 %v4572, 0.5
        %v4589 = vmul.f32 %v4573, 0.5
        %v4590 = vmul.f32 %v4574, 0.5
        %v4591 = vmul.f32 %v4575, 0.5
        %v4592 = vmul.f32 %v4576, 0.5
        %v4593 = vmul.f32 %v4577, 0.5
        %v4594 = vmul.f32 %v4578, 0.5
        %v4595 = vmul.f32 %v4579, 0.5
        %v4596 = vmul.f32 %v4580, 0.5
        %v4597 = vmul.f32 %v4581, 0.5
        %v4598 = vmul.f32 %v4582, 0.5
        %v4599 = vmul.f32 %v4583, 0.5
        %v4600 = vmul.f32 %v4584, 0.5
        %v4601 = vmul.f32 %v4585, 0.5
        %v4602 = vadd.f32 %v4586, 0.5
        %v4603 = vadd.f32 %v4587, 0.5
        %v4604 = vadd.f32 %v4588, 0.5
        %v4605 = vadd.f32 %v4589, 0.5
        %v4606 = vadd.f32 %v4590, 0.5
        %v4607 = vadd.f32 %v4591, 0.5
        %v4608 = vadd.f32 %v4592, 0.5
        %v4609 = vadd.f32 %v4593, 0.5
        %v4610 = vadd.f32 %v4594, 0.5
        %v4611 = vadd.f32 %v4595, 0.5
        %v4612 = vadd.f32 %v4596, 0.5
        %v4613 = vadd.f32 %v4597, 0.5
        %v4614 = vadd.f32 %v4598, 0.5
        %v4615 = vadd.f32 %v4599, 0.5
        %v4616 = vadd.f32 %v4600, 0.5
        %v4617 = vadd.f32 %v4601, 0.5
        %v4618 = vld [vmem:[#allocation8 + $0x7] sm:$0x1]
        %v4619 = vlaneseq
        %v4620 = vshrl.u32 %v4619, 7
        %v4621 = vsub.s32 0, %v4620
        %v4622 = vrot.slane %v4618, %v4621
        %v4623 = vmul.f32 %v4602, %v4622
        %v4624 = vmul.f32 %v4603, %v4622
        %v4625 = vmul.f32 %v4604, %v4622
        %v4626 = vmul.f32 %v4605, %v4622
        %v4627 = vmul.f32 %v4606, %v4622
        %v4628 = vmul.f32 %v4607, %v4622
        %v4629 = vmul.f32 %v4608, %v4622
        %v4630 = vmul.f32 %v4609, %v4622
        %v4631 = vmul.f32 %v4610, %v4622
        %v4632 = vmul.f32 %v4611, %v4622
        %v4633 = vmul.f32 %v4612, %v4622
        %v4634 = vmul.f32 %v4613, %v4622
        %v4635 = vmul.f32 %v4614, %v4622
        %v4636 = vmul.f32 %v4615, %v4622
        %v4637 = vmul.f32 %v4616, %v4622
        %v4638 = vmul.f32 %v4617, %v4622
        %v4639 = vadd.f32 %v4279, %v4623
        %v4640 = vadd.f32 %v4280, %v4624
        %v4641 = vadd.f32 %v4281, %v4625
        %v4642 = vadd.f32 %v4282, %v4626
        %v4643 = vadd.f32 %v4283, %v4627
        %v4644 = vadd.f32 %v4284, %v4628
        %v4645 = vadd.f32 %v4285, %v4629
        %v4646 = vadd.f32 %v4286, %v4630
        %v4647 = vadd.f32 %v4287, %v4631
        %v4648 = vadd.f32 %v4288, %v4632
        %v4649 = vadd.f32 %v4289, %v4633
        %v4650 = vadd.f32 %v4290, %v4634
        %v4651 = vadd.f32 %v4291, %v4635
        %v4652 = vadd.f32 %v4292, %v4636
        %v4653 = vadd.f32 %v4293, %v4637
        %v4654 = vadd.f32 %v4294, %v4638
        %v4655 = vld [vmem:[#allocation8 + $0x17] sm:$0x1]
        %v4656 = vlaneseq
        %v4657 = vshrl.u32 %v4656, 7
        %v4658 = vsub.s32 0, %v4657
        %v4659 = vrot.slane %v4655, %v4658
        %v4660 = vmul.f32 %v4602, %v4659
        %v4661 = vmul.f32 %v4603, %v4659
        %v4662 = vmul.f32 %v4604, %v4659
        %v4663 = vmul.f32 %v4605, %v4659
        %v4664 = vmul.f32 %v4606, %v4659
        %v4665 = vmul.f32 %v4607, %v4659
        %v4666 = vmul.f32 %v4608, %v4659
        %v4667 = vmul.f32 %v4609, %v4659
        %v4668 = vmul.f32 %v4610, %v4659
        %v4669 = vmul.f32 %v4611, %v4659
        %v4670 = vmul.f32 %v4612, %v4659
        %v4671 = vmul.f32 %v4613, %v4659
        %v4672 = vmul.f32 %v4614, %v4659
        %v4673 = vmul.f32 %v4615, %v4659
        %v4674 = vmul.f32 %v4616, %v4659
        %v4675 = vmul.f32 %v4617, %v4659
        %v4676 = vadd.f32 %v4316, %v4660
        %v4677 = vadd.f32 %v4317, %v4661
        %v4678 = vadd.f32 %v4318, %v4662
        %v4679 = vadd.f32 %v4319, %v4663
        %v4680 = vadd.f32 %v4320, %v4664
        %v4681 = vadd.f32 %v4321, %v4665
        %v4682 = vadd.f32 %v4322, %v4666
        %v4683 = vadd.f32 %v4323, %v4667
        %v4684 = vadd.f32 %v4324, %v4668
        %v4685 = vadd.f32 %v4325, %v4669
        %v4686 = vadd.f32 %v4326, %v4670
        %v4687 = vadd.f32 %v4327, %v4671
        %v4688 = vadd.f32 %v4328, %v4672
        %v4689 = vadd.f32 %v4329, %v4673
        %v4690 = vadd.f32 %v4330, %v4674
        %v4691 = vadd.f32 %v4331, %v4675
        %v4692 = vld [vmem:[#allocation8 + $0x27] sm:$0x1]
        %v4693 = vlaneseq
        %v4694 = vshrl.u32 %v4693, 7
        %v4695 = vsub.s32 0, %v4694
        %v4696 = vrot.slane %v4692, %v4695
        %v4697 = vmul.f32 %v4602, %v4696
        %v4698 = vmul.f32 %v4603, %v4696
        %v4699 = vmul.f32 %v4604, %v4696
        %v4700 = vmul.f32 %v4605, %v4696
        %v4701 = vmul.f32 %v4606, %v4696
        %v4702 = vmul.f32 %v4607, %v4696
        %v4703 = vmul.f32 %v4608, %v4696
        %v4704 = vmul.f32 %v4609, %v4696
        %v4705 = vmul.f32 %v4610, %v4696
        %v4706 = vmul.f32 %v4611, %v4696
        %v4707 = vmul.f32 %v4612, %v4696
        %v4708 = vmul.f32 %v4613, %v4696
        %v4709 = vmul.f32 %v4614, %v4696
        %v4710 = vmul.f32 %v4615, %v4696
        %v4711 = vmul.f32 %v4616, %v4696
        %v4712 = vmul.f32 %v4617, %v4696
        %v4713 = vadd.f32 %v4353, %v4697
        %v4714 = vadd.f32 %v4354, %v4698
        %v4715 = vadd.f32 %v4355, %v4699
        %v4716 = vadd.f32 %v4356, %v4700
        %v4717 = vadd.f32 %v4357, %v4701
        %v4718 = vadd.f32 %v4358, %v4702
        %v4719 = vadd.f32 %v4359, %v4703
        %v4720 = vadd.f32 %v4360, %v4704
        %v4721 = vadd.f32 %v4361, %v4705
        %v4722 = vadd.f32 %v4362, %v4706
        %v4723 = vadd.f32 %v4363, %v4707
        %v4724 = vadd.f32 %v4364, %v4708
        %v4725 = vadd.f32 %v4365, %v4709
        %v4726 = vadd.f32 %v4366, %v4710
        %v4727 = vadd.f32 %v4367, %v4711
        %v4728 = vadd.f32 %v4368, %v4712
        %v4729 = vld [vmem:[#allocation8 + $0x37] sm:$0x1]
        %v4730 = vlaneseq
        %v4731 = vshrl.u32 %v4730, 7
        %v4732 = vsub.s32 0, %v4731
        %v4733 = vrot.slane %v4729, %v4732
        %v4734 = vmul.f32 %v4602, %v4733
        %v4735 = vmul.f32 %v4603, %v4733
        %v4736 = vmul.f32 %v4604, %v4733
        %v4737 = vmul.f32 %v4605, %v4733
        %v4738 = vmul.f32 %v4606, %v4733
        %v4739 = vmul.f32 %v4607, %v4733
        %v4740 = vmul.f32 %v4608, %v4733
        %v4741 = vmul.f32 %v4609, %v4733
        %v4742 = vmul.f32 %v4610, %v4733
        %v4743 = vmul.f32 %v4611, %v4733
        %v4744 = vmul.f32 %v4612, %v4733
        %v4745 = vmul.f32 %v4613, %v4733
        %v4746 = vmul.f32 %v4614, %v4733
        %v4747 = vmul.f32 %v4615, %v4733
        %v4748 = vmul.f32 %v4616, %v4733
        %v4749 = vmul.f32 %v4617, %v4733
        %v4750 = vadd.f32 %v4390, %v4734
        %v4751 = vadd.f32 %v4391, %v4735
        %v4752 = vadd.f32 %v4392, %v4736
        %v4753 = vadd.f32 %v4393, %v4737
        %v4754 = vadd.f32 %v4394, %v4738
        %v4755 = vadd.f32 %v4395, %v4739
        %v4756 = vadd.f32 %v4396, %v4740
        %v4757 = vadd.f32 %v4397, %v4741
        %v4758 = vadd.f32 %v4398, %v4742
        %v4759 = vadd.f32 %v4399, %v4743
        %v4760 = vadd.f32 %v4400, %v4744
        %v4761 = vadd.f32 %v4401, %v4745
        %v4762 = vadd.f32 %v4402, %v4746
        %v4763 = vadd.f32 %v4403, %v4747
        %v4764 = vadd.f32 %v4404, %v4748
        %v4765 = vadd.f32 %v4405, %v4749
        %v4766 = vld [vmem:[#allocation8 + $0x47] sm:$0x1]
        %v4767 = vlaneseq
        %v4768 = vshrl.u32 %v4767, 7
        %v4769 = vsub.s32 0, %v4768
        %v4770 = vrot.slane %v4766, %v4769
        %v4771 = vmul.f32 %v4602, %v4770
        %v4772 = vmul.f32 %v4603, %v4770
        %v4773 = vmul.f32 %v4604, %v4770
        %v4774 = vmul.f32 %v4605, %v4770
        %v4775 = vmul.f32 %v4606, %v4770
        %v4776 = vmul.f32 %v4607, %v4770
        %v4777 = vmul.f32 %v4608, %v4770
        %v4778 = vmul.f32 %v4609, %v4770
        %v4779 = vmul.f32 %v4610, %v4770
        %v4780 = vmul.f32 %v4611, %v4770
        %v4781 = vmul.f32 %v4612, %v4770
        %v4782 = vmul.f32 %v4613, %v4770
        %v4783 = vmul.f32 %v4614, %v4770
        %v4784 = vmul.f32 %v4615, %v4770
        %v4785 = vmul.f32 %v4616, %v4770
        %v4786 = vmul.f32 %v4617, %v4770
        %v4787 = vadd.f32 %v4427, %v4771
        %v4788 = vadd.f32 %v4428, %v4772
        %v4789 = vadd.f32 %v4429, %v4773
        %v4790 = vadd.f32 %v4430, %v4774
        %v4791 = vadd.f32 %v4431, %v4775
        %v4792 = vadd.f32 %v4432, %v4776
        %v4793 = vadd.f32 %v4433, %v4777
        %v4794 = vadd.f32 %v4434, %v4778
        %v4795 = vadd.f32 %v4435, %v4779
        %v4796 = vadd.f32 %v4436, %v4780
        %v4797 = vadd.f32 %v4437, %v4781
        %v4798 = vadd.f32 %v4438, %v4782
        %v4799 = vadd.f32 %v4439, %v4783
        %v4800 = vadd.f32 %v4440, %v4784
        %v4801 = vadd.f32 %v4441, %v4785
        %v4802 = vadd.f32 %v4442, %v4786
        %v4803 = vld [vmem:[#allocation8 + $0x57] sm:$0x1]
        %v4804 = vlaneseq
        %v4805 = vshrl.u32 %v4804, 7
        %v4806 = vsub.s32 0, %v4805
        %v4807 = vrot.slane %v4803, %v4806
        %v4808 = vmul.f32 %v4602, %v4807
        %v4809 = vmul.f32 %v4603, %v4807
        %v4810 = vmul.f32 %v4604, %v4807
        %v4811 = vmul.f32 %v4605, %v4807
        %v4812 = vmul.f32 %v4606, %v4807
        %v4813 = vmul.f32 %v4607, %v4807
        %v4814 = vmul.f32 %v4608, %v4807
        %v4815 = vmul.f32 %v4609, %v4807
        %v4816 = vmul.f32 %v4610, %v4807
        %v4817 = vmul.f32 %v4611, %v4807
        %v4818 = vmul.f32 %v4612, %v4807
        %v4819 = vmul.f32 %v4613, %v4807
        %v4820 = vmul.f32 %v4614, %v4807
        %v4821 = vmul.f32 %v4615, %v4807
        %v4822 = vmul.f32 %v4616, %v4807
        %v4823 = vmul.f32 %v4617, %v4807
        %v4824 = vadd.f32 %v4464, %v4808
        %v4825 = vadd.f32 %v4465, %v4809
        %v4826 = vadd.f32 %v4466, %v4810
        %v4827 = vadd.f32 %v4467, %v4811
        %v4828 = vadd.f32 %v4468, %v4812
        %v4829 = vadd.f32 %v4469, %v4813
        %v4830 = vadd.f32 %v4470, %v4814
        %v4831 = vadd.f32 %v4471, %v4815
        %v4832 = vadd.f32 %v4472, %v4816
        %v4833 = vadd.f32 %v4473, %v4817
        %v4834 = vadd.f32 %v4474, %v4818
        %v4835 = vadd.f32 %v4475, %v4819
        %v4836 = vadd.f32 %v4476, %v4820
        %v4837 = vadd.f32 %v4477, %v4821
        %v4838 = vadd.f32 %v4478, %v4822
        %v4839 = vadd.f32 %v4479, %v4823
        %v4840 = vld [vmem:[#allocation8 + $0x67] sm:$0x1]
        %v4841 = vlaneseq
        %v4842 = vshrl.u32 %v4841, 7
        %v4843 = vsub.s32 0, %v4842
        %v4844 = vrot.slane %v4840, %v4843
        %v4845 = vmul.f32 %v4602, %v4844
        %v4846 = vmul.f32 %v4603, %v4844
        %v4847 = vmul.f32 %v4604, %v4844
        %v4848 = vmul.f32 %v4605, %v4844
        %v4849 = vmul.f32 %v4606, %v4844
        %v4850 = vmul.f32 %v4607, %v4844
        %v4851 = vmul.f32 %v4608, %v4844
        %v4852 = vmul.f32 %v4609, %v4844
        %v4853 = vmul.f32 %v4610, %v4844
        %v4854 = vmul.f32 %v4611, %v4844
        %v4855 = vmul.f32 %v4612, %v4844
        %v4856 = vmul.f32 %v4613, %v4844
        %v4857 = vmul.f32 %v4614, %v4844
        %v4858 = vmul.f32 %v4615, %v4844
        %v4859 = vmul.f32 %v4616, %v4844
        %v4860 = vmul.f32 %v4617, %v4844
        %v4861 = vadd.f32 %v4501, %v4845
        %v4862 = vadd.f32 %v4502, %v4846
        %v4863 = vadd.f32 %v4503, %v4847
        %v4864 = vadd.f32 %v4504, %v4848
        %v4865 = vadd.f32 %v4505, %v4849
        %v4866 = vadd.f32 %v4506, %v4850
        %v4867 = vadd.f32 %v4507, %v4851
        %v4868 = vadd.f32 %v4508, %v4852
        %v4869 = vadd.f32 %v4509, %v4853
        %v4870 = vadd.f32 %v4510, %v4854
        %v4871 = vadd.f32 %v4511, %v4855
        %v4872 = vadd.f32 %v4512, %v4856
        %v4873 = vadd.f32 %v4513, %v4857
        %v4874 = vadd.f32 %v4514, %v4858
        %v4875 = vadd.f32 %v4515, %v4859
        %v4876 = vadd.f32 %v4516, %v4860
        %v4877 = vld [vmem:[#allocation8 + $0x77] sm:$0x1]
        %v4878 = vlaneseq
        %v4879 = vshrl.u32 %v4878, 7
        %v4880 = vsub.s32 0, %v4879
        %v4881 = vrot.slane %v4877, %v4880
        %v4882 = vmul.f32 %v4602, %v4881
        %v4883 = vmul.f32 %v4603, %v4881
        %v4884 = vmul.f32 %v4604, %v4881
        %v4885 = vmul.f32 %v4605, %v4881
        %v4886 = vmul.f32 %v4606, %v4881
        %v4887 = vmul.f32 %v4607, %v4881
        %v4888 = vmul.f32 %v4608, %v4881
        %v4889 = vmul.f32 %v4609, %v4881
        %v4890 = vmul.f32 %v4610, %v4881
        %v4891 = vmul.f32 %v4611, %v4881
        %v4892 = vmul.f32 %v4612, %v4881
        %v4893 = vmul.f32 %v4613, %v4881
        %v4894 = vmul.f32 %v4614, %v4881
        %v4895 = vmul.f32 %v4615, %v4881
        %v4896 = vmul.f32 %v4616, %v4881
        %v4897 = vmul.f32 %v4617, %v4881
        %v4898 = vadd.f32 %v4538, %v4882
        %v4899 = vadd.f32 %v4539, %v4883
        %v4900 = vadd.f32 %v4540, %v4884
        %v4901 = vadd.f32 %v4541, %v4885
        %v4902 = vadd.f32 %v4542, %v4886
        %v4903 = vadd.f32 %v4543, %v4887
        %v4904 = vadd.f32 %v4544, %v4888
        %v4905 = vadd.f32 %v4545, %v4889
        %v4906 = vadd.f32 %v4546, %v4890
        %v4907 = vadd.f32 %v4547, %v4891
        %v4908 = vadd.f32 %v4548, %v4892
        %v4909 = vadd.f32 %v4549, %v4893
        %v4910 = vadd.f32 %v4550, %v4894
        %v4911 = vadd.f32 %v4551, %v4895
        %v4912 = vadd.f32 %v4552, %v4896
        %v4913 = vadd.f32 %v4553, %v4897
        %v4914 = vmul.f32 %v1745, 0.5
        %v4915 = vmul.f32 %v1749, 0.5
        %v4916 = vmul.f32 %v1755, 0.5
        %v4917 = vmul.f32 %v1759, 0.5
        %v4918 = vmul.f32 %v1765, 0.5
        %v4919 = vmul.f32 %v1769, 0.5
        %v4920 = vmul.f32 %v1775, 0.5
        %v4921 = vmul.f32 %v1779, 0.5
        %v4922 = vmul.f32 %v1785, 0.5
        %v4923 = vmul.f32 %v1789, 0.5
        %v4924 = vmul.f32 %v1795, 0.5
        %v4925 = vmul.f32 %v1799, 0.5
        %v4926 = vmul.f32 %v1805, 0.5
        %v4927 = vmul.f32 %v1809, 0.5
        %v4928 = vmul.f32 %v1815, 0.5
        %v4929 = vmul.f32 %v1819, 0.5
        %v4930 = vtanh.pop %v4914
        %v4931 = vtanh.pop %v4915
        %v4932 = vtanh.pop %v4916
        %v4933 = vtanh.pop %v4917
        %v4934 = vtanh.pop %v4918
        %v4935 = vtanh.pop %v4919
        %v4936 = vtanh.pop %v4920
        %v4937 = vtanh.pop %v4921
        %v4938 = vtanh.pop %v4922
        %v4939 = vtanh.pop %v4923
        %v4940 = vtanh.pop %v4924
        %v4941 = vtanh.pop %v4925
        %v4942 = vtanh.pop %v4926
        %v4943 = vtanh.pop %v4927
        %v4944 = vtanh.pop %v4928
        %v4945 = vtanh.pop %v4929
        %v4946 = vmul.f32 %v4930, 0.5
        %v4947 = vmul.f32 %v4931, 0.5
        %v4948 = vmul.f32 %v4932, 0.5
        %v4949 = vmul.f32 %v4933, 0.5
        %v4950 = vmul.f32 %v4934, 0.5
        %v4951 = vmul.f32 %v4935, 0.5
        %v4952 = vmul.f32 %v4936, 0.5
        %v4953 = vmul.f32 %v4937, 0.5
        %v4954 = vmul.f32 %v4938, 0.5
        %v4955 = vmul.f32 %v4939, 0.5
        %v4956 = vmul.f32 %v4940, 0.5
        %v4957 = vmul.f32 %v4941, 0.5
        %v4958 = vmul.f32 %v4942, 0.5
        %v4959 = vmul.f32 %v4943, 0.5
        %v4960 = vmul.f32 %v4944, 0.5
        %v4961 = vmul.f32 %v4945, 0.5
        %v4962 = vadd.f32 %v4946, 0.5
        %v4963 = vadd.f32 %v4947, 0.5
        %v4964 = vadd.f32 %v4948, 0.5
        %v4965 = vadd.f32 %v4949, 0.5
        %v4966 = vadd.f32 %v4950, 0.5
        %v4967 = vadd.f32 %v4951, 0.5
        %v4968 = vadd.f32 %v4952, 0.5
        %v4969 = vadd.f32 %v4953, 0.5
        %v4970 = vadd.f32 %v4954, 0.5
        %v4971 = vadd.f32 %v4955, 0.5
        %v4972 = vadd.f32 %v4956, 0.5
        %v4973 = vadd.f32 %v4957, 0.5
        %v4974 = vadd.f32 %v4958, 0.5
        %v4975 = vadd.f32 %v4959, 0.5
        %v4976 = vadd.f32 %v4960, 0.5
        %v4977 = vadd.f32 %v4961, 0.5
        %v4978 = vld [vmem:[#allocation8 + $0x8] sm:$0x1]
        %v4979 = vlaneseq
        %v4980 = vshrl.u32 %v4979, 7
        %v4981 = vsub.s32 0, %v4980
        %v4982 = vrot.slane %v4978, %v4981
        %v4983 = vmul.f32 %v4962, %v4982
        %v4984 = vmul.f32 %v4963, %v4982
        %v4985 = vmul.f32 %v4964, %v4982
        %v4986 = vmul.f32 %v4965, %v4982
        %v4987 = vmul.f32 %v4966, %v4982
        %v4988 = vmul.f32 %v4967, %v4982
        %v4989 = vmul.f32 %v4968, %v4982
        %v4990 = vmul.f32 %v4969, %v4982
        %v4991 = vmul.f32 %v4970, %v4982
        %v4992 = vmul.f32 %v4971, %v4982
        %v4993 = vmul.f32 %v4972, %v4982
        %v4994 = vmul.f32 %v4973, %v4982
        %v4995 = vmul.f32 %v4974, %v4982
        %v4996 = vmul.f32 %v4975, %v4982
        %v4997 = vmul.f32 %v4976, %v4982
        %v4998 = vmul.f32 %v4977, %v4982
        %v4999 = vadd.f32 %v4639, %v4983
        %v5000 = vadd.f32 %v4640, %v4984
        %v5001 = vadd.f32 %v4641, %v4985
        %v5002 = vadd.f32 %v4642, %v4986
        %v5003 = vadd.f32 %v4643, %v4987
        %v5004 = vadd.f32 %v4644, %v4988
        %v5005 = vadd.f32 %v4645, %v4989
        %v5006 = vadd.f32 %v4646, %v4990
        %v5007 = vadd.f32 %v4647, %v4991
        %v5008 = vadd.f32 %v4648, %v4992
        %v5009 = vadd.f32 %v4649, %v4993
        %v5010 = vadd.f32 %v4650, %v4994
        %v5011 = vadd.f32 %v4651, %v4995
        %v5012 = vadd.f32 %v4652, %v4996
        %v5013 = vadd.f32 %v4653, %v4997
        %v5014 = vadd.f32 %v4654, %v4998
        %v5015 = vld [vmem:[#allocation8 + $0x18] sm:$0x1]
        %v5016 = vlaneseq
        %v5017 = vshrl.u32 %v5016, 7
        %v5018 = vsub.s32 0, %v5017
        %v5019 = vrot.slane %v5015, %v5018
        %v5020 = vmul.f32 %v4962, %v5019
        %v5021 = vmul.f32 %v4963, %v5019
        %v5022 = vmul.f32 %v4964, %v5019
        %v5023 = vmul.f32 %v4965, %v5019
        %v5024 = vmul.f32 %v4966, %v5019
        %v5025 = vmul.f32 %v4967, %v5019
        %v5026 = vmul.f32 %v4968, %v5019
        %v5027 = vmul.f32 %v4969, %v5019
        %v5028 = vmul.f32 %v4970, %v5019
        %v5029 = vmul.f32 %v4971, %v5019
        %v5030 = vmul.f32 %v4972, %v5019
        %v5031 = vmul.f32 %v4973, %v5019
        %v5032 = vmul.f32 %v4974, %v5019
        %v5033 = vmul.f32 %v4975, %v5019
        %v5034 = vmul.f32 %v4976, %v5019
        %v5035 = vmul.f32 %v4977, %v5019
        %v5036 = vadd.f32 %v4676, %v5020
        %v5037 = vadd.f32 %v4677, %v5021
        %v5038 = vadd.f32 %v4678, %v5022
        %v5039 = vadd.f32 %v4679, %v5023
        %v5040 = vadd.f32 %v4680, %v5024
        %v5041 = vadd.f32 %v4681, %v5025
        %v5042 = vadd.f32 %v4682, %v5026
        %v5043 = vadd.f32 %v4683, %v5027
        %v5044 = vadd.f32 %v4684, %v5028
        %v5045 = vadd.f32 %v4685, %v5029
        %v5046 = vadd.f32 %v4686, %v5030
        %v5047 = vadd.f32 %v4687, %v5031
        %v5048 = vadd.f32 %v4688, %v5032
        %v5049 = vadd.f32 %v4689, %v5033
        %v5050 = vadd.f32 %v4690, %v5034
        %v5051 = vadd.f32 %v4691, %v5035
        %v5052 = vld [vmem:[#allocation8 + $0x28] sm:$0x1]
        %v5053 = vlaneseq
        %v5054 = vshrl.u32 %v5053, 7
        %v5055 = vsub.s32 0, %v5054
        %v5056 = vrot.slane %v5052, %v5055
        %v5057 = vmul.f32 %v4962, %v5056
        %v5058 = vmul.f32 %v4963, %v5056
        %v5059 = vmul.f32 %v4964, %v5056
        %v5060 = vmul.f32 %v4965, %v5056
        %v5061 = vmul.f32 %v4966, %v5056
        %v5062 = vmul.f32 %v4967, %v5056
        %v5063 = vmul.f32 %v4968, %v5056
        %v5064 = vmul.f32 %v4969, %v5056
        %v5065 = vmul.f32 %v4970, %v5056
        %v5066 = vmul.f32 %v4971, %v5056
        %v5067 = vmul.f32 %v4972, %v5056
        %v5068 = vmul.f32 %v4973, %v5056
        %v5069 = vmul.f32 %v4974, %v5056
        %v5070 = vmul.f32 %v4975, %v5056
        %v5071 = vmul.f32 %v4976, %v5056
        %v5072 = vmul.f32 %v4977, %v5056
        %v5073 = vadd.f32 %v4713, %v5057
        %v5074 = vadd.f32 %v4714, %v5058
        %v5075 = vadd.f32 %v4715, %v5059
        %v5076 = vadd.f32 %v4716, %v5060
        %v5077 = vadd.f32 %v4717, %v5061
        %v5078 = vadd.f32 %v4718, %v5062
        %v5079 = vadd.f32 %v4719, %v5063
        %v5080 = vadd.f32 %v4720, %v5064
        %v5081 = vadd.f32 %v4721, %v5065
        %v5082 = vadd.f32 %v4722, %v5066
        %v5083 = vadd.f32 %v4723, %v5067
        %v5084 = vadd.f32 %v4724, %v5068
        %v5085 = vadd.f32 %v4725, %v5069
        %v5086 = vadd.f32 %v4726, %v5070
        %v5087 = vadd.f32 %v4727, %v5071
        %v5088 = vadd.f32 %v4728, %v5072
        %v5089 = vld [vmem:[#allocation8 + $0x38] sm:$0x1]
        %v5090 = vlaneseq
        %v5091 = vshrl.u32 %v5090, 7
        %v5092 = vsub.s32 0, %v5091
        %v5093 = vrot.slane %v5089, %v5092
        %v5094 = vmul.f32 %v4962, %v5093
        %v5095 = vmul.f32 %v4963, %v5093
        %v5096 = vmul.f32 %v4964, %v5093
        %v5097 = vmul.f32 %v4965, %v5093
        %v5098 = vmul.f32 %v4966, %v5093
        %v5099 = vmul.f32 %v4967, %v5093
        %v5100 = vmul.f32 %v4968, %v5093
        %v5101 = vmul.f32 %v4969, %v5093
        %v5102 = vmul.f32 %v4970, %v5093
        %v5103 = vmul.f32 %v4971, %v5093
        %v5104 = vmul.f32 %v4972, %v5093
        %v5105 = vmul.f32 %v4973, %v5093
        %v5106 = vmul.f32 %v4974, %v5093
        %v5107 = vmul.f32 %v4975, %v5093
        %v5108 = vmul.f32 %v4976, %v5093
        %v5109 = vmul.f32 %v4977, %v5093
        %v5110 = vadd.f32 %v4750, %v5094
        %v5111 = vadd.f32 %v4751, %v5095
        %v5112 = vadd.f32 %v4752, %v5096
        %v5113 = vadd.f32 %v4753, %v5097
        %v5114 = vadd.f32 %v4754, %v5098
        %v5115 = vadd.f32 %v4755, %v5099
        %v5116 = vadd.f32 %v4756, %v5100
        %v5117 = vadd.f32 %v4757, %v5101
        %v5118 = vadd.f32 %v4758, %v5102
        %v5119 = vadd.f32 %v4759, %v5103
        %v5120 = vadd.f32 %v4760, %v5104
        %v5121 = vadd.f32 %v4761, %v5105
        %v5122 = vadd.f32 %v4762, %v5106
        %v5123 = vadd.f32 %v4763, %v5107
        %v5124 = vadd.f32 %v4764, %v5108
        %v5125 = vadd.f32 %v4765, %v5109
        %v5126 = vld [vmem:[#allocation8 + $0x48] sm:$0x1]
        %v5127 = vlaneseq
        %v5128 = vshrl.u32 %v5127, 7
        %v5129 = vsub.s32 0, %v5128
        %v5130 = vrot.slane %v5126, %v5129
        %v5131 = vmul.f32 %v4962, %v5130
        %v5132 = vmul.f32 %v4963, %v5130
        %v5133 = vmul.f32 %v4964, %v5130
        %v5134 = vmul.f32 %v4965, %v5130
        %v5135 = vmul.f32 %v4966, %v5130
        %v5136 = vmul.f32 %v4967, %v5130
        %v5137 = vmul.f32 %v4968, %v5130
        %v5138 = vmul.f32 %v4969, %v5130
        %v5139 = vmul.f32 %v4970, %v5130
        %v5140 = vmul.f32 %v4971, %v5130
        %v5141 = vmul.f32 %v4972, %v5130
        %v5142 = vmul.f32 %v4973, %v5130
        %v5143 = vmul.f32 %v4974, %v5130
        %v5144 = vmul.f32 %v4975, %v5130
        %v5145 = vmul.f32 %v4976, %v5130
        %v5146 = vmul.f32 %v4977, %v5130
        %v5147 = vadd.f32 %v4787, %v5131
        %v5148 = vadd.f32 %v4788, %v5132
        %v5149 = vadd.f32 %v4789, %v5133
        %v5150 = vadd.f32 %v4790, %v5134
        %v5151 = vadd.f32 %v4791, %v5135
        %v5152 = vadd.f32 %v4792, %v5136
        %v5153 = vadd.f32 %v4793, %v5137
        %v5154 = vadd.f32 %v4794, %v5138
        %v5155 = vadd.f32 %v4795, %v5139
        %v5156 = vadd.f32 %v4796, %v5140
        %v5157 = vadd.f32 %v4797, %v5141
        %v5158 = vadd.f32 %v4798, %v5142
        %v5159 = vadd.f32 %v4799, %v5143
        %v5160 = vadd.f32 %v4800, %v5144
        %v5161 = vadd.f32 %v4801, %v5145
        %v5162 = vadd.f32 %v4802, %v5146
        %v5163 = vld [vmem:[#allocation8 + $0x58] sm:$0x1]
        %v5164 = vlaneseq
        %v5165 = vshrl.u32 %v5164, 7
        %v5166 = vsub.s32 0, %v5165
        %v5167 = vrot.slane %v5163, %v5166
        %v5168 = vmul.f32 %v4962, %v5167
        %v5169 = vmul.f32 %v4963, %v5167
        %v5170 = vmul.f32 %v4964, %v5167
        %v5171 = vmul.f32 %v4965, %v5167
        %v5172 = vmul.f32 %v4966, %v5167
        %v5173 = vmul.f32 %v4967, %v5167
        %v5174 = vmul.f32 %v4968, %v5167
        %v5175 = vmul.f32 %v4969, %v5167
        %v5176 = vmul.f32 %v4970, %v5167
        %v5177 = vmul.f32 %v4971, %v5167
        %v5178 = vmul.f32 %v4972, %v5167
        %v5179 = vmul.f32 %v4973, %v5167
        %v5180 = vmul.f32 %v4974, %v5167
        %v5181 = vmul.f32 %v4975, %v5167
        %v5182 = vmul.f32 %v4976, %v5167
        %v5183 = vmul.f32 %v4977, %v5167
        %v5184 = vadd.f32 %v4824, %v5168
        %v5185 = vadd.f32 %v4825, %v5169
        %v5186 = vadd.f32 %v4826, %v5170
        %v5187 = vadd.f32 %v4827, %v5171
        %v5188 = vadd.f32 %v4828, %v5172
        %v5189 = vadd.f32 %v4829, %v5173
        %v5190 = vadd.f32 %v4830, %v5174
        %v5191 = vadd.f32 %v4831, %v5175
        %v5192 = vadd.f32 %v4832, %v5176
        %v5193 = vadd.f32 %v4833, %v5177
        %v5194 = vadd.f32 %v4834, %v5178
        %v5195 = vadd.f32 %v4835, %v5179
        %v5196 = vadd.f32 %v4836, %v5180
        %v5197 = vadd.f32 %v4837, %v5181
        %v5198 = vadd.f32 %v4838, %v5182
        %v5199 = vadd.f32 %v4839, %v5183
        %v5200 = vld [vmem:[#allocation8 + $0x68] sm:$0x1]
        %v5201 = vlaneseq
        %v5202 = vshrl.u32 %v5201, 7
        %v5203 = vsub.s32 0, %v5202
        %v5204 = vrot.slane %v5200, %v5203
        %v5205 = vmul.f32 %v4962, %v5204
        %v5206 = vmul.f32 %v4963, %v5204
        %v5207 = vmul.f32 %v4964, %v5204
        %v5208 = vmul.f32 %v4965, %v5204
        %v5209 = vmul.f32 %v4966, %v5204
        %v5210 = vmul.f32 %v4967, %v5204
        %v5211 = vmul.f32 %v4968, %v5204
        %v5212 = vmul.f32 %v4969, %v5204
        %v5213 = vmul.f32 %v4970, %v5204
        %v5214 = vmul.f32 %v4971, %v5204
        %v5215 = vmul.f32 %v4972, %v5204
        %v5216 = vmul.f32 %v4973, %v5204
        %v5217 = vmul.f32 %v4974, %v5204
        %v5218 = vmul.f32 %v4975, %v5204
        %v5219 = vmul.f32 %v4976, %v5204
        %v5220 = vmul.f32 %v4977, %v5204
        %v5221 = vadd.f32 %v4861, %v5205
        %v5222 = vadd.f32 %v4862, %v5206
        %v5223 = vadd.f32 %v4863, %v5207
        %v5224 = vadd.f32 %v4864, %v5208
        %v5225 = vadd.f32 %v4865, %v5209
        %v5226 = vadd.f32 %v4866, %v5210
        %v5227 = vadd.f32 %v4867, %v5211
        %v5228 = vadd.f32 %v4868, %v5212
        %v5229 = vadd.f32 %v4869, %v5213
        %v5230 = vadd.f32 %v4870, %v5214
        %v5231 = vadd.f32 %v4871, %v5215
        %v5232 = vadd.f32 %v4872, %v5216
        %v5233 = vadd.f32 %v4873, %v5217
        %v5234 = vadd.f32 %v4874, %v5218
        %v5235 = vadd.f32 %v4875, %v5219
        %v5236 = vadd.f32 %v4876, %v5220
        %v5237 = vld [vmem:[#allocation8 + $0x78] sm:$0x1]
        %v5238 = vlaneseq
        %v5239 = vshrl.u32 %v5238, 7
        %v5240 = vsub.s32 0, %v5239
        %v5241 = vrot.slane %v5237, %v5240
        %v5242 = vmul.f32 %v4962, %v5241
        %v5243 = vmul.f32 %v4963, %v5241
        %v5244 = vmul.f32 %v4964, %v5241
        %v5245 = vmul.f32 %v4965, %v5241
        %v5246 = vmul.f32 %v4966, %v5241
        %v5247 = vmul.f32 %v4967, %v5241
        %v5248 = vmul.f32 %v4968, %v5241
        %v5249 = vmul.f32 %v4969, %v5241
        %v5250 = vmul.f32 %v4970, %v5241
        %v5251 = vmul.f32 %v4971, %v5241
        %v5252 = vmul.f32 %v4972, %v5241
        %v5253 = vmul.f32 %v4973, %v5241
        %v5254 = vmul.f32 %v4974, %v5241
        %v5255 = vmul.f32 %v4975, %v5241
        %v5256 = vmul.f32 %v4976, %v5241
        %v5257 = vmul.f32 %v4977, %v5241
        %v5258 = vadd.f32 %v4898, %v5242
        %v5259 = vadd.f32 %v4899, %v5243
        %v5260 = vadd.f32 %v4900, %v5244
        %v5261 = vadd.f32 %v4901, %v5245
        %v5262 = vadd.f32 %v4902, %v5246
        %v5263 = vadd.f32 %v4903, %v5247
        %v5264 = vadd.f32 %v4904, %v5248
        %v5265 = vadd.f32 %v4905, %v5249
        %v5266 = vadd.f32 %v4906, %v5250
        %v5267 = vadd.f32 %v4907, %v5251
        %v5268 = vadd.f32 %v4908, %v5252
        %v5269 = vadd.f32 %v4909, %v5253
        %v5270 = vadd.f32 %v4910, %v5254
        %v5271 = vadd.f32 %v4911, %v5255
        %v5272 = vadd.f32 %v4912, %v5256
        %v5273 = vadd.f32 %v4913, %v5257
        %v5274 = vmul.f32 %v1747, 0.5
        %v5275 = vmul.f32 %v1751, 0.5
        %v5276 = vmul.f32 %v1757, 0.5
        %v5277 = vmul.f32 %v1761, 0.5
        %v5278 = vmul.f32 %v1767, 0.5
        %v5279 = vmul.f32 %v1771, 0.5
        %v5280 = vmul.f32 %v1777, 0.5
        %v5281 = vmul.f32 %v1781, 0.5
        %v5282 = vmul.f32 %v1787, 0.5
        %v5283 = vmul.f32 %v1791, 0.5
        %v5284 = vmul.f32 %v1797, 0.5
        %v5285 = vmul.f32 %v1801, 0.5
        %v5286 = vmul.f32 %v1807, 0.5
        %v5287 = vmul.f32 %v1811, 0.5
        %v5288 = vmul.f32 %v1817, 0.5
        %v5289 = vmul.f32 %v1821, 0.5
        %v5290 = vtanh.pop %v5274
        %v5291 = vtanh.pop %v5275
        %v5292 = vtanh.pop %v5276
        %v5293 = vtanh.pop %v5277
        %v5294 = vtanh.pop %v5278
        %v5295 = vtanh.pop %v5279
        %v5296 = vtanh.pop %v5280
        %v5297 = vtanh.pop %v5281
        %v5298 = vtanh.pop %v5282
        %v5299 = vtanh.pop %v5283
        %v5300 = vtanh.pop %v5284
        %v5301 = vtanh.pop %v5285
        %v5302 = vtanh.pop %v5286
        %v5303 = vtanh.pop %v5287
        %v5304 = vtanh.pop %v5288
        %v5305 = vtanh.pop %v5289
        %v5306 = vmul.f32 %v5290, 0.5
        %v5307 = vmul.f32 %v5291, 0.5
        %v5308 = vmul.f32 %v5292, 0.5
        %v5309 = vmul.f32 %v5293, 0.5
        %v5310 = vmul.f32 %v5294, 0.5
        %v5311 = vmul.f32 %v5295, 0.5
        %v5312 = vmul.f32 %v5296, 0.5
        %v5313 = vmul.f32 %v5297, 0.5
        %v5314 = vmul.f32 %v5298, 0.5
        %v5315 = vmul.f32 %v5299, 0.5
        %v5316 = vmul.f32 %v5300, 0.5
        %v5317 = vmul.f32 %v5301, 0.5
        %v5318 = vmul.f32 %v5302, 0.5
        %v5319 = vmul.f32 %v5303, 0.5
        %v5320 = vmul.f32 %v5304, 0.5
        %v5321 = vmul.f32 %v5305, 0.5
        %v5322 = vadd.f32 %v5306, 0.5
        %v5323 = vadd.f32 %v5307, 0.5
        %v5324 = vadd.f32 %v5308, 0.5
        %v5325 = vadd.f32 %v5309, 0.5
        %v5326 = vadd.f32 %v5310, 0.5
        %v5327 = vadd.f32 %v5311, 0.5
        %v5328 = vadd.f32 %v5312, 0.5
        %v5329 = vadd.f32 %v5313, 0.5
        %v5330 = vadd.f32 %v5314, 0.5
        %v5331 = vadd.f32 %v5315, 0.5
        %v5332 = vadd.f32 %v5316, 0.5
        %v5333 = vadd.f32 %v5317, 0.5
        %v5334 = vadd.f32 %v5318, 0.5
        %v5335 = vadd.f32 %v5319, 0.5
        %v5336 = vadd.f32 %v5320, 0.5
        %v5337 = vadd.f32 %v5321, 0.5
        %v5338 = vld [vmem:[#allocation8 + $0x9] sm:$0x1]
        %v5339 = vlaneseq
        %v5340 = vshrl.u32 %v5339, 7
        %v5341 = vsub.s32 0, %v5340
        %v5342 = vrot.slane %v5338, %v5341
        %v5343 = vmul.f32 %v5322, %v5342
        %v5344 = vmul.f32 %v5323, %v5342
        %v5345 = vmul.f32 %v5324, %v5342
        %v5346 = vmul.f32 %v5325, %v5342
        %v5347 = vmul.f32 %v5326, %v5342
        %v5348 = vmul.f32 %v5327, %v5342
        %v5349 = vmul.f32 %v5328, %v5342
        %v5350 = vmul.f32 %v5329, %v5342
        %v5351 = vmul.f32 %v5330, %v5342
        %v5352 = vmul.f32 %v5331, %v5342
        %v5353 = vmul.f32 %v5332, %v5342
        %v5354 = vmul.f32 %v5333, %v5342
        %v5355 = vmul.f32 %v5334, %v5342
        %v5356 = vmul.f32 %v5335, %v5342
        %v5357 = vmul.f32 %v5336, %v5342
        %v5358 = vmul.f32 %v5337, %v5342
        %v5359 = vadd.f32 %v4999, %v5343
        %v5360 = vadd.f32 %v5000, %v5344
        %v5361 = vadd.f32 %v5001, %v5345
        %v5362 = vadd.f32 %v5002, %v5346
        %v5363 = vadd.f32 %v5003, %v5347
        %v5364 = vadd.f32 %v5004, %v5348
        %v5365 = vadd.f32 %v5005, %v5349
        %v5366 = vadd.f32 %v5006, %v5350
        %v5367 = vadd.f32 %v5007, %v5351
        %v5368 = vadd.f32 %v5008, %v5352
        %v5369 = vadd.f32 %v5009, %v5353
        %v5370 = vadd.f32 %v5010, %v5354
        %v5371 = vadd.f32 %v5011, %v5355
        %v5372 = vadd.f32 %v5012, %v5356
        %v5373 = vadd.f32 %v5013, %v5357
        %v5374 = vadd.f32 %v5014, %v5358
        %v5375 = vld [vmem:[#allocation8 + $0x19] sm:$0x1]
        %v5376 = vlaneseq
        %v5377 = vshrl.u32 %v5376, 7
        %v5378 = vsub.s32 0, %v5377
        %v5379 = vrot.slane %v5375, %v5378
        %v5380 = vmul.f32 %v5322, %v5379
        %v5381 = vmul.f32 %v5323, %v5379
        %v5382 = vmul.f32 %v5324, %v5379
        %v5383 = vmul.f32 %v5325, %v5379
        %v5384 = vmul.f32 %v5326, %v5379
        %v5385 = vmul.f32 %v5327, %v5379
        %v5386 = vmul.f32 %v5328, %v5379
        %v5387 = vmul.f32 %v5329, %v5379
        %v5388 = vmul.f32 %v5330, %v5379
        %v5389 = vmul.f32 %v5331, %v5379
        %v5390 = vmul.f32 %v5332, %v5379
        %v5391 = vmul.f32 %v5333, %v5379
        %v5392 = vmul.f32 %v5334, %v5379
        %v5393 = vmul.f32 %v5335, %v5379
        %v5394 = vmul.f32 %v5336, %v5379
        %v5395 = vmul.f32 %v5337, %v5379
        %v5396 = vadd.f32 %v5036, %v5380
        %v5397 = vadd.f32 %v5037, %v5381
        %v5398 = vadd.f32 %v5038, %v5382
        %v5399 = vadd.f32 %v5039, %v5383
        %v5400 = vadd.f32 %v5040, %v5384
        %v5401 = vadd.f32 %v5041, %v5385
        %v5402 = vadd.f32 %v5042, %v5386
        %v5403 = vadd.f32 %v5043, %v5387
        %v5404 = vadd.f32 %v5044, %v5388
        %v5405 = vadd.f32 %v5045, %v5389
        %v5406 = vadd.f32 %v5046, %v5390
        %v5407 = vadd.f32 %v5047, %v5391
        %v5408 = vadd.f32 %v5048, %v5392
        %v5409 = vadd.f32 %v5049, %v5393
        %v5410 = vadd.f32 %v5050, %v5394
        %v5411 = vadd.f32 %v5051, %v5395
        %v5412 = vld [vmem:[#allocation8 + $0x29] sm:$0x1]
        %v5413 = vlaneseq
        %v5414 = vshrl.u32 %v5413, 7
        %v5415 = vsub.s32 0, %v5414
        %v5416 = vrot.slane %v5412, %v5415
        %v5417 = vmul.f32 %v5322, %v5416
        %v5418 = vmul.f32 %v5323, %v5416
        %v5419 = vmul.f32 %v5324, %v5416
        %v5420 = vmul.f32 %v5325, %v5416
        %v5421 = vmul.f32 %v5326, %v5416
        %v5422 = vmul.f32 %v5327, %v5416
        %v5423 = vmul.f32 %v5328, %v5416
        %v5424 = vmul.f32 %v5329, %v5416
        %v5425 = vmul.f32 %v5330, %v5416
        %v5426 = vmul.f32 %v5331, %v5416
        %v5427 = vmul.f32 %v5332, %v5416
        %v5428 = vmul.f32 %v5333, %v5416
        %v5429 = vmul.f32 %v5334, %v5416
        %v5430 = vmul.f32 %v5335, %v5416
        %v5431 = vmul.f32 %v5336, %v5416
        %v5432 = vmul.f32 %v5337, %v5416
        %v5433 = vadd.f32 %v5073, %v5417
        %v5434 = vadd.f32 %v5074, %v5418
        %v5435 = vadd.f32 %v5075, %v5419
        %v5436 = vadd.f32 %v5076, %v5420
        %v5437 = vadd.f32 %v5077, %v5421
        %v5438 = vadd.f32 %v5078, %v5422
        %v5439 = vadd.f32 %v5079, %v5423
        %v5440 = vadd.f32 %v5080, %v5424
        %v5441 = vadd.f32 %v5081, %v5425
        %v5442 = vadd.f32 %v5082, %v5426
        %v5443 = vadd.f32 %v5083, %v5427
        %v5444 = vadd.f32 %v5084, %v5428
        %v5445 = vadd.f32 %v5085, %v5429
        %v5446 = vadd.f32 %v5086, %v5430
        %v5447 = vadd.f32 %v5087, %v5431
        %v5448 = vadd.f32 %v5088, %v5432
        %v5449 = vld [vmem:[#allocation8 + $0x39] sm:$0x1]
        %v5450 = vlaneseq
        %v5451 = vshrl.u32 %v5450, 7
        %v5452 = vsub.s32 0, %v5451
        %v5453 = vrot.slane %v5449, %v5452
        %v5454 = vmul.f32 %v5322, %v5453
        %v5455 = vmul.f32 %v5323, %v5453
        %v5456 = vmul.f32 %v5324, %v5453
        %v5457 = vmul.f32 %v5325, %v5453
        %v5458 = vmul.f32 %v5326, %v5453
        %v5459 = vmul.f32 %v5327, %v5453
        %v5460 = vmul.f32 %v5328, %v5453
        %v5461 = vmul.f32 %v5329, %v5453
        %v5462 = vmul.f32 %v5330, %v5453
        %v5463 = vmul.f32 %v5331, %v5453
        %v5464 = vmul.f32 %v5332, %v5453
        %v5465 = vmul.f32 %v5333, %v5453
        %v5466 = vmul.f32 %v5334, %v5453
        %v5467 = vmul.f32 %v5335, %v5453
        %v5468 = vmul.f32 %v5336, %v5453
        %v5469 = vmul.f32 %v5337, %v5453
        %v5470 = vadd.f32 %v5110, %v5454
        %v5471 = vadd.f32 %v5111, %v5455
        %v5472 = vadd.f32 %v5112, %v5456
        %v5473 = vadd.f32 %v5113, %v5457
        %v5474 = vadd.f32 %v5114, %v5458
        %v5475 = vadd.f32 %v5115, %v5459
        %v5476 = vadd.f32 %v5116, %v5460
        %v5477 = vadd.f32 %v5117, %v5461
        %v5478 = vadd.f32 %v5118, %v5462
        %v5479 = vadd.f32 %v5119, %v5463
        %v5480 = vadd.f32 %v5120, %v5464
        %v5481 = vadd.f32 %v5121, %v5465
        %v5482 = vadd.f32 %v5122, %v5466
        %v5483 = vadd.f32 %v5123, %v5467
        %v5484 = vadd.f32 %v5124, %v5468
        %v5485 = vadd.f32 %v5125, %v5469
        %v5486 = vld [vmem:[#allocation8 + $0x49] sm:$0x1]
        %v5487 = vlaneseq
        %v5488 = vshrl.u32 %v5487, 7
        %v5489 = vsub.s32 0, %v5488
        %v5490 = vrot.slane %v5486, %v5489
        %v5491 = vmul.f32 %v5322, %v5490
        %v5492 = vmul.f32 %v5323, %v5490
        %v5493 = vmul.f32 %v5324, %v5490
        %v5494 = vmul.f32 %v5325, %v5490
        %v5495 = vmul.f32 %v5326, %v5490
        %v5496 = vmul.f32 %v5327, %v5490
        %v5497 = vmul.f32 %v5328, %v5490
        %v5498 = vmul.f32 %v5329, %v5490
        %v5499 = vmul.f32 %v5330, %v5490
        %v5500 = vmul.f32 %v5331, %v5490
        %v5501 = vmul.f32 %v5332, %v5490
        %v5502 = vmul.f32 %v5333, %v5490
        %v5503 = vmul.f32 %v5334, %v5490
        %v5504 = vmul.f32 %v5335, %v5490
        %v5505 = vmul.f32 %v5336, %v5490
        %v5506 = vmul.f32 %v5337, %v5490
        %v5507 = vadd.f32 %v5147, %v5491
        %v5508 = vadd.f32 %v5148, %v5492
        %v5509 = vadd.f32 %v5149, %v5493
        %v5510 = vadd.f32 %v5150, %v5494
        %v5511 = vadd.f32 %v5151, %v5495
        %v5512 = vadd.f32 %v5152, %v5496
        %v5513 = vadd.f32 %v5153, %v5497
        %v5514 = vadd.f32 %v5154, %v5498
        %v5515 = vadd.f32 %v5155, %v5499
        %v5516 = vadd.f32 %v5156, %v5500
        %v5517 = vadd.f32 %v5157, %v5501
        %v5518 = vadd.f32 %v5158, %v5502
        %v5519 = vadd.f32 %v5159, %v5503
        %v5520 = vadd.f32 %v5160, %v5504
        %v5521 = vadd.f32 %v5161, %v5505
        %v5522 = vadd.f32 %v5162, %v5506
        %v5523 = vld [vmem:[#allocation8 + $0x59] sm:$0x1]
        %v5524 = vlaneseq
        %v5525 = vshrl.u32 %v5524, 7
        %v5526 = vsub.s32 0, %v5525
        %v5527 = vrot.slane %v5523, %v5526
        %v5528 = vmul.f32 %v5322, %v5527
        %v5529 = vmul.f32 %v5323, %v5527
        %v5530 = vmul.f32 %v5324, %v5527
        %v5531 = vmul.f32 %v5325, %v5527
        %v5532 = vmul.f32 %v5326, %v5527
        %v5533 = vmul.f32 %v5327, %v5527
        %v5534 = vmul.f32 %v5328, %v5527
        %v5535 = vmul.f32 %v5329, %v5527
        %v5536 = vmul.f32 %v5330, %v5527
        %v5537 = vmul.f32 %v5331, %v5527
        %v5538 = vmul.f32 %v5332, %v5527
        %v5539 = vmul.f32 %v5333, %v5527
        %v5540 = vmul.f32 %v5334, %v5527
        %v5541 = vmul.f32 %v5335, %v5527
        %v5542 = vmul.f32 %v5336, %v5527
        %v5543 = vmul.f32 %v5337, %v5527
        %v5544 = vadd.f32 %v5184, %v5528
        %v5545 = vadd.f32 %v5185, %v5529
        %v5546 = vadd.f32 %v5186, %v5530
        %v5547 = vadd.f32 %v5187, %v5531
        %v5548 = vadd.f32 %v5188, %v5532
        %v5549 = vadd.f32 %v5189, %v5533
        %v5550 = vadd.f32 %v5190, %v5534
        %v5551 = vadd.f32 %v5191, %v5535
        %v5552 = vadd.f32 %v5192, %v5536
        %v5553 = vadd.f32 %v5193, %v5537
        %v5554 = vadd.f32 %v5194, %v5538
        %v5555 = vadd.f32 %v5195, %v5539
        %v5556 = vadd.f32 %v5196, %v5540
        %v5557 = vadd.f32 %v5197, %v5541
        %v5558 = vadd.f32 %v5198, %v5542
        %v5559 = vadd.f32 %v5199, %v5543
        %v5560 = vld [vmem:[#allocation8 + $0x69] sm:$0x1]
        %v5561 = vlaneseq
        %v5562 = vshrl.u32 %v5561, 7
        %v5563 = vsub.s32 0, %v5562
        %v5564 = vrot.slane %v5560, %v5563
        %v5565 = vmul.f32 %v5322, %v5564
        %v5566 = vmul.f32 %v5323, %v5564
        %v5567 = vmul.f32 %v5324, %v5564
        %v5568 = vmul.f32 %v5325, %v5564
        %v5569 = vmul.f32 %v5326, %v5564
        %v5570 = vmul.f32 %v5327, %v5564
        %v5571 = vmul.f32 %v5328, %v5564
        %v5572 = vmul.f32 %v5329, %v5564
        %v5573 = vmul.f32 %v5330, %v5564
        %v5574 = vmul.f32 %v5331, %v5564
        %v5575 = vmul.f32 %v5332, %v5564
        %v5576 = vmul.f32 %v5333, %v5564
        %v5577 = vmul.f32 %v5334, %v5564
        %v5578 = vmul.f32 %v5335, %v5564
        %v5579 = vmul.f32 %v5336, %v5564
        %v5580 = vmul.f32 %v5337, %v5564
        %v5581 = vadd.f32 %v5221, %v5565
        %v5582 = vadd.f32 %v5222, %v5566
        %v5583 = vadd.f32 %v5223, %v5567
        %v5584 = vadd.f32 %v5224, %v5568
        %v5585 = vadd.f32 %v5225, %v5569
        %v5586 = vadd.f32 %v5226, %v5570
        %v5587 = vadd.f32 %v5227, %v5571
        %v5588 = vadd.f32 %v5228, %v5572
        %v5589 = vadd.f32 %v5229, %v5573
        %v5590 = vadd.f32 %v5230, %v5574
        %v5591 = vadd.f32 %v5231, %v5575
        %v5592 = vadd.f32 %v5232, %v5576
        %v5593 = vadd.f32 %v5233, %v5577
        %v5594 = vadd.f32 %v5234, %v5578
        %v5595 = vadd.f32 %v5235, %v5579
        %v5596 = vadd.f32 %v5236, %v5580
        %v5597 = vld [vmem:[#allocation8 + $0x79] sm:$0x1]
        %v5598 = vlaneseq
        %v5599 = vshrl.u32 %v5598, 7
        %v5600 = vsub.s32 0, %v5599
        %v5601 = vrot.slane %v5597, %v5600
        %v5602 = vmul.f32 %v5322, %v5601
        %v5603 = vmul.f32 %v5323, %v5601
        %v5604 = vmul.f32 %v5324, %v5601
        %v5605 = vmul.f32 %v5325, %v5601
        %v5606 = vmul.f32 %v5326, %v5601
        %v5607 = vmul.f32 %v5327, %v5601
        %v5608 = vmul.f32 %v5328, %v5601
        %v5609 = vmul.f32 %v5329, %v5601
        %v5610 = vmul.f32 %v5330, %v5601
        %v5611 = vmul.f32 %v5331, %v5601
        %v5612 = vmul.f32 %v5332, %v5601
        %v5613 = vmul.f32 %v5333, %v5601
        %v5614 = vmul.f32 %v5334, %v5601
        %v5615 = vmul.f32 %v5335, %v5601
        %v5616 = vmul.f32 %v5336, %v5601
        %v5617 = vmul.f32 %v5337, %v5601
        %v5618 = vadd.f32 %v5258, %v5602
        %v5619 = vadd.f32 %v5259, %v5603
        %v5620 = vadd.f32 %v5260, %v5604
        %v5621 = vadd.f32 %v5261, %v5605
        %v5622 = vadd.f32 %v5262, %v5606
        %v5623 = vadd.f32 %v5263, %v5607
        %v5624 = vadd.f32 %v5264, %v5608
        %v5625 = vadd.f32 %v5265, %v5609
        %v5626 = vadd.f32 %v5266, %v5610
        %v5627 = vadd.f32 %v5267, %v5611
        %v5628 = vadd.f32 %v5268, %v5612
        %v5629 = vadd.f32 %v5269, %v5613
        %v5630 = vadd.f32 %v5270, %v5614
        %v5631 = vadd.f32 %v5271, %v5615
        %v5632 = vadd.f32 %v5272, %v5616
        %v5633 = vadd.f32 %v5273, %v5617
        %v5634 = vmul.f32 %v1858, 0.5
        %v5635 = vmul.f32 %v1862, 0.5
        %v5636 = vmul.f32 %v1868, 0.5
        %v5637 = vmul.f32 %v1872, 0.5
        %v5638 = vmul.f32 %v1878, 0.5
        %v5639 = vmul.f32 %v1882, 0.5
        %v5640 = vmul.f32 %v1888, 0.5
        %v5641 = vmul.f32 %v1892, 0.5
        %v5642 = vmul.f32 %v1898, 0.5
        %v5643 = vmul.f32 %v1902, 0.5
        %v5644 = vmul.f32 %v1908, 0.5
        %v5645 = vmul.f32 %v1912, 0.5
        %v5646 = vmul.f32 %v1918, 0.5
        %v5647 = vmul.f32 %v1922, 0.5
        %v5648 = vmul.f32 %v1928, 0.5
        %v5649 = vmul.f32 %v1932, 0.5
        %v5650 = vtanh.pop %v5634
        %v5651 = vtanh.pop %v5635
        %v5652 = vtanh.pop %v5636
        %v5653 = vtanh.pop %v5637
        %v5654 = vtanh.pop %v5638
        %v5655 = vtanh.pop %v5639
        %v5656 = vtanh.pop %v5640
        %v5657 = vtanh.pop %v5641
        %v5658 = vtanh.pop %v5642
        %v5659 = vtanh.pop %v5643
        %v5660 = vtanh.pop %v5644
        %v5661 = vtanh.pop %v5645
        %v5662 = vtanh.pop %v5646
        %v5663 = vtanh.pop %v5647
        %v5664 = vtanh.pop %v5648
        %v5665 = vtanh.pop %v5649
        %v5666 = vmul.f32 %v5650, 0.5
        %v5667 = vmul.f32 %v5651, 0.5
        %v5668 = vmul.f32 %v5652, 0.5
        %v5669 = vmul.f32 %v5653, 0.5
        %v5670 = vmul.f32 %v5654, 0.5
        %v5671 = vmul.f32 %v5655, 0.5
        %v5672 = vmul.f32 %v5656, 0.5
        %v5673 = vmul.f32 %v5657, 0.5
        %v5674 = vmul.f32 %v5658, 0.5
        %v5675 = vmul.f32 %v5659, 0.5
        %v5676 = vmul.f32 %v5660, 0.5
        %v5677 = vmul.f32 %v5661, 0.5
        %v5678 = vmul.f32 %v5662, 0.5
        %v5679 = vmul.f32 %v5663, 0.5
        %v5680 = vmul.f32 %v5664, 0.5
        %v5681 = vmul.f32 %v5665, 0.5
        %v5682 = vadd.f32 %v5666, 0.5
        %v5683 = vadd.f32 %v5667, 0.5
        %v5684 = vadd.f32 %v5668, 0.5
        %v5685 = vadd.f32 %v5669, 0.5
        %v5686 = vadd.f32 %v5670, 0.5
        %v5687 = vadd.f32 %v5671, 0.5
        %v5688 = vadd.f32 %v5672, 0.5
        %v5689 = vadd.f32 %v5673, 0.5
        %v5690 = vadd.f32 %v5674, 0.5
        %v5691 = vadd.f32 %v5675, 0.5
        %v5692 = vadd.f32 %v5676, 0.5
        %v5693 = vadd.f32 %v5677, 0.5
        %v5694 = vadd.f32 %v5678, 0.5
        %v5695 = vadd.f32 %v5679, 0.5
        %v5696 = vadd.f32 %v5680, 0.5
        %v5697 = vadd.f32 %v5681, 0.5
        %v5698 = vld [vmem:[#allocation8 + $0xa] sm:$0x1]
        %v5699 = vlaneseq
        %v5700 = vshrl.u32 %v5699, 7
        %v5701 = vsub.s32 0, %v5700
        %v5702 = vrot.slane %v5698, %v5701
        %v5703 = vmul.f32 %v5682, %v5702
        %v5704 = vmul.f32 %v5683, %v5702
        %v5705 = vmul.f32 %v5684, %v5702
        %v5706 = vmul.f32 %v5685, %v5702
        %v5707 = vmul.f32 %v5686, %v5702
        %v5708 = vmul.f32 %v5687, %v5702
        %v5709 = vmul.f32 %v5688, %v5702
        %v5710 = vmul.f32 %v5689, %v5702
        %v5711 = vmul.f32 %v5690, %v5702
        %v5712 = vmul.f32 %v5691, %v5702
        %v5713 = vmul.f32 %v5692, %v5702
        %v5714 = vmul.f32 %v5693, %v5702
        %v5715 = vmul.f32 %v5694, %v5702
        %v5716 = vmul.f32 %v5695, %v5702
        %v5717 = vmul.f32 %v5696, %v5702
        %v5718 = vmul.f32 %v5697, %v5702
        %v5719 = vadd.f32 %v5359, %v5703
        %v5720 = vadd.f32 %v5360, %v5704
        %v5721 = vadd.f32 %v5361, %v5705
        %v5722 = vadd.f32 %v5362, %v5706
        %v5723 = vadd.f32 %v5363, %v5707
        %v5724 = vadd.f32 %v5364, %v5708
        %v5725 = vadd.f32 %v5365, %v5709
        %v5726 = vadd.f32 %v5366, %v5710
        %v5727 = vadd.f32 %v5367, %v5711
        %v5728 = vadd.f32 %v5368, %v5712
        %v5729 = vadd.f32 %v5369, %v5713
        %v5730 = vadd.f32 %v5370, %v5714
        %v5731 = vadd.f32 %v5371, %v5715
        %v5732 = vadd.f32 %v5372, %v5716
        %v5733 = vadd.f32 %v5373, %v5717
        %v5734 = vadd.f32 %v5374, %v5718
        %v5735 = vld [vmem:[#allocation8 + $0x1a] sm:$0x1]
        %v5736 = vlaneseq
        %v5737 = vshrl.u32 %v5736, 7
        %v5738 = vsub.s32 0, %v5737
        %v5739 = vrot.slane %v5735, %v5738
        %v5740 = vmul.f32 %v5682, %v5739
        %v5741 = vmul.f32 %v5683, %v5739
        %v5742 = vmul.f32 %v5684, %v5739
        %v5743 = vmul.f32 %v5685, %v5739
        %v5744 = vmul.f32 %v5686, %v5739
        %v5745 = vmul.f32 %v5687, %v5739
        %v5746 = vmul.f32 %v5688, %v5739
        %v5747 = vmul.f32 %v5689, %v5739
        %v5748 = vmul.f32 %v5690, %v5739
        %v5749 = vmul.f32 %v5691, %v5739
        %v5750 = vmul.f32 %v5692, %v5739
        %v5751 = vmul.f32 %v5693, %v5739
        %v5752 = vmul.f32 %v5694, %v5739
        %v5753 = vmul.f32 %v5695, %v5739
        %v5754 = vmul.f32 %v5696, %v5739
        %v5755 = vmul.f32 %v5697, %v5739
        %v5756 = vadd.f32 %v5396, %v5740
        %v5757 = vadd.f32 %v5397, %v5741
        %v5758 = vadd.f32 %v5398, %v5742
        %v5759 = vadd.f32 %v5399, %v5743
        %v5760 = vadd.f32 %v5400, %v5744
        %v5761 = vadd.f32 %v5401, %v5745
        %v5762 = vadd.f32 %v5402, %v5746
        %v5763 = vadd.f32 %v5403, %v5747
        %v5764 = vadd.f32 %v5404, %v5748
        %v5765 = vadd.f32 %v5405, %v5749
        %v5766 = vadd.f32 %v5406, %v5750
        %v5767 = vadd.f32 %v5407, %v5751
        %v5768 = vadd.f32 %v5408, %v5752
        %v5769 = vadd.f32 %v5409, %v5753
        %v5770 = vadd.f32 %v5410, %v5754
        %v5771 = vadd.f32 %v5411, %v5755
        %v5772 = vld [vmem:[#allocation8 + $0x2a] sm:$0x1]
        %v5773 = vlaneseq
        %v5774 = vshrl.u32 %v5773, 7
        %v5775 = vsub.s32 0, %v5774
        %v5776 = vrot.slane %v5772, %v5775
        %v5777 = vmul.f32 %v5682, %v5776
        %v5778 = vmul.f32 %v5683, %v5776
        %v5779 = vmul.f32 %v5684, %v5776
        %v5780 = vmul.f32 %v5685, %v5776
        %v5781 = vmul.f32 %v5686, %v5776
        %v5782 = vmul.f32 %v5687, %v5776
        %v5783 = vmul.f32 %v5688, %v5776
        %v5784 = vmul.f32 %v5689, %v5776
        %v5785 = vmul.f32 %v5690, %v5776
        %v5786 = vmul.f32 %v5691, %v5776
        %v5787 = vmul.f32 %v5692, %v5776
        %v5788 = vmul.f32 %v5693, %v5776
        %v5789 = vmul.f32 %v5694, %v5776
        %v5790 = vmul.f32 %v5695, %v5776
        %v5791 = vmul.f32 %v5696, %v5776
        %v5792 = vmul.f32 %v5697, %v5776
        %v5793 = vadd.f32 %v5433, %v5777
        %v5794 = vadd.f32 %v5434, %v5778
        %v5795 = vadd.f32 %v5435, %v5779
        %v5796 = vadd.f32 %v5436, %v5780
        %v5797 = vadd.f32 %v5437, %v5781
        %v5798 = vadd.f32 %v5438, %v5782
        %v5799 = vadd.f32 %v5439, %v5783
        %v5800 = vadd.f32 %v5440, %v5784
        %v5801 = vadd.f32 %v5441, %v5785
        %v5802 = vadd.f32 %v5442, %v5786
        %v5803 = vadd.f32 %v5443, %v5787
        %v5804 = vadd.f32 %v5444, %v5788
        %v5805 = vadd.f32 %v5445, %v5789
        %v5806 = vadd.f32 %v5446, %v5790
        %v5807 = vadd.f32 %v5447, %v5791
        %v5808 = vadd.f32 %v5448, %v5792
        %v5809 = vld [vmem:[#allocation8 + $0x3a] sm:$0x1]
        %v5810 = vlaneseq
        %v5811 = vshrl.u32 %v5810, 7
        %v5812 = vsub.s32 0, %v5811
        %v5813 = vrot.slane %v5809, %v5812
        %v5814 = vmul.f32 %v5682, %v5813
        %v5815 = vmul.f32 %v5683, %v5813
        %v5816 = vmul.f32 %v5684, %v5813
        %v5817 = vmul.f32 %v5685, %v5813
        %v5818 = vmul.f32 %v5686, %v5813
        %v5819 = vmul.f32 %v5687, %v5813
        %v5820 = vmul.f32 %v5688, %v5813
        %v5821 = vmul.f32 %v5689, %v5813
        %v5822 = vmul.f32 %v5690, %v5813
        %v5823 = vmul.f32 %v5691, %v5813
        %v5824 = vmul.f32 %v5692, %v5813
        %v5825 = vmul.f32 %v5693, %v5813
        %v5826 = vmul.f32 %v5694, %v5813
        %v5827 = vmul.f32 %v5695, %v5813
        %v5828 = vmul.f32 %v5696, %v5813
        %v5829 = vmul.f32 %v5697, %v5813
        %v5830 = vadd.f32 %v5470, %v5814
        %v5831 = vadd.f32 %v5471, %v5815
        %v5832 = vadd.f32 %v5472, %v5816
        %v5833 = vadd.f32 %v5473, %v5817
        %v5834 = vadd.f32 %v5474, %v5818
        %v5835 = vadd.f32 %v5475, %v5819
        %v5836 = vadd.f32 %v5476, %v5820
        %v5837 = vadd.f32 %v5477, %v5821
        %v5838 = vadd.f32 %v5478, %v5822
        %v5839 = vadd.f32 %v5479, %v5823
        %v5840 = vadd.f32 %v5480, %v5824
        %v5841 = vadd.f32 %v5481, %v5825
        %v5842 = vadd.f32 %v5482, %v5826
        %v5843 = vadd.f32 %v5483, %v5827
        %v5844 = vadd.f32 %v5484, %v5828
        %v5845 = vadd.f32 %v5485, %v5829
        %v5846 = vld [vmem:[#allocation8 + $0x4a] sm:$0x1]
        %v5847 = vlaneseq
        %v5848 = vshrl.u32 %v5847, 7
        %v5849 = vsub.s32 0, %v5848
        %v5850 = vrot.slane %v5846, %v5849
        %v5851 = vmul.f32 %v5682, %v5850
        %v5852 = vmul.f32 %v5683, %v5850
        %v5853 = vmul.f32 %v5684, %v5850
        %v5854 = vmul.f32 %v5685, %v5850
        %v5855 = vmul.f32 %v5686, %v5850
        %v5856 = vmul.f32 %v5687, %v5850
        %v5857 = vmul.f32 %v5688, %v5850
        %v5858 = vmul.f32 %v5689, %v5850
        %v5859 = vmul.f32 %v5690, %v5850
        %v5860 = vmul.f32 %v5691, %v5850
        %v5861 = vmul.f32 %v5692, %v5850
        %v5862 = vmul.f32 %v5693, %v5850
        %v5863 = vmul.f32 %v5694, %v5850
        %v5864 = vmul.f32 %v5695, %v5850
        %v5865 = vmul.f32 %v5696, %v5850
        %v5866 = vmul.f32 %v5697, %v5850
        %v5867 = vadd.f32 %v5507, %v5851
        %v5868 = vadd.f32 %v5508, %v5852
        %v5869 = vadd.f32 %v5509, %v5853
        %v5870 = vadd.f32 %v5510, %v5854
        %v5871 = vadd.f32 %v5511, %v5855
        %v5872 = vadd.f32 %v5512, %v5856
        %v5873 = vadd.f32 %v5513, %v5857
        %v5874 = vadd.f32 %v5514, %v5858
        %v5875 = vadd.f32 %v5515, %v5859
        %v5876 = vadd.f32 %v5516, %v5860
        %v5877 = vadd.f32 %v5517, %v5861
        %v5878 = vadd.f32 %v5518, %v5862
        %v5879 = vadd.f32 %v5519, %v5863
        %v5880 = vadd.f32 %v5520, %v5864
        %v5881 = vadd.f32 %v5521, %v5865
        %v5882 = vadd.f32 %v5522, %v5866
        %v5883 = vld [vmem:[#allocation8 + $0x5a] sm:$0x1]
        %v5884 = vlaneseq
        %v5885 = vshrl.u32 %v5884, 7
        %v5886 = vsub.s32 0, %v5885
        %v5887 = vrot.slane %v5883, %v5886
        %v5888 = vmul.f32 %v5682, %v5887
        %v5889 = vmul.f32 %v5683, %v5887
        %v5890 = vmul.f32 %v5684, %v5887
        %v5891 = vmul.f32 %v5685, %v5887
        %v5892 = vmul.f32 %v5686, %v5887
        %v5893 = vmul.f32 %v5687, %v5887
        %v5894 = vmul.f32 %v5688, %v5887
        %v5895 = vmul.f32 %v5689, %v5887
        %v5896 = vmul.f32 %v5690, %v5887
        %v5897 = vmul.f32 %v5691, %v5887
        %v5898 = vmul.f32 %v5692, %v5887
        %v5899 = vmul.f32 %v5693, %v5887
        %v5900 = vmul.f32 %v5694, %v5887
        %v5901 = vmul.f32 %v5695, %v5887
        %v5902 = vmul.f32 %v5696, %v5887
        %v5903 = vmul.f32 %v5697, %v5887
        %v5904 = vadd.f32 %v5544, %v5888
        %v5905 = vadd.f32 %v5545, %v5889
        %v5906 = vadd.f32 %v5546, %v5890
        %v5907 = vadd.f32 %v5547, %v5891
        %v5908 = vadd.f32 %v5548, %v5892
        %v5909 = vadd.f32 %v5549, %v5893
        %v5910 = vadd.f32 %v5550, %v5894
        %v5911 = vadd.f32 %v5551, %v5895
        %v5912 = vadd.f32 %v5552, %v5896
        %v5913 = vadd.f32 %v5553, %v5897
        %v5914 = vadd.f32 %v5554, %v5898
        %v5915 = vadd.f32 %v5555, %v5899
        %v5916 = vadd.f32 %v5556, %v5900
        %v5917 = vadd.f32 %v5557, %v5901
        %v5918 = vadd.f32 %v5558, %v5902
        %v5919 = vadd.f32 %v5559, %v5903
        %v5920 = vld [vmem:[#allocation8 + $0x6a] sm:$0x1]
        %v5921 = vlaneseq
        %v5922 = vshrl.u32 %v5921, 7
        %v5923 = vsub.s32 0, %v5922
        %v5924 = vrot.slane %v5920, %v5923
        %v5925 = vmul.f32 %v5682, %v5924
        %v5926 = vmul.f32 %v5683, %v5924
        %v5927 = vmul.f32 %v5684, %v5924
        %v5928 = vmul.f32 %v5685, %v5924
        %v5929 = vmul.f32 %v5686, %v5924
        %v5930 = vmul.f32 %v5687, %v5924
        %v5931 = vmul.f32 %v5688, %v5924
        %v5932 = vmul.f32 %v5689, %v5924
        %v5933 = vmul.f32 %v5690, %v5924
        %v5934 = vmul.f32 %v5691, %v5924
        %v5935 = vmul.f32 %v5692, %v5924
        %v5936 = vmul.f32 %v5693, %v5924
        %v5937 = vmul.f32 %v5694, %v5924
        %v5938 = vmul.f32 %v5695, %v5924
        %v5939 = vmul.f32 %v5696, %v5924
        %v5940 = vmul.f32 %v5697, %v5924
        %v5941 = vadd.f32 %v5581, %v5925
        %v5942 = vadd.f32 %v5582, %v5926
        %v5943 = vadd.f32 %v5583, %v5927
        %v5944 = vadd.f32 %v5584, %v5928
        %v5945 = vadd.f32 %v5585, %v5929
        %v5946 = vadd.f32 %v5586, %v5930
        %v5947 = vadd.f32 %v5587, %v5931
        %v5948 = vadd.f32 %v5588, %v5932
        %v5949 = vadd.f32 %v5589, %v5933
        %v5950 = vadd.f32 %v5590, %v5934
        %v5951 = vadd.f32 %v5591, %v5935
        %v5952 = vadd.f32 %v5592, %v5936
        %v5953 = vadd.f32 %v5593, %v5937
        %v5954 = vadd.f32 %v5594, %v5938
        %v5955 = vadd.f32 %v5595, %v5939
        %v5956 = vadd.f32 %v5596, %v5940
        %v5957 = vld [vmem:[#allocation8 + $0x7a] sm:$0x1]
        %v5958 = vlaneseq
        %v5959 = vshrl.u32 %v5958, 7
        %v5960 = vsub.s32 0, %v5959
        %v5961 = vrot.slane %v5957, %v5960
        %v5962 = vmul.f32 %v5682, %v5961
        %v5963 = vmul.f32 %v5683, %v5961
        %v5964 = vmul.f32 %v5684, %v5961
        %v5965 = vmul.f32 %v5685, %v5961
        %v5966 = vmul.f32 %v5686, %v5961
        %v5967 = vmul.f32 %v5687, %v5961
        %v5968 = vmul.f32 %v5688, %v5961
        %v5969 = vmul.f32 %v5689, %v5961
        %v5970 = vmul.f32 %v5690, %v5961
        %v5971 = vmul.f32 %v5691, %v5961
        %v5972 = vmul.f32 %v5692, %v5961
        %v5973 = vmul.f32 %v5693, %v5961
        %v5974 = vmul.f32 %v5694, %v5961
        %v5975 = vmul.f32 %v5695, %v5961
        %v5976 = vmul.f32 %v5696, %v5961
        %v5977 = vmul.f32 %v5697, %v5961
        %v5978 = vadd.f32 %v5618, %v5962
        %v5979 = vadd.f32 %v5619, %v5963
        %v5980 = vadd.f32 %v5620, %v5964
        %v5981 = vadd.f32 %v5621, %v5965
        %v5982 = vadd.f32 %v5622, %v5966
        %v5983 = vadd.f32 %v5623, %v5967
        %v5984 = vadd.f32 %v5624, %v5968
        %v5985 = vadd.f32 %v5625, %v5969
        %v5986 = vadd.f32 %v5626, %v5970
        %v5987 = vadd.f32 %v5627, %v5971
        %v5988 = vadd.f32 %v5628, %v5972
        %v5989 = vadd.f32 %v5629, %v5973
        %v5990 = vadd.f32 %v5630, %v5974
        %v5991 = vadd.f32 %v5631, %v5975
        %v5992 = vadd.f32 %v5632, %v5976
        %v5993 = vadd.f32 %v5633, %v5977
        %v5994 = vmul.f32 %v1860, 0.5
        %v5995 = vmul.f32 %v1864, 0.5
        %v5996 = vmul.f32 %v1870, 0.5
        %v5997 = vmul.f32 %v1874, 0.5
        %v5998 = vmul.f32 %v1880, 0.5
        %v5999 = vmul.f32 %v1884, 0.5
        %v6000 = vmul.f32 %v1890, 0.5
        %v6001 = vmul.f32 %v1894, 0.5
        %v6002 = vmul.f32 %v1900, 0.5
        %v6003 = vmul.f32 %v1904, 0.5
        %v6004 = vmul.f32 %v1910, 0.5
        %v6005 = vmul.f32 %v1914, 0.5
        %v6006 = vmul.f32 %v1920, 0.5
        %v6007 = vmul.f32 %v1924, 0.5
        %v6008 = vmul.f32 %v1930, 0.5
        %v6009 = vmul.f32 %v1934, 0.5
        %v6010 = vtanh.pop %v5994
        %v6011 = vtanh.pop %v5995
        %v6012 = vtanh.pop %v5996
        %v6013 = vtanh.pop %v5997
        %v6014 = vtanh.pop %v5998
        %v6015 = vtanh.pop %v5999
        %v6016 = vtanh.pop %v6000
        %v6017 = vtanh.pop %v6001
        %v6018 = vtanh.pop %v6002
        %v6019 = vtanh.pop %v6003
        %v6020 = vtanh.pop %v6004
        %v6021 = vtanh.pop %v6005
        %v6022 = vtanh.pop %v6006
        %v6023 = vtanh.pop %v6007
        %v6024 = vtanh.pop %v6008
        %v6025 = vtanh.pop %v6009
        %v6026 = vmul.f32 %v6010, 0.5
        %v6027 = vmul.f32 %v6011, 0.5
        %v6028 = vmul.f32 %v6012, 0.5
        %v6029 = vmul.f32 %v6013, 0.5
        %v6030 = vmul.f32 %v6014, 0.5
        %v6031 = vmul.f32 %v6015, 0.5
        %v6032 = vmul.f32 %v6016, 0.5
        %v6033 = vmul.f32 %v6017, 0.5
        %v6034 = vmul.f32 %v6018, 0.5
        %v6035 = vmul.f32 %v6019, 0.5
        %v6036 = vmul.f32 %v6020, 0.5
        %v6037 = vmul.f32 %v6021, 0.5
        %v6038 = vmul.f32 %v6022, 0.5
        %v6039 = vmul.f32 %v6023, 0.5
        %v6040 = vmul.f32 %v6024, 0.5
        %v6041 = vmul.f32 %v6025, 0.5
        %v6042 = vadd.f32 %v6026, 0.5
        %v6043 = vadd.f32 %v6027, 0.5
        %v6044 = vadd.f32 %v6028, 0.5
        %v6045 = vadd.f32 %v6029, 0.5
        %v6046 = vadd.f32 %v6030, 0.5
        %v6047 = vadd.f32 %v6031, 0.5
        %v6048 = vadd.f32 %v6032, 0.5
        %v6049 = vadd.f32 %v6033, 0.5
        %v6050 = vadd.f32 %v6034, 0.5
        %v6051 = vadd.f32 %v6035, 0.5
        %v6052 = vadd.f32 %v6036, 0.5
        %v6053 = vadd.f32 %v6037, 0.5
        %v6054 = vadd.f32 %v6038, 0.5
        %v6055 = vadd.f32 %v6039, 0.5
        %v6056 = vadd.f32 %v6040, 0.5
        %v6057 = vadd.f32 %v6041, 0.5
        %v6058 = vld [vmem:[#allocation8 + $0xb] sm:$0x1]
        %v6059 = vlaneseq
        %v6060 = vshrl.u32 %v6059, 7
        %v6061 = vsub.s32 0, %v6060
        %v6062 = vrot.slane %v6058, %v6061
        %v6063 = vmul.f32 %v6042, %v6062
        %v6064 = vmul.f32 %v6043, %v6062
        %v6065 = vmul.f32 %v6044, %v6062
        %v6066 = vmul.f32 %v6045, %v6062
        %v6067 = vmul.f32 %v6046, %v6062
        %v6068 = vmul.f32 %v6047, %v6062
        %v6069 = vmul.f32 %v6048, %v6062
        %v6070 = vmul.f32 %v6049, %v6062
        %v6071 = vmul.f32 %v6050, %v6062
        %v6072 = vmul.f32 %v6051, %v6062
        %v6073 = vmul.f32 %v6052, %v6062
        %v6074 = vmul.f32 %v6053, %v6062
        %v6075 = vmul.f32 %v6054, %v6062
        %v6076 = vmul.f32 %v6055, %v6062
        %v6077 = vmul.f32 %v6056, %v6062
        %v6078 = vmul.f32 %v6057, %v6062
        %v6079 = vadd.f32 %v5719, %v6063
        %v6080 = vadd.f32 %v5720, %v6064
        %v6081 = vadd.f32 %v5721, %v6065
        %v6082 = vadd.f32 %v5722, %v6066
        %v6083 = vadd.f32 %v5723, %v6067
        %v6084 = vadd.f32 %v5724, %v6068
        %v6085 = vadd.f32 %v5725, %v6069
        %v6086 = vadd.f32 %v5726, %v6070
        %v6087 = vadd.f32 %v5727, %v6071
        %v6088 = vadd.f32 %v5728, %v6072
        %v6089 = vadd.f32 %v5729, %v6073
        %v6090 = vadd.f32 %v5730, %v6074
        %v6091 = vadd.f32 %v5731, %v6075
        %v6092 = vadd.f32 %v5732, %v6076
        %v6093 = vadd.f32 %v5733, %v6077
        %v6094 = vadd.f32 %v5734, %v6078
        %v6095 = vld [vmem:[#allocation8 + $0x1b] sm:$0x1]
        %v6096 = vlaneseq
        %v6097 = vshrl.u32 %v6096, 7
        %v6098 = vsub.s32 0, %v6097
        %v6099 = vrot.slane %v6095, %v6098
        %v6100 = vmul.f32 %v6042, %v6099
        %v6101 = vmul.f32 %v6043, %v6099
        %v6102 = vmul.f32 %v6044, %v6099
        %v6103 = vmul.f32 %v6045, %v6099
        %v6104 = vmul.f32 %v6046, %v6099
        %v6105 = vmul.f32 %v6047, %v6099
        %v6106 = vmul.f32 %v6048, %v6099
        %v6107 = vmul.f32 %v6049, %v6099
        %v6108 = vmul.f32 %v6050, %v6099
        %v6109 = vmul.f32 %v6051, %v6099
        %v6110 = vmul.f32 %v6052, %v6099
        %v6111 = vmul.f32 %v6053, %v6099
        %v6112 = vmul.f32 %v6054, %v6099
        %v6113 = vmul.f32 %v6055, %v6099
        %v6114 = vmul.f32 %v6056, %v6099
        %v6115 = vmul.f32 %v6057, %v6099
        %v6116 = vadd.f32 %v5756, %v6100
        %v6117 = vadd.f32 %v5757, %v6101
        %v6118 = vadd.f32 %v5758, %v6102
        %v6119 = vadd.f32 %v5759, %v6103
        %v6120 = vadd.f32 %v5760, %v6104
        %v6121 = vadd.f32 %v5761, %v6105
        %v6122 = vadd.f32 %v5762, %v6106
        %v6123 = vadd.f32 %v5763, %v6107
        %v6124 = vadd.f32 %v5764, %v6108
        %v6125 = vadd.f32 %v5765, %v6109
        %v6126 = vadd.f32 %v5766, %v6110
        %v6127 = vadd.f32 %v5767, %v6111
        %v6128 = vadd.f32 %v5768, %v6112
        %v6129 = vadd.f32 %v5769, %v6113
        %v6130 = vadd.f32 %v5770, %v6114
        %v6131 = vadd.f32 %v5771, %v6115
        %v6132 = vld [vmem:[#allocation8 + $0x2b] sm:$0x1]
        %v6133 = vlaneseq
        %v6134 = vshrl.u32 %v6133, 7
        %v6135 = vsub.s32 0, %v6134
        %v6136 = vrot.slane %v6132, %v6135
        %v6137 = vmul.f32 %v6042, %v6136
        %v6138 = vmul.f32 %v6043, %v6136
        %v6139 = vmul.f32 %v6044, %v6136
        %v6140 = vmul.f32 %v6045, %v6136
        %v6141 = vmul.f32 %v6046, %v6136
        %v6142 = vmul.f32 %v6047, %v6136
        %v6143 = vmul.f32 %v6048, %v6136
        %v6144 = vmul.f32 %v6049, %v6136
        %v6145 = vmul.f32 %v6050, %v6136
        %v6146 = vmul.f32 %v6051, %v6136
        %v6147 = vmul.f32 %v6052, %v6136
        %v6148 = vmul.f32 %v6053, %v6136
        %v6149 = vmul.f32 %v6054, %v6136
        %v6150 = vmul.f32 %v6055, %v6136
        %v6151 = vmul.f32 %v6056, %v6136
        %v6152 = vmul.f32 %v6057, %v6136
        %v6153 = vadd.f32 %v5793, %v6137
        %v6154 = vadd.f32 %v5794, %v6138
        %v6155 = vadd.f32 %v5795, %v6139
        %v6156 = vadd.f32 %v5796, %v6140
        %v6157 = vadd.f32 %v5797, %v6141
        %v6158 = vadd.f32 %v5798, %v6142
        %v6159 = vadd.f32 %v5799, %v6143
        %v6160 = vadd.f32 %v5800, %v6144
        %v6161 = vadd.f32 %v5801, %v6145
        %v6162 = vadd.f32 %v5802, %v6146
        %v6163 = vadd.f32 %v5803, %v6147
        %v6164 = vadd.f32 %v5804, %v6148
        %v6165 = vadd.f32 %v5805, %v6149
        %v6166 = vadd.f32 %v5806, %v6150
        %v6167 = vadd.f32 %v5807, %v6151
        %v6168 = vadd.f32 %v5808, %v6152
        %v6169 = vld [vmem:[#allocation8 + $0x3b] sm:$0x1]
        %v6170 = vlaneseq
        %v6171 = vshrl.u32 %v6170, 7
        %v6172 = vsub.s32 0, %v6171
        %v6173 = vrot.slane %v6169, %v6172
        %v6174 = vmul.f32 %v6042, %v6173
        %v6175 = vmul.f32 %v6043, %v6173
        %v6176 = vmul.f32 %v6044, %v6173
        %v6177 = vmul.f32 %v6045, %v6173
        %v6178 = vmul.f32 %v6046, %v6173
        %v6179 = vmul.f32 %v6047, %v6173
        %v6180 = vmul.f32 %v6048, %v6173
        %v6181 = vmul.f32 %v6049, %v6173
        %v6182 = vmul.f32 %v6050, %v6173
        %v6183 = vmul.f32 %v6051, %v6173
        %v6184 = vmul.f32 %v6052, %v6173
        %v6185 = vmul.f32 %v6053, %v6173
        %v6186 = vmul.f32 %v6054, %v6173
        %v6187 = vmul.f32 %v6055, %v6173
        %v6188 = vmul.f32 %v6056, %v6173
        %v6189 = vmul.f32 %v6057, %v6173
        %v6190 = vadd.f32 %v5830, %v6174
        %v6191 = vadd.f32 %v5831, %v6175
        %v6192 = vadd.f32 %v5832, %v6176
        %v6193 = vadd.f32 %v5833, %v6177
        %v6194 = vadd.f32 %v5834, %v6178
        %v6195 = vadd.f32 %v5835, %v6179
        %v6196 = vadd.f32 %v5836, %v6180
        %v6197 = vadd.f32 %v5837, %v6181
        %v6198 = vadd.f32 %v5838, %v6182
        %v6199 = vadd.f32 %v5839, %v6183
        %v6200 = vadd.f32 %v5840, %v6184
        %v6201 = vadd.f32 %v5841, %v6185
        %v6202 = vadd.f32 %v5842, %v6186
        %v6203 = vadd.f32 %v5843, %v6187
        %v6204 = vadd.f32 %v5844, %v6188
        %v6205 = vadd.f32 %v5845, %v6189
        %v6206 = vld [vmem:[#allocation8 + $0x4b] sm:$0x1]
        %v6207 = vlaneseq
        %v6208 = vshrl.u32 %v6207, 7
        %v6209 = vsub.s32 0, %v6208
        %v6210 = vrot.slane %v6206, %v6209
        %v6211 = vmul.f32 %v6042, %v6210
        %v6212 = vmul.f32 %v6043, %v6210
        %v6213 = vmul.f32 %v6044, %v6210
        %v6214 = vmul.f32 %v6045, %v6210
        %v6215 = vmul.f32 %v6046, %v6210
        %v6216 = vmul.f32 %v6047, %v6210
        %v6217 = vmul.f32 %v6048, %v6210
        %v6218 = vmul.f32 %v6049, %v6210
        %v6219 = vmul.f32 %v6050, %v6210
        %v6220 = vmul.f32 %v6051, %v6210
        %v6221 = vmul.f32 %v6052, %v6210
        %v6222 = vmul.f32 %v6053, %v6210
        %v6223 = vmul.f32 %v6054, %v6210
        %v6224 = vmul.f32 %v6055, %v6210
        %v6225 = vmul.f32 %v6056, %v6210
        %v6226 = vmul.f32 %v6057, %v6210
        %v6227 = vadd.f32 %v5867, %v6211
        %v6228 = vadd.f32 %v5868, %v6212
        %v6229 = vadd.f32 %v5869, %v6213
        %v6230 = vadd.f32 %v5870, %v6214
        %v6231 = vadd.f32 %v5871, %v6215
        %v6232 = vadd.f32 %v5872, %v6216
        %v6233 = vadd.f32 %v5873, %v6217
        %v6234 = vadd.f32 %v5874, %v6218
        %v6235 = vadd.f32 %v5875, %v6219
        %v6236 = vadd.f32 %v5876, %v6220
        %v6237 = vadd.f32 %v5877, %v6221
        %v6238 = vadd.f32 %v5878, %v6222
        %v6239 = vadd.f32 %v5879, %v6223
        %v6240 = vadd.f32 %v5880, %v6224
        %v6241 = vadd.f32 %v5881, %v6225
        %v6242 = vadd.f32 %v5882, %v6226
        %v6243 = vld [vmem:[#allocation8 + $0x5b] sm:$0x1]
        %v6244 = vlaneseq
        %v6245 = vshrl.u32 %v6244, 7
        %v6246 = vsub.s32 0, %v6245
        %v6247 = vrot.slane %v6243, %v6246
        %v6248 = vmul.f32 %v6042, %v6247
        %v6249 = vmul.f32 %v6043, %v6247
        %v6250 = vmul.f32 %v6044, %v6247
        %v6251 = vmul.f32 %v6045, %v6247
        %v6252 = vmul.f32 %v6046, %v6247
        %v6253 = vmul.f32 %v6047, %v6247
        %v6254 = vmul.f32 %v6048, %v6247
        %v6255 = vmul.f32 %v6049, %v6247
        %v6256 = vmul.f32 %v6050, %v6247
        %v6257 = vmul.f32 %v6051, %v6247
        %v6258 = vmul.f32 %v6052, %v6247
        %v6259 = vmul.f32 %v6053, %v6247
        %v6260 = vmul.f32 %v6054, %v6247
        %v6261 = vmul.f32 %v6055, %v6247
        %v6262 = vmul.f32 %v6056, %v6247
        %v6263 = vmul.f32 %v6057, %v6247
        %v6264 = vadd.f32 %v5904, %v6248
        %v6265 = vadd.f32 %v5905, %v6249
        %v6266 = vadd.f32 %v5906, %v6250
        %v6267 = vadd.f32 %v5907, %v6251
        %v6268 = vadd.f32 %v5908, %v6252
        %v6269 = vadd.f32 %v5909, %v6253
        %v6270 = vadd.f32 %v5910, %v6254
        %v6271 = vadd.f32 %v5911, %v6255
        %v6272 = vadd.f32 %v5912, %v6256
        %v6273 = vadd.f32 %v5913, %v6257
        %v6274 = vadd.f32 %v5914, %v6258
        %v6275 = vadd.f32 %v5915, %v6259
        %v6276 = vadd.f32 %v5916, %v6260
        %v6277 = vadd.f32 %v5917, %v6261
        %v6278 = vadd.f32 %v5918, %v6262
        %v6279 = vadd.f32 %v5919, %v6263
        %v6280 = vld [vmem:[#allocation8 + $0x6b] sm:$0x1]
        %v6281 = vlaneseq
        %v6282 = vshrl.u32 %v6281, 7
        %v6283 = vsub.s32 0, %v6282
        %v6284 = vrot.slane %v6280, %v6283
        %v6285 = vmul.f32 %v6042, %v6284
        %v6286 = vmul.f32 %v6043, %v6284
        %v6287 = vmul.f32 %v6044, %v6284
        %v6288 = vmul.f32 %v6045, %v6284
        %v6289 = vmul.f32 %v6046, %v6284
        %v6290 = vmul.f32 %v6047, %v6284
        %v6291 = vmul.f32 %v6048, %v6284
        %v6292 = vmul.f32 %v6049, %v6284
        %v6293 = vmul.f32 %v6050, %v6284
        %v6294 = vmul.f32 %v6051, %v6284
        %v6295 = vmul.f32 %v6052, %v6284
        %v6296 = vmul.f32 %v6053, %v6284
        %v6297 = vmul.f32 %v6054, %v6284
        %v6298 = vmul.f32 %v6055, %v6284
        %v6299 = vmul.f32 %v6056, %v6284
        %v6300 = vmul.f32 %v6057, %v6284
        %v6301 = vadd.f32 %v5941, %v6285
        %v6302 = vadd.f32 %v5942, %v6286
        %v6303 = vadd.f32 %v5943, %v6287
        %v6304 = vadd.f32 %v5944, %v6288
        %v6305 = vadd.f32 %v5945, %v6289
        %v6306 = vadd.f32 %v5946, %v6290
        %v6307 = vadd.f32 %v5947, %v6291
        %v6308 = vadd.f32 %v5948, %v6292
        %v6309 = vadd.f32 %v5949, %v6293
        %v6310 = vadd.f32 %v5950, %v6294
        %v6311 = vadd.f32 %v5951, %v6295
        %v6312 = vadd.f32 %v5952, %v6296
        %v6313 = vadd.f32 %v5953, %v6297
        %v6314 = vadd.f32 %v5954, %v6298
        %v6315 = vadd.f32 %v5955, %v6299
        %v6316 = vadd.f32 %v5956, %v6300
        %v6317 = vld [vmem:[#allocation8 + $0x7b] sm:$0x1]
        %v6318 = vlaneseq
        %v6319 = vshrl.u32 %v6318, 7
        %v6320 = vsub.s32 0, %v6319
        %v6321 = vrot.slane %v6317, %v6320
        %v6322 = vmul.f32 %v6042, %v6321
        %v6323 = vmul.f32 %v6043, %v6321
        %v6324 = vmul.f32 %v6044, %v6321
        %v6325 = vmul.f32 %v6045, %v6321
        %v6326 = vmul.f32 %v6046, %v6321
        %v6327 = vmul.f32 %v6047, %v6321
        %v6328 = vmul.f32 %v6048, %v6321
        %v6329 = vmul.f32 %v6049, %v6321
        %v6330 = vmul.f32 %v6050, %v6321
        %v6331 = vmul.f32 %v6051, %v6321
        %v6332 = vmul.f32 %v6052, %v6321
        %v6333 = vmul.f32 %v6053, %v6321
        %v6334 = vmul.f32 %v6054, %v6321
        %v6335 = vmul.f32 %v6055, %v6321
        %v6336 = vmul.f32 %v6056, %v6321
        %v6337 = vmul.f32 %v6057, %v6321
        %v6338 = vadd.f32 %v5978, %v6322
        %v6339 = vadd.f32 %v5979, %v6323
        %v6340 = vadd.f32 %v5980, %v6324
        %v6341 = vadd.f32 %v5981, %v6325
        %v6342 = vadd.f32 %v5982, %v6326
        %v6343 = vadd.f32 %v5983, %v6327
        %v6344 = vadd.f32 %v5984, %v6328
        %v6345 = vadd.f32 %v5985, %v6329
        %v6346 = vadd.f32 %v5986, %v6330
        %v6347 = vadd.f32 %v5987, %v6331
        %v6348 = vadd.f32 %v5988, %v6332
        %v6349 = vadd.f32 %v5989, %v6333
        %v6350 = vadd.f32 %v5990, %v6334
        %v6351 = vadd.f32 %v5991, %v6335
        %v6352 = vadd.f32 %v5992, %v6336
        %v6353 = vadd.f32 %v5993, %v6337
        %v6354 = vmul.f32 %v1971, 0.5
        %v6355 = vmul.f32 %v1975, 0.5
        %v6356 = vmul.f32 %v1981, 0.5
        %v6357 = vmul.f32 %v1985, 0.5
        %v6358 = vmul.f32 %v1991, 0.5
        %v6359 = vmul.f32 %v1995, 0.5
        %v6360 = vmul.f32 %v2001, 0.5
        %v6361 = vmul.f32 %v2005, 0.5
        %v6362 = vmul.f32 %v2011, 0.5
        %v6363 = vmul.f32 %v2015, 0.5
        %v6364 = vmul.f32 %v2021, 0.5
        %v6365 = vmul.f32 %v2025, 0.5
        %v6366 = vmul.f32 %v2031, 0.5
        %v6367 = vmul.f32 %v2035, 0.5
        %v6368 = vmul.f32 %v2041, 0.5
        %v6369 = vmul.f32 %v2045, 0.5
        %v6370 = vtanh.pop %v6354
        %v6371 = vtanh.pop %v6355
        %v6372 = vtanh.pop %v6356
        %v6373 = vtanh.pop %v6357
        %v6374 = vtanh.pop %v6358
        %v6375 = vtanh.pop %v6359
        %v6376 = vtanh.pop %v6360
        %v6377 = vtanh.pop %v6361
        %v6378 = vtanh.pop %v6362
        %v6379 = vtanh.pop %v6363
        %v6380 = vtanh.pop %v6364
        %v6381 = vtanh.pop %v6365
        %v6382 = vtanh.pop %v6366
        %v6383 = vtanh.pop %v6367
        %v6384 = vtanh.pop %v6368
        %v6385 = vtanh.pop %v6369
        %v6386 = vmul.f32 %v6370, 0.5
        %v6387 = vmul.f32 %v6371, 0.5
        %v6388 = vmul.f32 %v6372, 0.5
        %v6389 = vmul.f32 %v6373, 0.5
        %v6390 = vmul.f32 %v6374, 0.5
        %v6391 = vmul.f32 %v6375, 0.5
        %v6392 = vmul.f32 %v6376, 0.5
        %v6393 = vmul.f32 %v6377, 0.5
        %v6394 = vmul.f32 %v6378, 0.5
        %v6395 = vmul.f32 %v6379, 0.5
        %v6396 = vmul.f32 %v6380, 0.5
        %v6397 = vmul.f32 %v6381, 0.5
        %v6398 = vmul.f32 %v6382, 0.5
        %v6399 = vmul.f32 %v6383, 0.5
        %v6400 = vmul.f32 %v6384, 0.5
        %v6401 = vmul.f32 %v6385, 0.5
        %v6402 = vadd.f32 %v6386, 0.5
        %v6403 = vadd.f32 %v6387, 0.5
        %v6404 = vadd.f32 %v6388, 0.5
        %v6405 = vadd.f32 %v6389, 0.5
        %v6406 = vadd.f32 %v6390, 0.5
        %v6407 = vadd.f32 %v6391, 0.5
        %v6408 = vadd.f32 %v6392, 0.5
        %v6409 = vadd.f32 %v6393, 0.5
        %v6410 = vadd.f32 %v6394, 0.5
        %v6411 = vadd.f32 %v6395, 0.5
        %v6412 = vadd.f32 %v6396, 0.5
        %v6413 = vadd.f32 %v6397, 0.5
        %v6414 = vadd.f32 %v6398, 0.5
        %v6415 = vadd.f32 %v6399, 0.5
        %v6416 = vadd.f32 %v6400, 0.5
        %v6417 = vadd.f32 %v6401, 0.5
        %v6418 = vld [vmem:[#allocation8 + $0xc] sm:$0x1]
        %v6419 = vlaneseq
        %v6420 = vshrl.u32 %v6419, 7
        %v6421 = vsub.s32 0, %v6420
        %v6422 = vrot.slane %v6418, %v6421
        %v6423 = vmul.f32 %v6402, %v6422
        %v6424 = vmul.f32 %v6403, %v6422
        %v6425 = vmul.f32 %v6404, %v6422
        %v6426 = vmul.f32 %v6405, %v6422
        %v6427 = vmul.f32 %v6406, %v6422
        %v6428 = vmul.f32 %v6407, %v6422
        %v6429 = vmul.f32 %v6408, %v6422
        %v6430 = vmul.f32 %v6409, %v6422
        %v6431 = vmul.f32 %v6410, %v6422
        %v6432 = vmul.f32 %v6411, %v6422
        %v6433 = vmul.f32 %v6412, %v6422
        %v6434 = vmul.f32 %v6413, %v6422
        %v6435 = vmul.f32 %v6414, %v6422
        %v6436 = vmul.f32 %v6415, %v6422
        %v6437 = vmul.f32 %v6416, %v6422
        %v6438 = vmul.f32 %v6417, %v6422
        %v6439 = vadd.f32 %v6079, %v6423
        %v6440 = vadd.f32 %v6080, %v6424
        %v6441 = vadd.f32 %v6081, %v6425
        %v6442 = vadd.f32 %v6082, %v6426
        %v6443 = vadd.f32 %v6083, %v6427
        %v6444 = vadd.f32 %v6084, %v6428
        %v6445 = vadd.f32 %v6085, %v6429
        %v6446 = vadd.f32 %v6086, %v6430
        %v6447 = vadd.f32 %v6087, %v6431
        %v6448 = vadd.f32 %v6088, %v6432
        %v6449 = vadd.f32 %v6089, %v6433
        %v6450 = vadd.f32 %v6090, %v6434
        %v6451 = vadd.f32 %v6091, %v6435
        %v6452 = vadd.f32 %v6092, %v6436
        %v6453 = vadd.f32 %v6093, %v6437
        %v6454 = vadd.f32 %v6094, %v6438
        %v6455 = vld [vmem:[#allocation8 + $0x1c] sm:$0x1]
        %v6456 = vlaneseq
        %v6457 = vshrl.u32 %v6456, 7
        %v6458 = vsub.s32 0, %v6457
        %v6459 = vrot.slane %v6455, %v6458
        %v6460 = vmul.f32 %v6402, %v6459
        %v6461 = vmul.f32 %v6403, %v6459
        %v6462 = vmul.f32 %v6404, %v6459
        %v6463 = vmul.f32 %v6405, %v6459
        %v6464 = vmul.f32 %v6406, %v6459
        %v6465 = vmul.f32 %v6407, %v6459
        %v6466 = vmul.f32 %v6408, %v6459
        %v6467 = vmul.f32 %v6409, %v6459
        %v6468 = vmul.f32 %v6410, %v6459
        %v6469 = vmul.f32 %v6411, %v6459
        %v6470 = vmul.f32 %v6412, %v6459
        %v6471 = vmul.f32 %v6413, %v6459
        %v6472 = vmul.f32 %v6414, %v6459
        %v6473 = vmul.f32 %v6415, %v6459
        %v6474 = vmul.f32 %v6416, %v6459
        %v6475 = vmul.f32 %v6417, %v6459
        %v6476 = vadd.f32 %v6116, %v6460
        %v6477 = vadd.f32 %v6117, %v6461
        %v6478 = vadd.f32 %v6118, %v6462
        %v6479 = vadd.f32 %v6119, %v6463
        %v6480 = vadd.f32 %v6120, %v6464
        %v6481 = vadd.f32 %v6121, %v6465
        %v6482 = vadd.f32 %v6122, %v6466
        %v6483 = vadd.f32 %v6123, %v6467
        %v6484 = vadd.f32 %v6124, %v6468
        %v6485 = vadd.f32 %v6125, %v6469
        %v6486 = vadd.f32 %v6126, %v6470
        %v6487 = vadd.f32 %v6127, %v6471
        %v6488 = vadd.f32 %v6128, %v6472
        %v6489 = vadd.f32 %v6129, %v6473
        %v6490 = vadd.f32 %v6130, %v6474
        %v6491 = vadd.f32 %v6131, %v6475
        %v6492 = vld [vmem:[#allocation8 + $0x2c] sm:$0x1]
        %v6493 = vlaneseq
        %v6494 = vshrl.u32 %v6493, 7
        %v6495 = vsub.s32 0, %v6494
        %v6496 = vrot.slane %v6492, %v6495
        %v6497 = vmul.f32 %v6402, %v6496
        %v6498 = vmul.f32 %v6403, %v6496
        %v6499 = vmul.f32 %v6404, %v6496
        %v6500 = vmul.f32 %v6405, %v6496
        %v6501 = vmul.f32 %v6406, %v6496
        %v6502 = vmul.f32 %v6407, %v6496
        %v6503 = vmul.f32 %v6408, %v6496
        %v6504 = vmul.f32 %v6409, %v6496
        %v6505 = vmul.f32 %v6410, %v6496
        %v6506 = vmul.f32 %v6411, %v6496
        %v6507 = vmul.f32 %v6412, %v6496
        %v6508 = vmul.f32 %v6413, %v6496
        %v6509 = vmul.f32 %v6414, %v6496
        %v6510 = vmul.f32 %v6415, %v6496
        %v6511 = vmul.f32 %v6416, %v6496
        %v6512 = vmul.f32 %v6417, %v6496
        %v6513 = vadd.f32 %v6153, %v6497
        %v6514 = vadd.f32 %v6154, %v6498
        %v6515 = vadd.f32 %v6155, %v6499
        %v6516 = vadd.f32 %v6156, %v6500
        %v6517 = vadd.f32 %v6157, %v6501
        %v6518 = vadd.f32 %v6158, %v6502
        %v6519 = vadd.f32 %v6159, %v6503
        %v6520 = vadd.f32 %v6160, %v6504
        %v6521 = vadd.f32 %v6161, %v6505
        %v6522 = vadd.f32 %v6162, %v6506
        %v6523 = vadd.f32 %v6163, %v6507
        %v6524 = vadd.f32 %v6164, %v6508
        %v6525 = vadd.f32 %v6165, %v6509
        %v6526 = vadd.f32 %v6166, %v6510
        %v6527 = vadd.f32 %v6167, %v6511
        %v6528 = vadd.f32 %v6168, %v6512
        %v6529 = vld [vmem:[#allocation8 + $0x3c] sm:$0x1]
        %v6530 = vlaneseq
        %v6531 = vshrl.u32 %v6530, 7
        %v6532 = vsub.s32 0, %v6531
        %v6533 = vrot.slane %v6529, %v6532
        %v6534 = vmul.f32 %v6402, %v6533
        %v6535 = vmul.f32 %v6403, %v6533
        %v6536 = vmul.f32 %v6404, %v6533
        %v6537 = vmul.f32 %v6405, %v6533
        %v6538 = vmul.f32 %v6406, %v6533
        %v6539 = vmul.f32 %v6407, %v6533
        %v6540 = vmul.f32 %v6408, %v6533
        %v6541 = vmul.f32 %v6409, %v6533
        %v6542 = vmul.f32 %v6410, %v6533
        %v6543 = vmul.f32 %v6411, %v6533
        %v6544 = vmul.f32 %v6412, %v6533
        %v6545 = vmul.f32 %v6413, %v6533
        %v6546 = vmul.f32 %v6414, %v6533
        %v6547 = vmul.f32 %v6415, %v6533
        %v6548 = vmul.f32 %v6416, %v6533
        %v6549 = vmul.f32 %v6417, %v6533
        %v6550 = vadd.f32 %v6190, %v6534
        %v6551 = vadd.f32 %v6191, %v6535
        %v6552 = vadd.f32 %v6192, %v6536
        %v6553 = vadd.f32 %v6193, %v6537
        %v6554 = vadd.f32 %v6194, %v6538
        %v6555 = vadd.f32 %v6195, %v6539
        %v6556 = vadd.f32 %v6196, %v6540
        %v6557 = vadd.f32 %v6197, %v6541
        %v6558 = vadd.f32 %v6198, %v6542
        %v6559 = vadd.f32 %v6199, %v6543
        %v6560 = vadd.f32 %v6200, %v6544
        %v6561 = vadd.f32 %v6201, %v6545
        %v6562 = vadd.f32 %v6202, %v6546
        %v6563 = vadd.f32 %v6203, %v6547
        %v6564 = vadd.f32 %v6204, %v6548
        %v6565 = vadd.f32 %v6205, %v6549
        %v6566 = vld [vmem:[#allocation8 + $0x4c] sm:$0x1]
        %v6567 = vlaneseq
        %v6568 = vshrl.u32 %v6567, 7
        %v6569 = vsub.s32 0, %v6568
        %v6570 = vrot.slane %v6566, %v6569
        %v6571 = vmul.f32 %v6402, %v6570
        %v6572 = vmul.f32 %v6403, %v6570
        %v6573 = vmul.f32 %v6404, %v6570
        %v6574 = vmul.f32 %v6405, %v6570
        %v6575 = vmul.f32 %v6406, %v6570
        %v6576 = vmul.f32 %v6407, %v6570
        %v6577 = vmul.f32 %v6408, %v6570
        %v6578 = vmul.f32 %v6409, %v6570
        %v6579 = vmul.f32 %v6410, %v6570
        %v6580 = vmul.f32 %v6411, %v6570
        %v6581 = vmul.f32 %v6412, %v6570
        %v6582 = vmul.f32 %v6413, %v6570
        %v6583 = vmul.f32 %v6414, %v6570
        %v6584 = vmul.f32 %v6415, %v6570
        %v6585 = vmul.f32 %v6416, %v6570
        %v6586 = vmul.f32 %v6417, %v6570
        %v6587 = vadd.f32 %v6227, %v6571
        %v6588 = vadd.f32 %v6228, %v6572
        %v6589 = vadd.f32 %v6229, %v6573
        %v6590 = vadd.f32 %v6230, %v6574
        %v6591 = vadd.f32 %v6231, %v6575
        %v6592 = vadd.f32 %v6232, %v6576
        %v6593 = vadd.f32 %v6233, %v6577
        %v6594 = vadd.f32 %v6234, %v6578
        %v6595 = vadd.f32 %v6235, %v6579
        %v6596 = vadd.f32 %v6236, %v6580
        %v6597 = vadd.f32 %v6237, %v6581
        %v6598 = vadd.f32 %v6238, %v6582
        %v6599 = vadd.f32 %v6239, %v6583
        %v6600 = vadd.f32 %v6240, %v6584
        %v6601 = vadd.f32 %v6241, %v6585
        %v6602 = vadd.f32 %v6242, %v6586
        %v6603 = vld [vmem:[#allocation8 + $0x5c] sm:$0x1]
        %v6604 = vlaneseq
        %v6605 = vshrl.u32 %v6604, 7
        %v6606 = vsub.s32 0, %v6605
        %v6607 = vrot.slane %v6603, %v6606
        %v6608 = vmul.f32 %v6402, %v6607
        %v6609 = vmul.f32 %v6403, %v6607
        %v6610 = vmul.f32 %v6404, %v6607
        %v6611 = vmul.f32 %v6405, %v6607
        %v6612 = vmul.f32 %v6406, %v6607
        %v6613 = vmul.f32 %v6407, %v6607
        %v6614 = vmul.f32 %v6408, %v6607
        %v6615 = vmul.f32 %v6409, %v6607
        %v6616 = vmul.f32 %v6410, %v6607
        %v6617 = vmul.f32 %v6411, %v6607
        %v6618 = vmul.f32 %v6412, %v6607
        %v6619 = vmul.f32 %v6413, %v6607
        %v6620 = vmul.f32 %v6414, %v6607
        %v6621 = vmul.f32 %v6415, %v6607
        %v6622 = vmul.f32 %v6416, %v6607
        %v6623 = vmul.f32 %v6417, %v6607
        %v6624 = vadd.f32 %v6264, %v6608
        %v6625 = vadd.f32 %v6265, %v6609
        %v6626 = vadd.f32 %v6266, %v6610
        %v6627 = vadd.f32 %v6267, %v6611
        %v6628 = vadd.f32 %v6268, %v6612
        %v6629 = vadd.f32 %v6269, %v6613
        %v6630 = vadd.f32 %v6270, %v6614
        %v6631 = vadd.f32 %v6271, %v6615
        %v6632 = vadd.f32 %v6272, %v6616
        %v6633 = vadd.f32 %v6273, %v6617
        %v6634 = vadd.f32 %v6274, %v6618
        %v6635 = vadd.f32 %v6275, %v6619
        %v6636 = vadd.f32 %v6276, %v6620
        %v6637 = vadd.f32 %v6277, %v6621
        %v6638 = vadd.f32 %v6278, %v6622
        %v6639 = vadd.f32 %v6279, %v6623
        %v6640 = vld [vmem:[#allocation8 + $0x6c] sm:$0x1]
        %v6641 = vlaneseq
        %v6642 = vshrl.u32 %v6641, 7
        %v6643 = vsub.s32 0, %v6642
        %v6644 = vrot.slane %v6640, %v6643
        %v6645 = vmul.f32 %v6402, %v6644
        %v6646 = vmul.f32 %v6403, %v6644
        %v6647 = vmul.f32 %v6404, %v6644
        %v6648 = vmul.f32 %v6405, %v6644
        %v6649 = vmul.f32 %v6406, %v6644
        %v6650 = vmul.f32 %v6407, %v6644
        %v6651 = vmul.f32 %v6408, %v6644
        %v6652 = vmul.f32 %v6409, %v6644
        %v6653 = vmul.f32 %v6410, %v6644
        %v6654 = vmul.f32 %v6411, %v6644
        %v6655 = vmul.f32 %v6412, %v6644
        %v6656 = vmul.f32 %v6413, %v6644
        %v6657 = vmul.f32 %v6414, %v6644
        %v6658 = vmul.f32 %v6415, %v6644
        %v6659 = vmul.f32 %v6416, %v6644
        %v6660 = vmul.f32 %v6417, %v6644
        %v6661 = vadd.f32 %v6301, %v6645
        %v6662 = vadd.f32 %v6302, %v6646
        %v6663 = vadd.f32 %v6303, %v6647
        %v6664 = vadd.f32 %v6304, %v6648
        %v6665 = vadd.f32 %v6305, %v6649
        %v6666 = vadd.f32 %v6306, %v6650
        %v6667 = vadd.f32 %v6307, %v6651
        %v6668 = vadd.f32 %v6308, %v6652
        %v6669 = vadd.f32 %v6309, %v6653
        %v6670 = vadd.f32 %v6310, %v6654
        %v6671 = vadd.f32 %v6311, %v6655
        %v6672 = vadd.f32 %v6312, %v6656
        %v6673 = vadd.f32 %v6313, %v6657
        %v6674 = vadd.f32 %v6314, %v6658
        %v6675 = vadd.f32 %v6315, %v6659
        %v6676 = vadd.f32 %v6316, %v6660
        %v6677 = vld [vmem:[#allocation8 + $0x7c] sm:$0x1]
        %v6678 = vlaneseq
        %v6679 = vshrl.u32 %v6678, 7
        %v6680 = vsub.s32 0, %v6679
        %v6681 = vrot.slane %v6677, %v6680
        %v6682 = vmul.f32 %v6402, %v6681
        %v6683 = vmul.f32 %v6403, %v6681
        %v6684 = vmul.f32 %v6404, %v6681
        %v6685 = vmul.f32 %v6405, %v6681
        %v6686 = vmul.f32 %v6406, %v6681
        %v6687 = vmul.f32 %v6407, %v6681
        %v6688 = vmul.f32 %v6408, %v6681
        %v6689 = vmul.f32 %v6409, %v6681
        %v6690 = vmul.f32 %v6410, %v6681
        %v6691 = vmul.f32 %v6411, %v6681
        %v6692 = vmul.f32 %v6412, %v6681
        %v6693 = vmul.f32 %v6413, %v6681
        %v6694 = vmul.f32 %v6414, %v6681
        %v6695 = vmul.f32 %v6415, %v6681
        %v6696 = vmul.f32 %v6416, %v6681
        %v6697 = vmul.f32 %v6417, %v6681
        %v6698 = vadd.f32 %v6338, %v6682
        %v6699 = vadd.f32 %v6339, %v6683
        %v6700 = vadd.f32 %v6340, %v6684
        %v6701 = vadd.f32 %v6341, %v6685
        %v6702 = vadd.f32 %v6342, %v6686
        %v6703 = vadd.f32 %v6343, %v6687
        %v6704 = vadd.f32 %v6344, %v6688
        %v6705 = vadd.f32 %v6345, %v6689
        %v6706 = vadd.f32 %v6346, %v6690
        %v6707 = vadd.f32 %v6347, %v6691
        %v6708 = vadd.f32 %v6348, %v6692
        %v6709 = vadd.f32 %v6349, %v6693
        %v6710 = vadd.f32 %v6350, %v6694
        %v6711 = vadd.f32 %v6351, %v6695
        %v6712 = vadd.f32 %v6352, %v6696
        %v6713 = vadd.f32 %v6353, %v6697
        %v6714 = vmul.f32 %v1973, 0.5
        %v6715 = vmul.f32 %v1977, 0.5
        %v6716 = vmul.f32 %v1983, 0.5
        %v6717 = vmul.f32 %v1987, 0.5
        %v6718 = vmul.f32 %v1993, 0.5
        %v6719 = vmul.f32 %v1997, 0.5
        %v6720 = vmul.f32 %v2003, 0.5
        %v6721 = vmul.f32 %v2007, 0.5
        %v6722 = vmul.f32 %v2013, 0.5
        %v6723 = vmul.f32 %v2017, 0.5
        %v6724 = vmul.f32 %v2023, 0.5
        %v6725 = vmul.f32 %v2027, 0.5
        %v6726 = vmul.f32 %v2033, 0.5
        %v6727 = vmul.f32 %v2037, 0.5
        %v6728 = vmul.f32 %v2043, 0.5
        %v6729 = vmul.f32 %v2047, 0.5
        %v6730 = vtanh.pop %v6714
        %v6731 = vtanh.pop %v6715
        %v6732 = vtanh.pop %v6716
        %v6733 = vtanh.pop %v6717
        %v6734 = vtanh.pop %v6718
        %v6735 = vtanh.pop %v6719
        %v6736 = vtanh.pop %v6720
        %v6737 = vtanh.pop %v6721
        %v6738 = vtanh.pop %v6722
        %v6739 = vtanh.pop %v6723
        %v6740 = vtanh.pop %v6724
        %v6741 = vtanh.pop %v6725
        %v6742 = vtanh.pop %v6726
        %v6743 = vtanh.pop %v6727
        %v6744 = vtanh.pop %v6728
        %v6745 = vtanh.pop %v6729
        %v6746 = vmul.f32 %v6730, 0.5
        %v6747 = vmul.f32 %v6731, 0.5
        %v6748 = vmul.f32 %v6732, 0.5
        %v6749 = vmul.f32 %v6733, 0.5
        %v6750 = vmul.f32 %v6734, 0.5
        %v6751 = vmul.f32 %v6735, 0.5
        %v6752 = vmul.f32 %v6736, 0.5
        %v6753 = vmul.f32 %v6737, 0.5
        %v6754 = vmul.f32 %v6738, 0.5
        %v6755 = vmul.f32 %v6739, 0.5
        %v6756 = vmul.f32 %v6740, 0.5
        %v6757 = vmul.f32 %v6741, 0.5
        %v6758 = vmul.f32 %v6742, 0.5
        %v6759 = vmul.f32 %v6743, 0.5
        %v6760 = vmul.f32 %v6744, 0.5
        %v6761 = vmul.f32 %v6745, 0.5
        %v6762 = vadd.f32 %v6746, 0.5
        %v6763 = vadd.f32 %v6747, 0.5
        %v6764 = vadd.f32 %v6748, 0.5
        %v6765 = vadd.f32 %v6749, 0.5
        %v6766 = vadd.f32 %v6750, 0.5
        %v6767 = vadd.f32 %v6751, 0.5
        %v6768 = vadd.f32 %v6752, 0.5
        %v6769 = vadd.f32 %v6753, 0.5
        %v6770 = vadd.f32 %v6754, 0.5
        %v6771 = vadd.f32 %v6755, 0.5
        %v6772 = vadd.f32 %v6756, 0.5
        %v6773 = vadd.f32 %v6757, 0.5
        %v6774 = vadd.f32 %v6758, 0.5
        %v6775 = vadd.f32 %v6759, 0.5
        %v6776 = vadd.f32 %v6760, 0.5
        %v6777 = vadd.f32 %v6761, 0.5
        %v6778 = vld [vmem:[#allocation8 + $0xd] sm:$0x1]
        %v6779 = vlaneseq
        %v6780 = vshrl.u32 %v6779, 7
        %v6781 = vsub.s32 0, %v6780
        %v6782 = vrot.slane %v6778, %v6781
        %v6783 = vmul.f32 %v6762, %v6782
        %v6784 = vmul.f32 %v6763, %v6782
        %v6785 = vmul.f32 %v6764, %v6782
        %v6786 = vmul.f32 %v6765, %v6782
        %v6787 = vmul.f32 %v6766, %v6782
        %v6788 = vmul.f32 %v6767, %v6782
        %v6789 = vmul.f32 %v6768, %v6782
        %v6790 = vmul.f32 %v6769, %v6782
        %v6791 = vmul.f32 %v6770, %v6782
        %v6792 = vmul.f32 %v6771, %v6782
        %v6793 = vmul.f32 %v6772, %v6782
        %v6794 = vmul.f32 %v6773, %v6782
        %v6795 = vmul.f32 %v6774, %v6782
        %v6796 = vmul.f32 %v6775, %v6782
        %v6797 = vmul.f32 %v6776, %v6782
        %v6798 = vmul.f32 %v6777, %v6782
        %v6799 = vadd.f32 %v6439, %v6783
        %v6800 = vadd.f32 %v6440, %v6784
        %v6801 = vadd.f32 %v6441, %v6785
        %v6802 = vadd.f32 %v6442, %v6786
        %v6803 = vadd.f32 %v6443, %v6787
        %v6804 = vadd.f32 %v6444, %v6788
        %v6805 = vadd.f32 %v6445, %v6789
        %v6806 = vadd.f32 %v6446, %v6790
        %v6807 = vadd.f32 %v6447, %v6791
        %v6808 = vadd.f32 %v6448, %v6792
        %v6809 = vadd.f32 %v6449, %v6793
        %v6810 = vadd.f32 %v6450, %v6794
        %v6811 = vadd.f32 %v6451, %v6795
        %v6812 = vadd.f32 %v6452, %v6796
        %v6813 = vadd.f32 %v6453, %v6797
        %v6814 = vadd.f32 %v6454, %v6798
        %v6815 = vld [vmem:[#allocation8 + $0x1d] sm:$0x1]
        %v6816 = vlaneseq
        %v6817 = vshrl.u32 %v6816, 7
        %v6818 = vsub.s32 0, %v6817
        %v6819 = vrot.slane %v6815, %v6818
        %v6820 = vmul.f32 %v6762, %v6819
        %v6821 = vmul.f32 %v6763, %v6819
        %v6822 = vmul.f32 %v6764, %v6819
        %v6823 = vmul.f32 %v6765, %v6819
        %v6824 = vmul.f32 %v6766, %v6819
        %v6825 = vmul.f32 %v6767, %v6819
        %v6826 = vmul.f32 %v6768, %v6819
        %v6827 = vmul.f32 %v6769, %v6819
        %v6828 = vmul.f32 %v6770, %v6819
        %v6829 = vmul.f32 %v6771, %v6819
        %v6830 = vmul.f32 %v6772, %v6819
        %v6831 = vmul.f32 %v6773, %v6819
        %v6832 = vmul.f32 %v6774, %v6819
        %v6833 = vmul.f32 %v6775, %v6819
        %v6834 = vmul.f32 %v6776, %v6819
        %v6835 = vmul.f32 %v6777, %v6819
        %v6836 = vadd.f32 %v6476, %v6820
        %v6837 = vadd.f32 %v6477, %v6821
        %v6838 = vadd.f32 %v6478, %v6822
        %v6839 = vadd.f32 %v6479, %v6823
        %v6840 = vadd.f32 %v6480, %v6824
        %v6841 = vadd.f32 %v6481, %v6825
        %v6842 = vadd.f32 %v6482, %v6826
        %v6843 = vadd.f32 %v6483, %v6827
        %v6844 = vadd.f32 %v6484, %v6828
        %v6845 = vadd.f32 %v6485, %v6829
        %v6846 = vadd.f32 %v6486, %v6830
        %v6847 = vadd.f32 %v6487, %v6831
        %v6848 = vadd.f32 %v6488, %v6832
        %v6849 = vadd.f32 %v6489, %v6833
        %v6850 = vadd.f32 %v6490, %v6834
        %v6851 = vadd.f32 %v6491, %v6835
        %v6852 = vld [vmem:[#allocation8 + $0x2d] sm:$0x1]
        %v6853 = vlaneseq
        %v6854 = vshrl.u32 %v6853, 7
        %v6855 = vsub.s32 0, %v6854
        %v6856 = vrot.slane %v6852, %v6855
        %v6857 = vmul.f32 %v6762, %v6856
        %v6858 = vmul.f32 %v6763, %v6856
        %v6859 = vmul.f32 %v6764, %v6856
        %v6860 = vmul.f32 %v6765, %v6856
        %v6861 = vmul.f32 %v6766, %v6856
        %v6862 = vmul.f32 %v6767, %v6856
        %v6863 = vmul.f32 %v6768, %v6856
        %v6864 = vmul.f32 %v6769, %v6856
        %v6865 = vmul.f32 %v6770, %v6856
        %v6866 = vmul.f32 %v6771, %v6856
        %v6867 = vmul.f32 %v6772, %v6856
        %v6868 = vmul.f32 %v6773, %v6856
        %v6869 = vmul.f32 %v6774, %v6856
        %v6870 = vmul.f32 %v6775, %v6856
        %v6871 = vmul.f32 %v6776, %v6856
        %v6872 = vmul.f32 %v6777, %v6856
        %v6873 = vadd.f32 %v6513, %v6857
        %v6874 = vadd.f32 %v6514, %v6858
        %v6875 = vadd.f32 %v6515, %v6859
        %v6876 = vadd.f32 %v6516, %v6860
        %v6877 = vadd.f32 %v6517, %v6861
        %v6878 = vadd.f32 %v6518, %v6862
        %v6879 = vadd.f32 %v6519, %v6863
        %v6880 = vadd.f32 %v6520, %v6864
        %v6881 = vadd.f32 %v6521, %v6865
        %v6882 = vadd.f32 %v6522, %v6866
        %v6883 = vadd.f32 %v6523, %v6867
        %v6884 = vadd.f32 %v6524, %v6868
        %v6885 = vadd.f32 %v6525, %v6869
        %v6886 = vadd.f32 %v6526, %v6870
        %v6887 = vadd.f32 %v6527, %v6871
        %v6888 = vadd.f32 %v6528, %v6872
        %v6889 = vld [vmem:[#allocation8 + $0x3d] sm:$0x1]
        %v6890 = vlaneseq
        %v6891 = vshrl.u32 %v6890, 7
        %v6892 = vsub.s32 0, %v6891
        %v6893 = vrot.slane %v6889, %v6892
        %v6894 = vmul.f32 %v6762, %v6893
        %v6895 = vmul.f32 %v6763, %v6893
        %v6896 = vmul.f32 %v6764, %v6893
        %v6897 = vmul.f32 %v6765, %v6893
        %v6898 = vmul.f32 %v6766, %v6893
        %v6899 = vmul.f32 %v6767, %v6893
        %v6900 = vmul.f32 %v6768, %v6893
        %v6901 = vmul.f32 %v6769, %v6893
        %v6902 = vmul.f32 %v6770, %v6893
        %v6903 = vmul.f32 %v6771, %v6893
        %v6904 = vmul.f32 %v6772, %v6893
        %v6905 = vmul.f32 %v6773, %v6893
        %v6906 = vmul.f32 %v6774, %v6893
        %v6907 = vmul.f32 %v6775, %v6893
        %v6908 = vmul.f32 %v6776, %v6893
        %v6909 = vmul.f32 %v6777, %v6893
        %v6910 = vadd.f32 %v6550, %v6894
        %v6911 = vadd.f32 %v6551, %v6895
        %v6912 = vadd.f32 %v6552, %v6896
        %v6913 = vadd.f32 %v6553, %v6897
        %v6914 = vadd.f32 %v6554, %v6898
        %v6915 = vadd.f32 %v6555, %v6899
        %v6916 = vadd.f32 %v6556, %v6900
        %v6917 = vadd.f32 %v6557, %v6901
        %v6918 = vadd.f32 %v6558, %v6902
        %v6919 = vadd.f32 %v6559, %v6903
        %v6920 = vadd.f32 %v6560, %v6904
        %v6921 = vadd.f32 %v6561, %v6905
        %v6922 = vadd.f32 %v6562, %v6906
        %v6923 = vadd.f32 %v6563, %v6907
        %v6924 = vadd.f32 %v6564, %v6908
        %v6925 = vadd.f32 %v6565, %v6909
        %v6926 = vld [vmem:[#allocation8 + $0x4d] sm:$0x1]
        %v6927 = vlaneseq
        %v6928 = vshrl.u32 %v6927, 7
        %v6929 = vsub.s32 0, %v6928
        %v6930 = vrot.slane %v6926, %v6929
        %v6931 = vmul.f32 %v6762, %v6930
        %v6932 = vmul.f32 %v6763, %v6930
        %v6933 = vmul.f32 %v6764, %v6930
        %v6934 = vmul.f32 %v6765, %v6930
        %v6935 = vmul.f32 %v6766, %v6930
        %v6936 = vmul.f32 %v6767, %v6930
        %v6937 = vmul.f32 %v6768, %v6930
        %v6938 = vmul.f32 %v6769, %v6930
        %v6939 = vmul.f32 %v6770, %v6930
        %v6940 = vmul.f32 %v6771, %v6930
        %v6941 = vmul.f32 %v6772, %v6930
        %v6942 = vmul.f32 %v6773, %v6930
        %v6943 = vmul.f32 %v6774, %v6930
        %v6944 = vmul.f32 %v6775, %v6930
        %v6945 = vmul.f32 %v6776, %v6930
        %v6946 = vmul.f32 %v6777, %v6930
        %v6947 = vadd.f32 %v6587, %v6931
        %v6948 = vadd.f32 %v6588, %v6932
        %v6949 = vadd.f32 %v6589, %v6933
        %v6950 = vadd.f32 %v6590, %v6934
        %v6951 = vadd.f32 %v6591, %v6935
        %v6952 = vadd.f32 %v6592, %v6936
        %v6953 = vadd.f32 %v6593, %v6937
        %v6954 = vadd.f32 %v6594, %v6938
        %v6955 = vadd.f32 %v6595, %v6939
        %v6956 = vadd.f32 %v6596, %v6940
        %v6957 = vadd.f32 %v6597, %v6941
        %v6958 = vadd.f32 %v6598, %v6942
        %v6959 = vadd.f32 %v6599, %v6943
        %v6960 = vadd.f32 %v6600, %v6944
        %v6961 = vadd.f32 %v6601, %v6945
        %v6962 = vadd.f32 %v6602, %v6946
        %v6963 = vld [vmem:[#allocation8 + $0x5d] sm:$0x1]
        %v6964 = vlaneseq
        %v6965 = vshrl.u32 %v6964, 7
        %v6966 = vsub.s32 0, %v6965
        %v6967 = vrot.slane %v6963, %v6966
        %v6968 = vmul.f32 %v6762, %v6967
        %v6969 = vmul.f32 %v6763, %v6967
        %v6970 = vmul.f32 %v6764, %v6967
        %v6971 = vmul.f32 %v6765, %v6967
        %v6972 = vmul.f32 %v6766, %v6967
        %v6973 = vmul.f32 %v6767, %v6967
        %v6974 = vmul.f32 %v6768, %v6967
        %v6975 = vmul.f32 %v6769, %v6967
        %v6976 = vmul.f32 %v6770, %v6967
        %v6977 = vmul.f32 %v6771, %v6967
        %v6978 = vmul.f32 %v6772, %v6967
        %v6979 = vmul.f32 %v6773, %v6967
        %v6980 = vmul.f32 %v6774, %v6967
        %v6981 = vmul.f32 %v6775, %v6967
        %v6982 = vmul.f32 %v6776, %v6967
        %v6983 = vmul.f32 %v6777, %v6967
        %v6984 = vadd.f32 %v6624, %v6968
        %v6985 = vadd.f32 %v6625, %v6969
        %v6986 = vadd.f32 %v6626, %v6970
        %v6987 = vadd.f32 %v6627, %v6971
        %v6988 = vadd.f32 %v6628, %v6972
        %v6989 = vadd.f32 %v6629, %v6973
        %v6990 = vadd.f32 %v6630, %v6974
        %v6991 = vadd.f32 %v6631, %v6975
        %v6992 = vadd.f32 %v6632, %v6976
        %v6993 = vadd.f32 %v6633, %v6977
        %v6994 = vadd.f32 %v6634, %v6978
        %v6995 = vadd.f32 %v6635, %v6979
        %v6996 = vadd.f32 %v6636, %v6980
        %v6997 = vadd.f32 %v6637, %v6981
        %v6998 = vadd.f32 %v6638, %v6982
        %v6999 = vadd.f32 %v6639, %v6983
        %v7000 = vld [vmem:[#allocation8 + $0x6d] sm:$0x1]
        %v7001 = vlaneseq
        %v7002 = vshrl.u32 %v7001, 7
        %v7003 = vsub.s32 0, %v7002
        %v7004 = vrot.slane %v7000, %v7003
        %v7005 = vmul.f32 %v6762, %v7004
        %v7006 = vmul.f32 %v6763, %v7004
        %v7007 = vmul.f32 %v6764, %v7004
        %v7008 = vmul.f32 %v6765, %v7004
        %v7009 = vmul.f32 %v6766, %v7004
        %v7010 = vmul.f32 %v6767, %v7004
        %v7011 = vmul.f32 %v6768, %v7004
        %v7012 = vmul.f32 %v6769, %v7004
        %v7013 = vmul.f32 %v6770, %v7004
        %v7014 = vmul.f32 %v6771, %v7004
        %v7015 = vmul.f32 %v6772, %v7004
        %v7016 = vmul.f32 %v6773, %v7004
        %v7017 = vmul.f32 %v6774, %v7004
        %v7018 = vmul.f32 %v6775, %v7004
        %v7019 = vmul.f32 %v6776, %v7004
        %v7020 = vmul.f32 %v6777, %v7004
        %v7021 = vadd.f32 %v6661, %v7005
        %v7022 = vadd.f32 %v6662, %v7006
        %v7023 = vadd.f32 %v6663, %v7007
        %v7024 = vadd.f32 %v6664, %v7008
        %v7025 = vadd.f32 %v6665, %v7009
        %v7026 = vadd.f32 %v6666, %v7010
        %v7027 = vadd.f32 %v6667, %v7011
        %v7028 = vadd.f32 %v6668, %v7012
        %v7029 = vadd.f32 %v6669, %v7013
        %v7030 = vadd.f32 %v6670, %v7014
        %v7031 = vadd.f32 %v6671, %v7015
        %v7032 = vadd.f32 %v6672, %v7016
        %v7033 = vadd.f32 %v6673, %v7017
        %v7034 = vadd.f32 %v6674, %v7018
        %v7035 = vadd.f32 %v6675, %v7019
        %v7036 = vadd.f32 %v6676, %v7020
        %v7037 = vld [vmem:[#allocation8 + $0x7d] sm:$0x1]
        %v7038 = vlaneseq
        %v7039 = vshrl.u32 %v7038, 7
        %v7040 = vsub.s32 0, %v7039
        %v7041 = vrot.slane %v7037, %v7040
        %v7042 = vmul.f32 %v6762, %v7041
        %v7043 = vmul.f32 %v6763, %v7041
        %v7044 = vmul.f32 %v6764, %v7041
        %v7045 = vmul.f32 %v6765, %v7041
        %v7046 = vmul.f32 %v6766, %v7041
        %v7047 = vmul.f32 %v6767, %v7041
        %v7048 = vmul.f32 %v6768, %v7041
        %v7049 = vmul.f32 %v6769, %v7041
        %v7050 = vmul.f32 %v6770, %v7041
        %v7051 = vmul.f32 %v6771, %v7041
        %v7052 = vmul.f32 %v6772, %v7041
        %v7053 = vmul.f32 %v6773, %v7041
        %v7054 = vmul.f32 %v6774, %v7041
        %v7055 = vmul.f32 %v6775, %v7041
        %v7056 = vmul.f32 %v6776, %v7041
        %v7057 = vmul.f32 %v6777, %v7041
        %v7058 = vadd.f32 %v6698, %v7042
        %v7059 = vadd.f32 %v6699, %v7043
        %v7060 = vadd.f32 %v6700, %v7044
        %v7061 = vadd.f32 %v6701, %v7045
        %v7062 = vadd.f32 %v6702, %v7046
        %v7063 = vadd.f32 %v6703, %v7047
        %v7064 = vadd.f32 %v6704, %v7048
        %v7065 = vadd.f32 %v6705, %v7049
        %v7066 = vadd.f32 %v6706, %v7050
        %v7067 = vadd.f32 %v6707, %v7051
        %v7068 = vadd.f32 %v6708, %v7052
        %v7069 = vadd.f32 %v6709, %v7053
        %v7070 = vadd.f32 %v6710, %v7054
        %v7071 = vadd.f32 %v6711, %v7055
        %v7072 = vadd.f32 %v6712, %v7056
        %v7073 = vadd.f32 %v6713, %v7057
        %v7074 = vmul.f32 %v2084, 0.5
        %v7075 = vmul.f32 %v2088, 0.5
        %v7076 = vmul.f32 %v2094, 0.5
        %v7077 = vmul.f32 %v2098, 0.5
        %v7078 = vmul.f32 %v2104, 0.5
        %v7079 = vmul.f32 %v2108, 0.5
        %v7080 = vmul.f32 %v2114, 0.5
        %v7081 = vmul.f32 %v2118, 0.5
        %v7082 = vmul.f32 %v2124, 0.5
        %v7083 = vmul.f32 %v2128, 0.5
        %v7084 = vmul.f32 %v2134, 0.5
        %v7085 = vmul.f32 %v2138, 0.5
        %v7086 = vmul.f32 %v2144, 0.5
        %v7087 = vmul.f32 %v2148, 0.5
        %v7088 = vmul.f32 %v2154, 0.5
        %v7089 = vmul.f32 %v2158, 0.5
        %v7090 = vtanh.pop %v7074
        %v7091 = vtanh.pop %v7075
        %v7092 = vtanh.pop %v7076
        %v7093 = vtanh.pop %v7077
        %v7094 = vtanh.pop %v7078
        %v7095 = vtanh.pop %v7079
        %v7096 = vtanh.pop %v7080
        %v7097 = vtanh.pop %v7081
        %v7098 = vtanh.pop %v7082
        %v7099 = vtanh.pop %v7083
        %v7100 = vtanh.pop %v7084
        %v7101 = vtanh.pop %v7085
        %v7102 = vtanh.pop %v7086
        %v7103 = vtanh.pop %v7087
        %v7104 = vtanh.pop %v7088
        %v7105 = vtanh.pop %v7089
        %v7106 = vmul.f32 %v7090, 0.5
        %v7107 = vmul.f32 %v7091, 0.5
        %v7108 = vmul.f32 %v7092, 0.5
        %v7109 = vmul.f32 %v7093, 0.5
        %v7110 = vmul.f32 %v7094, 0.5
        %v7111 = vmul.f32 %v7095, 0.5
        %v7112 = vmul.f32 %v7096, 0.5
        %v7113 = vmul.f32 %v7097, 0.5
        %v7114 = vmul.f32 %v7098, 0.5
        %v7115 = vmul.f32 %v7099, 0.5
        %v7116 = vmul.f32 %v7100, 0.5
        %v7117 = vmul.f32 %v7101, 0.5
        %v7118 = vmul.f32 %v7102, 0.5
        %v7119 = vmul.f32 %v7103, 0.5
        %v7120 = vmul.f32 %v7104, 0.5
        %v7121 = vmul.f32 %v7105, 0.5
        %v7122 = vadd.f32 %v7106, 0.5
        %v7123 = vadd.f32 %v7107, 0.5
        %v7124 = vadd.f32 %v7108, 0.5
        %v7125 = vadd.f32 %v7109, 0.5
        %v7126 = vadd.f32 %v7110, 0.5
        %v7127 = vadd.f32 %v7111, 0.5
        %v7128 = vadd.f32 %v7112, 0.5
        %v7129 = vadd.f32 %v7113, 0.5
        %v7130 = vadd.f32 %v7114, 0.5
        %v7131 = vadd.f32 %v7115, 0.5
        %v7132 = vadd.f32 %v7116, 0.5
        %v7133 = vadd.f32 %v7117, 0.5
        %v7134 = vadd.f32 %v7118, 0.5
        %v7135 = vadd.f32 %v7119, 0.5
        %v7136 = vadd.f32 %v7120, 0.5
        %v7137 = vadd.f32 %v7121, 0.5
        %v7138 = vld [vmem:[#allocation8 + $0xe] sm:$0x1]
        %v7139 = vlaneseq
        %v7140 = vshrl.u32 %v7139, 7
        %v7141 = vsub.s32 0, %v7140
        %v7142 = vrot.slane %v7138, %v7141
        %v7143 = vmul.f32 %v7122, %v7142
        %v7144 = vmul.f32 %v7123, %v7142
        %v7145 = vmul.f32 %v7124, %v7142
        %v7146 = vmul.f32 %v7125, %v7142
        %v7147 = vmul.f32 %v7126, %v7142
        %v7148 = vmul.f32 %v7127, %v7142
        %v7149 = vmul.f32 %v7128, %v7142
        %v7150 = vmul.f32 %v7129, %v7142
        %v7151 = vmul.f32 %v7130, %v7142
        %v7152 = vmul.f32 %v7131, %v7142
        %v7153 = vmul.f32 %v7132, %v7142
        %v7154 = vmul.f32 %v7133, %v7142
        %v7155 = vmul.f32 %v7134, %v7142
        %v7156 = vmul.f32 %v7135, %v7142
        %v7157 = vmul.f32 %v7136, %v7142
        %v7158 = vmul.f32 %v7137, %v7142
        %v7159 = vadd.f32 %v6799, %v7143
        %v7160 = vadd.f32 %v6800, %v7144
        %v7161 = vadd.f32 %v6801, %v7145
        %v7162 = vadd.f32 %v6802, %v7146
        %v7163 = vadd.f32 %v6803, %v7147
        %v7164 = vadd.f32 %v6804, %v7148
        %v7165 = vadd.f32 %v6805, %v7149
        %v7166 = vadd.f32 %v6806, %v7150
        %v7167 = vadd.f32 %v6807, %v7151
        %v7168 = vadd.f32 %v6808, %v7152
        %v7169 = vadd.f32 %v6809, %v7153
        %v7170 = vadd.f32 %v6810, %v7154
        %v7171 = vadd.f32 %v6811, %v7155
        %v7172 = vadd.f32 %v6812, %v7156
        %v7173 = vadd.f32 %v6813, %v7157
        %v7174 = vadd.f32 %v6814, %v7158
        %v7175 = vld [vmem:[#allocation8 + $0x1e] sm:$0x1]
        %v7176 = vlaneseq
        %v7177 = vshrl.u32 %v7176, 7
        %v7178 = vsub.s32 0, %v7177
        %v7179 = vrot.slane %v7175, %v7178
        %v7180 = vmul.f32 %v7122, %v7179
        %v7181 = vmul.f32 %v7123, %v7179
        %v7182 = vmul.f32 %v7124, %v7179
        %v7183 = vmul.f32 %v7125, %v7179
        %v7184 = vmul.f32 %v7126, %v7179
        %v7185 = vmul.f32 %v7127, %v7179
        %v7186 = vmul.f32 %v7128, %v7179
        %v7187 = vmul.f32 %v7129, %v7179
        %v7188 = vmul.f32 %v7130, %v7179
        %v7189 = vmul.f32 %v7131, %v7179
        %v7190 = vmul.f32 %v7132, %v7179
        %v7191 = vmul.f32 %v7133, %v7179
        %v7192 = vmul.f32 %v7134, %v7179
        %v7193 = vmul.f32 %v7135, %v7179
        %v7194 = vmul.f32 %v7136, %v7179
        %v7195 = vmul.f32 %v7137, %v7179
        %v7196 = vadd.f32 %v6836, %v7180
        %v7197 = vadd.f32 %v6837, %v7181
        %v7198 = vadd.f32 %v6838, %v7182
        %v7199 = vadd.f32 %v6839, %v7183
        %v7200 = vadd.f32 %v6840, %v7184
        %v7201 = vadd.f32 %v6841, %v7185
        %v7202 = vadd.f32 %v6842, %v7186
        %v7203 = vadd.f32 %v6843, %v7187
        %v7204 = vadd.f32 %v6844, %v7188
        %v7205 = vadd.f32 %v6845, %v7189
        %v7206 = vadd.f32 %v6846, %v7190
        %v7207 = vadd.f32 %v6847, %v7191
        %v7208 = vadd.f32 %v6848, %v7192
        %v7209 = vadd.f32 %v6849, %v7193
        %v7210 = vadd.f32 %v6850, %v7194
        %v7211 = vadd.f32 %v6851, %v7195
        %v7212 = vld [vmem:[#allocation8 + $0x2e] sm:$0x1]
        %v7213 = vlaneseq
        %v7214 = vshrl.u32 %v7213, 7
        %v7215 = vsub.s32 0, %v7214
        %v7216 = vrot.slane %v7212, %v7215
        %v7217 = vmul.f32 %v7122, %v7216
        %v7218 = vmul.f32 %v7123, %v7216
        %v7219 = vmul.f32 %v7124, %v7216
        %v7220 = vmul.f32 %v7125, %v7216
        %v7221 = vmul.f32 %v7126, %v7216
        %v7222 = vmul.f32 %v7127, %v7216
        %v7223 = vmul.f32 %v7128, %v7216
        %v7224 = vmul.f32 %v7129, %v7216
        %v7225 = vmul.f32 %v7130, %v7216
        %v7226 = vmul.f32 %v7131, %v7216
        %v7227 = vmul.f32 %v7132, %v7216
        %v7228 = vmul.f32 %v7133, %v7216
        %v7229 = vmul.f32 %v7134, %v7216
        %v7230 = vmul.f32 %v7135, %v7216
        %v7231 = vmul.f32 %v7136, %v7216
        %v7232 = vmul.f32 %v7137, %v7216
        %v7233 = vadd.f32 %v6873, %v7217
        %v7234 = vadd.f32 %v6874, %v7218
        %v7235 = vadd.f32 %v6875, %v7219
        %v7236 = vadd.f32 %v6876, %v7220
        %v7237 = vadd.f32 %v6877, %v7221
        %v7238 = vadd.f32 %v6878, %v7222
        %v7239 = vadd.f32 %v6879, %v7223
        %v7240 = vadd.f32 %v6880, %v7224
        %v7241 = vadd.f32 %v6881, %v7225
        %v7242 = vadd.f32 %v6882, %v7226
        %v7243 = vadd.f32 %v6883, %v7227
        %v7244 = vadd.f32 %v6884, %v7228
        %v7245 = vadd.f32 %v6885, %v7229
        %v7246 = vadd.f32 %v6886, %v7230
        %v7247 = vadd.f32 %v6887, %v7231
        %v7248 = vadd.f32 %v6888, %v7232
        %v7249 = vld [vmem:[#allocation8 + $0x3e] sm:$0x1]
        %v7250 = vlaneseq
        %v7251 = vshrl.u32 %v7250, 7
        %v7252 = vsub.s32 0, %v7251
        %v7253 = vrot.slane %v7249, %v7252
        %v7254 = vmul.f32 %v7122, %v7253
        %v7255 = vmul.f32 %v7123, %v7253
        %v7256 = vmul.f32 %v7124, %v7253
        %v7257 = vmul.f32 %v7125, %v7253
        %v7258 = vmul.f32 %v7126, %v7253
        %v7259 = vmul.f32 %v7127, %v7253
        %v7260 = vmul.f32 %v7128, %v7253
        %v7261 = vmul.f32 %v7129, %v7253
        %v7262 = vmul.f32 %v7130, %v7253
        %v7263 = vmul.f32 %v7131, %v7253
        %v7264 = vmul.f32 %v7132, %v7253
        %v7265 = vmul.f32 %v7133, %v7253
        %v7266 = vmul.f32 %v7134, %v7253
        %v7267 = vmul.f32 %v7135, %v7253
        %v7268 = vmul.f32 %v7136, %v7253
        %v7269 = vmul.f32 %v7137, %v7253
        %v7270 = vadd.f32 %v6910, %v7254
        %v7271 = vadd.f32 %v6911, %v7255
        %v7272 = vadd.f32 %v6912, %v7256
        %v7273 = vadd.f32 %v6913, %v7257
        %v7274 = vadd.f32 %v6914, %v7258
        %v7275 = vadd.f32 %v6915, %v7259
        %v7276 = vadd.f32 %v6916, %v7260
        %v7277 = vadd.f32 %v6917, %v7261
        %v7278 = vadd.f32 %v6918, %v7262
        %v7279 = vadd.f32 %v6919, %v7263
        %v7280 = vadd.f32 %v6920, %v7264
        %v7281 = vadd.f32 %v6921, %v7265
        %v7282 = vadd.f32 %v6922, %v7266
        %v7283 = vadd.f32 %v6923, %v7267
        %v7284 = vadd.f32 %v6924, %v7268
        %v7285 = vadd.f32 %v6925, %v7269
        %v7286 = vld [vmem:[#allocation8 + $0x4e] sm:$0x1]
        %v7287 = vlaneseq
        %v7288 = vshrl.u32 %v7287, 7
        %v7289 = vsub.s32 0, %v7288
        %v7290 = vrot.slane %v7286, %v7289
        %v7291 = vmul.f32 %v7122, %v7290
        %v7292 = vmul.f32 %v7123, %v7290
        %v7293 = vmul.f32 %v7124, %v7290
        %v7294 = vmul.f32 %v7125, %v7290
        %v7295 = vmul.f32 %v7126, %v7290
        %v7296 = vmul.f32 %v7127, %v7290
        %v7297 = vmul.f32 %v7128, %v7290
        %v7298 = vmul.f32 %v7129, %v7290
        %v7299 = vmul.f32 %v7130, %v7290
        %v7300 = vmul.f32 %v7131, %v7290
        %v7301 = vmul.f32 %v7132, %v7290
        %v7302 = vmul.f32 %v7133, %v7290
        %v7303 = vmul.f32 %v7134, %v7290
        %v7304 = vmul.f32 %v7135, %v7290
        %v7305 = vmul.f32 %v7136, %v7290
        %v7306 = vmul.f32 %v7137, %v7290
        %v7307 = vadd.f32 %v6947, %v7291
        %v7308 = vadd.f32 %v6948, %v7292
        %v7309 = vadd.f32 %v6949, %v7293
        %v7310 = vadd.f32 %v6950, %v7294
        %v7311 = vadd.f32 %v6951, %v7295
        %v7312 = vadd.f32 %v6952, %v7296
        %v7313 = vadd.f32 %v6953, %v7297
        %v7314 = vadd.f32 %v6954, %v7298
        %v7315 = vadd.f32 %v6955, %v7299
        %v7316 = vadd.f32 %v6956, %v7300
        %v7317 = vadd.f32 %v6957, %v7301
        %v7318 = vadd.f32 %v6958, %v7302
        %v7319 = vadd.f32 %v6959, %v7303
        %v7320 = vadd.f32 %v6960, %v7304
        %v7321 = vadd.f32 %v6961, %v7305
        %v7322 = vadd.f32 %v6962, %v7306
        %v7323 = vld [vmem:[#allocation8 + $0x5e] sm:$0x1]
        %v7324 = vlaneseq
        %v7325 = vshrl.u32 %v7324, 7
        %v7326 = vsub.s32 0, %v7325
        %v7327 = vrot.slane %v7323, %v7326
        %v7328 = vmul.f32 %v7122, %v7327
        %v7329 = vmul.f32 %v7123, %v7327
        %v7330 = vmul.f32 %v7124, %v7327
        %v7331 = vmul.f32 %v7125, %v7327
        %v7332 = vmul.f32 %v7126, %v7327
        %v7333 = vmul.f32 %v7127, %v7327
        %v7334 = vmul.f32 %v7128, %v7327
        %v7335 = vmul.f32 %v7129, %v7327
        %v7336 = vmul.f32 %v7130, %v7327
        %v7337 = vmul.f32 %v7131, %v7327
        %v7338 = vmul.f32 %v7132, %v7327
        %v7339 = vmul.f32 %v7133, %v7327
        %v7340 = vmul.f32 %v7134, %v7327
        %v7341 = vmul.f32 %v7135, %v7327
        %v7342 = vmul.f32 %v7136, %v7327
        %v7343 = vmul.f32 %v7137, %v7327
        %v7344 = vadd.f32 %v6984, %v7328
        %v7345 = vadd.f32 %v6985, %v7329
        %v7346 = vadd.f32 %v6986, %v7330
        %v7347 = vadd.f32 %v6987, %v7331
        %v7348 = vadd.f32 %v6988, %v7332
        %v7349 = vadd.f32 %v6989, %v7333
        %v7350 = vadd.f32 %v6990, %v7334
        %v7351 = vadd.f32 %v6991, %v7335
        %v7352 = vadd.f32 %v6992, %v7336
        %v7353 = vadd.f32 %v6993, %v7337
        %v7354 = vadd.f32 %v6994, %v7338
        %v7355 = vadd.f32 %v6995, %v7339
        %v7356 = vadd.f32 %v6996, %v7340
        %v7357 = vadd.f32 %v6997, %v7341
        %v7358 = vadd.f32 %v6998, %v7342
        %v7359 = vadd.f32 %v6999, %v7343
        %v7360 = vld [vmem:[#allocation8 + $0x6e] sm:$0x1]
        %v7361 = vlaneseq
        %v7362 = vshrl.u32 %v7361, 7
        %v7363 = vsub.s32 0, %v7362
        %v7364 = vrot.slane %v7360, %v7363
        %v7365 = vmul.f32 %v7122, %v7364
        %v7366 = vmul.f32 %v7123, %v7364
        %v7367 = vmul.f32 %v7124, %v7364
        %v7368 = vmul.f32 %v7125, %v7364
        %v7369 = vmul.f32 %v7126, %v7364
        %v7370 = vmul.f32 %v7127, %v7364
        %v7371 = vmul.f32 %v7128, %v7364
        %v7372 = vmul.f32 %v7129, %v7364
        %v7373 = vmul.f32 %v7130, %v7364
        %v7374 = vmul.f32 %v7131, %v7364
        %v7375 = vmul.f32 %v7132, %v7364
        %v7376 = vmul.f32 %v7133, %v7364
        %v7377 = vmul.f32 %v7134, %v7364
        %v7378 = vmul.f32 %v7135, %v7364
        %v7379 = vmul.f32 %v7136, %v7364
        %v7380 = vmul.f32 %v7137, %v7364
        %v7381 = vadd.f32 %v7021, %v7365
        %v7382 = vadd.f32 %v7022, %v7366
        %v7383 = vadd.f32 %v7023, %v7367
        %v7384 = vadd.f32 %v7024, %v7368
        %v7385 = vadd.f32 %v7025, %v7369
        %v7386 = vadd.f32 %v7026, %v7370
        %v7387 = vadd.f32 %v7027, %v7371
        %v7388 = vadd.f32 %v7028, %v7372
        %v7389 = vadd.f32 %v7029, %v7373
        %v7390 = vadd.f32 %v7030, %v7374
        %v7391 = vadd.f32 %v7031, %v7375
        %v7392 = vadd.f32 %v7032, %v7376
        %v7393 = vadd.f32 %v7033, %v7377
        %v7394 = vadd.f32 %v7034, %v7378
        %v7395 = vadd.f32 %v7035, %v7379
        %v7396 = vadd.f32 %v7036, %v7380
        %v7397 = vld [vmem:[#allocation8 + $0x7e] sm:$0x1]
        %v7398 = vlaneseq
        %v7399 = vshrl.u32 %v7398, 7
        %v7400 = vsub.s32 0, %v7399
        %v7401 = vrot.slane %v7397, %v7400
        %v7402 = vmul.f32 %v7122, %v7401
        %v7403 = vmul.f32 %v7123, %v7401
        %v7404 = vmul.f32 %v7124, %v7401
        %v7405 = vmul.f32 %v7125, %v7401
        %v7406 = vmul.f32 %v7126, %v7401
        %v7407 = vmul.f32 %v7127, %v7401
        %v7408 = vmul.f32 %v7128, %v7401
        %v7409 = vmul.f32 %v7129, %v7401
        %v7410 = vmul.f32 %v7130, %v7401
        %v7411 = vmul.f32 %v7131, %v7401
        %v7412 = vmul.f32 %v7132, %v7401
        %v7413 = vmul.f32 %v7133, %v7401
        %v7414 = vmul.f32 %v7134, %v7401
        %v7415 = vmul.f32 %v7135, %v7401
        %v7416 = vmul.f32 %v7136, %v7401
        %v7417 = vmul.f32 %v7137, %v7401
        %v7418 = vadd.f32 %v7058, %v7402
        %v7419 = vadd.f32 %v7059, %v7403
        %v7420 = vadd.f32 %v7060, %v7404
        %v7421 = vadd.f32 %v7061, %v7405
        %v7422 = vadd.f32 %v7062, %v7406
        %v7423 = vadd.f32 %v7063, %v7407
        %v7424 = vadd.f32 %v7064, %v7408
        %v7425 = vadd.f32 %v7065, %v7409
        %v7426 = vadd.f32 %v7066, %v7410
        %v7427 = vadd.f32 %v7067, %v7411
        %v7428 = vadd.f32 %v7068, %v7412
        %v7429 = vadd.f32 %v7069, %v7413
        %v7430 = vadd.f32 %v7070, %v7414
        %v7431 = vadd.f32 %v7071, %v7415
        %v7432 = vadd.f32 %v7072, %v7416
        %v7433 = vadd.f32 %v7073, %v7417
        %v7434 = vmul.f32 %v2086, 0.5
        %v7435 = vmul.f32 %v2090, 0.5
        %v7436 = vmul.f32 %v2096, 0.5
        %v7437 = vmul.f32 %v2100, 0.5
        %v7438 = vmul.f32 %v2106, 0.5
        %v7439 = vmul.f32 %v2110, 0.5
        %v7440 = vmul.f32 %v2116, 0.5
        %v7441 = vmul.f32 %v2120, 0.5
        %v7442 = vmul.f32 %v2126, 0.5
        %v7443 = vmul.f32 %v2130, 0.5
        %v7444 = vmul.f32 %v2136, 0.5
        %v7445 = vmul.f32 %v2140, 0.5
        %v7446 = vmul.f32 %v2146, 0.5
        %v7447 = vmul.f32 %v2150, 0.5
        %v7448 = vmul.f32 %v2156, 0.5
        %v7449 = vmul.f32 %v2160, 0.5
        %v7450 = vtanh.pop %v7434
        %v7451 = vtanh.pop %v7435
        %v7452 = vtanh.pop %v7436
        %v7453 = vtanh.pop %v7437
        %v7454 = vtanh.pop %v7438
        %v7455 = vtanh.pop %v7439
        %v7456 = vtanh.pop %v7440
        %v7457 = vtanh.pop %v7441
        %v7458 = vtanh.pop %v7442
        %v7459 = vtanh.pop %v7443
        %v7460 = vtanh.pop %v7444
        %v7461 = vtanh.pop %v7445
        %v7462 = vtanh.pop %v7446
        %v7463 = vtanh.pop %v7447
        %v7464 = vtanh.pop %v7448
        %v7465 = vtanh.pop %v7449
        %v7466 = vmul.f32 %v7450, 0.5
        %v7467 = vmul.f32 %v7451, 0.5
        %v7468 = vmul.f32 %v7452, 0.5
        %v7469 = vmul.f32 %v7453, 0.5
        %v7470 = vmul.f32 %v7454, 0.5
        %v7471 = vmul.f32 %v7455, 0.5
        %v7472 = vmul.f32 %v7456, 0.5
        %v7473 = vmul.f32 %v7457, 0.5
        %v7474 = vmul.f32 %v7458, 0.5
        %v7475 = vmul.f32 %v7459, 0.5
        %v7476 = vmul.f32 %v7460, 0.5
        %v7477 = vmul.f32 %v7461, 0.5
        %v7478 = vmul.f32 %v7462, 0.5
        %v7479 = vmul.f32 %v7463, 0.5
        %v7480 = vmul.f32 %v7464, 0.5
        %v7481 = vmul.f32 %v7465, 0.5
        %v7482 = vadd.f32 %v7466, 0.5
        %v7483 = vadd.f32 %v7467, 0.5
        %v7484 = vadd.f32 %v7468, 0.5
        %v7485 = vadd.f32 %v7469, 0.5
        %v7486 = vadd.f32 %v7470, 0.5
        %v7487 = vadd.f32 %v7471, 0.5
        %v7488 = vadd.f32 %v7472, 0.5
        %v7489 = vadd.f32 %v7473, 0.5
        %v7490 = vadd.f32 %v7474, 0.5
        %v7491 = vadd.f32 %v7475, 0.5
        %v7492 = vadd.f32 %v7476, 0.5
        %v7493 = vadd.f32 %v7477, 0.5
        %v7494 = vadd.f32 %v7478, 0.5
        %v7495 = vadd.f32 %v7479, 0.5
        %v7496 = vadd.f32 %v7480, 0.5
        %v7497 = vadd.f32 %v7481, 0.5
        %v7498 = vld [vmem:[#allocation8 + $0xf] sm:$0x1]
        %v7499 = vlaneseq
        %v7500 = vshrl.u32 %v7499, 7
        %v7501 = vsub.s32 0, %v7500
        %v7502 = vrot.slane %v7498, %v7501
        %v7503 = vmul.f32 %v7482, %v7502
        %v7504 = vmul.f32 %v7483, %v7502
        %v7505 = vmul.f32 %v7484, %v7502
        %v7506 = vmul.f32 %v7485, %v7502
        %v7507 = vmul.f32 %v7486, %v7502
        %v7508 = vmul.f32 %v7487, %v7502
        %v7509 = vmul.f32 %v7488, %v7502
        %v7510 = vmul.f32 %v7489, %v7502
        %v7511 = vmul.f32 %v7490, %v7502
        %v7512 = vmul.f32 %v7491, %v7502
        %v7513 = vmul.f32 %v7492, %v7502
        %v7514 = vmul.f32 %v7493, %v7502
        %v7515 = vmul.f32 %v7494, %v7502
        %v7516 = vmul.f32 %v7495, %v7502
        %v7517 = vmul.f32 %v7496, %v7502
        %v7518 = vmul.f32 %v7497, %v7502
        %v7519 = vadd.f32 %v7159, %v7503
        %v7520 = vadd.f32 %v7160, %v7504
        %v7521 = vadd.f32 %v7161, %v7505
        %v7522 = vadd.f32 %v7162, %v7506
        %v7523 = vadd.f32 %v7163, %v7507
        %v7524 = vadd.f32 %v7164, %v7508
        %v7525 = vadd.f32 %v7165, %v7509
        %v7526 = vadd.f32 %v7166, %v7510
        %v7527 = vadd.f32 %v7167, %v7511
        %v7528 = vadd.f32 %v7168, %v7512
        %v7529 = vadd.f32 %v7169, %v7513
        %v7530 = vadd.f32 %v7170, %v7514
        %v7531 = vadd.f32 %v7171, %v7515
        %v7532 = vadd.f32 %v7172, %v7516
        %v7533 = vadd.f32 %v7173, %v7517
        %v7534 = vadd.f32 %v7174, %v7518
        %v7535 = vld [vmem:[#allocation8 + $0x1f] sm:$0x1]
        %v7536 = vlaneseq
        %v7537 = vshrl.u32 %v7536, 7
        %v7538 = vsub.s32 0, %v7537
        %v7539 = vrot.slane %v7535, %v7538
        %v7540 = vmul.f32 %v7482, %v7539
        %v7541 = vmul.f32 %v7483, %v7539
        %v7542 = vmul.f32 %v7484, %v7539
        %v7543 = vmul.f32 %v7485, %v7539
        %v7544 = vmul.f32 %v7486, %v7539
        %v7545 = vmul.f32 %v7487, %v7539
        %v7546 = vmul.f32 %v7488, %v7539
        %v7547 = vmul.f32 %v7489, %v7539
        %v7548 = vmul.f32 %v7490, %v7539
        %v7549 = vmul.f32 %v7491, %v7539
        %v7550 = vmul.f32 %v7492, %v7539
        %v7551 = vmul.f32 %v7493, %v7539
        %v7552 = vmul.f32 %v7494, %v7539
        %v7553 = vmul.f32 %v7495, %v7539
        %v7554 = vmul.f32 %v7496, %v7539
        %v7555 = vmul.f32 %v7497, %v7539
        %v7556 = vadd.f32 %v7196, %v7540
        %v7557 = vadd.f32 %v7197, %v7541
        %v7558 = vadd.f32 %v7198, %v7542
        %v7559 = vadd.f32 %v7199, %v7543
        %v7560 = vadd.f32 %v7200, %v7544
        %v7561 = vadd.f32 %v7201, %v7545
        %v7562 = vadd.f32 %v7202, %v7546
        %v7563 = vadd.f32 %v7203, %v7547
        %v7564 = vadd.f32 %v7204, %v7548
        %v7565 = vadd.f32 %v7205, %v7549
        %v7566 = vadd.f32 %v7206, %v7550
        %v7567 = vadd.f32 %v7207, %v7551
        %v7568 = vadd.f32 %v7208, %v7552
        %v7569 = vadd.f32 %v7209, %v7553
        %v7570 = vadd.f32 %v7210, %v7554
        %v7571 = vadd.f32 %v7211, %v7555
        %v7572 = vld [vmem:[#allocation8 + $0x2f] sm:$0x1]
        %v7573 = vlaneseq
        %v7574 = vshrl.u32 %v7573, 7
        %v7575 = vsub.s32 0, %v7574
        %v7576 = vrot.slane %v7572, %v7575
        %v7577 = vmul.f32 %v7482, %v7576
        %v7578 = vmul.f32 %v7483, %v7576
        %v7579 = vmul.f32 %v7484, %v7576
        %v7580 = vmul.f32 %v7485, %v7576
        %v7581 = vmul.f32 %v7486, %v7576
        %v7582 = vmul.f32 %v7487, %v7576
        %v7583 = vmul.f32 %v7488, %v7576
        %v7584 = vmul.f32 %v7489, %v7576
        %v7585 = vmul.f32 %v7490, %v7576
        %v7586 = vmul.f32 %v7491, %v7576
        %v7587 = vmul.f32 %v7492, %v7576
        %v7588 = vmul.f32 %v7493, %v7576
        %v7589 = vmul.f32 %v7494, %v7576
        %v7590 = vmul.f32 %v7495, %v7576
        %v7591 = vmul.f32 %v7496, %v7576
        %v7592 = vmul.f32 %v7497, %v7576
        %v7593 = vadd.f32 %v7233, %v7577
        %v7594 = vadd.f32 %v7234, %v7578
        %v7595 = vadd.f32 %v7235, %v7579
        %v7596 = vadd.f32 %v7236, %v7580
        %v7597 = vadd.f32 %v7237, %v7581
        %v7598 = vadd.f32 %v7238, %v7582
        %v7599 = vadd.f32 %v7239, %v7583
        %v7600 = vadd.f32 %v7240, %v7584
        %v7601 = vadd.f32 %v7241, %v7585
        %v7602 = vadd.f32 %v7242, %v7586
        %v7603 = vadd.f32 %v7243, %v7587
        %v7604 = vadd.f32 %v7244, %v7588
        %v7605 = vadd.f32 %v7245, %v7589
        %v7606 = vadd.f32 %v7246, %v7590
        %v7607 = vadd.f32 %v7247, %v7591
        %v7608 = vadd.f32 %v7248, %v7592
        %v7609 = vld [vmem:[#allocation8 + $0x3f] sm:$0x1]
        %v7610 = vlaneseq
        %v7611 = vshrl.u32 %v7610, 7
        %v7612 = vsub.s32 0, %v7611
        %v7613 = vrot.slane %v7609, %v7612
        %v7614 = vmul.f32 %v7482, %v7613
        %v7615 = vmul.f32 %v7483, %v7613
        %v7616 = vmul.f32 %v7484, %v7613
        %v7617 = vmul.f32 %v7485, %v7613
        %v7618 = vmul.f32 %v7486, %v7613
        %v7619 = vmul.f32 %v7487, %v7613
        %v7620 = vmul.f32 %v7488, %v7613
        %v7621 = vmul.f32 %v7489, %v7613
        %v7622 = vmul.f32 %v7490, %v7613
        %v7623 = vmul.f32 %v7491, %v7613
        %v7624 = vmul.f32 %v7492, %v7613
        %v7625 = vmul.f32 %v7493, %v7613
        %v7626 = vmul.f32 %v7494, %v7613
        %v7627 = vmul.f32 %v7495, %v7613
        %v7628 = vmul.f32 %v7496, %v7613
        %v7629 = vmul.f32 %v7497, %v7613
        %v7630 = vadd.f32 %v7270, %v7614
        %v7631 = vadd.f32 %v7271, %v7615
        %v7632 = vadd.f32 %v7272, %v7616
        %v7633 = vadd.f32 %v7273, %v7617
        %v7634 = vadd.f32 %v7274, %v7618
        %v7635 = vadd.f32 %v7275, %v7619
        %v7636 = vadd.f32 %v7276, %v7620
        %v7637 = vadd.f32 %v7277, %v7621
        %v7638 = vadd.f32 %v7278, %v7622
        %v7639 = vadd.f32 %v7279, %v7623
        %v7640 = vadd.f32 %v7280, %v7624
        %v7641 = vadd.f32 %v7281, %v7625
        %v7642 = vadd.f32 %v7282, %v7626
        %v7643 = vadd.f32 %v7283, %v7627
        %v7644 = vadd.f32 %v7284, %v7628
        %v7645 = vadd.f32 %v7285, %v7629
        %v7646 = vld [vmem:[#allocation8 + $0x4f] sm:$0x1]
        %v7647 = vlaneseq
        %v7648 = vshrl.u32 %v7647, 7
        %v7649 = vsub.s32 0, %v7648
        %v7650 = vrot.slane %v7646, %v7649
        %v7651 = vmul.f32 %v7482, %v7650
        %v7652 = vmul.f32 %v7483, %v7650
        %v7653 = vmul.f32 %v7484, %v7650
        %v7654 = vmul.f32 %v7485, %v7650
        %v7655 = vmul.f32 %v7486, %v7650
        %v7656 = vmul.f32 %v7487, %v7650
        %v7657 = vmul.f32 %v7488, %v7650
        %v7658 = vmul.f32 %v7489, %v7650
        %v7659 = vmul.f32 %v7490, %v7650
        %v7660 = vmul.f32 %v7491, %v7650
        %v7661 = vmul.f32 %v7492, %v7650
        %v7662 = vmul.f32 %v7493, %v7650
        %v7663 = vmul.f32 %v7494, %v7650
        %v7664 = vmul.f32 %v7495, %v7650
        %v7665 = vmul.f32 %v7496, %v7650
        %v7666 = vmul.f32 %v7497, %v7650
        %v7667 = vadd.f32 %v7307, %v7651
        %v7668 = vadd.f32 %v7308, %v7652
        %v7669 = vadd.f32 %v7309, %v7653
        %v7670 = vadd.f32 %v7310, %v7654
        %v7671 = vadd.f32 %v7311, %v7655
        %v7672 = vadd.f32 %v7312, %v7656
        %v7673 = vadd.f32 %v7313, %v7657
        %v7674 = vadd.f32 %v7314, %v7658
        %v7675 = vadd.f32 %v7315, %v7659
        %v7676 = vadd.f32 %v7316, %v7660
        %v7677 = vadd.f32 %v7317, %v7661
        %v7678 = vadd.f32 %v7318, %v7662
        %v7679 = vadd.f32 %v7319, %v7663
        %v7680 = vadd.f32 %v7320, %v7664
        %v7681 = vadd.f32 %v7321, %v7665
        %v7682 = vadd.f32 %v7322, %v7666
        %v7683 = vld [vmem:[#allocation8 + $0x5f] sm:$0x1]
        %v7684 = vlaneseq
        %v7685 = vshrl.u32 %v7684, 7
        %v7686 = vsub.s32 0, %v7685
        %v7687 = vrot.slane %v7683, %v7686
        %v7688 = vmul.f32 %v7482, %v7687
        %v7689 = vmul.f32 %v7483, %v7687
        %v7690 = vmul.f32 %v7484, %v7687
        %v7691 = vmul.f32 %v7485, %v7687
        %v7692 = vmul.f32 %v7486, %v7687
        %v7693 = vmul.f32 %v7487, %v7687
        %v7694 = vmul.f32 %v7488, %v7687
        %v7695 = vmul.f32 %v7489, %v7687
        %v7696 = vmul.f32 %v7490, %v7687
        %v7697 = vmul.f32 %v7491, %v7687
        %v7698 = vmul.f32 %v7492, %v7687
        %v7699 = vmul.f32 %v7493, %v7687
        %v7700 = vmul.f32 %v7494, %v7687
        %v7701 = vmul.f32 %v7495, %v7687
        %v7702 = vmul.f32 %v7496, %v7687
        %v7703 = vmul.f32 %v7497, %v7687
        %v7704 = vadd.f32 %v7344, %v7688
        %v7705 = vadd.f32 %v7345, %v7689
        %v7706 = vadd.f32 %v7346, %v7690
        %v7707 = vadd.f32 %v7347, %v7691
        %v7708 = vadd.f32 %v7348, %v7692
        %v7709 = vadd.f32 %v7349, %v7693
        %v7710 = vadd.f32 %v7350, %v7694
        %v7711 = vadd.f32 %v7351, %v7695
        %v7712 = vadd.f32 %v7352, %v7696
        %v7713 = vadd.f32 %v7353, %v7697
        %v7714 = vadd.f32 %v7354, %v7698
        %v7715 = vadd.f32 %v7355, %v7699
        %v7716 = vadd.f32 %v7356, %v7700
        %v7717 = vadd.f32 %v7357, %v7701
        %v7718 = vadd.f32 %v7358, %v7702
        %v7719 = vadd.f32 %v7359, %v7703
        %v7720 = vld [vmem:[#allocation8 + $0x6f] sm:$0x1]
        %v7721 = vlaneseq
        %v7722 = vshrl.u32 %v7721, 7
        %v7723 = vsub.s32 0, %v7722
        %v7724 = vrot.slane %v7720, %v7723
        %v7725 = vmul.f32 %v7482, %v7724
        %v7726 = vmul.f32 %v7483, %v7724
        %v7727 = vmul.f32 %v7484, %v7724
        %v7728 = vmul.f32 %v7485, %v7724
        %v7729 = vmul.f32 %v7486, %v7724
        %v7730 = vmul.f32 %v7487, %v7724
        %v7731 = vmul.f32 %v7488, %v7724
        %v7732 = vmul.f32 %v7489, %v7724
        %v7733 = vmul.f32 %v7490, %v7724
        %v7734 = vmul.f32 %v7491, %v7724
        %v7735 = vmul.f32 %v7492, %v7724
        %v7736 = vmul.f32 %v7493, %v7724
        %v7737 = vmul.f32 %v7494, %v7724
        %v7738 = vmul.f32 %v7495, %v7724
        %v7739 = vmul.f32 %v7496, %v7724
        %v7740 = vmul.f32 %v7497, %v7724
        %v7741 = vadd.f32 %v7381, %v7725
        %v7742 = vadd.f32 %v7382, %v7726
        %v7743 = vadd.f32 %v7383, %v7727
        %v7744 = vadd.f32 %v7384, %v7728
        %v7745 = vadd.f32 %v7385, %v7729
        %v7746 = vadd.f32 %v7386, %v7730
        %v7747 = vadd.f32 %v7387, %v7731
        %v7748 = vadd.f32 %v7388, %v7732
        %v7749 = vadd.f32 %v7389, %v7733
        %v7750 = vadd.f32 %v7390, %v7734
        %v7751 = vadd.f32 %v7391, %v7735
        %v7752 = vadd.f32 %v7392, %v7736
        %v7753 = vadd.f32 %v7393, %v7737
        %v7754 = vadd.f32 %v7394, %v7738
        %v7755 = vadd.f32 %v7395, %v7739
        %v7756 = vadd.f32 %v7396, %v7740
        %v7757 = vld [vmem:[#allocation8 + $0x7f] sm:$0x1]
        %v7758 = vlaneseq
        %v7759 = vshrl.u32 %v7758, 7
        %v7760 = vsub.s32 0, %v7759
        %v7761 = vrot.slane %v7757, %v7760
        %v7762 = vmul.f32 %v7482, %v7761
        %v7763 = vmul.f32 %v7483, %v7761
        %v7764 = vmul.f32 %v7484, %v7761
        %v7765 = vmul.f32 %v7485, %v7761
        %v7766 = vmul.f32 %v7486, %v7761
        %v7767 = vmul.f32 %v7487, %v7761
        %v7768 = vmul.f32 %v7488, %v7761
        %v7769 = vmul.f32 %v7489, %v7761
        %v7770 = vmul.f32 %v7490, %v7761
        %v7771 = vmul.f32 %v7491, %v7761
        %v7772 = vmul.f32 %v7492, %v7761
        %v7773 = vmul.f32 %v7493, %v7761
        %v7774 = vmul.f32 %v7494, %v7761
        %v7775 = vmul.f32 %v7495, %v7761
        %v7776 = vmul.f32 %v7496, %v7761
        %v7777 = vmul.f32 %v7497, %v7761
        %v7778 = vadd.f32 %v7418, %v7762
        %v7779 = vadd.f32 %v7419, %v7763
        %v7780 = vadd.f32 %v7420, %v7764
        %v7781 = vadd.f32 %v7421, %v7765
        %v7782 = vadd.f32 %v7422, %v7766
        %v7783 = vadd.f32 %v7423, %v7767
        %v7784 = vadd.f32 %v7424, %v7768
        %v7785 = vadd.f32 %v7425, %v7769
        %v7786 = vadd.f32 %v7426, %v7770
        %v7787 = vadd.f32 %v7427, %v7771
        %v7788 = vadd.f32 %v7428, %v7772
        %v7789 = vadd.f32 %v7429, %v7773
        %v7790 = vadd.f32 %v7430, %v7774
        %v7791 = vadd.f32 %v7431, %v7775
        %v7792 = vadd.f32 %v7432, %v7776
        %v7793 = vadd.f32 %v7433, %v7777
        %v7794 = vld [vmem:[%s4] sm:$0x1]
        %v7795 = vlaneseq
        %v7796 = vshrl.u32 %v7795, 7
        %v7797 = vsub.s32 0, %v7796
        %v7798 = vrot.slane %v7794, %v7797
        %v7799 = vadd.f32 %v7519, %v7798
        %v7800 = vadd.f32 %v7520, %v7798
        %v7801 = vadd.f32 %v7521, %v7798
        %v7802 = vadd.f32 %v7522, %v7798
        %v7803 = vadd.f32 %v7523, %v7798
        %v7804 = vadd.f32 %v7524, %v7798
        %v7805 = vadd.f32 %v7525, %v7798
        %v7806 = vadd.f32 %v7526, %v7798
        %v7807 = vadd.f32 %v7527, %v7798
        %v7808 = vadd.f32 %v7528, %v7798
        %v7809 = vadd.f32 %v7529, %v7798
        %v7810 = vadd.f32 %v7530, %v7798
        %v7811 = vadd.f32 %v7531, %v7798
        %v7812 = vadd.f32 %v7532, %v7798
        %v7813 = vadd.f32 %v7533, %v7798
        %v7814 = vadd.f32 %v7534, %v7798
        %v7815 = vld [vmem:[%s4 + $0x1] sm:$0x1]
        %v7816 = vlaneseq
        %v7817 = vshrl.u32 %v7816, 7
        %v7818 = vsub.s32 0, %v7817
        %v7819 = vrot.slane %v7815, %v7818
        %v7820 = vadd.f32 %v7556, %v7819
        %v7821 = vadd.f32 %v7557, %v7819
        %v7822 = vadd.f32 %v7558, %v7819
        %v7823 = vadd.f32 %v7559, %v7819
        %v7824 = vadd.f32 %v7560, %v7819
        %v7825 = vadd.f32 %v7561, %v7819
        %v7826 = vadd.f32 %v7562, %v7819
        %v7827 = vadd.f32 %v7563, %v7819
        %v7828 = vadd.f32 %v7564, %v7819
        %v7829 = vadd.f32 %v7565, %v7819
        %v7830 = vadd.f32 %v7566, %v7819
        %v7831 = vadd.f32 %v7567, %v7819
        %v7832 = vadd.f32 %v7568, %v7819
        %v7833 = vadd.f32 %v7569, %v7819
        %v7834 = vadd.f32 %v7570, %v7819
        %v7835 = vadd.f32 %v7571, %v7819
        %v7836 = vld [vmem:[%s4 + $0x2] sm:$0x1]
        %v7837 = vlaneseq
        %v7838 = vshrl.u32 %v7837, 7
        %v7839 = vsub.s32 0, %v7838
        %v7840 = vrot.slane %v7836, %v7839
        %v7841 = vadd.f32 %v7593, %v7840
        %v7842 = vadd.f32 %v7594, %v7840
        %v7843 = vadd.f32 %v7595, %v7840
        %v7844 = vadd.f32 %v7596, %v7840
        %v7845 = vadd.f32 %v7597, %v7840
        %v7846 = vadd.f32 %v7598, %v7840
        %v7847 = vadd.f32 %v7599, %v7840
        %v7848 = vadd.f32 %v7600, %v7840
        %v7849 = vadd.f32 %v7601, %v7840
        %v7850 = vadd.f32 %v7602, %v7840
        %v7851 = vadd.f32 %v7603, %v7840
        %v7852 = vadd.f32 %v7604, %v7840
        %v7853 = vadd.f32 %v7605, %v7840
        %v7854 = vadd.f32 %v7606, %v7840
        %v7855 = vadd.f32 %v7607, %v7840
        %v7856 = vadd.f32 %v7608, %v7840
        %v7857 = vld [vmem:[%s4 + $0x3] sm:$0x1]
        %v7858 = vlaneseq
        %v7859 = vshrl.u32 %v7858, 7
        %v7860 = vsub.s32 0, %v7859
        %v7861 = vrot.slane %v7857, %v7860
        %v7862 = vadd.f32 %v7630, %v7861
        %v7863 = vadd.f32 %v7631, %v7861
        %v7864 = vadd.f32 %v7632, %v7861
        %v7865 = vadd.f32 %v7633, %v7861
        %v7866 = vadd.f32 %v7634, %v7861
        %v7867 = vadd.f32 %v7635, %v7861
        %v7868 = vadd.f32 %v7636, %v7861
        %v7869 = vadd.f32 %v7637, %v7861
        %v7870 = vadd.f32 %v7638, %v7861
        %v7871 = vadd.f32 %v7639, %v7861
        %v7872 = vadd.f32 %v7640, %v7861
        %v7873 = vadd.f32 %v7641, %v7861
        %v7874 = vadd.f32 %v7642, %v7861
        %v7875 = vadd.f32 %v7643, %v7861
        %v7876 = vadd.f32 %v7644, %v7861
        %v7877 = vadd.f32 %v7645, %v7861
        %v7878 = vld [vmem:[%s4 + $0x4] sm:$0x1]
        %v7879 = vlaneseq
        %v7880 = vshrl.u32 %v7879, 7
        %v7881 = vsub.s32 0, %v7880
        %v7882 = vrot.slane %v7878, %v7881
        %v7883 = vadd.f32 %v7667, %v7882
        %v7884 = vadd.f32 %v7668, %v7882
        %v7885 = vadd.f32 %v7669, %v7882
        %v7886 = vadd.f32 %v7670, %v7882
        %v7887 = vadd.f32 %v7671, %v7882
        %v7888 = vadd.f32 %v7672, %v7882
        %v7889 = vadd.f32 %v7673, %v7882
        %v7890 = vadd.f32 %v7674, %v7882
        %v7891 = vadd.f32 %v7675, %v7882
        %v7892 = vadd.f32 %v7676, %v7882
        %v7893 = vadd.f32 %v7677, %v7882
        %v7894 = vadd.f32 %v7678, %v7882
        %v7895 = vadd.f32 %v7679, %v7882
        %v7896 = vadd.f32 %v7680, %v7882
        %v7897 = vadd.f32 %v7681, %v7882
        %v7898 = vadd.f32 %v7682, %v7882
        %v7899 = vld [vmem:[%s4 + $0x5] sm:$0x1]
        %v7900 = vlaneseq
        %v7901 = vshrl.u32 %v7900, 7
        %v7902 = vsub.s32 0, %v7901
        %v7903 = vrot.slane %v7899, %v7902
        %v7904 = vadd.f32 %v7704, %v7903
        %v7905 = vadd.f32 %v7705, %v7903
        %v7906 = vadd.f32 %v7706, %v7903
        %v7907 = vadd.f32 %v7707, %v7903
        %v7908 = vadd.f32 %v7708, %v7903
        %v7909 = vadd.f32 %v7709, %v7903
        %v7910 = vadd.f32 %v7710, %v7903
        %v7911 = vadd.f32 %v7711, %v7903
        %v7912 = vadd.f32 %v7712, %v7903
        %v7913 = vadd.f32 %v7713, %v7903
        %v7914 = vadd.f32 %v7714, %v7903
        %v7915 = vadd.f32 %v7715, %v7903
        %v7916 = vadd.f32 %v7716, %v7903
        %v7917 = vadd.f32 %v7717, %v7903
        %v7918 = vadd.f32 %v7718, %v7903
        %v7919 = vadd.f32 %v7719, %v7903
        %v7920 = vld [vmem:[%s4 + $0x6] sm:$0x1]
        %v7921 = vlaneseq
        %v7922 = vshrl.u32 %v7921, 7
        %v7923 = vsub.s32 0, %v7922
        %v7924 = vrot.slane %v7920, %v7923
        %v7925 = vadd.f32 %v7741, %v7924
        %v7926 = vadd.f32 %v7742, %v7924
        %v7927 = vadd.f32 %v7743, %v7924
        %v7928 = vadd.f32 %v7744, %v7924
        %v7929 = vadd.f32 %v7745, %v7924
        %v7930 = vadd.f32 %v7746, %v7924
        %v7931 = vadd.f32 %v7747, %v7924
        %v7932 = vadd.f32 %v7748, %v7924
        %v7933 = vadd.f32 %v7749, %v7924
        %v7934 = vadd.f32 %v7750, %v7924
        %v7935 = vadd.f32 %v7751, %v7924
        %v7936 = vadd.f32 %v7752, %v7924
        %v7937 = vadd.f32 %v7753, %v7924
        %v7938 = vadd.f32 %v7754, %v7924
        %v7939 = vadd.f32 %v7755, %v7924
        %v7940 = vadd.f32 %v7756, %v7924
        %v7941 = vld [vmem:[%s4 + $0x7] sm:$0x1]
        %v7942 = vlaneseq
        %v7943 = vshrl.u32 %v7942, 7
        %v7944 = vsub.s32 0, %v7943
        %v7945 = vrot.slane %v7941, %v7944
        %v7946 = vadd.f32 %v7778, %v7945
        %v7947 = vadd.f32 %v7779, %v7945
        %v7948 = vadd.f32 %v7780, %v7945
        %v7949 = vadd.f32 %v7781, %v7945
        %v7950 = vadd.f32 %v7782, %v7945
        %v7951 = vadd.f32 %v7783, %v7945
        %v7952 = vadd.f32 %v7784, %v7945
        %v7953 = vadd.f32 %v7785, %v7945
        %v7954 = vadd.f32 %v7786, %v7945
        %v7955 = vadd.f32 %v7787, %v7945
        %v7956 = vadd.f32 %v7788, %v7945
        %v7957 = vadd.f32 %v7789, %v7945
        %v7958 = vadd.f32 %v7790, %v7945
        %v7959 = vadd.f32 %v7791, %v7945
        %v7960 = vadd.f32 %v7792, %v7945
        %v7961 = vadd.f32 %v7793, %v7945
        %v7962 = vmul.f32 %v7799, 0.5
        %v7963 = vmul.f32 %v7800, 0.5
        %v7964 = vmul.f32 %v7801, 0.5
        %v7965 = vmul.f32 %v7802, 0.5
        %v7966 = vmul.f32 %v7803, 0.5
        %v7967 = vmul.f32 %v7804, 0.5
        %v7968 = vmul.f32 %v7805, 0.5
        %v7969 = vmul.f32 %v7806, 0.5
        %v7970 = vmul.f32 %v7807, 0.5
        %v7971 = vmul.f32 %v7808, 0.5
        %v7972 = vmul.f32 %v7809, 0.5
        %v7973 = vmul.f32 %v7810, 0.5
        %v7974 = vmul.f32 %v7811, 0.5
        %v7975 = vmul.f32 %v7812, 0.5
        %v7976 = vmul.f32 %v7813, 0.5
        %v7977 = vmul.f32 %v7814, 0.5
        %v7978 = vtanh.pop %v7962
        %v7979 = vtanh.pop %v7963
        %v7980 = vtanh.pop %v7964
        %v7981 = vtanh.pop %v7965
        %v7982 = vtanh.pop %v7966
        %v7983 = vtanh.pop %v7967
        %v7984 = vtanh.pop %v7968
        %v7985 = vtanh.pop %v7969
        %v7986 = vtanh.pop %v7970
        %v7987 = vtanh.pop %v7971
        %v7988 = vtanh.pop %v7972
        %v7989 = vtanh.pop %v7973
        %v7990 = vtanh.pop %v7974
        %v7991 = vtanh.pop %v7975
        %v7992 = vtanh.pop %v7976
        %v7993 = vtanh.pop %v7977
        %v7994 = vmul.f32 %v7978, 0.5
        %v7995 = vmul.f32 %v7979, 0.5
        %v7996 = vmul.f32 %v7980, 0.5
        %v7997 = vmul.f32 %v7981, 0.5
        %v7998 = vmul.f32 %v7982, 0.5
        %v7999 = vmul.f32 %v7983, 0.5
        %v8000 = vmul.f32 %v7984, 0.5
        %v8001 = vmul.f32 %v7985, 0.5
        %v8002 = vmul.f32 %v7986, 0.5
        %v8003 = vmul.f32 %v7987, 0.5
        %v8004 = vmul.f32 %v7988, 0.5
        %v8005 = vmul.f32 %v7989, 0.5
        %v8006 = vmul.f32 %v7990, 0.5
        %v8007 = vmul.f32 %v7991, 0.5
        %v8008 = vmul.f32 %v7992, 0.5
        %v8009 = vmul.f32 %v7993, 0.5
        %v8010 = vadd.f32 %v7994, 0.5
        %v8011 = vadd.f32 %v7995, 0.5
        %v8012 = vadd.f32 %v7996, 0.5
        %v8013 = vadd.f32 %v7997, 0.5
        %v8014 = vadd.f32 %v7998, 0.5
        %v8015 = vadd.f32 %v7999, 0.5
        %v8016 = vadd.f32 %v8000, 0.5
        %v8017 = vadd.f32 %v8001, 0.5
        %v8018 = vadd.f32 %v8002, 0.5
        %v8019 = vadd.f32 %v8003, 0.5
        %v8020 = vadd.f32 %v8004, 0.5
        %v8021 = vadd.f32 %v8005, 0.5
        %v8022 = vadd.f32 %v8006, 0.5
        %v8023 = vadd.f32 %v8007, 0.5
        %v8024 = vadd.f32 %v8008, 0.5
        %v8025 = vadd.f32 %v8009, 0.5
        %v8026 = vld [vmem:[%s5] sm:$0x1]
        %v8027 = vlaneseq
        %v8028 = vshrl.u32 %v8027, 7
        %v8029 = vsub.s32 0, %v8028
        %v8030 = vrot.slane %v8026, %v8029
        %v8031 = vmul.f32 %v8010, %v8030
        %v8032 = vmul.f32 %v8011, %v8030
        %v8033 = vmul.f32 %v8012, %v8030
        %v8034 = vmul.f32 %v8013, %v8030
        %v8035 = vmul.f32 %v8014, %v8030
        %v8036 = vmul.f32 %v8015, %v8030
        %v8037 = vmul.f32 %v8016, %v8030
        %v8038 = vmul.f32 %v8017, %v8030
        %v8039 = vmul.f32 %v8018, %v8030
        %v8040 = vmul.f32 %v8019, %v8030
        %v8041 = vmul.f32 %v8020, %v8030
        %v8042 = vmul.f32 %v8021, %v8030
        %v8043 = vmul.f32 %v8022, %v8030
        %v8044 = vmul.f32 %v8023, %v8030
        %v8045 = vmul.f32 %v8024, %v8030
        %v8046 = vmul.f32 %v8025, %v8030
        %v8047 = vmul.f32 %v7820, 0.5
        %v8048 = vmul.f32 %v7821, 0.5
        %v8049 = vmul.f32 %v7822, 0.5
        %v8050 = vmul.f32 %v7823, 0.5
        %v8051 = vmul.f32 %v7824, 0.5
        %v8052 = vmul.f32 %v7825, 0.5
        %v8053 = vmul.f32 %v7826, 0.5
        %v8054 = vmul.f32 %v7827, 0.5
        %v8055 = vmul.f32 %v7828, 0.5
        %v8056 = vmul.f32 %v7829, 0.5
        %v8057 = vmul.f32 %v7830, 0.5
        %v8058 = vmul.f32 %v7831, 0.5
        %v8059 = vmul.f32 %v7832, 0.5
        %v8060 = vmul.f32 %v7833, 0.5
        %v8061 = vmul.f32 %v7834, 0.5
        %v8062 = vmul.f32 %v7835, 0.5
        %v8063 = vtanh.pop %v8047
        %v8064 = vtanh.pop %v8048
        %v8065 = vtanh.pop %v8049
        %v8066 = vtanh.pop %v8050
        %v8067 = vtanh.pop %v8051
        %v8068 = vtanh.pop %v8052
        %v8069 = vtanh.pop %v8053
        %v8070 = vtanh.pop %v8054
        %v8071 = vtanh.pop %v8055
        %v8072 = vtanh.pop %v8056
        %v8073 = vtanh.pop %v8057
        %v8074 = vtanh.pop %v8058
        %v8075 = vtanh.pop %v8059
        %v8076 = vtanh.pop %v8060
        %v8077 = vtanh.pop %v8061
        %v8078 = vtanh.pop %v8062
        %v8079 = vmul.f32 %v8063, 0.5
        %v8080 = vmul.f32 %v8064, 0.5
        %v8081 = vmul.f32 %v8065, 0.5
        %v8082 = vmul.f32 %v8066, 0.5
        %v8083 = vmul.f32 %v8067, 0.5
        %v8084 = vmul.f32 %v8068, 0.5
        %v8085 = vmul.f32 %v8069, 0.5
        %v8086 = vmul.f32 %v8070, 0.5
        %v8087 = vmul.f32 %v8071, 0.5
        %v8088 = vmul.f32 %v8072, 0.5
        %v8089 = vmul.f32 %v8073, 0.5
        %v8090 = vmul.f32 %v8074, 0.5
        %v8091 = vmul.f32 %v8075, 0.5
        %v8092 = vmul.f32 %v8076, 0.5
        %v8093 = vmul.f32 %v8077, 0.5
        %v8094 = vmul.f32 %v8078, 0.5
        %v8095 = vadd.f32 %v8079, 0.5
        %v8096 = vadd.f32 %v8080, 0.5
        %v8097 = vadd.f32 %v8081, 0.5
        %v8098 = vadd.f32 %v8082, 0.5
        %v8099 = vadd.f32 %v8083, 0.5
        %v8100 = vadd.f32 %v8084, 0.5
        %v8101 = vadd.f32 %v8085, 0.5
        %v8102 = vadd.f32 %v8086, 0.5
        %v8103 = vadd.f32 %v8087, 0.5
        %v8104 = vadd.f32 %v8088, 0.5
        %v8105 = vadd.f32 %v8089, 0.5
        %v8106 = vadd.f32 %v8090, 0.5
        %v8107 = vadd.f32 %v8091, 0.5
        %v8108 = vadd.f32 %v8092, 0.5
        %v8109 = vadd.f32 %v8093, 0.5
        %v8110 = vadd.f32 %v8094, 0.5
        %v8111 = vld [vmem:[%s5 + $0x1] sm:$0x1]
        %v8112 = vlaneseq
        %v8113 = vshrl.u32 %v8112, 7
        %v8114 = vsub.s32 0, %v8113
        %v8115 = vrot.slane %v8111, %v8114
        %v8116 = vmul.f32 %v8095, %v8115
        %v8117 = vmul.f32 %v8096, %v8115
        %v8118 = vmul.f32 %v8097, %v8115
        %v8119 = vmul.f32 %v8098, %v8115
        %v8120 = vmul.f32 %v8099, %v8115
        %v8121 = vmul.f32 %v8100, %v8115
        %v8122 = vmul.f32 %v8101, %v8115
        %v8123 = vmul.f32 %v8102, %v8115
        %v8124 = vmul.f32 %v8103, %v8115
        %v8125 = vmul.f32 %v8104, %v8115
        %v8126 = vmul.f32 %v8105, %v8115
        %v8127 = vmul.f32 %v8106, %v8115
        %v8128 = vmul.f32 %v8107, %v8115
        %v8129 = vmul.f32 %v8108, %v8115
        %v8130 = vmul.f32 %v8109, %v8115
        %v8131 = vmul.f32 %v8110, %v8115
        %v8132 = vadd.f32 %v8031, %v8116
        %v8133 = vadd.f32 %v8032, %v8117
        %v8134 = vadd.f32 %v8033, %v8118
        %v8135 = vadd.f32 %v8034, %v8119
        %v8136 = vadd.f32 %v8035, %v8120
        %v8137 = vadd.f32 %v8036, %v8121
        %v8138 = vadd.f32 %v8037, %v8122
        %v8139 = vadd.f32 %v8038, %v8123
        %v8140 = vadd.f32 %v8039, %v8124
        %v8141 = vadd.f32 %v8040, %v8125
        %v8142 = vadd.f32 %v8041, %v8126
        %v8143 = vadd.f32 %v8042, %v8127
        %v8144 = vadd.f32 %v8043, %v8128
        %v8145 = vadd.f32 %v8044, %v8129
        %v8146 = vadd.f32 %v8045, %v8130
        %v8147 = vadd.f32 %v8046, %v8131
        %v8148 = vmul.f32 %v7841, 0.5
        %v8149 = vmul.f32 %v7842, 0.5
        %v8150 = vmul.f32 %v7843, 0.5
        %v8151 = vmul.f32 %v7844, 0.5
        %v8152 = vmul.f32 %v7845, 0.5
        %v8153 = vmul.f32 %v7846, 0.5
        %v8154 = vmul.f32 %v7847, 0.5
        %v8155 = vmul.f32 %v7848, 0.5
        %v8156 = vmul.f32 %v7849, 0.5
        %v8157 = vmul.f32 %v7850, 0.5
        %v8158 = vmul.f32 %v7851, 0.5
        %v8159 = vmul.f32 %v7852, 0.5
        %v8160 = vmul.f32 %v7853, 0.5
        %v8161 = vmul.f32 %v7854, 0.5
        %v8162 = vmul.f32 %v7855, 0.5
        %v8163 = vmul.f32 %v7856, 0.5
        %v8164 = vtanh.pop %v8148
        %v8165 = vtanh.pop %v8149
        %v8166 = vtanh.pop %v8150
        %v8167 = vtanh.pop %v8151
        %v8168 = vtanh.pop %v8152
        %v8169 = vtanh.pop %v8153
        %v8170 = vtanh.pop %v8154
        %v8171 = vtanh.pop %v8155
        %v8172 = vtanh.pop %v8156
        %v8173 = vtanh.pop %v8157
        %v8174 = vtanh.pop %v8158
        %v8175 = vtanh.pop %v8159
        %v8176 = vtanh.pop %v8160
        %v8177 = vtanh.pop %v8161
        %v8178 = vtanh.pop %v8162
        %v8179 = vtanh.pop %v8163
        %v8180 = vmul.f32 %v8164, 0.5
        %v8181 = vmul.f32 %v8165, 0.5
        %v8182 = vmul.f32 %v8166, 0.5
        %v8183 = vmul.f32 %v8167, 0.5
        %v8184 = vmul.f32 %v8168, 0.5
        %v8185 = vmul.f32 %v8169, 0.5
        %v8186 = vmul.f32 %v8170, 0.5
        %v8187 = vmul.f32 %v8171, 0.5
        %v8188 = vmul.f32 %v8172, 0.5
        %v8189 = vmul.f32 %v8173, 0.5
        %v8190 = vmul.f32 %v8174, 0.5
        %v8191 = vmul.f32 %v8175, 0.5
        %v8192 = vmul.f32 %v8176, 0.5
        %v8193 = vmul.f32 %v8177, 0.5
        %v8194 = vmul.f32 %v8178, 0.5
        %v8195 = vmul.f32 %v8179, 0.5
        %v8196 = vadd.f32 %v8180, 0.5
        %v8197 = vadd.f32 %v8181, 0.5
        %v8198 = vadd.f32 %v8182, 0.5
        %v8199 = vadd.f32 %v8183, 0.5
        %v8200 = vadd.f32 %v8184, 0.5
        %v8201 = vadd.f32 %v8185, 0.5
        %v8202 = vadd.f32 %v8186, 0.5
        %v8203 = vadd.f32 %v8187, 0.5
        %v8204 = vadd.f32 %v8188, 0.5
        %v8205 = vadd.f32 %v8189, 0.5
        %v8206 = vadd.f32 %v8190, 0.5
        %v8207 = vadd.f32 %v8191, 0.5
        %v8208 = vadd.f32 %v8192, 0.5
        %v8209 = vadd.f32 %v8193, 0.5
        %v8210 = vadd.f32 %v8194, 0.5
        %v8211 = vadd.f32 %v8195, 0.5
        %v8212 = vld [vmem:[%s5 + $0x2] sm:$0x1]
        %v8213 = vlaneseq
        %v8214 = vshrl.u32 %v8213, 7
        %v8215 = vsub.s32 0, %v8214
        %v8216 = vrot.slane %v8212, %v8215
        %v8217 = vmul.f32 %v8196, %v8216
        %v8218 = vmul.f32 %v8197, %v8216
        %v8219 = vmul.f32 %v8198, %v8216
        %v8220 = vmul.f32 %v8199, %v8216
        %v8221 = vmul.f32 %v8200, %v8216
        %v8222 = vmul.f32 %v8201, %v8216
        %v8223 = vmul.f32 %v8202, %v8216
        %v8224 = vmul.f32 %v8203, %v8216
        %v8225 = vmul.f32 %v8204, %v8216
        %v8226 = vmul.f32 %v8205, %v8216
        %v8227 = vmul.f32 %v8206, %v8216
        %v8228 = vmul.f32 %v8207, %v8216
        %v8229 = vmul.f32 %v8208, %v8216
        %v8230 = vmul.f32 %v8209, %v8216
        %v8231 = vmul.f32 %v8210, %v8216
        %v8232 = vmul.f32 %v8211, %v8216
        %v8233 = vadd.f32 %v8132, %v8217
        %v8234 = vadd.f32 %v8133, %v8218
        %v8235 = vadd.f32 %v8134, %v8219
        %v8236 = vadd.f32 %v8135, %v8220
        %v8237 = vadd.f32 %v8136, %v8221
        %v8238 = vadd.f32 %v8137, %v8222
        %v8239 = vadd.f32 %v8138, %v8223
        %v8240 = vadd.f32 %v8139, %v8224
        %v8241 = vadd.f32 %v8140, %v8225
        %v8242 = vadd.f32 %v8141, %v8226
        %v8243 = vadd.f32 %v8142, %v8227
        %v8244 = vadd.f32 %v8143, %v8228
        %v8245 = vadd.f32 %v8144, %v8229
        %v8246 = vadd.f32 %v8145, %v8230
        %v8247 = vadd.f32 %v8146, %v8231
        %v8248 = vadd.f32 %v8147, %v8232
        %v8249 = vmul.f32 %v7862, 0.5
        %v8250 = vmul.f32 %v7863, 0.5
        %v8251 = vmul.f32 %v7864, 0.5
        %v8252 = vmul.f32 %v7865, 0.5
        %v8253 = vmul.f32 %v7866, 0.5
        %v8254 = vmul.f32 %v7867, 0.5
        %v8255 = vmul.f32 %v7868, 0.5
        %v8256 = vmul.f32 %v7869, 0.5
        %v8257 = vmul.f32 %v7870, 0.5
        %v8258 = vmul.f32 %v7871, 0.5
        %v8259 = vmul.f32 %v7872, 0.5
        %v8260 = vmul.f32 %v7873, 0.5
        %v8261 = vmul.f32 %v7874, 0.5
        %v8262 = vmul.f32 %v7875, 0.5
        %v8263 = vmul.f32 %v7876, 0.5
        %v8264 = vmul.f32 %v7877, 0.5
        %v8265 = vtanh.pop %v8249
        %v8266 = vtanh.pop %v8250
        %v8267 = vtanh.pop %v8251
        %v8268 = vtanh.pop %v8252
        %v8269 = vtanh.pop %v8253
        %v8270 = vtanh.pop %v8254
        %v8271 = vtanh.pop %v8255
        %v8272 = vtanh.pop %v8256
        %v8273 = vtanh.pop %v8257
        %v8274 = vtanh.pop %v8258
        %v8275 = vtanh.pop %v8259
        %v8276 = vtanh.pop %v8260
        %v8277 = vtanh.pop %v8261
        %v8278 = vtanh.pop %v8262
        %v8279 = vtanh.pop %v8263
        %v8280 = vtanh.pop %v8264
        %v8281 = vmul.f32 %v8265, 0.5
        %v8282 = vmul.f32 %v8266, 0.5
        %v8283 = vmul.f32 %v8267, 0.5
        %v8284 = vmul.f32 %v8268, 0.5
        %v8285 = vmul.f32 %v8269, 0.5
        %v8286 = vmul.f32 %v8270, 0.5
        %v8287 = vmul.f32 %v8271, 0.5
        %v8288 = vmul.f32 %v8272, 0.5
        %v8289 = vmul.f32 %v8273, 0.5
        %v8290 = vmul.f32 %v8274, 0.5
        %v8291 = vmul.f32 %v8275, 0.5
        %v8292 = vmul.f32 %v8276, 0.5
        %v8293 = vmul.f32 %v8277, 0.5
        %v8294 = vmul.f32 %v8278, 0.5
        %v8295 = vmul.f32 %v8279, 0.5
        %v8296 = vmul.f32 %v8280, 0.5
        %v8297 = vadd.f32 %v8281, 0.5
        %v8298 = vadd.f32 %v8282, 0.5
        %v8299 = vadd.f32 %v8283, 0.5
        %v8300 = vadd.f32 %v8284, 0.5
        %v8301 = vadd.f32 %v8285, 0.5
        %v8302 = vadd.f32 %v8286, 0.5
        %v8303 = vadd.f32 %v8287, 0.5
        %v8304 = vadd.f32 %v8288, 0.5
        %v8305 = vadd.f32 %v8289, 0.5
        %v8306 = vadd.f32 %v8290, 0.5
        %v8307 = vadd.f32 %v8291, 0.5
        %v8308 = vadd.f32 %v8292, 0.5
        %v8309 = vadd.f32 %v8293, 0.5
        %v8310 = vadd.f32 %v8294, 0.5
        %v8311 = vadd.f32 %v8295, 0.5
        %v8312 = vadd.f32 %v8296, 0.5
        %v8313 = vld [vmem:[%s5 + $0x3] sm:$0x1]
        %v8314 = vlaneseq
        %v8315 = vshrl.u32 %v8314, 7
        %v8316 = vsub.s32 0, %v8315
        %v8317 = vrot.slane %v8313, %v8316
        %v8318 = vmul.f32 %v8297, %v8317
        %v8319 = vmul.f32 %v8298, %v8317
        %v8320 = vmul.f32 %v8299, %v8317
        %v8321 = vmul.f32 %v8300, %v8317
        %v8322 = vmul.f32 %v8301, %v8317
        %v8323 = vmul.f32 %v8302, %v8317
        %v8324 = vmul.f32 %v8303, %v8317
        %v8325 = vmul.f32 %v8304, %v8317
        %v8326 = vmul.f32 %v8305, %v8317
        %v8327 = vmul.f32 %v8306, %v8317
        %v8328 = vmul.f32 %v8307, %v8317
        %v8329 = vmul.f32 %v8308, %v8317
        %v8330 = vmul.f32 %v8309, %v8317
        %v8331 = vmul.f32 %v8310, %v8317
        %v8332 = vmul.f32 %v8311, %v8317
        %v8333 = vmul.f32 %v8312, %v8317
        %v8334 = vadd.f32 %v8233, %v8318
        %v8335 = vadd.f32 %v8234, %v8319
        %v8336 = vadd.f32 %v8235, %v8320
        %v8337 = vadd.f32 %v8236, %v8321
        %v8338 = vadd.f32 %v8237, %v8322
        %v8339 = vadd.f32 %v8238, %v8323
        %v8340 = vadd.f32 %v8239, %v8324
        %v8341 = vadd.f32 %v8240, %v8325
        %v8342 = vadd.f32 %v8241, %v8326
        %v8343 = vadd.f32 %v8242, %v8327
        %v8344 = vadd.f32 %v8243, %v8328
        %v8345 = vadd.f32 %v8244, %v8329
        %v8346 = vadd.f32 %v8245, %v8330
        %v8347 = vadd.f32 %v8246, %v8331
        %v8348 = vadd.f32 %v8247, %v8332
        %v8349 = vadd.f32 %v8248, %v8333
        %v8350 = vmul.f32 %v7883, 0.5
        %v8351 = vmul.f32 %v7884, 0.5
        %v8352 = vmul.f32 %v7885, 0.5
        %v8353 = vmul.f32 %v7886, 0.5
        %v8354 = vmul.f32 %v7887, 0.5
        %v8355 = vmul.f32 %v7888, 0.5
        %v8356 = vmul.f32 %v7889, 0.5
        %v8357 = vmul.f32 %v7890, 0.5
        %v8358 = vmul.f32 %v7891, 0.5
        %v8359 = vmul.f32 %v7892, 0.5
        %v8360 = vmul.f32 %v7893, 0.5
        %v8361 = vmul.f32 %v7894, 0.5
        %v8362 = vmul.f32 %v7895, 0.5
        %v8363 = vmul.f32 %v7896, 0.5
        %v8364 = vmul.f32 %v7897, 0.5
        %v8365 = vmul.f32 %v7898, 0.5
        %v8366 = vtanh.pop %v8350
        %v8367 = vtanh.pop %v8351
        %v8368 = vtanh.pop %v8352
        %v8369 = vtanh.pop %v8353
        %v8370 = vtanh.pop %v8354
        %v8371 = vtanh.pop %v8355
        %v8372 = vtanh.pop %v8356
        %v8373 = vtanh.pop %v8357
        %v8374 = vtanh.pop %v8358
        %v8375 = vtanh.pop %v8359
        %v8376 = vtanh.pop %v8360
        %v8377 = vtanh.pop %v8361
        %v8378 = vtanh.pop %v8362
        %v8379 = vtanh.pop %v8363
        %v8380 = vtanh.pop %v8364
        %v8381 = vtanh.pop %v8365
        %v8382 = vmul.f32 %v8366, 0.5
        %v8383 = vmul.f32 %v8367, 0.5
        %v8384 = vmul.f32 %v8368, 0.5
        %v8385 = vmul.f32 %v8369, 0.5
        %v8386 = vmul.f32 %v8370, 0.5
        %v8387 = vmul.f32 %v8371, 0.5
        %v8388 = vmul.f32 %v8372, 0.5
        %v8389 = vmul.f32 %v8373, 0.5
        %v8390 = vmul.f32 %v8374, 0.5
        %v8391 = vmul.f32 %v8375, 0.5
        %v8392 = vmul.f32 %v8376, 0.5
        %v8393 = vmul.f32 %v8377, 0.5
        %v8394 = vmul.f32 %v8378, 0.5
        %v8395 = vmul.f32 %v8379, 0.5
        %v8396 = vmul.f32 %v8380, 0.5
        %v8397 = vmul.f32 %v8381, 0.5
        %v8398 = vadd.f32 %v8382, 0.5
        %v8399 = vadd.f32 %v8383, 0.5
        %v8400 = vadd.f32 %v8384, 0.5
        %v8401 = vadd.f32 %v8385, 0.5
        %v8402 = vadd.f32 %v8386, 0.5
        %v8403 = vadd.f32 %v8387, 0.5
        %v8404 = vadd.f32 %v8388, 0.5
        %v8405 = vadd.f32 %v8389, 0.5
        %v8406 = vadd.f32 %v8390, 0.5
        %v8407 = vadd.f32 %v8391, 0.5
        %v8408 = vadd.f32 %v8392, 0.5
        %v8409 = vadd.f32 %v8393, 0.5
        %v8410 = vadd.f32 %v8394, 0.5
        %v8411 = vadd.f32 %v8395, 0.5
        %v8412 = vadd.f32 %v8396, 0.5
        %v8413 = vadd.f32 %v8397, 0.5
        %v8414 = vld [vmem:[%s5 + $0x4] sm:$0x1]
        %v8415 = vlaneseq
        %v8416 = vshrl.u32 %v8415, 7
        %v8417 = vsub.s32 0, %v8416
        %v8418 = vrot.slane %v8414, %v8417
        %v8419 = vmul.f32 %v8398, %v8418
        %v8420 = vmul.f32 %v8399, %v8418
        %v8421 = vmul.f32 %v8400, %v8418
        %v8422 = vmul.f32 %v8401, %v8418
        %v8423 = vmul.f32 %v8402, %v8418
        %v8424 = vmul.f32 %v8403, %v8418
        %v8425 = vmul.f32 %v8404, %v8418
        %v8426 = vmul.f32 %v8405, %v8418
        %v8427 = vmul.f32 %v8406, %v8418
        %v8428 = vmul.f32 %v8407, %v8418
        %v8429 = vmul.f32 %v8408, %v8418
        %v8430 = vmul.f32 %v8409, %v8418
        %v8431 = vmul.f32 %v8410, %v8418
        %v8432 = vmul.f32 %v8411, %v8418
        %v8433 = vmul.f32 %v8412, %v8418
        %v8434 = vmul.f32 %v8413, %v8418
        %v8435 = vadd.f32 %v8334, %v8419
        %v8436 = vadd.f32 %v8335, %v8420
        %v8437 = vadd.f32 %v8336, %v8421
        %v8438 = vadd.f32 %v8337, %v8422
        %v8439 = vadd.f32 %v8338, %v8423
        %v8440 = vadd.f32 %v8339, %v8424
        %v8441 = vadd.f32 %v8340, %v8425
        %v8442 = vadd.f32 %v8341, %v8426
        %v8443 = vadd.f32 %v8342, %v8427
        %v8444 = vadd.f32 %v8343, %v8428
        %v8445 = vadd.f32 %v8344, %v8429
        %v8446 = vadd.f32 %v8345, %v8430
        %v8447 = vadd.f32 %v8346, %v8431
        %v8448 = vadd.f32 %v8347, %v8432
        %v8449 = vadd.f32 %v8348, %v8433
        %v8450 = vadd.f32 %v8349, %v8434
        %v8451 = vmul.f32 %v7904, 0.5
        %v8452 = vmul.f32 %v7905, 0.5
        %v8453 = vmul.f32 %v7906, 0.5
        %v8454 = vmul.f32 %v7907, 0.5
        %v8455 = vmul.f32 %v7908, 0.5
        %v8456 = vmul.f32 %v7909, 0.5
        %v8457 = vmul.f32 %v7910, 0.5
        %v8458 = vmul.f32 %v7911, 0.5
        %v8459 = vmul.f32 %v7912, 0.5
        %v8460 = vmul.f32 %v7913, 0.5
        %v8461 = vmul.f32 %v7914, 0.5
        %v8462 = vmul.f32 %v7915, 0.5
        %v8463 = vmul.f32 %v7916, 0.5
        %v8464 = vmul.f32 %v7917, 0.5
        %v8465 = vmul.f32 %v7918, 0.5
        %v8466 = vmul.f32 %v7919, 0.5
        %v8467 = vtanh.pop %v8451
        %v8468 = vtanh.pop %v8452
        %v8469 = vtanh.pop %v8453
        %v8470 = vtanh.pop %v8454
        %v8471 = vtanh.pop %v8455
        %v8472 = vtanh.pop %v8456
        %v8473 = vtanh.pop %v8457
        %v8474 = vtanh.pop %v8458
        %v8475 = vtanh.pop %v8459
        %v8476 = vtanh.pop %v8460
        %v8477 = vtanh.pop %v8461
        %v8478 = vtanh.pop %v8462
        %v8479 = vtanh.pop %v8463
        %v8480 = vtanh.pop %v8464
        %v8481 = vtanh.pop %v8465
        %v8482 = vtanh.pop %v8466
        %v8483 = vmul.f32 %v8467, 0.5
        %v8484 = vmul.f32 %v8468, 0.5
        %v8485 = vmul.f32 %v8469, 0.5
        %v8486 = vmul.f32 %v8470, 0.5
        %v8487 = vmul.f32 %v8471, 0.5
        %v8488 = vmul.f32 %v8472, 0.5
        %v8489 = vmul.f32 %v8473, 0.5
        %v8490 = vmul.f32 %v8474, 0.5
        %v8491 = vmul.f32 %v8475, 0.5
        %v8492 = vmul.f32 %v8476, 0.5
        %v8493 = vmul.f32 %v8477, 0.5
        %v8494 = vmul.f32 %v8478, 0.5
        %v8495 = vmul.f32 %v8479, 0.5
        %v8496 = vmul.f32 %v8480, 0.5
        %v8497 = vmul.f32 %v8481, 0.5
        %v8498 = vmul.f32 %v8482, 0.5
        %v8499 = vadd.f32 %v8483, 0.5
        %v8500 = vadd.f32 %v8484, 0.5
        %v8501 = vadd.f32 %v8485, 0.5
        %v8502 = vadd.f32 %v8486, 0.5
        %v8503 = vadd.f32 %v8487, 0.5
        %v8504 = vadd.f32 %v8488, 0.5
        %v8505 = vadd.f32 %v8489, 0.5
        %v8506 = vadd.f32 %v8490, 0.5
        %v8507 = vadd.f32 %v8491, 0.5
        %v8508 = vadd.f32 %v8492, 0.5
        %v8509 = vadd.f32 %v8493, 0.5
        %v8510 = vadd.f32 %v8494, 0.5
        %v8511 = vadd.f32 %v8495, 0.5
        %v8512 = vadd.f32 %v8496, 0.5
        %v8513 = vadd.f32 %v8497, 0.5
        %v8514 = vadd.f32 %v8498, 0.5
        %v8515 = vld [vmem:[%s5 + $0x5] sm:$0x1]
        %v8516 = vlaneseq
        %v8517 = vshrl.u32 %v8516, 7
        %v8518 = vsub.s32 0, %v8517
        %v8519 = vrot.slane %v8515, %v8518
        %v8520 = vmul.f32 %v8499, %v8519
        %v8521 = vmul.f32 %v8500, %v8519
        %v8522 = vmul.f32 %v8501, %v8519
        %v8523 = vmul.f32 %v8502, %v8519
        %v8524 = vmul.f32 %v8503, %v8519
        %v8525 = vmul.f32 %v8504, %v8519
        %v8526 = vmul.f32 %v8505, %v8519
        %v8527 = vmul.f32 %v8506, %v8519
        %v8528 = vmul.f32 %v8507, %v8519
        %v8529 = vmul.f32 %v8508, %v8519
        %v8530 = vmul.f32 %v8509, %v8519
        %v8531 = vmul.f32 %v8510, %v8519
        %v8532 = vmul.f32 %v8511, %v8519
        %v8533 = vmul.f32 %v8512, %v8519
        %v8534 = vmul.f32 %v8513, %v8519
        %v8535 = vmul.f32 %v8514, %v8519
        %v8536 = vadd.f32 %v8435, %v8520
        %v8537 = vadd.f32 %v8436, %v8521
        %v8538 = vadd.f32 %v8437, %v8522
        %v8539 = vadd.f32 %v8438, %v8523
        %v8540 = vadd.f32 %v8439, %v8524
        %v8541 = vadd.f32 %v8440, %v8525
        %v8542 = vadd.f32 %v8441, %v8526
        %v8543 = vadd.f32 %v8442, %v8527
        %v8544 = vadd.f32 %v8443, %v8528
        %v8545 = vadd.f32 %v8444, %v8529
        %v8546 = vadd.f32 %v8445, %v8530
        %v8547 = vadd.f32 %v8446, %v8531
        %v8548 = vadd.f32 %v8447, %v8532
        %v8549 = vadd.f32 %v8448, %v8533
        %v8550 = vadd.f32 %v8449, %v8534
        %v8551 = vadd.f32 %v8450, %v8535
        %v8552 = vmul.f32 %v7925, 0.5
        %v8553 = vmul.f32 %v7926, 0.5
        %v8554 = vmul.f32 %v7927, 0.5
        %v8555 = vmul.f32 %v7928, 0.5
        %v8556 = vmul.f32 %v7929, 0.5
        %v8557 = vmul.f32 %v7930, 0.5
        %v8558 = vmul.f32 %v7931, 0.5
        %v8559 = vmul.f32 %v7932, 0.5
        %v8560 = vmul.f32 %v7933, 0.5
        %v8561 = vmul.f32 %v7934, 0.5
        %v8562 = vmul.f32 %v7935, 0.5
        %v8563 = vmul.f32 %v7936, 0.5
        %v8564 = vmul.f32 %v7937, 0.5
        %v8565 = vmul.f32 %v7938, 0.5
        %v8566 = vmul.f32 %v7939, 0.5
        %v8567 = vmul.f32 %v7940, 0.5
        %v8568 = vtanh.pop %v8552
        %v8569 = vtanh.pop %v8553
        %v8570 = vtanh.pop %v8554
        %v8571 = vtanh.pop %v8555
        %v8572 = vtanh.pop %v8556
        %v8573 = vtanh.pop %v8557
        %v8574 = vtanh.pop %v8558
        %v8575 = vtanh.pop %v8559
        %v8576 = vtanh.pop %v8560
        %v8577 = vtanh.pop %v8561
        %v8578 = vtanh.pop %v8562
        %v8579 = vtanh.pop %v8563
        %v8580 = vtanh.pop %v8564
        %v8581 = vtanh.pop %v8565
        %v8582 = vtanh.pop %v8566
        %v8583 = vtanh.pop %v8567
        %v8584 = vmul.f32 %v8568, 0.5
        %v8585 = vmul.f32 %v8569, 0.5
        %v8586 = vmul.f32 %v8570, 0.5
        %v8587 = vmul.f32 %v8571, 0.5
        %v8588 = vmul.f32 %v8572, 0.5
        %v8589 = vmul.f32 %v8573, 0.5
        %v8590 = vmul.f32 %v8574, 0.5
        %v8591 = vmul.f32 %v8575, 0.5
        %v8592 = vmul.f32 %v8576, 0.5
        %v8593 = vmul.f32 %v8577, 0.5
        %v8594 = vmul.f32 %v8578, 0.5
        %v8595 = vmul.f32 %v8579, 0.5
        %v8596 = vmul.f32 %v8580, 0.5
        %v8597 = vmul.f32 %v8581, 0.5
        %v8598 = vmul.f32 %v8582, 0.5
        %v8599 = vmul.f32 %v8583, 0.5
        %v8600 = vadd.f32 %v8584, 0.5
        %v8601 = vadd.f32 %v8585, 0.5
        %v8602 = vadd.f32 %v8586, 0.5
        %v8603 = vadd.f32 %v8587, 0.5
        %v8604 = vadd.f32 %v8588, 0.5
        %v8605 = vadd.f32 %v8589, 0.5
        %v8606 = vadd.f32 %v8590, 0.5
        %v8607 = vadd.f32 %v8591, 0.5
        %v8608 = vadd.f32 %v8592, 0.5
        %v8609 = vadd.f32 %v8593, 0.5
        %v8610 = vadd.f32 %v8594, 0.5
        %v8611 = vadd.f32 %v8595, 0.5
        %v8612 = vadd.f32 %v8596, 0.5
        %v8613 = vadd.f32 %v8597, 0.5
        %v8614 = vadd.f32 %v8598, 0.5
        %v8615 = vadd.f32 %v8599, 0.5
        %v8616 = vld [vmem:[%s5 + $0x6] sm:$0x1]
        %v8617 = vlaneseq
        %v8618 = vshrl.u32 %v8617, 7
        %v8619 = vsub.s32 0, %v8618
        %v8620 = vrot.slane %v8616, %v8619
        %v8621 = vmul.f32 %v8600, %v8620
        %v8622 = vmul.f32 %v8601, %v8620
        %v8623 = vmul.f32 %v8602, %v8620
        %v8624 = vmul.f32 %v8603, %v8620
        %v8625 = vmul.f32 %v8604, %v8620
        %v8626 = vmul.f32 %v8605, %v8620
        %v8627 = vmul.f32 %v8606, %v8620
        %v8628 = vmul.f32 %v8607, %v8620
        %v8629 = vmul.f32 %v8608, %v8620
        %v8630 = vmul.f32 %v8609, %v8620
        %v8631 = vmul.f32 %v8610, %v8620
        %v8632 = vmul.f32 %v8611, %v8620
        %v8633 = vmul.f32 %v8612, %v8620
        %v8634 = vmul.f32 %v8613, %v8620
        %v8635 = vmul.f32 %v8614, %v8620
        %v8636 = vmul.f32 %v8615, %v8620
        %v8637 = vadd.f32 %v8536, %v8621
        %v8638 = vadd.f32 %v8537, %v8622
        %v8639 = vadd.f32 %v8538, %v8623
        %v8640 = vadd.f32 %v8539, %v8624
        %v8641 = vadd.f32 %v8540, %v8625
        %v8642 = vadd.f32 %v8541, %v8626
        %v8643 = vadd.f32 %v8542, %v8627
        %v8644 = vadd.f32 %v8543, %v8628
        %v8645 = vadd.f32 %v8544, %v8629
        %v8646 = vadd.f32 %v8545, %v8630
        %v8647 = vadd.f32 %v8546, %v8631
        %v8648 = vadd.f32 %v8547, %v8632
        %v8649 = vadd.f32 %v8548, %v8633
        %v8650 = vadd.f32 %v8549, %v8634
        %v8651 = vadd.f32 %v8550, %v8635
        %v8652 = vadd.f32 %v8551, %v8636
        %v8653 = vmul.f32 %v7946, 0.5
        %v8654 = vmul.f32 %v7947, 0.5
        %v8655 = vmul.f32 %v7948, 0.5
        %v8656 = vmul.f32 %v7949, 0.5
        %v8657 = vmul.f32 %v7950, 0.5
        %v8658 = vmul.f32 %v7951, 0.5
        %v8659 = vmul.f32 %v7952, 0.5
        %v8660 = vmul.f32 %v7953, 0.5
        %v8661 = vmul.f32 %v7954, 0.5
        %v8662 = vmul.f32 %v7955, 0.5
        %v8663 = vmul.f32 %v7956, 0.5
        %v8664 = vmul.f32 %v7957, 0.5
        %v8665 = vmul.f32 %v7958, 0.5
        %v8666 = vmul.f32 %v7959, 0.5
        %v8667 = vmul.f32 %v7960, 0.5
        %v8668 = vmul.f32 %v7961, 0.5
        %v8669 = vtanh.pop %v8653
        %v8670 = vtanh.pop %v8654
        %v8671 = vtanh.pop %v8655
        %v8672 = vtanh.pop %v8656
        %v8673 = vtanh.pop %v8657
        %v8674 = vtanh.pop %v8658
        %v8675 = vtanh.pop %v8659
        %v8676 = vtanh.pop %v8660
        %v8677 = vtanh.pop %v8661
        %v8678 = vtanh.pop %v8662
        %v8679 = vtanh.pop %v8663
        %v8680 = vtanh.pop %v8664
        %v8681 = vtanh.pop %v8665
        %v8682 = vtanh.pop %v8666
        %v8683 = vtanh.pop %v8667
        %v8684 = vtanh.pop %v8668
        %v8685 = vmul.f32 %v8669, 0.5
        %v8686 = vmul.f32 %v8670, 0.5
        %v8687 = vmul.f32 %v8671, 0.5
        %v8688 = vmul.f32 %v8672, 0.5
        %v8689 = vmul.f32 %v8673, 0.5
        %v8690 = vmul.f32 %v8674, 0.5
        %v8691 = vmul.f32 %v8675, 0.5
        %v8692 = vmul.f32 %v8676, 0.5
        %v8693 = vmul.f32 %v8677, 0.5
        %v8694 = vmul.f32 %v8678, 0.5
        %v8695 = vmul.f32 %v8679, 0.5
        %v8696 = vmul.f32 %v8680, 0.5
        %v8697 = vmul.f32 %v8681, 0.5
        %v8698 = vmul.f32 %v8682, 0.5
        %v8699 = vmul.f32 %v8683, 0.5
        %v8700 = vmul.f32 %v8684, 0.5
        %v8701 = vadd.f32 %v8685, 0.5
        %v8702 = vadd.f32 %v8686, 0.5
        %v8703 = vadd.f32 %v8687, 0.5
        %v8704 = vadd.f32 %v8688, 0.5
        %v8705 = vadd.f32 %v8689, 0.5
        %v8706 = vadd.f32 %v8690, 0.5
        %v8707 = vadd.f32 %v8691, 0.5
        %v8708 = vadd.f32 %v8692, 0.5
        %v8709 = vadd.f32 %v8693, 0.5
        %v8710 = vadd.f32 %v8694, 0.5
        %v8711 = vadd.f32 %v8695, 0.5
        %v8712 = vadd.f32 %v8696, 0.5
        %v8713 = vadd.f32 %v8697, 0.5
        %v8714 = vadd.f32 %v8698, 0.5
        %v8715 = vadd.f32 %v8699, 0.5
        %v8716 = vadd.f32 %v8700, 0.5
        %v8717 = vld [vmem:[%s5 + $0x7] sm:$0x1]
        %v8718 = vlaneseq
        %v8719 = vshrl.u32 %v8718, 7
        %v8720 = vsub.s32 0, %v8719
        %v8721 = vrot.slane %v8717, %v8720
        %v8722 = vmul.f32 %v8701, %v8721
        %v8723 = vmul.f32 %v8702, %v8721
        %v8724 = vmul.f32 %v8703, %v8721
        %v8725 = vmul.f32 %v8704, %v8721
        %v8726 = vmul.f32 %v8705, %v8721
        %v8727 = vmul.f32 %v8706, %v8721
        %v8728 = vmul.f32 %v8707, %v8721
        %v8729 = vmul.f32 %v8708, %v8721
        %v8730 = vmul.f32 %v8709, %v8721
        %v8731 = vmul.f32 %v8710, %v8721
        %v8732 = vmul.f32 %v8711, %v8721
        %v8733 = vmul.f32 %v8712, %v8721
        %v8734 = vmul.f32 %v8713, %v8721
        %v8735 = vmul.f32 %v8714, %v8721
        %v8736 = vmul.f32 %v8715, %v8721
        %v8737 = vmul.f32 %v8716, %v8721
        %v8738 = vadd.f32 %v8637, %v8722
        %v8739 = vadd.f32 %v8638, %v8723
        %v8740 = vadd.f32 %v8639, %v8724
        %v8741 = vadd.f32 %v8640, %v8725
        %v8742 = vadd.f32 %v8641, %v8726
        %v8743 = vadd.f32 %v8642, %v8727
        %v8744 = vadd.f32 %v8643, %v8728
        %v8745 = vadd.f32 %v8644, %v8729
        %v8746 = vadd.f32 %v8645, %v8730
        %v8747 = vadd.f32 %v8646, %v8731
        %v8748 = vadd.f32 %v8647, %v8732
        %v8749 = vadd.f32 %v8648, %v8733
        %v8750 = vadd.f32 %v8649, %v8734
        %v8751 = vadd.f32 %v8650, %v8735
        %v8752 = vadd.f32 %v8651, %v8736
        %v8753 = vadd.f32 %v8652, %v8737
        %v8754 = vld [vmem:[%s6] sm:$0x1]
        %v8756 = vlaneseq
        %v8757 = vshrl.u32 %v8756, 7
        %v8758 = vsub.s32 0, %v8757
        %v8759 = vrot.slane %v8754, %v8758
        %v8761 = vadd.f32 %v8738, %v8759
        %v8762 = vadd.f32 %v8739, %v8759
        %v8763 = vadd.f32 %v8740, %v8759
        %v8764 = vadd.f32 %v8741, %v8759
        %v8765 = vadd.f32 %v8742, %v8759
        %v8766 = vadd.f32 %v8743, %v8759
        %v8767 = vadd.f32 %v8744, %v8759
        %v8768 = vadd.f32 %v8745, %v8759
        %v8769 = vadd.f32 %v8746, %v8759
        %v8770 = vadd.f32 %v8747, %v8759
        %v8771 = vadd.f32 %v8748, %v8759
        %v8772 = vadd.f32 %v8749, %v8759
        %v8773 = vadd.f32 %v8750, %v8759
        %v8774 = vadd.f32 %v8751, %v8759
        %v8775 = vadd.f32 %v8752, %v8759
        %v8776 = vadd.f32 %v8753, %v8759
        %8777 = vst [vmem:[%s338] sm:$0xff] %v8761
        %8778 = vst [vmem:[%s338 + $0x8] sm:$0xff] %v8762
        %8779 = vst [vmem:[%s338 + $0x10] sm:$0xff] %v8763
        %8780 = vst [vmem:[%s338 + $0x18] sm:$0xff] %v8764
        %8781 = vst [vmem:[%s338 + $0x20] sm:$0xff] %v8765
        %8782 = vst [vmem:[%s338 + $0x28] sm:$0xff] %v8766
        %8783 = vst [vmem:[%s338 + $0x30] sm:$0xff] %v8767
        %8784 = vst [vmem:[%s338 + $0x38] sm:$0xff] %v8768
        %8785 = vst [vmem:[%s338 + $0x40] sm:$0xff] %v8769
        %8786 = vst [vmem:[%s338 + $0x48] sm:$0xff] %v8770
        %8787 = vst [vmem:[%s338 + $0x50] sm:$0xff] %v8771
        %8788 = vst [vmem:[%s338 + $0x58] sm:$0xff] %v8772
        %8789 = vst [vmem:[%s338 + $0x60] sm:$0xff] %v8773
        %8790 = vst [vmem:[%s338 + $0x68] sm:$0xff] %v8774
        %8791 = vst [vmem:[%s338 + $0x70] sm:$0xff] %v8775
        %8792 = vst [vmem:[%s338 + $0x78] sm:$0xff] %v8776
        %s8793 = sand.u32 %s186, 1
        %s8794 = scalar_lea.sflag [#allocation4], %s8793
        %s8795 = sand.u32 %s186, 1
        %s8796 = smul.addr %s8795, 128
        %s8797 = scalar_lea.vmem [#allocation10], %s8796
        // Predicated region
        $region65: #{tpu_custom_call.1} parent=47 // pred_check
          %p8798 = pneg %p196
        $region66: #{tpu_custom_call.1} parent=47 // pred_check_branch
          %8800 = sbr.rel (%p8798) target = $region68
        $region67: #{tpu_custom_call.1} parent=47 // pred_region
          %s8801 = smul.u32 16, %s26
          %s8803 = ssub.s32 2048, 2048
          %8804 = vsyncadd %s8794, %s8803
          %s8805 = smul.addr %s8801, 128
          %s8806 = scalar_lea.hbm %s7, %s8805
          %s8807 = sshll.u32 %s8797, 4
          %s8808 = int_to_ptr.vmem [resolvable:$true] %s8807
          %8813 = dma.vmem_to_hbm [thread:$0]  %s8808, 2048, %s8806, %s8794, 128, 128, 8
        $region68: #{tpu_custom_call.1} parent=47 // pred_fallthru
          _
      $region48: #{tpu_custom_call.1} parent=5 // pred_fallthru
        _
      %p8814 = scmp.le.s32.totalorder 2, %s21
      // Predicated region
      $region69: #{tpu_custom_call.1} parent=5 // pred_check
        %p8815 = pneg %p8814
      $region70: #{tpu_custom_call.1} parent=5 // pred_check_branch
        %8817 = sbr.rel (%p8815) target = $region72
      $region71: #{tpu_custom_call.1} parent=5 // pred_region
        %s8818 = ssub.s32 %s21, 2
        // Predicated region
        $region73: #{tpu_custom_call.1} parent=71 // pred_check
          %p8819 = pneg %p202
        $region74: #{tpu_custom_call.1} parent=71 // pred_check_branch
          %8821 = sbr.rel (%p8819) target = $region76
        $region75: #{tpu_custom_call.1} parent=71 // pred_region
          %s8822 = sand.u32 %s187, 1
          %s8823 = scalar_lea.sflag [#allocation4], %s8822
          %s8824 = sand.u32 %s187, 1
          %s8825 = smul.addr %s8824, 128
          %s8826 = scalar_lea.vmem [#allocation10], %s8825
          %8827 = dma.done %s8823, 2048
        $region76: #{tpu_custom_call.1} parent=71 // pred_fallthru
          _
      $region72: #{tpu_custom_call.1} parent=5 // pred_fallthru
        _
    $region6: #{tpu_custom_call.1} parent=1 // loop_footer
      %s25 = sadd.s32 1, %s21
    $region7: #{tpu_custom_call.1} parent=1 // loop_footer_branch
      %20 = sbr.rel target = $region3
    $region8: #{tpu_custom_call.1} parent=1 // loop_exit
      _
    %8828 = vsyncpa [#allocation3], 1
    %s8829 = scalar_lea.sflag [#allocation3], 1
    %8830 = vsyncpa %s8829, 1
    %8831 = vsyncpa [#allocation6], 1
    %8832 = vsyncpa [#allocation9], 1
    %8833 = vsyncpa [#allocation4], 1
    %s8834 = scalar_lea.sflag [#allocation4], 1
    %8835 = vsyncpa %s8834, 1

</llo_original>
